<compile_context>
chip_gen: v7x
topology: tpu7x:2x2x1
jax: 0.10.0
libtpu: 0.0.40
codegen_flags: <defaults>
</compile_context>

<pallas_src>
import functools

import jax
import jax.numpy as jnp
from jax.experimental import pallas as pl
from jax.experimental.pallas import tpu as pltpu

MXU_DTYPE = jnp.bfloat16          # MXU input dtype; accumulation stays f32.
_LANE = 128                       # lane width (N padding, TM granularity)
_TM_CAP = 2048                    # max M tile (review: v6e/v7x want >= 1024)
_PIPE_BUDGET = 12 * 1024 * 1024   # bytes for the double-buffered A/out tiles


def _round_up(x, m):
    return (x + m - 1) // m * m


# ----------------------------------------------------------------------------
# Pallas kernel: one M-tile of  out = relu?(A @ W + bias)
# ----------------------------------------------------------------------------
def _matmul_bias_relu_kernel(a_ref, w_ref, b_ref, o_ref, *, apply_relu):
    acc = jnp.dot(a_ref[...], w_ref[...], preferred_element_type=jnp.float32)
    acc = acc + b_ref[...]                 # (1, N_pad) broadcasts over the M tile
    if apply_relu:
        acc = jnp.maximum(acc, 0.0)
    o_ref[...] = acc.astype(o_ref.dtype)


def pallas_linear(a, w, bias2d, *, relu, out_dtype):
    """a: (M, K); w: (K, N_pad) bf16; bias2d: (1, N_pad) f32.

    Returns the full padded (M_pad, N_pad) result of relu?(a @ w + bias) in
    `out_dtype`; callers slice off padded rows / columns lazily (so the slice
    fuses into the consumer instead of forcing an extra HBM pass).
    """
    M, K = a.shape
    k_w, n_pad = w.shape
    assert K == k_w and n_pad % _LANE == 0

    in_b = jnp.dtype(MXU_DTYPE).itemsize
    out_b = jnp.dtype(out_dtype).itemsize

    # K-aware M tile under the pipeline-buffer budget (double-buffered A + out).
    per_row = 2 * K * in_b + 2 * n_pad * out_b
    tm = min(_TM_CAP, max(_LANE, (_PIPE_BUDGET // per_row) // _LANE * _LANE))
    if M >= 2 * _LANE:
        # Megacore-aware: at least two M blocks so both v7x cores get work.
        tm = min(tm, _round_up((M + 1) // 2, _LANE))
    else:
        tm = _LANE

    m_pad = _round_up(max(M, 1), tm)
    a = a.astype(MXU_DTYPE)
    if m_pad != M:
        a = jnp.pad(a, ((0, m_pad - M), (0, 0)))
    grid_m = m_pad // tm

    # Right-sized VMEM request (review: never ask for v7x's full 64 MiB).
    resident = K * n_pad * in_b + n_pad * 4
    vmem_bytes = int(min(32 * 1024 * 1024,
                         max(16 * 1024 * 1024,
                             tm * per_row + resident + 4 * 1024 * 1024)))

    cost = pl.CostEstimate(
        flops=2 * m_pad * K * n_pad,
        transcendentals=0,
        bytes_accessed=(m_pad * K * in_b + K * n_pad * in_b
                        + n_pad * 4 + m_pad * n_pad * out_b),
    )

    return pl.pallas_call(
        functools.partial(_matmul_bias_relu_kernel, apply_relu=relu),
        out_shape=jax.ShapeDtypeStruct((m_pad, n_pad), out_dtype),
        grid=(grid_m,),
        in_specs=[
            pl.BlockSpec((tm, K), lambda i: (i, 0)),      # A: tiled over M
            pl.BlockSpec((K, n_pad), lambda i: (0, 0)),   # W: resident (const idx)
            pl.BlockSpec((1, n_pad), lambda i: (0, 0)),   # bias: resident
        ],
        out_specs=pl.BlockSpec((tm, n_pad), lambda i: (i, 0)),
        compiler_params=pltpu.CompilerParams(
            dimension_semantics=("parallel",),            # megacore on v7x
            vmem_limit_bytes=vmem_bytes,
        ),
        cost_estimate=cost,
    )(a, w, bias2d)


# ----------------------------------------------------------------------------
# NHWC im2col (single concatenate, (kh, kw, Cin)-minor) + conv wrapper
# ----------------------------------------------------------------------------
def _im2col_nhwc(x, kh, kw, stride, cin):
    """x: (B, H, W, C_pad) -> (B*OH*OW, kh*kw*cin) patches, built in one pass."""
    B, H, W, _ = x.shape
    oh = (H - kh) // stride + 1
    ow = (W - kw) // stride + 1
    cols = []
    for i in range(kh):
        for j in range(kw):
            cols.append(x[:, i:i + (oh - 1) * stride + 1:stride,
                          j:j + (ow - 1) * stride + 1:stride, :cin])
    patches = jnp.concatenate(cols, axis=-1)          # (B, OH, OW, kh*kw*cin)
    return patches.reshape(B * oh * ow, kh * kw * cin), oh, ow


def conv2d_relu(x_nhwc, w_mat, bias2d, *, cin, kh, kw, stride,
                out_dtype=MXU_DTYPE):
    """NHWC conv + bias + ReLU as one Pallas GEMM.

    Returns (B, OH, OW, N_pad) in `out_dtype`; only the first Cout channels are
    valid (the next layer slices them inside its own im2col, channel padding is
    zero-valued anyway).
    """
    B = x_nhwc.shape[0]
    patches, oh, ow = _im2col_nhwc(x_nhwc.astype(MXU_DTYPE), kh, kw, stride, cin)
    y = pallas_linear(patches, w_mat, bias2d, relu=True, out_dtype=out_dtype)
    n_pad = w_mat.shape[1]
    return y[:B * oh * ow].reshape(B, oh, ow, n_pad)


# ----------------------------------------------------------------------------
# Parameters: random init in PyTorch layout, then one-time prep to kernel layout
# ----------------------------------------------------------------------------
def init_convnet_params_torch(key, in_channels, feature_dim):
    """Random params in PyTorch layout (Conv2d: (O,I,KH,KW); Linear: (O,I))."""
    ks = jax.random.split(key, 8)

    def u(k, shape, fan_in):
        bound = 1.0 / jnp.sqrt(jnp.float32(fan_in))
        return jax.random.uniform(k, shape, jnp.float32, -bound, bound)

    p = {}
    p["conv1_w"] = u(ks[0], (32, in_channels, 8, 8), in_channels * 8 * 8)
    p["conv1_b"] = u(ks[1], (32,), in_channels * 8 * 8)
    p["conv2_w"] = u(ks[2], (64, 32, 4, 4), 32 * 4 * 4)
    p["conv2_b"] = u(ks[3], (64,), 32 * 4 * 4)
    p["conv3_w"] = u(ks[4], (64, 64, 3, 3), 64 * 3 * 3)
    p["conv3_b"] = u(ks[5], (64,), 64 * 3 * 3)
    p["fc1_w"] = u(ks[6], (feature_dim, 64 * 7 * 7), 64 * 7 * 7)
    p["fc1_b"] = u(ks[7], (feature_dim,), 64 * 7 * 7)
    return p


def _prep_matmul_weight(w_mat, b_vec):
    """Zero-pad N to a multiple of 128; weight -> bf16, bias -> (1, N_pad) f32."""
    _, n = w_mat.shape
    n_pad = _round_up(n, _LANE)
    if n_pad != n:
        w_mat = jnp.pad(w_mat, ((0, 0), (0, n_pad - n)))
        b_vec = jnp.pad(b_vec, (0, n_pad - n))
    return w_mat.astype(MXU_DTYPE), b_vec.reshape(1, n_pad).astype(jnp.float32)


def prep_params(p_torch, feature_dim):
    """One-time layout conversion: NHWC im2col GEMM weights, 128-padded N."""
    q = {}
    for name in ("conv1", "conv2", "conv3"):
        w = p_torch[name + "_w"]                                # (O, I, KH, KW)
        o, i, kh, kw = w.shape
        w = w.transpose(2, 3, 1, 0).reshape(kh * kw * i, o)     # (kh,kw,Cin) minor
        q[name + "_w"], q[name + "_b"] = _prep_matmul_weight(w, p_torch[name + "_b"])
    # fc1: PyTorch flattens NCHW as (C,H,W); our flatten is NHWC (H,W,C) ->
    # permute the weight's input rows once so results match exactly.
    w = p_torch["fc1_w"]                                        # (F, 64*7*7)
    w = w.reshape(feature_dim, 64, 7, 7).transpose(2, 3, 1, 0)  # (H, W, C, F)
    w = w.reshape(64 * 7 * 7, feature_dim)
    q["fc1_w"], q["fc1_b"] = _prep_matmul_weight(w, p_torch["fc1_b"])
    return q


# ----------------------------------------------------------------------------
# Forward pass (matches ConvNet.forward: conv stack -> flatten -> fc -> ReLU)
# ----------------------------------------------------------------------------
def convnet_forward(params, x_nchw, *, feature_dim):
    """x: (B, in_channels, 84, 84) f32 -> (B, feature_dim) f32."""
    x = jnp.transpose(x_nchw.astype(MXU_DTYPE), (0, 2, 3, 1))   # one NCHW->NHWC
    cin = x.shape[-1]
    x = conv2d_relu(x, params["conv1_w"], params["conv1_b"],
                    cin=cin, kh=8, kw=8, stride=4)
    x = conv2d_relu(x, params["conv2_w"], params["conv2_b"],
                    cin=32, kh=4, kw=4, stride=2)
    x = conv2d_relu(x, params["conv3_w"], params["conv3_b"],
                    cin=64, kh=3, kw=3, stride=1)
    B = x.shape[0]
    feats = x[..., :64].reshape(B, -1)       # NHWC flatten; fc rows pre-permuted
    out = pallas_linear(feats, params["fc1_w"], params["fc1_b"],
                        relu=True, out_dtype=jnp.float32)
    return out[:B, :feature_dim]


# ----------------------------------------------------------------------------
# Pure-JAX reference with matching bf16 rounding (validates layout plumbing)
# ----------------------------------------------------------------------------
def convnet_reference(p_torch, x_nchw):
    def q(a):
        return a.astype(jnp.bfloat16).astype(jnp.float32)

    def conv(x, w, b, stride):
        y = jax.lax.conv_general_dilated(
            q(x), q(w), (stride, stride), "VALID",
            dimension_numbers=("NCHW", "OIHW", "NCHW"))
        y = jax.nn.relu(y + b[None, :, None, None])
        return y.astype(jnp.bfloat16).astype(jnp.float32)

    x = conv(x_nchw, p_torch["conv1_w"], p_torch["conv1_b"], 4)
    x = conv(x, p_torch["conv2_w"], p_torch["conv2_b"], 2)
    x = conv(x, p_torch["conv3_w"], p_torch["conv3_b"], 1)
    f = x.reshape(x.shape[0], -1)
    return jax.nn.relu(q(f) @ q(p_torch["fc1_w"]).T + p_torch["fc1_b"])


if __name__ == "__main__":
    # The module hard-codes a 64*7*7 flatten -> input spatial must be 84x84.
    batch, in_channels, feature_dim = 2, 3, 512

    key = jax.random.PRNGKey(0)
    pkey, xkey = jax.random.split(key)
    torch_layout = init_convnet_params_torch(pkey, in_channels, feature_dim)
    params = prep_params(torch_layout, feature_dim)
    x = jax.random.normal(xkey, (batch, in_channels, 84, 84), jnp.float32)

    fwd = jax.jit(functools.partial(convnet_forward, feature_dim=feature_dim))
    out = jax.block_until_ready(fwd(params, x))
    assert out.shape == (batch, feature_dim) and out.dtype == jnp.float32

    ref = convnet_reference(torch_layout, x)
    assert bool(jnp.allclose(out, ref, rtol=1e-2, atol=1e-2))
    print("KERNEL_OK")
</pallas_src>

<mosaic_0001>
module attributes {stable_mosaic.version = 11 : i64} {
  func.func @_matmul_bias_relu_kernel(%arg0: i32, %arg1: memref<512x192xbf16, #tpu.memory_space<vmem>>, %arg2: memref<192x128xbf16, #tpu.memory_space<vmem>>, %arg3: memref<1x128xf32, #tpu.memory_space<vmem>>, %arg4: memref<512x128xbf16, #tpu.memory_space<vmem>>) attributes {dimension_semantics = [#tpu.dimension_semantics<parallel>], iteration_bounds = array<i64: 2>, scalar_prefetch = 0 : i64, scratch_operands = 0 : i64, tpu.core_type = #tpu.core_type<tc>, window_params = [{transform_indices = @transform_0, window_bounds = array<i64: 512, 192>}, {pipeline_mode = #tpu.pipeline_mode<synchronous>, transform_indices = @transform_1, window_bounds = array<i64: 192, 128>}, {pipeline_mode = #tpu.pipeline_mode<synchronous>, transform_indices = @transform_2, window_bounds = array<i64: 1, 128>}, {transform_indices = @transform_3, window_bounds = array<i64: 512, 128>}]} {
    %c0 = arith.constant 0 : index
    %c0_0 = arith.constant 0 : index
    %0 = vector.load %arg1[%c0, %c0_0] : memref<512x192xbf16, #tpu.memory_space<vmem>>, vector<512x192xbf16>
    %c0_1 = arith.constant 0 : index
    %c0_2 = arith.constant 0 : index
    %1 = vector.load %arg2[%c0_1, %c0_2] : memref<192x128xbf16, #tpu.memory_space<vmem>>, vector<192x128xbf16>
    %cst = arith.constant dense<0.000000e+00> : vector<512x128xf32>
    %2 = tpu.matmul %0, %1, %cst {dimension_numbers = #tpu.dot_dimension_numbers<[1], [0], [0], [1], [0, 0, 1, 1], [], []>} : vector<512x192xbf16>, vector<192x128xbf16>, vector<512x128xf32> -> vector<512x128xf32>
    %c0_3 = arith.constant 0 : index
    %c0_4 = arith.constant 0 : index
    %3 = vector.load %arg3[%c0_3, %c0_4] : memref<1x128xf32, #tpu.memory_space<vmem>>, vector<1x128xf32>
    %4 = vector.broadcast %3 : vector<1x128xf32> to vector<512x128xf32>
    %5 = arith.addf %2, %4 : vector<512x128xf32>
    %cst_5 = arith.constant 0.000000e+00 : f32
    %6 = vector.broadcast %cst_5 : f32 to vector<512x128xf32>
    %7 = arith.maximumf %5, %6 : vector<512x128xf32>
    %8 = arith.truncf %7 : vector<512x128xf32> to vector<512x128xbf16>
    %c0_6 = arith.constant 0 : index
    %c0_7 = arith.constant 0 : index
    %9 = vector.load %arg4[%c0_6, %c0_7] : memref<512x128xbf16, #tpu.memory_space<vmem>>, vector<512x128xbf16>
    tpu.vector_store %arg4[%c0_6, %c0_7], %8 {strides = array<i32>} : memref<512x128xbf16, #tpu.memory_space<vmem>>, vector<512x128xbf16>,
    return
  }
  func.func @transform_0(%arg0: i32) -> (i32, i32) {
    %c0_i32 = arith.constant 0 : i32
    %c0_i32_0 = arith.constant 0 : i32
    return %arg0, %c0_i32 : i32, i32
  }
  func.func @transform_1(%arg0: i32) -> (i32, i32) {
    %c0_i32 = arith.constant 0 : i32
    %c0_i32_0 = arith.constant 0 : i32
    %c0_i32_1 = arith.constant 0 : i32
    return %c0_i32, %c0_i32_0 : i32, i32
  }
  func.func @transform_2(%arg0: i32) -> (i32, i32) {
    %c0_i32 = arith.constant 0 : i32
    %c0_i32_0 = arith.constant 0 : i32
    %c0_i32_1 = arith.constant 0 : i32
    return %c0_i32, %c0_i32_0 : i32, i32
  }
  func.func @transform_3(%arg0: i32) -> (i32, i32) {
    %c0_i32 = arith.constant 0 : i32
    %c0_i32_0 = arith.constant 0 : i32
    return %arg0, %c0_i32 : i32, i32
  }
}

module attributes {stable_mosaic.version = 11 : i64} {
  func.func @_matmul_bias_relu_kernel(%arg0: i32, %arg1: memref<128x512xbf16, #tpu.memory_space<vmem>>, %arg2: memref<512x128xbf16, #tpu.memory_space<vmem>>, %arg3: memref<1x128xf32, #tpu.memory_space<vmem>>, %arg4: memref<128x128xbf16, #tpu.memory_space<vmem>>) attributes {dimension_semantics = [#tpu.dimension_semantics<parallel>], iteration_bounds = array<i64: 2>, scalar_prefetch = 0 : i64, scratch_operands = 0 : i64, tpu.core_type = #tpu.core_type<tc>, window_params = [{transform_indices = @transform_0, window_bounds = array<i64: 128, 512>}, {pipeline_mode = #tpu.pipeline_mode<synchronous>, transform_indices = @transform_1, window_bounds = array<i64: 512, 128>}, {pipeline_mode = #tpu.pipeline_mode<synchronous>, transform_indices = @transform_2, window_bounds = array<i64: 1, 128>}, {transform_indices = @transform_3, window_bounds = array<i64: 128, 128>}]} {
    %c0 = arith.constant 0 : index
    %c0_0 = arith.constant 0 : index
    %0 = vector.load %arg1[%c0, %c0_0] : memref<128x512xbf16, #tpu.memory_space<vmem>>, vector<128x512xbf16>
    %c0_1 = arith.constant 0 : index
    %c0_2 = arith.constant 0 : index
    %1 = vector.load %arg2[%c0_1, %c0_2] : memref<512x128xbf16, #tpu.memory_space<vmem>>, vector<512x128xbf16>
    %cst = arith.constant dense<0.000000e+00> : vector<128x128xf32>
    %2 = tpu.matmul %0, %1, %cst {dimension_numbers = #tpu.dot_dimension_numbers<[1], [0], [0], [1], [0, 0, 1, 1], [], []>} : vector<128x512xbf16>, vector<512x128xbf16>, vector<128x128xf32> -> vector<128x128xf32>
    %c0_3 = arith.constant 0 : index
    %c0_4 = arith.constant 0 : index
    %3 = vector.load %arg3[%c0_3, %c0_4] : memref<1x128xf32, #tpu.memory_space<vmem>>, vector<1x128xf32>
    %4 = vector.broadcast %3 : vector<1x128xf32> to vector<128x128xf32>
    %5 = arith.addf %2, %4 : vector<128x128xf32>
    %cst_5 = arith.constant 0.000000e+00 : f32
    %6 = vector.broadcast %cst_5 : f32 to vector<128x128xf32>
    %7 = arith.maximumf %5, %6 : vector<128x128xf32>
    %8 = arith.truncf %7 : vector<128x128xf32> to vector<128x128xbf16>
    %c0_6 = arith.constant 0 : index
    %c0_7 = arith.constant 0 : index
    %9 = vector.load %arg4[%c0_6, %c0_7] : memref<128x128xbf16, #tpu.memory_space<vmem>>, vector<128x128xbf16>
    tpu.vector_store %arg4[%c0_6, %c0_7], %8 {strides = array<i32>} : memref<128x128xbf16, #tpu.memory_space<vmem>>, vector<128x128xbf16>,
    return
  }
  func.func @transform_0(%arg0: i32) -> (i32, i32) {
    %c0_i32 = arith.constant 0 : i32
    %c0_i32_0 = arith.constant 0 : i32
    return %arg0, %c0_i32 : i32, i32
  }
  func.func @transform_1(%arg0: i32) -> (i32, i32) {
    %c0_i32 = arith.constant 0 : i32
    %c0_i32_0 = arith.constant 0 : i32
    %c0_i32_1 = arith.constant 0 : i32
    return %c0_i32, %c0_i32_0 : i32, i32
  }
  func.func @transform_2(%arg0: i32) -> (i32, i32) {
    %c0_i32 = arith.constant 0 : i32
    %c0_i32_0 = arith.constant 0 : i32
    %c0_i32_1 = arith.constant 0 : i32
    return %c0_i32, %c0_i32_0 : i32, i32
  }
  func.func @transform_3(%arg0: i32) -> (i32, i32) {
    %c0_i32 = arith.constant 0 : i32
    %c0_i32_0 = arith.constant 0 : i32
    return %arg0, %c0_i32 : i32, i32
  }
}

module attributes {stable_mosaic.version = 11 : i64} {
  func.func @_matmul_bias_relu_kernel(%arg0: i32, %arg1: memref<128x576xbf16, #tpu.memory_space<vmem>>, %arg2: memref<576x128xbf16, #tpu.memory_space<vmem>>, %arg3: memref<1x128xf32, #tpu.memory_space<vmem>>, %arg4: memref<128x128xbf16, #tpu.memory_space<vmem>>) attributes {dimension_semantics = [#tpu.dimension_semantics<parallel>], iteration_bounds = array<i64: 1>, scalar_prefetch = 0 : i64, scratch_operands = 0 : i64, tpu.core_type = #tpu.core_type<tc>, window_params = [{transform_indices = @transform_0, window_bounds = array<i64: 128, 576>}, {pipeline_mode = #tpu.pipeline_mode<synchronous>, transform_indices = @transform_1, window_bounds = array<i64: 576, 128>}, {pipeline_mode = #tpu.pipeline_mode<synchronous>, transform_indices = @transform_2, window_bounds = array<i64: 1, 128>}, {transform_indices = @transform_3, window_bounds = array<i64: 128, 128>}]} {
    %c0 = arith.constant 0 : index
    %c0_0 = arith.constant 0 : index
    %0 = vector.load %arg1[%c0, %c0_0] : memref<128x576xbf16, #tpu.memory_space<vmem>>, vector<128x576xbf16>
    %c0_1 = arith.constant 0 : index
    %c0_2 = arith.constant 0 : index
    %1 = vector.load %arg2[%c0_1, %c0_2] : memref<576x128xbf16, #tpu.memory_space<vmem>>, vector<576x128xbf16>
    %cst = arith.constant dense<0.000000e+00> : vector<128x128xf32>
    %2 = tpu.matmul %0, %1, %cst {dimension_numbers = #tpu.dot_dimension_numbers<[1], [0], [0], [1], [0, 0, 1, 1], [], []>} : vector<128x576xbf16>, vector<576x128xbf16>, vector<128x128xf32> -> vector<128x128xf32>
    %c0_3 = arith.constant 0 : index
    %c0_4 = arith.constant 0 : index
    %3 = vector.load %arg3[%c0_3, %c0_4] : memref<1x128xf32, #tpu.memory_space<vmem>>, vector<1x128xf32>
    %4 = vector.broadcast %3 : vector<1x128xf32> to vector<128x128xf32>
    %5 = arith.addf %2, %4 : vector<128x128xf32>
    %cst_5 = arith.constant 0.000000e+00 : f32
    %6 = vector.broadcast %cst_5 : f32 to vector<128x128xf32>
    %7 = arith.maximumf %5, %6 : vector<128x128xf32>
    %8 = arith.truncf %7 : vector<128x128xf32> to vector<128x128xbf16>
    %c0_6 = arith.constant 0 : index
    %c0_7 = arith.constant 0 : index
    %9 = vector.load %arg4[%c0_6, %c0_7] : memref<128x128xbf16, #tpu.memory_space<vmem>>, vector<128x128xbf16>
    tpu.vector_store %arg4[%c0_6, %c0_7], %8 {strides = array<i32>} : memref<128x128xbf16, #tpu.memory_space<vmem>>, vector<128x128xbf16>,
    return
  }
  func.func @transform_0(%arg0: i32) -> (i32, i32) {
    %c0_i32 = arith.constant 0 : i32
    %c0_i32_0 = arith.constant 0 : i32
    return %arg0, %c0_i32 : i32, i32
  }
  func.func @transform_1(%arg0: i32) -> (i32, i32) {
    %c0_i32 = arith.constant 0 : i32
    %c0_i32_0 = arith.constant 0 : i32
    %c0_i32_1 = arith.constant 0 : i32
    return %c0_i32, %c0_i32_0 : i32, i32
  }
  func.func @transform_2(%arg0: i32) -> (i32, i32) {
    %c0_i32 = arith.constant 0 : i32
    %c0_i32_0 = arith.constant 0 : i32
    %c0_i32_1 = arith.constant 0 : i32
    return %c0_i32, %c0_i32_0 : i32, i32
  }
  func.func @transform_3(%arg0: i32) -> (i32, i32) {
    %c0_i32 = arith.constant 0 : i32
    %c0_i32_0 = arith.constant 0 : i32
    return %arg0, %c0_i32 : i32, i32
  }
}

module attributes {stable_mosaic.version = 11 : i64} {
  func.func @_matmul_bias_relu_kernel(%arg0: i32, %arg1: memref<128x3136xbf16, #tpu.memory_space<vmem>>, %arg2: memref<3136x512xbf16, #tpu.memory_space<vmem>>, %arg3: memref<1x512xf32, #tpu.memory_space<vmem>>, %arg4: memref<128x512xf32, #tpu.memory_space<vmem>>) attributes {dimension_semantics = [#tpu.dimension_semantics<parallel>], iteration_bounds = array<i64: 1>, scalar_prefetch = 0 : i64, scratch_operands = 0 : i64, tpu.core_type = #tpu.core_type<tc>, window_params = [{transform_indices = @transform_0, window_bounds = array<i64: 128, 3136>}, {pipeline_mode = #tpu.pipeline_mode<synchronous>, transform_indices = @transform_1, window_bounds = array<i64: 3136, 512>}, {pipeline_mode = #tpu.pipeline_mode<synchronous>, transform_indices = @transform_2, window_bounds = array<i64: 1, 512>}, {transform_indices = @transform_3, window_bounds = array<i64: 128, 512>}]} {
    %c0 = arith.constant 0 : index
    %c0_0 = arith.constant 0 : index
    %0 = vector.load %arg1[%c0, %c0_0] : memref<128x3136xbf16, #tpu.memory_space<vmem>>, vector<128x3136xbf16>
    %c0_1 = arith.constant 0 : index
    %c0_2 = arith.constant 0 : index
    %1 = vector.load %arg2[%c0_1, %c0_2] : memref<3136x512xbf16, #tpu.memory_space<vmem>>, vector<3136x512xbf16>
    %cst = arith.constant dense<0.000000e+00> : vector<128x512xf32>
    %2 = tpu.matmul %0, %1, %cst {dimension_numbers = #tpu.dot_dimension_numbers<[1], [0], [0], [1], [0, 0, 1, 1], [], []>} : vector<128x3136xbf16>, vector<3136x512xbf16>, vector<128x512xf32> -> vector<128x512xf32>
    %c0_3 = arith.constant 0 : index
    %c0_4 = arith.constant 0 : index
    %3 = vector.load %arg3[%c0_3, %c0_4] : memref<1x512xf32, #tpu.memory_space<vmem>>, vector<1x512xf32>
    %4 = vector.broadcast %3 : vector<1x512xf32> to vector<128x512xf32>
    %5 = arith.addf %2, %4 : vector<128x512xf32>
    %cst_5 = arith.constant 0.000000e+00 : f32
    %6 = vector.broadcast %cst_5 : f32 to vector<128x512xf32>
    %7 = arith.maximumf %5, %6 : vector<128x512xf32>
    %c0_6 = arith.constant 0 : index
    %c0_7 = arith.constant 0 : index
    %8 = vector.load %arg4[%c0_6, %c0_7] : memref<128x512xf32, #tpu.memory_space<vmem>>, vector<128x512xf32>
    tpu.vector_store %arg4[%c0_6, %c0_7], %7 {strides = array<i32>} : memref<128x512xf32, #tpu.memory_space<vmem>>, vector<128x512xf32>,
    return
  }
  func.func @transform_0(%arg0: i32) -> (i32, i32) {
    %c0_i32 = arith.constant 0 : i32
    %c0_i32_0 = arith.constant 0 : i32
    return %arg0, %c0_i32 : i32, i32
  }
  func.func @transform_1(%arg0: i32) -> (i32, i32) {
    %c0_i32 = arith.constant 0 : i32
    %c0_i32_0 = arith.constant 0 : i32
    %c0_i32_1 = arith.constant 0 : i32
    return %c0_i32, %c0_i32_0 : i32, i32
  }
  func.func @transform_2(%arg0: i32) -> (i32, i32) {
    %c0_i32 = arith.constant 0 : i32
    %c0_i32_0 = arith.constant 0 : i32
    %c0_i32_1 = arith.constant 0 : i32
    return %c0_i32, %c0_i32_0 : i32, i32
  }
  func.func @transform_3(%arg0: i32) -> (i32, i32) {
    %c0_i32 = arith.constant 0 : i32
    %c0_i32_0 = arith.constant 0 : i32
    return %arg0, %c0_i32 : i32, i32
  }
}

</mosaic_0001>

<llo_original>
// kernel: convnet_forward.4
$region0: #{convnet_forward.4}
  #allocation0 [shape = 'u32[]', space=smem, size = 0x4, offset = 0x4, fixed_abs, tag = 'smem constant byte address 0x4 - core index']
  #allocation1 [shape = 'u32[144,128]{1,0:T(1,128)}', space=vmem, size = 0x12000, scoped, tag = 'internal scratch']
  %s0 = inlined_call_operand.vmem [shape: bf16[1024,192], index: 0, kind: input, shape index: {}]
  %s1 = inlined_call_operand.vmem [shape: bf16[192,128], index: 1, kind: input, shape index: {}]
  %s2 = inlined_call_operand.vmem [shape: f32[1,128], index: 2, kind: input, shape index: {}]
  %s3 = inlined_call_operand.vmem [shape: bf16[1024,128], index: 3, kind: output, shape index: {}]
  %s4 = sld [smem:[#allocation0]]
  $region45: #{convnet_forward.4} parent=0
    _
  %s6 = ssub.s32 1, %s4
  %s7 = scalar_select 0, %s6, %s4
  loop: start=0, step=1, limit=4
  $region2: #{convnet_forward.4} parent=0 // loop_pre_header
    _
  $region3: #{convnet_forward.4} parent=0 // loop_header
    %s9 = sphi 0, %s13
    %p10 = scmp.ge.s32.totalorder %s9, 4
    %s19 = sphi 0, %s21
    %s22 = sphi 0, %s19
    %s23 = sphi 0, %s22
    %s39 = sphi 0, %s23
    %s43 = sphi 0, %s43
    %s45 = sphi 0, %s43
    %s46 = sphi 0, %s45
    %s60 = sphi 0, %s46
    %s64 = sphi 0, %s64
    %s66 = sphi 0, %s64
    %s67 = sphi 0, %s66
    %s81 = sphi 0, %s67
    %s87 = sphi 0, %s89
    %s90 = sphi 0, %s87
    %s91 = sphi 0, %s90
    %s107 = sphi 0, %s91
  $region4: #{convnet_forward.4} parent=0 // loop_header_branch
    %12 = sbr.rel (%p10) target = $region8
  $region5: #{convnet_forward.4} parent=0 // loop_body
    %s14 = ssub.s32 %s9, 1
    %s15 = ssub.s32 %s9, 2
    %s16 = sadd.s32 %s9, 1
    %s17 = ssub.s32 %s9, %s16
    %p18 = scmp.eq.s32.totalorder %s17, 0
    %s20 = sadd.s32 %s19, 1
    %s21 = scalar_select %p18, %s19, %s20
    %p24 = pneg %p18
    %p25 = scmp.eq.s32.totalorder %s9, 1
    %p26 = por %p24, %p25
    %p27 = scmp.ne.s32.totalorder %s19, %s22
    %p28 = scmp.eq.s32.totalorder %s9, 0
    %p29 = por %p27, %p28
    %p30 = scmp.ne.s32.totalorder %s19, %s22
    %p31 = scmp.eq.s32.totalorder %s14, 1
    %p32 = por %p30, %p31
    %p33 = scmp.ne.s32.totalorder %s22, %s23
    %p34 = scmp.eq.s32.totalorder %s14, 0
    %p35 = por %p33, %p34
    %p36 = scmp.ne.s32.totalorder %s22, %s23
    %p37 = scmp.eq.s32.totalorder %s15, 1
    %p38 = por %p36, %p37
    %p40 = scmp.ne.s32.totalorder %s23, %s39
    %p41 = scmp.eq.s32.totalorder %s15, 0
    %p42 = por %p40, %p41
    %s44 = sadd.s32 %s43, 1
    %p47 = scmp.eq.s32.totalorder %s9, 1
    %p48 = scmp.ne.s32.totalorder %s43, %s45
    %p49 = scmp.eq.s32.totalorder %s9, 0
    %p50 = por %p48, %p49
    %p51 = scmp.ne.s32.totalorder %s43, %s45
    %p52 = scmp.eq.s32.totalorder %s14, 1
    %p53 = por %p51, %p52
    %p54 = scmp.ne.s32.totalorder %s45, %s46
    %p55 = scmp.eq.s32.totalorder %s14, 0
    %p56 = por %p54, %p55
    %p57 = scmp.ne.s32.totalorder %s45, %s46
    %p58 = scmp.eq.s32.totalorder %s15, 1
    %p59 = por %p57, %p58
    %p61 = scmp.ne.s32.totalorder %s46, %s60
    %p62 = scmp.eq.s32.totalorder %s15, 0
    %p63 = por %p61, %p62
    %s65 = sadd.s32 %s64, 1
    %p68 = scmp.eq.s32.totalorder %s9, 1
    %p69 = scmp.ne.s32.totalorder %s64, %s66
    %p70 = scmp.eq.s32.totalorder %s9, 0
    %p71 = por %p69, %p70
    %p72 = scmp.ne.s32.totalorder %s64, %s66
    %p73 = scmp.eq.s32.totalorder %s14, 1
    %p74 = por %p72, %p73
    %p75 = scmp.ne.s32.totalorder %s66, %s67
    %p76 = scmp.eq.s32.totalorder %s14, 0
    %p77 = por %p75, %p76
    %p78 = scmp.ne.s32.totalorder %s66, %s67
    %p79 = scmp.eq.s32.totalorder %s15, 1
    %p80 = por %p78, %p79
    %p82 = scmp.ne.s32.totalorder %s67, %s81
    %p83 = scmp.eq.s32.totalorder %s15, 0
    %p84 = por %p82, %p83
    %s85 = ssub.s32 %s9, %s16
    %p86 = scmp.eq.s32.totalorder %s85, 0
    %s88 = sadd.s32 %s87, 1
    %s89 = scalar_select %p86, %s87, %s88
    %p92 = pneg %p86
    %p93 = scmp.eq.s32.totalorder %s9, 1
    %p94 = por %p92, %p93
    %p95 = scmp.ne.s32.totalorder %s87, %s90
    %p96 = scmp.eq.s32.totalorder %s9, 0
    %p97 = por %p95, %p96
    %p98 = scmp.ne.s32.totalorder %s87, %s90
    %p99 = scmp.eq.s32.totalorder %s14, 1
    %p100 = por %p98, %p99
    %p101 = scmp.ne.s32.totalorder %s90, %s91
    %p102 = scmp.eq.s32.totalorder %s14, 0
    %p103 = por %p101, %p102
    %p104 = scmp.ne.s32.totalorder %s90, %s91
    %p105 = scmp.eq.s32.totalorder %s15, 1
    %p106 = por %p104, %p105
    %p108 = scmp.ne.s32.totalorder %s91, %s107
    %p109 = scmp.eq.s32.totalorder %s15, 0
    %p110 = por %p108, %p109
    %p111 = scmp.le.s32.totalorder 1, %s9
    %p112 = scmp.lt.s32.totalorder %s9, 3
    %p113 = pnand %p111, %p112
    %p114 = pneg %p113
    // Predicated region
    $region9: #{convnet_forward.4} parent=5 // pred_check
      _
    $region10: #{convnet_forward.4} parent=5 // pred_check_branch
      %116 = sbr.rel (%p113) target = $region12
    $region11: #{convnet_forward.4} parent=5 // pred_region
      %s117 = ssub.s32 %s9, 1
      // Predicated region
      $region13: #{convnet_forward.4} parent=11 // pred_check
        %p118 = pneg %p56
      $region14: #{convnet_forward.4} parent=11 // pred_check_branch
        %120 = sbr.rel (%p118) target = $region16
      $region15: #{convnet_forward.4} parent=11 // pred_region
        _
      $region16: #{convnet_forward.4} parent=11 // pred_fallthru
        _
      // Predicated region
      $region17: #{convnet_forward.4} parent=11 // pred_check
        %p121 = pneg %p77
      $region18: #{convnet_forward.4} parent=11 // pred_check_branch
        %123 = sbr.rel (%p121) target = $region20
      $region19: #{convnet_forward.4} parent=11 // pred_region
        _
      $region20: #{convnet_forward.4} parent=11 // pred_fallthru
        _
    $region12: #{convnet_forward.4} parent=5 // pred_fallthru
      _
    %p124 = scmp.lt.s32.totalorder %s9, 2
    // Predicated region
    $region21: #{convnet_forward.4} parent=5 // pred_check
      %p125 = pneg %p124
    $region22: #{convnet_forward.4} parent=5 // pred_check_branch
      %127 = sbr.rel (%p125) target = $region24
    $region23: #{convnet_forward.4} parent=5 // pred_region
      // Predicated region
      $region25: #{convnet_forward.4} parent=23 // pred_check
        %p128 = pneg %p29
      $region26: #{convnet_forward.4} parent=23 // pred_check_branch
        %130 = sbr.rel (%p128) target = $region28
      $region27: #{convnet_forward.4} parent=23 // pred_region
        %s131 = smul.u32 64, %s9
        %p132 = scmp.lt.s32.totalorder %s131, 127
        %s133 = scalar_select %p132, %s131, 127
        %s134 = smul.addr %s133, 2
        %s135 = smul.addr %s134, 4
        %s136 = scalar_lea.vmem %s0, %s135
        %s137 = smul.u32 64, %s9
      $region28: #{convnet_forward.4} parent=23 // pred_fallthru
        _
    $region24: #{convnet_forward.4} parent=5 // pred_fallthru
      _
    %p138 = scmp.le.s32.totalorder 1, %s9
    %p139 = scmp.lt.s32.totalorder %s9, 3
    %p140 = pnand %p138, %p139
    %p141 = pneg %p140
    // Predicated region
    $region29: #{convnet_forward.4} parent=5 // pred_check
      _
    $region30: #{convnet_forward.4} parent=5 // pred_check_branch
      %143 = sbr.rel (%p140) target = $region32
    $region31: #{convnet_forward.4} parent=5 // pred_region
      %s144 = ssub.s32 %s9, 1
      %s145 = smul.u32 64, %s14
      %p146 = scmp.lt.s32.totalorder %s145, 127
      %s147 = scalar_select %p146, %s145, 127
      %s148 = smul.addr %s147, 2
      %s149 = smul.addr %s148, 4
      %s150 = scalar_lea.vmem %s0, %s149
      %p151 = pneg %p35
      %p152 = pneg %p32
      %p153 = pneg %p56
      %p154 = pneg %p53
      %p155 = pneg %p77
      %p156 = pneg %p74
      %p157 = pneg %p103
      %p158 = pneg %p100
      %s159 = smul.u32 64, %s14
      %p160 = scmp.lt.s32.totalorder %s159, 127
      %s161 = scalar_select %p160, %s159, 127
      %s162 = smul.addr %s161, 4
      %s163 = scalar_lea.vmem %s3, %s162
      %s164 = smul.u32 64, %s14
      %p165 = scmp.lt.s32.totalorder %s164, 127
      %s166 = scalar_select %p165, %s164, 127
      %s167 = smul.addr %s166, 2
      %s168 = smul.addr %s167, 4
      %s169 = scalar_lea.vmem %s0, %s168
      %s170 = smul.u32 64, %s14
      %s171 = smul.u32 64, %s14
      %p172 = scmp.lt.s32.totalorder %s171, 127
      %s173 = scalar_select %p172, %s171, 127
      %s174 = smul.addr %s173, 4
      %s175 = scalar_lea.vmem %s3, %s174
      %s176 = smul.u32 64, %s14
      %v178 = vld [vmem:[%s169] sm:$0xff]
      %v179 = vld [vmem:[%s169 + $0x8] sm:$0xff]
      %v180 = vld [vmem:[%s169 + $0x10] sm:$0xff]
      %v181 = vld [vmem:[%s169 + $0x18] sm:$0xff]
      %v182 = vld [vmem:[%s169 + $0x20] sm:$0xff]
      %v183 = vld [vmem:[%s169 + $0x28] sm:$0xff]
      %v184 = vld [vmem:[%s169 + $0x30] sm:$0xff]
      %v185 = vld [vmem:[%s169 + $0x38] sm:$0xff]
      %v186 = vld [vmem:[%s169 + $0x40] sm:$0xff]
      %v187 = vld [vmem:[%s169 + $0x48] sm:$0xff]
      %v188 = vld [vmem:[%s169 + $0x50] sm:$0xff]
      %v189 = vld [vmem:[%s169 + $0x58] sm:$0xff]
      %v190 = vld [vmem:[%s169 + $0x60] sm:$0xff]
      %v191 = vld [vmem:[%s169 + $0x68] sm:$0xff]
      %v192 = vld [vmem:[%s169 + $0x70] sm:$0xff]
      %v193 = vld [vmem:[%s169 + $0x78] sm:$0xff]
      %v194 = vld [vmem:[%s169 + $0x80] sm:$0xff]
      %v195 = vld [vmem:[%s169 + $0x88] sm:$0xff]
      %v196 = vld [vmem:[%s169 + $0x90] sm:$0xff]
      %v197 = vld [vmem:[%s169 + $0x98] sm:$0xff]
      %v198 = vld [vmem:[%s169 + $0xa0] sm:$0xff]
      %v199 = vld [vmem:[%s169 + $0xa8] sm:$0xff]
      %v200 = vld [vmem:[%s169 + $0xb0] sm:$0xff]
      %v201 = vld [vmem:[%s169 + $0xb8] sm:$0xff]
      %v202 = vld [vmem:[%s169 + $0xc0] sm:$0xff]
      %v203 = vld [vmem:[%s169 + $0xc8] sm:$0xff]
      %v204 = vld [vmem:[%s169 + $0xd0] sm:$0xff]
      %v205 = vld [vmem:[%s169 + $0xd8] sm:$0xff]
      %v206 = vld [vmem:[%s169 + $0xe0] sm:$0xff]
      %v207 = vld [vmem:[%s169 + $0xe8] sm:$0xff]
      %v208 = vld [vmem:[%s169 + $0xf0] sm:$0xff]
      %v209 = vld [vmem:[%s169 + $0xf8] sm:$0xff]
      %v210 = vld [vmem:[%s169 + $0x100] sm:$0xff]
      %v211 = vld [vmem:[%s169 + $0x108] sm:$0xff]
      %v212 = vld [vmem:[%s169 + $0x110] sm:$0xff]
      %v213 = vld [vmem:[%s169 + $0x118] sm:$0xff]
      %v214 = vld [vmem:[%s169 + $0x120] sm:$0xff]
      %v215 = vld [vmem:[%s169 + $0x128] sm:$0xff]
      %v216 = vld [vmem:[%s169 + $0x130] sm:$0xff]
      %v217 = vld [vmem:[%s169 + $0x138] sm:$0xff]
      %v218 = vld [vmem:[%s169 + $0x140] sm:$0xff]
      %v219 = vld [vmem:[%s169 + $0x148] sm:$0xff]
      %v220 = vld [vmem:[%s169 + $0x150] sm:$0xff]
      %v221 = vld [vmem:[%s169 + $0x158] sm:$0xff]
      %v222 = vld [vmem:[%s169 + $0x160] sm:$0xff]
      %v223 = vld [vmem:[%s169 + $0x168] sm:$0xff]
      %v224 = vld [vmem:[%s169 + $0x170] sm:$0xff]
      %v225 = vld [vmem:[%s169 + $0x178] sm:$0xff]
      %v226 = vld [vmem:[%s169 + $0x180] sm:$0xff]
      %v227 = vld [vmem:[%s169 + $0x188] sm:$0xff]
      %v228 = vld [vmem:[%s169 + $0x190] sm:$0xff]
      %v229 = vld [vmem:[%s169 + $0x198] sm:$0xff]
      %v230 = vld [vmem:[%s169 + $0x1a0] sm:$0xff]
      %v231 = vld [vmem:[%s169 + $0x1a8] sm:$0xff]
      %v232 = vld [vmem:[%s169 + $0x1b0] sm:$0xff]
      %v233 = vld [vmem:[%s169 + $0x1b8] sm:$0xff]
      %v234 = vld [vmem:[%s169 + $0x1c0] sm:$0xff]
      %v235 = vld [vmem:[%s169 + $0x1c8] sm:$0xff]
      %v236 = vld [vmem:[%s169 + $0x1d0] sm:$0xff]
      %v237 = vld [vmem:[%s169 + $0x1d8] sm:$0xff]
      %v238 = vld [vmem:[%s169 + $0x1e0] sm:$0xff]
      %v239 = vld [vmem:[%s169 + $0x1e8] sm:$0xff]
      %v240 = vld [vmem:[%s169 + $0x1f0] sm:$0xff]
      %v241 = vld [vmem:[%s169 + $0x1f8] sm:$0xff]
      %v242 = vld [vmem:[%s1] sm:$0xf]
      %v243 = vld [vmem:[%s1 + $0x4] sm:$0xf]
      %v244 = vld [vmem:[%s1 + $0x8] sm:$0xf]
      %v245 = vld [vmem:[%s1 + $0xc] sm:$0xf]
      %v246 = vld [vmem:[%s1 + $0x10] sm:$0xf]
      %v247 = vld [vmem:[%s1 + $0x14] sm:$0xf]
      %v248 = vld [vmem:[%s1 + $0x18] sm:$0xf]
      %v249 = vld [vmem:[%s1 + $0x1c] sm:$0xf]
      %v250 = vld [vmem:[%s1 + $0x20] sm:$0xf]
      %v251 = vld [vmem:[%s1 + $0x24] sm:$0xf]
      %v252 = vld [vmem:[%s1 + $0x28] sm:$0xf]
      %v253 = vld [vmem:[%s1 + $0x2c] sm:$0xf]
      %v254 = vld [vmem:[%s1 + $0x30] sm:$0xf]
      %v255 = vld [vmem:[%s1 + $0x34] sm:$0xf]
      %v256 = vld [vmem:[%s1 + $0x38] sm:$0xf]
      %v257 = vld [vmem:[%s1 + $0x3c] sm:$0xf]
      %v258 = vld [vmem:[%s1 + $0x40] sm:$0xf]
      %v259 = vld [vmem:[%s1 + $0x44] sm:$0xf]
      %v260 = vld [vmem:[%s1 + $0x48] sm:$0xf]
      %v261 = vld [vmem:[%s1 + $0x4c] sm:$0xf]
      %v262 = vld [vmem:[%s1 + $0x50] sm:$0xf]
      %v263 = vld [vmem:[%s1 + $0x54] sm:$0xf]
      %v264 = vld [vmem:[%s1 + $0x58] sm:$0xf]
      %v265 = vld [vmem:[%s1 + $0x5c] sm:$0xf]
      %v266 = vld [vmem:[%s2] sm:$0x1]
      %v268 = vlaneseq
      %v269 = vshrl.u32 %v268, 7
      %v270 = vsub.s32 0, %v269
      %v271 = vrot.slane %v266, %v270
      %v337 = vunpack.c.l.b16 %v178
      %v338 = vunpack.c.h.b16 %v178
      %v339 = vunpack.c.l.b16 %v179
      %v340 = vunpack.c.h.b16 %v179
      %v341 = vunpack.c.l.b16 %v180
      %v342 = vunpack.c.h.b16 %v180
      %v343 = vunpack.c.l.b16 %v181
      %v344 = vunpack.c.h.b16 %v181
      %v345 = vunpack.c.l.b16 %v182
      %v346 = vunpack.c.h.b16 %v182
      %v347 = vunpack.c.l.b16 %v183
      %v348 = vunpack.c.h.b16 %v183
      %v349 = vunpack.c.l.b16 %v184
      %v350 = vunpack.c.h.b16 %v184
      %v351 = vunpack.c.l.b16 %v185
      %v352 = vunpack.c.h.b16 %v185
      %v353 = vunpack.c.l.b16 %v186
      %v354 = vunpack.c.h.b16 %v186
      %v355 = vunpack.c.l.b16 %v187
      %v356 = vunpack.c.h.b16 %v187
      %v357 = vunpack.c.l.b16 %v188
      %v358 = vunpack.c.h.b16 %v188
      %v359 = vunpack.c.l.b16 %v189
      %v360 = vunpack.c.h.b16 %v189
      %v361 = vunpack.c.l.b16 %v190
      %v362 = vunpack.c.h.b16 %v190
      %v363 = vunpack.c.l.b16 %v191
      %v364 = vunpack.c.h.b16 %v191
      %v365 = vunpack.c.l.b16 %v192
      %v366 = vunpack.c.h.b16 %v192
      %v367 = vunpack.c.l.b16 %v193
      %v368 = vunpack.c.h.b16 %v193
      %v369 = vunpack.c.l.b16 %v194
      %v370 = vunpack.c.h.b16 %v194
      %v371 = vunpack.c.l.b16 %v195
      %v372 = vunpack.c.h.b16 %v195
      %v373 = vunpack.c.l.b16 %v196
      %v374 = vunpack.c.h.b16 %v196
      %v375 = vunpack.c.l.b16 %v197
      %v376 = vunpack.c.h.b16 %v197
      %v377 = vunpack.c.l.b16 %v198
      %v378 = vunpack.c.h.b16 %v198
      %v379 = vunpack.c.l.b16 %v199
      %v380 = vunpack.c.h.b16 %v199
      %v381 = vunpack.c.l.b16 %v200
      %v382 = vunpack.c.h.b16 %v200
      %v383 = vunpack.c.l.b16 %v201
      %v384 = vunpack.c.h.b16 %v201
      %v385 = vunpack.c.l.b16 %v202
      %v386 = vunpack.c.h.b16 %v202
      %v387 = vunpack.c.l.b16 %v203
      %v388 = vunpack.c.h.b16 %v203
      %v389 = vunpack.c.l.b16 %v204
      %v390 = vunpack.c.h.b16 %v204
      %v391 = vunpack.c.l.b16 %v205
      %v392 = vunpack.c.h.b16 %v205
      %v393 = vunpack.c.l.b16 %v206
      %v394 = vunpack.c.h.b16 %v206
      %v395 = vunpack.c.l.b16 %v207
      %v396 = vunpack.c.h.b16 %v207
      %v397 = vunpack.c.l.b16 %v208
      %v398 = vunpack.c.h.b16 %v208
      %v399 = vunpack.c.l.b16 %v209
      %v400 = vunpack.c.h.b16 %v209
      %v401 = vunpack.c.l.b16 %v210
      %v402 = vunpack.c.h.b16 %v210
      %v403 = vunpack.c.l.b16 %v211
      %v404 = vunpack.c.h.b16 %v211
      %v405 = vunpack.c.l.b16 %v212
      %v406 = vunpack.c.h.b16 %v212
      %v407 = vunpack.c.l.b16 %v213
      %v408 = vunpack.c.h.b16 %v213
      %v409 = vunpack.c.l.b16 %v214
      %v410 = vunpack.c.h.b16 %v214
      %v411 = vunpack.c.l.b16 %v215
      %v412 = vunpack.c.h.b16 %v215
      %v413 = vunpack.c.l.b16 %v216
      %v414 = vunpack.c.h.b16 %v216
      %v415 = vunpack.c.l.b16 %v217
      %v416 = vunpack.c.h.b16 %v217
      %v417 = vunpack.c.l.b16 %v218
      %v418 = vunpack.c.h.b16 %v218
      %v419 = vunpack.c.l.b16 %v219
      %v420 = vunpack.c.h.b16 %v219
      %v421 = vunpack.c.l.b16 %v220
      %v422 = vunpack.c.h.b16 %v220
      %v423 = vunpack.c.l.b16 %v221
      %v424 = vunpack.c.h.b16 %v221
      %v425 = vunpack.c.l.b16 %v222
      %v426 = vunpack.c.h.b16 %v222
      %v427 = vunpack.c.l.b16 %v223
      %v428 = vunpack.c.h.b16 %v223
      %v429 = vunpack.c.l.b16 %v224
      %v430 = vunpack.c.h.b16 %v224
      %v431 = vunpack.c.l.b16 %v225
      %v432 = vunpack.c.h.b16 %v225
      %v433 = vunpack.c.l.b16 %v226
      %v434 = vunpack.c.h.b16 %v226
      %v435 = vunpack.c.l.b16 %v227
      %v436 = vunpack.c.h.b16 %v227
      %v437 = vunpack.c.l.b16 %v228
      %v438 = vunpack.c.h.b16 %v228
      %v439 = vunpack.c.l.b16 %v229
      %v440 = vunpack.c.h.b16 %v229
      %v441 = vunpack.c.l.b16 %v230
      %v442 = vunpack.c.h.b16 %v230
      %v443 = vunpack.c.l.b16 %v231
      %v444 = vunpack.c.h.b16 %v231
      %v445 = vunpack.c.l.b16 %v232
      %v446 = vunpack.c.h.b16 %v232
      %v447 = vunpack.c.l.b16 %v233
      %v448 = vunpack.c.h.b16 %v233
      %v449 = vunpack.c.l.b16 %v234
      %v450 = vunpack.c.h.b16 %v234
      %v451 = vunpack.c.l.b16 %v235
      %v452 = vunpack.c.h.b16 %v235
      %v453 = vunpack.c.l.b16 %v236
      %v454 = vunpack.c.h.b16 %v236
      %v455 = vunpack.c.l.b16 %v237
      %v456 = vunpack.c.h.b16 %v237
      %v457 = vunpack.c.l.b16 %v238
      %v458 = vunpack.c.h.b16 %v238
      %v459 = vunpack.c.l.b16 %v239
      %v460 = vunpack.c.h.b16 %v239
      %v461 = vunpack.c.l.b16 %v240
      %v462 = vunpack.c.h.b16 %v240
      %v463 = vunpack.c.l.b16 %v241
      %v464 = vunpack.c.h.b16 %v241
      %v465 = vpack.c.b16 %v339, %v337
      %v466 = vpack.c.b16 %v340, %v338
      %v467 = vpack.c.b16 %v343, %v341
      %v468 = vpack.c.b16 %v344, %v342
      %v469 = vpack.c.b16 %v347, %v345
      %v470 = vpack.c.b16 %v348, %v346
      %v471 = vpack.c.b16 %v351, %v349
      %v472 = vpack.c.b16 %v352, %v350
      %v473 = vpack.c.b16 %v355, %v353
      %v474 = vpack.c.b16 %v356, %v354
      %v475 = vpack.c.b16 %v359, %v357
      %v476 = vpack.c.b16 %v360, %v358
      %v477 = vpack.c.b16 %v363, %v361
      %v478 = vpack.c.b16 %v364, %v362
      %v479 = vpack.c.b16 %v367, %v365
      %v480 = vpack.c.b16 %v368, %v366
      %v481 = vpack.c.b16 %v371, %v369
      %v482 = vpack.c.b16 %v372, %v370
      %v483 = vpack.c.b16 %v375, %v373
      %v484 = vpack.c.b16 %v376, %v374
      %v485 = vpack.c.b16 %v379, %v377
      %v486 = vpack.c.b16 %v380, %v378
      %v487 = vpack.c.b16 %v383, %v381
      %v488 = vpack.c.b16 %v384, %v382
      %v489 = vpack.c.b16 %v387, %v385
      %v490 = vpack.c.b16 %v388, %v386
      %v491 = vpack.c.b16 %v391, %v389
      %v492 = vpack.c.b16 %v392, %v390
      %v493 = vpack.c.b16 %v395, %v393
      %v494 = vpack.c.b16 %v396, %v394
      %v495 = vpack.c.b16 %v399, %v397
      %v496 = vpack.c.b16 %v400, %v398
      %v497 = vpack.c.b16 %v403, %v401
      %v498 = vpack.c.b16 %v404, %v402
      %v499 = vpack.c.b16 %v407, %v405
      %v500 = vpack.c.b16 %v408, %v406
      %v501 = vpack.c.b16 %v411, %v409
      %v502 = vpack.c.b16 %v412, %v410
      %v503 = vpack.c.b16 %v415, %v413
      %v504 = vpack.c.b16 %v416, %v414
      %v505 = vpack.c.b16 %v419, %v417
      %v506 = vpack.c.b16 %v420, %v418
      %v507 = vpack.c.b16 %v423, %v421
      %v508 = vpack.c.b16 %v424, %v422
      %v509 = vpack.c.b16 %v427, %v425
      %v510 = vpack.c.b16 %v428, %v426
      %v511 = vpack.c.b16 %v431, %v429
      %v512 = vpack.c.b16 %v432, %v430
      %v513 = vpack.c.b16 %v435, %v433
      %v514 = vpack.c.b16 %v436, %v434
      %v515 = vpack.c.b16 %v439, %v437
      %v516 = vpack.c.b16 %v440, %v438
      %v517 = vpack.c.b16 %v443, %v441
      %v518 = vpack.c.b16 %v444, %v442
      %v519 = vpack.c.b16 %v447, %v445
      %v520 = vpack.c.b16 %v448, %v446
      %v521 = vpack.c.b16 %v451, %v449
      %v522 = vpack.c.b16 %v452, %v450
      %v523 = vpack.c.b16 %v455, %v453
      %v524 = vpack.c.b16 %v456, %v454
      %v525 = vpack.c.b16 %v459, %v457
      %v526 = vpack.c.b16 %v460, %v458
      %v527 = vpack.c.b16 %v463, %v461
      %v528 = vpack.c.b16 %v464, %v462
      %v585 = vunpack.c.l.b16 %v242
      %v586 = vunpack.c.l.b16 %v243
      %v587 = vunpack.c.l.b16 %v244
      %v588 = vunpack.c.l.b16 %v245
      %v589 = vunpack.c.l.b16 %v246
      %v590 = vunpack.c.l.b16 %v247
      %v591 = vunpack.c.l.b16 %v248
      %v592 = vunpack.c.l.b16 %v249
      %v593 = vunpack.c.l.b16 %v250
      %v594 = vunpack.c.l.b16 %v251
      %v595 = vunpack.c.l.b16 %v252
      %v596 = vunpack.c.l.b16 %v253
      %v597 = vunpack.c.l.b16 %v254
      %v598 = vunpack.c.l.b16 %v255
      %v599 = vunpack.c.l.b16 %v256
      %v600 = vunpack.c.l.b16 %v257
      %v601 = vunpack.c.l.b16 %v258
      %v602 = vunpack.c.l.b16 %v259
      %v603 = vunpack.c.l.b16 %v260
      %v604 = vunpack.c.l.b16 %v261
      %v605 = vunpack.c.l.b16 %v262
      %v606 = vunpack.c.l.b16 %v263
      %v607 = vunpack.c.l.b16 %v264
      %v608 = vunpack.c.l.b16 %v265
      %v609 = vpack.c.b16 %v586, %v585
      %v610 = vpack.c.b16 %v588, %v587
      %v611 = vpack.c.b16 %v590, %v589
      %v612 = vpack.c.b16 %v592, %v591
      %v613 = vpack.c.b16 %v594, %v593
      %v614 = vpack.c.b16 %v596, %v595
      %v615 = vpack.c.b16 %v598, %v597
      %v616 = vpack.c.b16 %v600, %v599
      %v617 = vpack.c.b16 %v602, %v601
      %v618 = vpack.c.b16 %v604, %v603
      %v619 = vpack.c.b16 %v606, %v605
      %v620 = vpack.c.b16 %v608, %v607
      %vm633 = vcmask 523264
      %v635 = vsel %vm633, %v466, 0
      %v638 = vsel %vm633, %v468, 0
      %v641 = vsel %vm633, %v470, 0
      %v644 = vsel %vm633, %v472, 0
      %v647 = vsel %vm633, %v474, 0
      %v650 = vsel %vm633, %v476, 0
      %v653 = vsel %vm633, %v478, 0
      %v656 = vsel %vm633, %v480, 0
      %v659 = vsel %vm633, %v482, 0
      %v662 = vsel %vm633, %v484, 0
      %v665 = vsel %vm633, %v486, 0
      %v668 = vsel %vm633, %v488, 0
      %v671 = vsel %vm633, %v490, 0
      %v674 = vsel %vm633, %v492, 0
      %v677 = vsel %vm633, %v494, 0
      %v680 = vsel %vm633, %v496, 0
      %v683 = vsel %vm633, %v498, 0
      %v686 = vsel %vm633, %v500, 0
      %v689 = vsel %vm633, %v502, 0
      %v692 = vsel %vm633, %v504, 0
      %v695 = vsel %vm633, %v506, 0
      %v698 = vsel %vm633, %v508, 0
      %v701 = vsel %vm633, %v510, 0
      %v704 = vsel %vm633, %v512, 0
      %v707 = vsel %vm633, %v514, 0
      %v710 = vsel %vm633, %v516, 0
      %v713 = vsel %vm633, %v518, 0
      %v716 = vsel %vm633, %v520, 0
      %v719 = vsel %vm633, %v522, 0
      %v722 = vsel %vm633, %v524, 0
      %v725 = vsel %vm633, %v526, 0
      %v728 = vsel %vm633, %v528, 0
      %730 = vmatprep.subr.bf16.mxu0 0
      %731 = vmatpush1.bf16.msra.mxu0 %v609
      %732 = vmatprep.subr.bf16.mxu0 0
      %733 = vmatpush1.bf16.msra.mxu0 %v610
      %734 = vmatprep.subr.bf16.mxu0 0
      %735 = vmatpush1.bf16.msra.mxu0 %v611
      %736 = vmatprep.subr.bf16.mxu0 0
      %737 = vmatpush1.bf16.msra.mxu0 %v612
      %738 = vmatprep.subr.bf16.mxu0 0
      %739 = vmatpush1.bf16.msra.mxu0 %v613
      %740 = vmatprep.subr.bf16.mxu0 0
      %741 = vmatpush1.bf16.msra.mxu0 %v614
      %742 = vmatprep.subr.bf16.mxu0 0
      %743 = vmatpush1.bf16.msra.mxu0 %v615
      %744 = vmatprep.subr.bf16.mxu0 0
      %745 = vmatpush1.bf16.msra.mxu0 %v616
      %746 = vmatprep.subr.bf16.mxu0 0
      %747 = vmatpush1.bf16.msra.mxu0 %v617
      %748 = vmatprep.subr.bf16.mxu0 0
      %749 = vmatpush1.bf16.msra.mxu0 %v618
      %750 = vmatprep.subr.bf16.mxu0 0
      %751 = vmatpush1.bf16.msra.mxu0 %v619
      %752 = vmatprep.subr.bf16.mxu0 0
      %753 = vmatpush1.bf16.msra.mxu0 %v620
      %754 = vmatprep.subr.bf16.mxu0 0
      %755 = vmatpush1.bf16.msra.mxu0 0
      %756 = vmatprep.subr.bf16.mxu0 0
      %757 = vmatpush1.bf16.msra.mxu0 0
      %758 = vmatprep.subr.bf16.mxu0 0
      %759 = vmatpush1.bf16.msra.mxu0 0
      %760 = vmatprep.subr.bf16.mxu0 0
      %761 = vmatpush1.bf16.msra.mxu0 0
      %762 = vmatprep.mubr.bf16.mxu0 %v635
      %763 = vmatmul.mubr.bf16.gmra.mrb[0].mxu0 %v465
      %v764 = vpop.f32.mrb[0].mxu0
      %v765 = vadd.f32 %v271, %v764
      %v766 = vpop.f32.mrb[0].mxu0
      %v767 = vpop.f32.mrb[0].mxu0
      %v768 = vadd.f32 %v271, %v767
      %v769 = vpop.f32.mrb[0].mxu0
      %770 = vmatprep.mubr.bf16.mxu0 %v638
      %771 = vmatmul.mubr.bf16.gmra.mrb[0].mxu0 %v467
      %v772 = vpop.f32.mrb[0].mxu0
      %v773 = vadd.f32 %v271, %v772
      %v774 = vpop.f32.mrb[0].mxu0
      %v775 = vpop.f32.mrb[0].mxu0
      %v776 = vadd.f32 %v271, %v775
      %v777 = vpop.f32.mrb[0].mxu0
      %778 = vmatprep.mubr.bf16.mxu0 %v641
      %779 = vmatmul.mubr.bf16.gmra.mrb[0].mxu0 %v469
      %v780 = vpop.f32.mrb[0].mxu0
      %v781 = vadd.f32 %v271, %v780
      %v782 = vpop.f32.mrb[0].mxu0
      %v783 = vpop.f32.mrb[0].mxu0
      %v784 = vadd.f32 %v271, %v783
      %v785 = vpop.f32.mrb[0].mxu0
      %786 = vmatprep.mubr.bf16.mxu0 %v644
      %787 = vmatmul.mubr.bf16.gmra.mrb[0].mxu0 %v471
      %v788 = vpop.f32.mrb[0].mxu0
      %v789 = vadd.f32 %v271, %v788
      %v790 = vpop.f32.mrb[0].mxu0
      %v791 = vpop.f32.mrb[0].mxu0
      %v792 = vadd.f32 %v271, %v791
      %v793 = vpop.f32.mrb[0].mxu0
      %794 = vmatprep.mubr.bf16.mxu0 %v647
      %795 = vmatmul.mubr.bf16.gmra.mrb[0].mxu0 %v473
      %v796 = vpop.f32.mrb[0].mxu0
      %v797 = vadd.f32 %v271, %v796
      %v798 = vpop.f32.mrb[0].mxu0
      %v799 = vpop.f32.mrb[0].mxu0
      %v800 = vadd.f32 %v271, %v799
      %v801 = vpop.f32.mrb[0].mxu0
      %802 = vmatprep.mubr.bf16.mxu0 %v650
      %803 = vmatmul.mubr.bf16.gmra.mrb[0].mxu0 %v475
      %v804 = vpop.f32.mrb[0].mxu0
      %v805 = vadd.f32 %v271, %v804
      %v806 = vpop.f32.mrb[0].mxu0
      %v807 = vpop.f32.mrb[0].mxu0
      %v808 = vadd.f32 %v271, %v807
      %v809 = vpop.f32.mrb[0].mxu0
      %810 = vmatprep.mubr.bf16.mxu0 %v653
      %811 = vmatmul.mubr.bf16.gmra.mrb[0].mxu0 %v477
      %v812 = vpop.f32.mrb[0].mxu0
      %v813 = vadd.f32 %v271, %v812
      %v814 = vpop.f32.mrb[0].mxu0
      %v815 = vpop.f32.mrb[0].mxu0
      %v816 = vadd.f32 %v271, %v815
      %v817 = vpop.f32.mrb[0].mxu0
      %818 = vmatprep.mubr.bf16.mxu0 %v656
      %819 = vmatmul.mubr.bf16.gmra.mrb[0].mxu0 %v479
      %v820 = vpop.f32.mrb[0].mxu0
      %v821 = vadd.f32 %v271, %v820
      %v822 = vpop.f32.mrb[0].mxu0
      %v823 = vpop.f32.mrb[0].mxu0
      %v824 = vadd.f32 %v271, %v823
      %v825 = vpop.f32.mrb[0].mxu0
      %826 = vmatprep.mubr.bf16.mxu0 %v659
      %827 = vmatmul.mubr.bf16.gmra.mrb[0].mxu0 %v481
      %v828 = vpop.f32.mrb[0].mxu0
      %v829 = vadd.f32 %v271, %v828
      %v830 = vpop.f32.mrb[0].mxu0
      %v831 = vpop.f32.mrb[0].mxu0
      %v832 = vadd.f32 %v271, %v831
      %v833 = vpop.f32.mrb[0].mxu0
      %834 = vmatprep.mubr.bf16.mxu0 %v662
      %835 = vmatmul.mubr.bf16.gmra.mrb[0].mxu0 %v483
      %v836 = vpop.f32.mrb[0].mxu0
      %v837 = vadd.f32 %v271, %v836
      %v838 = vpop.f32.mrb[0].mxu0
      %v839 = vpop.f32.mrb[0].mxu0
      %v840 = vadd.f32 %v271, %v839
      %v841 = vpop.f32.mrb[0].mxu0
      %842 = vmatprep.mubr.bf16.mxu0 %v665
      %843 = vmatmul.mubr.bf16.gmra.mrb[0].mxu0 %v485
      %v844 = vpop.f32.mrb[0].mxu0
      %v845 = vadd.f32 %v271, %v844
      %v846 = vpop.f32.mrb[0].mxu0
      %v847 = vpop.f32.mrb[0].mxu0
      %v848 = vadd.f32 %v271, %v847
      %v849 = vpop.f32.mrb[0].mxu0
      %850 = vmatprep.mubr.bf16.mxu0 %v668
      %851 = vmatmul.mubr.bf16.gmra.mrb[0].mxu0 %v487
      %v852 = vpop.f32.mrb[0].mxu0
      %v853 = vadd.f32 %v271, %v852
      %v854 = vpop.f32.mrb[0].mxu0
      %v855 = vpop.f32.mrb[0].mxu0
      %v856 = vadd.f32 %v271, %v855
      %v857 = vpop.f32.mrb[0].mxu0
      %858 = vmatprep.mubr.bf16.mxu0 %v671
      %859 = vmatmul.mubr.bf16.gmra.mrb[0].mxu0 %v489
      %v860 = vpop.f32.mrb[0].mxu0
      %v861 = vadd.f32 %v271, %v860
      %v862 = vpop.f32.mrb[0].mxu0
      %v863 = vpop.f32.mrb[0].mxu0
      %v864 = vadd.f32 %v271, %v863
      %v865 = vpop.f32.mrb[0].mxu0
      %866 = vmatprep.mubr.bf16.mxu0 %v674
      %867 = vmatmul.mubr.bf16.gmra.mrb[0].mxu0 %v491
      %v868 = vpop.f32.mrb[0].mxu0
      %v869 = vadd.f32 %v271, %v868
      %v870 = vpop.f32.mrb[0].mxu0
      %v871 = vpop.f32.mrb[0].mxu0
      %v872 = vadd.f32 %v271, %v871
      %v873 = vpop.f32.mrb[0].mxu0
      %874 = vmatprep.mubr.bf16.mxu0 %v677
      %875 = vmatmul.mubr.bf16.gmra.mrb[0].mxu0 %v493
      %v876 = vpop.f32.mrb[0].mxu0
      %v877 = vadd.f32 %v271, %v876
      %v878 = vpop.f32.mrb[0].mxu0
      %v879 = vpop.f32.mrb[0].mxu0
      %v880 = vadd.f32 %v271, %v879
      %v881 = vpop.f32.mrb[0].mxu0
      %882 = vmatprep.mubr.bf16.mxu0 %v680
      %883 = vmatmul.mubr.bf16.gmra.mrb[0].mxu0 %v495
      %v884 = vpop.f32.mrb[0].mxu0
      %v885 = vadd.f32 %v271, %v884
      %v886 = vpop.f32.mrb[0].mxu0
      %v887 = vpop.f32.mrb[0].mxu0
      %v888 = vadd.f32 %v271, %v887
      %v889 = vpop.f32.mrb[0].mxu0
      %890 = vmatprep.mubr.bf16.mxu0 %v683
      %891 = vmatmul.mubr.bf16.gmra.mrb[0].mxu0 %v497
      %v892 = vpop.f32.mrb[0].mxu0
      %v893 = vadd.f32 %v271, %v892
      %v894 = vpop.f32.mrb[0].mxu0
      %v895 = vpop.f32.mrb[0].mxu0
      %v896 = vadd.f32 %v271, %v895
      %v897 = vpop.f32.mrb[0].mxu0
      %898 = vmatprep.mubr.bf16.mxu0 %v686
      %899 = vmatmul.mubr.bf16.gmra.mrb[0].mxu0 %v499
      %v900 = vpop.f32.mrb[0].mxu0
      %v901 = vadd.f32 %v271, %v900
      %v902 = vpop.f32.mrb[0].mxu0
      %v903 = vpop.f32.mrb[0].mxu0
      %v904 = vadd.f32 %v271, %v903
      %v905 = vpop.f32.mrb[0].mxu0
      %906 = vmatprep.mubr.bf16.mxu0 %v689
      %907 = vmatmul.mubr.bf16.gmra.mrb[0].mxu0 %v501
      %v908 = vpop.f32.mrb[0].mxu0
      %v909 = vadd.f32 %v271, %v908
      %v910 = vpop.f32.mrb[0].mxu0
      %v911 = vpop.f32.mrb[0].mxu0
      %v912 = vadd.f32 %v271, %v911
      %v913 = vpop.f32.mrb[0].mxu0
      %914 = vmatprep.mubr.bf16.mxu0 %v692
      %915 = vmatmul.mubr.bf16.gmra.mrb[0].mxu0 %v503
      %v916 = vpop.f32.mrb[0].mxu0
      %v917 = vadd.f32 %v271, %v916
      %v918 = vpop.f32.mrb[0].mxu0
      %v919 = vpop.f32.mrb[0].mxu0
      %v920 = vadd.f32 %v271, %v919
      %v921 = vpop.f32.mrb[0].mxu0
      %922 = vmatprep.mubr.bf16.mxu0 %v695
      %923 = vmatmul.mubr.bf16.gmra.mrb[0].mxu0 %v505
      %v924 = vpop.f32.mrb[0].mxu0
      %v925 = vadd.f32 %v271, %v924
      %v926 = vpop.f32.mrb[0].mxu0
      %v927 = vpop.f32.mrb[0].mxu0
      %v928 = vadd.f32 %v271, %v927
      %v929 = vpop.f32.mrb[0].mxu0
      %930 = vmatprep.mubr.bf16.mxu0 %v698
      %931 = vmatmul.mubr.bf16.gmra.mrb[0].mxu0 %v507
      %v932 = vpop.f32.mrb[0].mxu0
      %v933 = vadd.f32 %v271, %v932
      %v934 = vpop.f32.mrb[0].mxu0
      %v935 = vpop.f32.mrb[0].mxu0
      %v936 = vadd.f32 %v271, %v935
      %v937 = vpop.f32.mrb[0].mxu0
      %938 = vmatprep.mubr.bf16.mxu0 %v701
      %939 = vmatmul.mubr.bf16.gmra.mrb[0].mxu0 %v509
      %v940 = vpop.f32.mrb[0].mxu0
      %v941 = vadd.f32 %v271, %v940
      %v942 = vpop.f32.mrb[0].mxu0
      %v943 = vpop.f32.mrb[0].mxu0
      %v944 = vadd.f32 %v271, %v943
      %v945 = vpop.f32.mrb[0].mxu0
      %946 = vmatprep.mubr.bf16.mxu0 %v704
      %947 = vmatmul.mubr.bf16.gmra.mrb[0].mxu0 %v511
      %v948 = vpop.f32.mrb[0].mxu0
      %v949 = vadd.f32 %v271, %v948
      %v950 = vpop.f32.mrb[0].mxu0
      %v951 = vpop.f32.mrb[0].mxu0
      %v952 = vadd.f32 %v271, %v951
      %v953 = vpop.f32.mrb[0].mxu0
      %954 = vmatprep.mubr.bf16.mxu0 %v707
      %955 = vmatmul.mubr.bf16.gmra.mrb[0].mxu0 %v513
      %v956 = vpop.f32.mrb[0].mxu0
      %v957 = vadd.f32 %v271, %v956
      %v958 = vpop.f32.mrb[0].mxu0
      %v959 = vpop.f32.mrb[0].mxu0
      %v960 = vadd.f32 %v271, %v959
      %v961 = vpop.f32.mrb[0].mxu0
      %962 = vmatprep.mubr.bf16.mxu0 %v710
      %963 = vmatmul.mubr.bf16.gmra.mrb[0].mxu0 %v515
      %v964 = vpop.f32.mrb[0].mxu0
      %v965 = vadd.f32 %v271, %v964
      %v966 = vpop.f32.mrb[0].mxu0
      %v967 = vpop.f32.mrb[0].mxu0
      %v968 = vadd.f32 %v271, %v967
      %v969 = vpop.f32.mrb[0].mxu0
      %970 = vmatprep.mubr.bf16.mxu0 %v713
      %971 = vmatmul.mubr.bf16.gmra.mrb[0].mxu0 %v517
      %v972 = vpop.f32.mrb[0].mxu0
      %v973 = vadd.f32 %v271, %v972
      %v974 = vpop.f32.mrb[0].mxu0
      %v975 = vpop.f32.mrb[0].mxu0
      %v976 = vadd.f32 %v271, %v975
      %v977 = vpop.f32.mrb[0].mxu0
      %978 = vmatprep.mubr.bf16.mxu0 %v716
      %979 = vmatmul.mubr.bf16.gmra.mrb[0].mxu0 %v519
      %v980 = vpop.f32.mrb[0].mxu0
      %v981 = vadd.f32 %v271, %v980
      %v982 = vpop.f32.mrb[0].mxu0
      %v983 = vpop.f32.mrb[0].mxu0
      %v984 = vadd.f32 %v271, %v983
      %v985 = vpop.f32.mrb[0].mxu0
      %986 = vmatprep.mubr.bf16.mxu0 %v719
      %987 = vmatmul.mubr.bf16.gmra.mrb[0].mxu0 %v521
      %v988 = vpop.f32.mrb[0].mxu0
      %v989 = vadd.f32 %v271, %v988
      %v990 = vpop.f32.mrb[0].mxu0
      %v991 = vpop.f32.mrb[0].mxu0
      %v992 = vadd.f32 %v271, %v991
      %v993 = vpop.f32.mrb[0].mxu0
      %994 = vmatprep.mubr.bf16.mxu0 %v722
      %995 = vmatmul.mubr.bf16.gmra.mrb[0].mxu0 %v523
      %v996 = vpop.f32.mrb[0].mxu0
      %v997 = vadd.f32 %v271, %v996
      %v998 = vpop.f32.mrb[0].mxu0
      %v999 = vpop.f32.mrb[0].mxu0
      %v1000 = vadd.f32 %v271, %v999
      %v1001 = vpop.f32.mrb[0].mxu0
      %1002 = vmatprep.mubr.bf16.mxu0 %v725
      %1003 = vmatmul.mubr.bf16.gmra.mrb[0].mxu0 %v525
      %v1004 = vpop.f32.mrb[0].mxu0
      %v1005 = vadd.f32 %v271, %v1004
      %v1006 = vpop.f32.mrb[0].mxu0
      %v1007 = vpop.f32.mrb[0].mxu0
      %v1008 = vadd.f32 %v271, %v1007
      %v1009 = vpop.f32.mrb[0].mxu0
      %1010 = vmatprep.mubr.bf16.mxu0 %v728
      %1011 = vmatmul.mubr.bf16.gmra.mrb[0].mxu0 %v527
      %v1012 = vpop.f32.mrb[0].mxu0
      %v1013 = vadd.f32 %v271, %v1012
      %v1014 = vpop.f32.mrb[0].mxu0
      %v1015 = vpop.f32.mrb[0].mxu0
      %v1016 = vadd.f32 %v271, %v1015
      %v1017 = vpop.f32.mrb[0].mxu0
      %1018 = vdwg.mxu0
      %v1019 = vmax.f32 %v765, 0.0
      %v1020 = vmax.f32 %v768, 0.0
      %v1021 = vmax.f32 %v773, 0.0
      %v1022 = vmax.f32 %v776, 0.0
      %v1023 = vmax.f32 %v781, 0.0
      %v1024 = vmax.f32 %v784, 0.0
      %v1025 = vmax.f32 %v789, 0.0
      %v1026 = vmax.f32 %v792, 0.0
      %v1027 = vmax.f32 %v797, 0.0
      %v1028 = vmax.f32 %v800, 0.0
      %v1029 = vmax.f32 %v805, 0.0
      %v1030 = vmax.f32 %v808, 0.0
      %v1031 = vmax.f32 %v813, 0.0
      %v1032 = vmax.f32 %v816, 0.0
      %v1033 = vmax.f32 %v821, 0.0
      %v1034 = vmax.f32 %v824, 0.0
      %v1035 = vmax.f32 %v829, 0.0
      %v1036 = vmax.f32 %v832, 0.0
      %v1037 = vmax.f32 %v837, 0.0
      %v1038 = vmax.f32 %v840, 0.0
      %v1039 = vmax.f32 %v845, 0.0
      %v1040 = vmax.f32 %v848, 0.0
      %v1041 = vmax.f32 %v853, 0.0
      %v1042 = vmax.f32 %v856, 0.0
      %v1043 = vmax.f32 %v861, 0.0
      %v1044 = vmax.f32 %v864, 0.0
      %v1045 = vmax.f32 %v869, 0.0
      %v1046 = vmax.f32 %v872, 0.0
      %v1047 = vmax.f32 %v877, 0.0
      %v1048 = vmax.f32 %v880, 0.0
      %v1049 = vmax.f32 %v885, 0.0
      %v1050 = vmax.f32 %v888, 0.0
      %v1051 = vmax.f32 %v893, 0.0
      %v1052 = vmax.f32 %v896, 0.0
      %v1053 = vmax.f32 %v901, 0.0
      %v1054 = vmax.f32 %v904, 0.0
      %v1055 = vmax.f32 %v909, 0.0
      %v1056 = vmax.f32 %v912, 0.0
      %v1057 = vmax.f32 %v917, 0.0
      %v1058 = vmax.f32 %v920, 0.0
      %v1059 = vmax.f32 %v925, 0.0
      %v1060 = vmax.f32 %v928, 0.0
      %v1061 = vmax.f32 %v933, 0.0
      %v1062 = vmax.f32 %v936, 0.0
      %v1063 = vmax.f32 %v941, 0.0
      %v1064 = vmax.f32 %v944, 0.0
      %v1065 = vmax.f32 %v949, 0.0
      %v1066 = vmax.f32 %v952, 0.0
      %v1067 = vmax.f32 %v957, 0.0
      %v1068 = vmax.f32 %v960, 0.0
      %v1069 = vmax.f32 %v965, 0.0
      %v1070 = vmax.f32 %v968, 0.0
      %v1071 = vmax.f32 %v973, 0.0
      %v1072 = vmax.f32 %v976, 0.0
      %v1073 = vmax.f32 %v981, 0.0
      %v1074 = vmax.f32 %v984, 0.0
      %v1075 = vmax.f32 %v989, 0.0
      %v1076 = vmax.f32 %v992, 0.0
      %v1077 = vmax.f32 %v997, 0.0
      %v1078 = vmax.f32 %v1000, 0.0
      %v1079 = vmax.f32 %v1005, 0.0
      %v1080 = vmax.f32 %v1008, 0.0
      %v1081 = vmax.f32 %v1013, 0.0
      %v1082 = vmax.f32 %v1016, 0.0
      %v1083 = vpack.c.bf16 %v1020, %v1019
      %v1084 = vpack.c.bf16 %v1022, %v1021
      %v1085 = vpack.c.bf16 %v1024, %v1023
      %v1086 = vpack.c.bf16 %v1026, %v1025
      %v1087 = vpack.c.bf16 %v1028, %v1027
      %v1088 = vpack.c.bf16 %v1030, %v1029
      %v1089 = vpack.c.bf16 %v1032, %v1031
      %v1090 = vpack.c.bf16 %v1034, %v1033
      %v1091 = vpack.c.bf16 %v1036, %v1035
      %v1092 = vpack.c.bf16 %v1038, %v1037
      %v1093 = vpack.c.bf16 %v1040, %v1039
      %v1094 = vpack.c.bf16 %v1042, %v1041
      %v1095 = vpack.c.bf16 %v1044, %v1043
      %v1096 = vpack.c.bf16 %v1046, %v1045
      %v1097 = vpack.c.bf16 %v1048, %v1047
      %v1098 = vpack.c.bf16 %v1050, %v1049
      %v1099 = vpack.c.bf16 %v1052, %v1051
      %v1100 = vpack.c.bf16 %v1054, %v1053
      %v1101 = vpack.c.bf16 %v1056, %v1055
      %v1102 = vpack.c.bf16 %v1058, %v1057
      %v1103 = vpack.c.bf16 %v1060, %v1059
      %v1104 = vpack.c.bf16 %v1062, %v1061
      %v1105 = vpack.c.bf16 %v1064, %v1063
      %v1106 = vpack.c.bf16 %v1066, %v1065
      %v1107 = vpack.c.bf16 %v1068, %v1067
      %v1108 = vpack.c.bf16 %v1070, %v1069
      %v1109 = vpack.c.bf16 %v1072, %v1071
      %v1110 = vpack.c.bf16 %v1074, %v1073
      %v1111 = vpack.c.bf16 %v1076, %v1075
      %v1112 = vpack.c.bf16 %v1078, %v1077
      %v1113 = vpack.c.bf16 %v1080, %v1079
      %v1114 = vpack.c.bf16 %v1082, %v1081
      %v1147 = vunpack.c.l.b16 %v1083
      %v1148 = vunpack.c.h.b16 %v1083
      %v1149 = vunpack.c.l.b16 %v1084
      %v1150 = vunpack.c.h.b16 %v1084
      %v1151 = vunpack.c.l.b16 %v1085
      %v1152 = vunpack.c.h.b16 %v1085
      %v1153 = vunpack.c.l.b16 %v1086
      %v1154 = vunpack.c.h.b16 %v1086
      %v1155 = vunpack.c.l.b16 %v1087
      %v1156 = vunpack.c.h.b16 %v1087
      %v1157 = vunpack.c.l.b16 %v1088
      %v1158 = vunpack.c.h.b16 %v1088
      %v1159 = vunpack.c.l.b16 %v1089
      %v1160 = vunpack.c.h.b16 %v1089
      %v1161 = vunpack.c.l.b16 %v1090
      %v1162 = vunpack.c.h.b16 %v1090
      %v1163 = vunpack.c.l.b16 %v1091
      %v1164 = vunpack.c.h.b16 %v1091
      %v1165 = vunpack.c.l.b16 %v1092
      %v1166 = vunpack.c.h.b16 %v1092
      %v1167 = vunpack.c.l.b16 %v1093
      %v1168 = vunpack.c.h.b16 %v1093
      %v1169 = vunpack.c.l.b16 %v1094
      %v1170 = vunpack.c.h.b16 %v1094
      %v1171 = vunpack.c.l.b16 %v1095
      %v1172 = vunpack.c.h.b16 %v1095
      %v1173 = vunpack.c.l.b16 %v1096
      %v1174 = vunpack.c.h.b16 %v1096
      %v1175 = vunpack.c.l.b16 %v1097
      %v1176 = vunpack.c.h.b16 %v1097
      %v1177 = vunpack.c.l.b16 %v1098
      %v1178 = vunpack.c.h.b16 %v1098
      %v1179 = vunpack.c.l.b16 %v1099
      %v1180 = vunpack.c.h.b16 %v1099
      %v1181 = vunpack.c.l.b16 %v1100
      %v1182 = vunpack.c.h.b16 %v1100
      %v1183 = vunpack.c.l.b16 %v1101
      %v1184 = vunpack.c.h.b16 %v1101
      %v1185 = vunpack.c.l.b16 %v1102
      %v1186 = vunpack.c.h.b16 %v1102
      %v1187 = vunpack.c.l.b16 %v1103
      %v1188 = vunpack.c.h.b16 %v1103
      %v1189 = vunpack.c.l.b16 %v1104
      %v1190 = vunpack.c.h.b16 %v1104
      %v1191 = vunpack.c.l.b16 %v1105
      %v1192 = vunpack.c.h.b16 %v1105
      %v1193 = vunpack.c.l.b16 %v1106
      %v1194 = vunpack.c.h.b16 %v1106
      %v1195 = vunpack.c.l.b16 %v1107
      %v1196 = vunpack.c.h.b16 %v1107
      %v1197 = vunpack.c.l.b16 %v1108
      %v1198 = vunpack.c.h.b16 %v1108
      %v1199 = vunpack.c.l.b16 %v1109
      %v1200 = vunpack.c.h.b16 %v1109
      %v1201 = vunpack.c.l.b16 %v1110
      %v1202 = vunpack.c.h.b16 %v1110
      %v1203 = vunpack.c.l.b16 %v1111
      %v1204 = vunpack.c.h.b16 %v1111
      %v1205 = vunpack.c.l.b16 %v1112
      %v1206 = vunpack.c.h.b16 %v1112
      %v1207 = vunpack.c.l.b16 %v1113
      %v1208 = vunpack.c.h.b16 %v1113
      %v1209 = vunpack.c.l.b16 %v1114
      %v1210 = vunpack.c.h.b16 %v1114
      %v1211 = vpack.c.b16 %v1147, %v1147
      %v1212 = vpack.c.b16 %v1148, %v1148
      %v1213 = vpack.c.b16 %v1149, %v1149
      %v1214 = vpack.c.b16 %v1150, %v1150
      %v1215 = vpack.c.b16 %v1151, %v1151
      %v1216 = vpack.c.b16 %v1152, %v1152
      %v1217 = vpack.c.b16 %v1153, %v1153
      %v1218 = vpack.c.b16 %v1154, %v1154
      %v1219 = vpack.c.b16 %v1155, %v1155
      %v1220 = vpack.c.b16 %v1156, %v1156
      %v1221 = vpack.c.b16 %v1157, %v1157
      %v1222 = vpack.c.b16 %v1158, %v1158
      %v1223 = vpack.c.b16 %v1159, %v1159
      %v1224 = vpack.c.b16 %v1160, %v1160
      %v1225 = vpack.c.b16 %v1161, %v1161
      %v1226 = vpack.c.b16 %v1162, %v1162
      %v1227 = vpack.c.b16 %v1163, %v1163
      %v1228 = vpack.c.b16 %v1164, %v1164
      %v1229 = vpack.c.b16 %v1165, %v1165
      %v1230 = vpack.c.b16 %v1166, %v1166
      %v1231 = vpack.c.b16 %v1167, %v1167
      %v1232 = vpack.c.b16 %v1168, %v1168
      %v1233 = vpack.c.b16 %v1169, %v1169
      %v1234 = vpack.c.b16 %v1170, %v1170
      %v1235 = vpack.c.b16 %v1171, %v1171
      %v1236 = vpack.c.b16 %v1172, %v1172
      %v1237 = vpack.c.b16 %v1173, %v1173
      %v1238 = vpack.c.b16 %v1174, %v1174
      %v1239 = vpack.c.b16 %v1175, %v1175
      %v1240 = vpack.c.b16 %v1176, %v1176
      %v1241 = vpack.c.b16 %v1177, %v1177
      %v1242 = vpack.c.b16 %v1178, %v1178
      %v1243 = vpack.c.b16 %v1179, %v1179
      %v1244 = vpack.c.b16 %v1180, %v1180
      %v1245 = vpack.c.b16 %v1181, %v1181
      %v1246 = vpack.c.b16 %v1182, %v1182
      %v1247 = vpack.c.b16 %v1183, %v1183
      %v1248 = vpack.c.b16 %v1184, %v1184
      %v1249 = vpack.c.b16 %v1185, %v1185
      %v1250 = vpack.c.b16 %v1186, %v1186
      %v1251 = vpack.c.b16 %v1187, %v1187
      %v1252 = vpack.c.b16 %v1188, %v1188
      %v1253 = vpack.c.b16 %v1189, %v1189
      %v1254 = vpack.c.b16 %v1190, %v1190
      %v1255 = vpack.c.b16 %v1191, %v1191
      %v1256 = vpack.c.b16 %v1192, %v1192
      %v1257 = vpack.c.b16 %v1193, %v1193
      %v1258 = vpack.c.b16 %v1194, %v1194
      %v1259 = vpack.c.b16 %v1195, %v1195
      %v1260 = vpack.c.b16 %v1196, %v1196
      %v1261 = vpack.c.b16 %v1197, %v1197
      %v1262 = vpack.c.b16 %v1198, %v1198
      %v1263 = vpack.c.b16 %v1199, %v1199
      %v1264 = vpack.c.b16 %v1200, %v1200
      %v1265 = vpack.c.b16 %v1201, %v1201
      %v1266 = vpack.c.b16 %v1202, %v1202
      %v1267 = vpack.c.b16 %v1203, %v1203
      %v1268 = vpack.c.b16 %v1204, %v1204
      %v1269 = vpack.c.b16 %v1205, %v1205
      %v1270 = vpack.c.b16 %v1206, %v1206
      %v1271 = vpack.c.b16 %v1207, %v1207
      %v1272 = vpack.c.b16 %v1208, %v1208
      %v1273 = vpack.c.b16 %v1209, %v1209
      %v1274 = vpack.c.b16 %v1210, %v1210
      %1339 = vst [vmem:[%s175] sm:$0xf] %v1211
      %1340 = vst [vmem:[%s175 + $0x4] sm:$0xf] %v1212
      %1341 = vst [vmem:[%s175 + $0x8] sm:$0xf] %v1213
      %1342 = vst [vmem:[%s175 + $0xc] sm:$0xf] %v1214
      %1343 = vst [vmem:[%s175 + $0x10] sm:$0xf] %v1215
      %1344 = vst [vmem:[%s175 + $0x14] sm:$0xf] %v1216
      %1345 = vst [vmem:[%s175 + $0x18] sm:$0xf] %v1217
      %1346 = vst [vmem:[%s175 + $0x1c] sm:$0xf] %v1218
      %1347 = vst [vmem:[%s175 + $0x20] sm:$0xf] %v1219
      %1348 = vst [vmem:[%s175 + $0x24] sm:$0xf] %v1220
      %1349 = vst [vmem:[%s175 + $0x28] sm:$0xf] %v1221
      %1350 = vst [vmem:[%s175 + $0x2c] sm:$0xf] %v1222
      %1351 = vst [vmem:[%s175 + $0x30] sm:$0xf] %v1223
      %1352 = vst [vmem:[%s175 + $0x34] sm:$0xf] %v1224
      %1353 = vst [vmem:[%s175 + $0x38] sm:$0xf] %v1225
      %1354 = vst [vmem:[%s175 + $0x3c] sm:$0xf] %v1226
      %1355 = vst [vmem:[%s175 + $0x40] sm:$0xf] %v1227
      %1356 = vst [vmem:[%s175 + $0x44] sm:$0xf] %v1228
      %1357 = vst [vmem:[%s175 + $0x48] sm:$0xf] %v1229
      %1358 = vst [vmem:[%s175 + $0x4c] sm:$0xf] %v1230
      %1359 = vst [vmem:[%s175 + $0x50] sm:$0xf] %v1231
      %1360 = vst [vmem:[%s175 + $0x54] sm:$0xf] %v1232
      %1361 = vst [vmem:[%s175 + $0x58] sm:$0xf] %v1233
      %1362 = vst [vmem:[%s175 + $0x5c] sm:$0xf] %v1234
      %1363 = vst [vmem:[%s175 + $0x60] sm:$0xf] %v1235
      %1364 = vst [vmem:[%s175 + $0x64] sm:$0xf] %v1236
      %1365 = vst [vmem:[%s175 + $0x68] sm:$0xf] %v1237
      %1366 = vst [vmem:[%s175 + $0x6c] sm:$0xf] %v1238
      %1367 = vst [vmem:[%s175 + $0x70] sm:$0xf] %v1239
      %1368 = vst [vmem:[%s175 + $0x74] sm:$0xf] %v1240
      %1369 = vst [vmem:[%s175 + $0x78] sm:$0xf] %v1241
      %1370 = vst [vmem:[%s175 + $0x7c] sm:$0xf] %v1242
      %1371 = vst [vmem:[%s175 + $0x80] sm:$0xf] %v1243
      %1372 = vst [vmem:[%s175 + $0x84] sm:$0xf] %v1244
      %1373 = vst [vmem:[%s175 + $0x88] sm:$0xf] %v1245
      %1374 = vst [vmem:[%s175 + $0x8c] sm:$0xf] %v1246
      %1375 = vst [vmem:[%s175 + $0x90] sm:$0xf] %v1247
      %1376 = vst [vmem:[%s175 + $0x94] sm:$0xf] %v1248
      %1377 = vst [vmem:[%s175 + $0x98] sm:$0xf] %v1249
      %1378 = vst [vmem:[%s175 + $0x9c] sm:$0xf] %v1250
      %1379 = vst [vmem:[%s175 + $0xa0] sm:$0xf] %v1251
      %1380 = vst [vmem:[%s175 + $0xa4] sm:$0xf] %v1252
      %1381 = vst [vmem:[%s175 + $0xa8] sm:$0xf] %v1253
      %1382 = vst [vmem:[%s175 + $0xac] sm:$0xf] %v1254
      %1383 = vst [vmem:[%s175 + $0xb0] sm:$0xf] %v1255
      %1384 = vst [vmem:[%s175 + $0xb4] sm:$0xf] %v1256
      %1385 = vst [vmem:[%s175 + $0xb8] sm:$0xf] %v1257
      %1386 = vst [vmem:[%s175 + $0xbc] sm:$0xf] %v1258
      %1387 = vst [vmem:[%s175 + $0xc0] sm:$0xf] %v1259
      %1388 = vst [vmem:[%s175 + $0xc4] sm:$0xf] %v1260
      %1389 = vst [vmem:[%s175 + $0xc8] sm:$0xf] %v1261
      %1390 = vst [vmem:[%s175 + $0xcc] sm:$0xf] %v1262
      %1391 = vst [vmem:[%s175 + $0xd0] sm:$0xf] %v1263
      %1392 = vst [vmem:[%s175 + $0xd4] sm:$0xf] %v1264
      %1393 = vst [vmem:[%s175 + $0xd8] sm:$0xf] %v1265
      %1394 = vst [vmem:[%s175 + $0xdc] sm:$0xf] %v1266
      %1395 = vst [vmem:[%s175 + $0xe0] sm:$0xf] %v1267
      %1396 = vst [vmem:[%s175 + $0xe4] sm:$0xf] %v1268
      %1397 = vst [vmem:[%s175 + $0xe8] sm:$0xf] %v1269
      %1398 = vst [vmem:[%s175 + $0xec] sm:$0xf] %v1270
      %1399 = vst [vmem:[%s175 + $0xf0] sm:$0xf] %v1271
      %1400 = vst [vmem:[%s175 + $0xf4] sm:$0xf] %v1272
      %1401 = vst [vmem:[%s175 + $0xf8] sm:$0xf] %v1273
      %1402 = vst [vmem:[%s175 + $0xfc] sm:$0xf] %v1274
      %s1403 = smul.u32 64, %s14
      %p1404 = scmp.lt.s32.totalorder %s1403, 127
      %s1405 = scalar_select %p1404, %s1403, 127
      %s1406 = smul.addr %s1405, 4
      %s1407 = scalar_lea.vmem %s3, %s1406
      // Predicated region
      $region33: #{convnet_forward.4} parent=31 // pred_check
        %p1408 = pneg %p100
      $region34: #{convnet_forward.4} parent=31 // pred_check_branch
        %1410 = sbr.rel (%p1408) target = $region36
      $region35: #{convnet_forward.4} parent=31 // pred_region
        %s1411 = smul.u32 64, %s14
      $region36: #{convnet_forward.4} parent=31 // pred_fallthru
        _
    $region32: #{convnet_forward.4} parent=5 // pred_fallthru
      _
    %p1412 = scmp.le.s32.totalorder 2, %s9
    // Predicated region
    $region37: #{convnet_forward.4} parent=5 // pred_check
      %p1413 = pneg %p1412
    $region38: #{convnet_forward.4} parent=5 // pred_check_branch
      %1415 = sbr.rel (%p1413) target = $region40
    $region39: #{convnet_forward.4} parent=5 // pred_region
      %s1416 = ssub.s32 %s9, 2
      // Predicated region
      $region41: #{convnet_forward.4} parent=39 // pred_check
        %p1417 = pneg %p106
      $region42: #{convnet_forward.4} parent=39 // pred_check_branch
        %1419 = sbr.rel (%p1417) target = $region44
      $region43: #{convnet_forward.4} parent=39 // pred_region
        %s1420 = smul.u32 64, %s15
        %p1421 = scmp.lt.s32.totalorder %s1420, 127
        %s1422 = scalar_select %p1421, %s1420, 127
        %s1423 = smul.addr %s1422, 4
        %s1424 = scalar_lea.vmem %s3, %s1423
      $region44: #{convnet_forward.4} parent=39 // pred_fallthru
        _
    $region40: #{convnet_forward.4} parent=5 // pred_fallthru
      _
  $region6: #{convnet_forward.4} parent=0 // loop_footer
    %s13 = sadd.s32 1, %s9
  $region7: #{convnet_forward.4} parent=0 // loop_footer_branch
    %8 = sbr.rel target = $region3
  $region8: #{convnet_forward.4} parent=0 // loop_exit
    _

// kernel: convnet_forward.5
$region0: #{convnet_forward.5}
  #allocation0 [shape = 'u32[]', space=smem, size = 0x4, offset = 0x4, fixed_abs, tag = 'smem constant byte address 0x4 - core index']
  #allocation1 [shape = 'u32[144,128]{1,0:T(1,128)}', space=vmem, size = 0x12000, scoped, tag = 'internal scratch']
  %s0 = inlined_call_operand.vmem [shape: bf16[256,512], index: 0, kind: input, shape index: {}]
  %s1 = inlined_call_operand.vmem [shape: bf16[512,128], index: 1, kind: input, shape index: {}]
  %s2 = inlined_call_operand.vmem [shape: f32[1,128], index: 2, kind: input, shape index: {}]
  %s3 = inlined_call_operand.vmem [shape: bf16[256,128], index: 3, kind: output, shape index: {}]
  %s4 = sld [smem:[#allocation0]]
  $region45: #{convnet_forward.5} parent=0
    _
  %s6 = ssub.s32 1, %s4
  %s7 = scalar_select 0, %s6, %s4
  loop: start=0, step=1, limit=4
  $region2: #{convnet_forward.5} parent=0 // loop_pre_header
    _
  $region3: #{convnet_forward.5} parent=0 // loop_header
    %s9 = sphi 0, %s13
    %p10 = scmp.ge.s32.totalorder %s9, 4
    %s19 = sphi 0, %s21
    %s22 = sphi 0, %s19
    %s23 = sphi 0, %s22
    %s39 = sphi 0, %s23
    %s43 = sphi 0, %s43
    %s45 = sphi 0, %s43
    %s46 = sphi 0, %s45
    %s60 = sphi 0, %s46
    %s64 = sphi 0, %s64
    %s66 = sphi 0, %s64
    %s67 = sphi 0, %s66
    %s81 = sphi 0, %s67
    %s87 = sphi 0, %s89
    %s90 = sphi 0, %s87
    %s91 = sphi 0, %s90
    %s107 = sphi 0, %s91
  $region4: #{convnet_forward.5} parent=0 // loop_header_branch
    %12 = sbr.rel (%p10) target = $region8
  $region5: #{convnet_forward.5} parent=0 // loop_body
    %s14 = ssub.s32 %s9, 1
    %s15 = ssub.s32 %s9, 2
    %s16 = sadd.s32 %s9, 1
    %s17 = ssub.s32 %s9, %s16
    %p18 = scmp.eq.s32.totalorder %s17, 0
    %s20 = sadd.s32 %s19, 1
    %s21 = scalar_select %p18, %s19, %s20
    %p24 = pneg %p18
    %p25 = scmp.eq.s32.totalorder %s9, 1
    %p26 = por %p24, %p25
    %p27 = scmp.ne.s32.totalorder %s19, %s22
    %p28 = scmp.eq.s32.totalorder %s9, 0
    %p29 = por %p27, %p28
    %p30 = scmp.ne.s32.totalorder %s19, %s22
    %p31 = scmp.eq.s32.totalorder %s14, 1
    %p32 = por %p30, %p31
    %p33 = scmp.ne.s32.totalorder %s22, %s23
    %p34 = scmp.eq.s32.totalorder %s14, 0
    %p35 = por %p33, %p34
    %p36 = scmp.ne.s32.totalorder %s22, %s23
    %p37 = scmp.eq.s32.totalorder %s15, 1
    %p38 = por %p36, %p37
    %p40 = scmp.ne.s32.totalorder %s23, %s39
    %p41 = scmp.eq.s32.totalorder %s15, 0
    %p42 = por %p40, %p41
    %s44 = sadd.s32 %s43, 1
    %p47 = scmp.eq.s32.totalorder %s9, 1
    %p48 = scmp.ne.s32.totalorder %s43, %s45
    %p49 = scmp.eq.s32.totalorder %s9, 0
    %p50 = por %p48, %p49
    %p51 = scmp.ne.s32.totalorder %s43, %s45
    %p52 = scmp.eq.s32.totalorder %s14, 1
    %p53 = por %p51, %p52
    %p54 = scmp.ne.s32.totalorder %s45, %s46
    %p55 = scmp.eq.s32.totalorder %s14, 0
    %p56 = por %p54, %p55
    %p57 = scmp.ne.s32.totalorder %s45, %s46
    %p58 = scmp.eq.s32.totalorder %s15, 1
    %p59 = por %p57, %p58
    %p61 = scmp.ne.s32.totalorder %s46, %s60
    %p62 = scmp.eq.s32.totalorder %s15, 0
    %p63 = por %p61, %p62
    %s65 = sadd.s32 %s64, 1
    %p68 = scmp.eq.s32.totalorder %s9, 1
    %p69 = scmp.ne.s32.totalorder %s64, %s66
    %p70 = scmp.eq.s32.totalorder %s9, 0
    %p71 = por %p69, %p70
    %p72 = scmp.ne.s32.totalorder %s64, %s66
    %p73 = scmp.eq.s32.totalorder %s14, 1
    %p74 = por %p72, %p73
    %p75 = scmp.ne.s32.totalorder %s66, %s67
    %p76 = scmp.eq.s32.totalorder %s14, 0
    %p77 = por %p75, %p76
    %p78 = scmp.ne.s32.totalorder %s66, %s67
    %p79 = scmp.eq.s32.totalorder %s15, 1
    %p80 = por %p78, %p79
    %p82 = scmp.ne.s32.totalorder %s67, %s81
    %p83 = scmp.eq.s32.totalorder %s15, 0
    %p84 = por %p82, %p83
    %s85 = ssub.s32 %s9, %s16
    %p86 = scmp.eq.s32.totalorder %s85, 0
    %s88 = sadd.s32 %s87, 1
    %s89 = scalar_select %p86, %s87, %s88
    %p92 = pneg %p86
    %p93 = scmp.eq.s32.totalorder %s9, 1
    %p94 = por %p92, %p93
    %p95 = scmp.ne.s32.totalorder %s87, %s90
    %p96 = scmp.eq.s32.totalorder %s9, 0
    %p97 = por %p95, %p96
    %p98 = scmp.ne.s32.totalorder %s87, %s90
    %p99 = scmp.eq.s32.totalorder %s14, 1
    %p100 = por %p98, %p99
    %p101 = scmp.ne.s32.totalorder %s90, %s91
    %p102 = scmp.eq.s32.totalorder %s14, 0
    %p103 = por %p101, %p102
    %p104 = scmp.ne.s32.totalorder %s90, %s91
    %p105 = scmp.eq.s32.totalorder %s15, 1
    %p106 = por %p104, %p105
    %p108 = scmp.ne.s32.totalorder %s91, %s107
    %p109 = scmp.eq.s32.totalorder %s15, 0
    %p110 = por %p108, %p109
    %p111 = scmp.le.s32.totalorder 1, %s9
    %p112 = scmp.lt.s32.totalorder %s9, 3
    %p113 = pnand %p111, %p112
    %p114 = pneg %p113
    // Predicated region
    $region9: #{convnet_forward.5} parent=5 // pred_check
      _
    $region10: #{convnet_forward.5} parent=5 // pred_check_branch
      %116 = sbr.rel (%p113) target = $region12
    $region11: #{convnet_forward.5} parent=5 // pred_region
      %s117 = ssub.s32 %s9, 1
      // Predicated region
      $region13: #{convnet_forward.5} parent=11 // pred_check
        %p118 = pneg %p56
      $region14: #{convnet_forward.5} parent=11 // pred_check_branch
        %120 = sbr.rel (%p118) target = $region16
      $region15: #{convnet_forward.5} parent=11 // pred_region
        _
      $region16: #{convnet_forward.5} parent=11 // pred_fallthru
        _
      // Predicated region
      $region17: #{convnet_forward.5} parent=11 // pred_check
        %p121 = pneg %p77
      $region18: #{convnet_forward.5} parent=11 // pred_check_branch
        %123 = sbr.rel (%p121) target = $region20
      $region19: #{convnet_forward.5} parent=11 // pred_region
        _
      $region20: #{convnet_forward.5} parent=11 // pred_fallthru
        _
    $region12: #{convnet_forward.5} parent=5 // pred_fallthru
      _
    %p124 = scmp.lt.s32.totalorder %s9, 2
    // Predicated region
    $region21: #{convnet_forward.5} parent=5 // pred_check
      %p125 = pneg %p124
    $region22: #{convnet_forward.5} parent=5 // pred_check_branch
      %127 = sbr.rel (%p125) target = $region24
    $region23: #{convnet_forward.5} parent=5 // pred_region
      // Predicated region
      $region25: #{convnet_forward.5} parent=23 // pred_check
        %p128 = pneg %p29
      $region26: #{convnet_forward.5} parent=23 // pred_check_branch
        %130 = sbr.rel (%p128) target = $region28
      $region27: #{convnet_forward.5} parent=23 // pred_region
        %s131 = smul.u32 16, %s9
        %p132 = scmp.lt.s32.totalorder %s131, 31
        %s133 = scalar_select %p132, %s131, 31
        %s134 = smul.addr %s133, 4
        %s135 = smul.addr %s134, 4
        %s136 = scalar_lea.vmem %s0, %s135
        %s137 = smul.u32 16, %s9
      $region28: #{convnet_forward.5} parent=23 // pred_fallthru
        _
    $region24: #{convnet_forward.5} parent=5 // pred_fallthru
      _
    %p138 = scmp.le.s32.totalorder 1, %s9
    %p139 = scmp.lt.s32.totalorder %s9, 3
    %p140 = pnand %p138, %p139
    %p141 = pneg %p140
    // Predicated region
    $region29: #{convnet_forward.5} parent=5 // pred_check
      _
    $region30: #{convnet_forward.5} parent=5 // pred_check_branch
      %143 = sbr.rel (%p140) target = $region32
    $region31: #{convnet_forward.5} parent=5 // pred_region
      %s144 = ssub.s32 %s9, 1
      %s145 = smul.u32 16, %s14
      %p146 = scmp.lt.s32.totalorder %s145, 31
      %s147 = scalar_select %p146, %s145, 31
      %s148 = smul.addr %s147, 4
      %s149 = smul.addr %s148, 4
      %s150 = scalar_lea.vmem %s0, %s149
      %p151 = pneg %p35
      %p152 = pneg %p32
      %p153 = pneg %p56
      %p154 = pneg %p53
      %p155 = pneg %p77
      %p156 = pneg %p74
      %p157 = pneg %p103
      %p158 = pneg %p100
      %s159 = smul.u32 16, %s14
      %p160 = scmp.lt.s32.totalorder %s159, 31
      %s161 = scalar_select %p160, %s159, 31
      %s162 = smul.addr %s161, 4
      %s163 = scalar_lea.vmem %s3, %s162
      %s164 = smul.u32 16, %s14
      %p165 = scmp.lt.s32.totalorder %s164, 31
      %s166 = scalar_select %p165, %s164, 31
      %s167 = smul.addr %s166, 4
      %s168 = smul.addr %s167, 4
      %s169 = scalar_lea.vmem %s0, %s168
      %s170 = smul.u32 16, %s14
      %s171 = smul.u32 16, %s14
      %p172 = scmp.lt.s32.totalorder %s171, 31
      %s173 = scalar_select %p172, %s171, 31
      %s174 = smul.addr %s173, 4
      %s175 = scalar_lea.vmem %s3, %s174
      %s176 = smul.u32 16, %s14
      %v178 = vld [vmem:[%s169] sm:$0xff]
      %v179 = vld [vmem:[%s169 + $0x8] sm:$0xff]
      %v180 = vld [vmem:[%s169 + $0x10] sm:$0xff]
      %v181 = vld [vmem:[%s169 + $0x18] sm:$0xff]
      %v182 = vld [vmem:[%s169 + $0x20] sm:$0xff]
      %v183 = vld [vmem:[%s169 + $0x28] sm:$0xff]
      %v184 = vld [vmem:[%s169 + $0x30] sm:$0xff]
      %v185 = vld [vmem:[%s169 + $0x38] sm:$0xff]
      %v186 = vld [vmem:[%s169 + $0x40] sm:$0xff]
      %v187 = vld [vmem:[%s169 + $0x48] sm:$0xff]
      %v188 = vld [vmem:[%s169 + $0x50] sm:$0xff]
      %v189 = vld [vmem:[%s169 + $0x58] sm:$0xff]
      %v190 = vld [vmem:[%s169 + $0x60] sm:$0xff]
      %v191 = vld [vmem:[%s169 + $0x68] sm:$0xff]
      %v192 = vld [vmem:[%s169 + $0x70] sm:$0xff]
      %v193 = vld [vmem:[%s169 + $0x78] sm:$0xff]
      %v194 = vld [vmem:[%s169 + $0x80] sm:$0xff]
      %v195 = vld [vmem:[%s169 + $0x88] sm:$0xff]
      %v196 = vld [vmem:[%s169 + $0x90] sm:$0xff]
      %v197 = vld [vmem:[%s169 + $0x98] sm:$0xff]
      %v198 = vld [vmem:[%s169 + $0xa0] sm:$0xff]
      %v199 = vld [vmem:[%s169 + $0xa8] sm:$0xff]
      %v200 = vld [vmem:[%s169 + $0xb0] sm:$0xff]
      %v201 = vld [vmem:[%s169 + $0xb8] sm:$0xff]
      %v202 = vld [vmem:[%s169 + $0xc0] sm:$0xff]
      %v203 = vld [vmem:[%s169 + $0xc8] sm:$0xff]
      %v204 = vld [vmem:[%s169 + $0xd0] sm:$0xff]
      %v205 = vld [vmem:[%s169 + $0xd8] sm:$0xff]
      %v206 = vld [vmem:[%s169 + $0xe0] sm:$0xff]
      %v207 = vld [vmem:[%s169 + $0xe8] sm:$0xff]
      %v208 = vld [vmem:[%s169 + $0xf0] sm:$0xff]
      %v209 = vld [vmem:[%s169 + $0xf8] sm:$0xff]
      %v210 = vld [vmem:[%s1] sm:$0xf]
      %v211 = vld [vmem:[%s1 + $0x4] sm:$0xf]
      %v212 = vld [vmem:[%s1 + $0x8] sm:$0xf]
      %v213 = vld [vmem:[%s1 + $0xc] sm:$0xf]
      %v214 = vld [vmem:[%s1 + $0x10] sm:$0xf]
      %v215 = vld [vmem:[%s1 + $0x14] sm:$0xf]
      %v216 = vld [vmem:[%s1 + $0x18] sm:$0xf]
      %v217 = vld [vmem:[%s1 + $0x1c] sm:$0xf]
      %v218 = vld [vmem:[%s1 + $0x20] sm:$0xf]
      %v219 = vld [vmem:[%s1 + $0x24] sm:$0xf]
      %v220 = vld [vmem:[%s1 + $0x28] sm:$0xf]
      %v221 = vld [vmem:[%s1 + $0x2c] sm:$0xf]
      %v222 = vld [vmem:[%s1 + $0x30] sm:$0xf]
      %v223 = vld [vmem:[%s1 + $0x34] sm:$0xf]
      %v224 = vld [vmem:[%s1 + $0x38] sm:$0xf]
      %v225 = vld [vmem:[%s1 + $0x3c] sm:$0xf]
      %v226 = vld [vmem:[%s1 + $0x40] sm:$0xf]
      %v227 = vld [vmem:[%s1 + $0x44] sm:$0xf]
      %v228 = vld [vmem:[%s1 + $0x48] sm:$0xf]
      %v229 = vld [vmem:[%s1 + $0x4c] sm:$0xf]
      %v230 = vld [vmem:[%s1 + $0x50] sm:$0xf]
      %v231 = vld [vmem:[%s1 + $0x54] sm:$0xf]
      %v232 = vld [vmem:[%s1 + $0x58] sm:$0xf]
      %v233 = vld [vmem:[%s1 + $0x5c] sm:$0xf]
      %v234 = vld [vmem:[%s1 + $0x60] sm:$0xf]
      %v235 = vld [vmem:[%s1 + $0x64] sm:$0xf]
      %v236 = vld [vmem:[%s1 + $0x68] sm:$0xf]
      %v237 = vld [vmem:[%s1 + $0x6c] sm:$0xf]
      %v238 = vld [vmem:[%s1 + $0x70] sm:$0xf]
      %v239 = vld [vmem:[%s1 + $0x74] sm:$0xf]
      %v240 = vld [vmem:[%s1 + $0x78] sm:$0xf]
      %v241 = vld [vmem:[%s1 + $0x7c] sm:$0xf]
      %v242 = vld [vmem:[%s1 + $0x80] sm:$0xf]
      %v243 = vld [vmem:[%s1 + $0x84] sm:$0xf]
      %v244 = vld [vmem:[%s1 + $0x88] sm:$0xf]
      %v245 = vld [vmem:[%s1 + $0x8c] sm:$0xf]
      %v246 = vld [vmem:[%s1 + $0x90] sm:$0xf]
      %v247 = vld [vmem:[%s1 + $0x94] sm:$0xf]
      %v248 = vld [vmem:[%s1 + $0x98] sm:$0xf]
      %v249 = vld [vmem:[%s1 + $0x9c] sm:$0xf]
      %v250 = vld [vmem:[%s1 + $0xa0] sm:$0xf]
      %v251 = vld [vmem:[%s1 + $0xa4] sm:$0xf]
      %v252 = vld [vmem:[%s1 + $0xa8] sm:$0xf]
      %v253 = vld [vmem:[%s1 + $0xac] sm:$0xf]
      %v254 = vld [vmem:[%s1 + $0xb0] sm:$0xf]
      %v255 = vld [vmem:[%s1 + $0xb4] sm:$0xf]
      %v256 = vld [vmem:[%s1 + $0xb8] sm:$0xf]
      %v257 = vld [vmem:[%s1 + $0xbc] sm:$0xf]
      %v258 = vld [vmem:[%s1 + $0xc0] sm:$0xf]
      %v259 = vld [vmem:[%s1 + $0xc4] sm:$0xf]
      %v260 = vld [vmem:[%s1 + $0xc8] sm:$0xf]
      %v261 = vld [vmem:[%s1 + $0xcc] sm:$0xf]
      %v262 = vld [vmem:[%s1 + $0xd0] sm:$0xf]
      %v263 = vld [vmem:[%s1 + $0xd4] sm:$0xf]
      %v264 = vld [vmem:[%s1 + $0xd8] sm:$0xf]
      %v265 = vld [vmem:[%s1 + $0xdc] sm:$0xf]
      %v266 = vld [vmem:[%s1 + $0xe0] sm:$0xf]
      %v267 = vld [vmem:[%s1 + $0xe4] sm:$0xf]
      %v268 = vld [vmem:[%s1 + $0xe8] sm:$0xf]
      %v269 = vld [vmem:[%s1 + $0xec] sm:$0xf]
      %v270 = vld [vmem:[%s1 + $0xf0] sm:$0xf]
      %v271 = vld [vmem:[%s1 + $0xf4] sm:$0xf]
      %v272 = vld [vmem:[%s1 + $0xf8] sm:$0xf]
      %v273 = vld [vmem:[%s1 + $0xfc] sm:$0xf]
      %v274 = vld [vmem:[%s2] sm:$0x1]
      %v276 = vlaneseq
      %v277 = vshrl.u32 %v276, 7
      %v278 = vsub.s32 0, %v277
      %v279 = vrot.slane %v274, %v278
      %v313 = vunpack.c.l.b16 %v178
      %v314 = vunpack.c.h.b16 %v178
      %v315 = vunpack.c.l.b16 %v179
      %v316 = vunpack.c.h.b16 %v179
      %v317 = vunpack.c.l.b16 %v180
      %v318 = vunpack.c.h.b16 %v180
      %v319 = vunpack.c.l.b16 %v181
      %v320 = vunpack.c.h.b16 %v181
      %v321 = vunpack.c.l.b16 %v182
      %v322 = vunpack.c.h.b16 %v182
      %v323 = vunpack.c.l.b16 %v183
      %v324 = vunpack.c.h.b16 %v183
      %v325 = vunpack.c.l.b16 %v184
      %v326 = vunpack.c.h.b16 %v184
      %v327 = vunpack.c.l.b16 %v185
      %v328 = vunpack.c.h.b16 %v185
      %v329 = vunpack.c.l.b16 %v186
      %v330 = vunpack.c.h.b16 %v186
      %v331 = vunpack.c.l.b16 %v187
      %v332 = vunpack.c.h.b16 %v187
      %v333 = vunpack.c.l.b16 %v188
      %v334 = vunpack.c.h.b16 %v188
      %v335 = vunpack.c.l.b16 %v189
      %v336 = vunpack.c.h.b16 %v189
      %v337 = vunpack.c.l.b16 %v190
      %v338 = vunpack.c.h.b16 %v190
      %v339 = vunpack.c.l.b16 %v191
      %v340 = vunpack.c.h.b16 %v191
      %v341 = vunpack.c.l.b16 %v192
      %v342 = vunpack.c.h.b16 %v192
      %v343 = vunpack.c.l.b16 %v193
      %v344 = vunpack.c.h.b16 %v193
      %v345 = vunpack.c.l.b16 %v194
      %v346 = vunpack.c.h.b16 %v194
      %v347 = vunpack.c.l.b16 %v195
      %v348 = vunpack.c.h.b16 %v195
      %v349 = vunpack.c.l.b16 %v196
      %v350 = vunpack.c.h.b16 %v196
      %v351 = vunpack.c.l.b16 %v197
      %v352 = vunpack.c.h.b16 %v197
      %v353 = vunpack.c.l.b16 %v198
      %v354 = vunpack.c.h.b16 %v198
      %v355 = vunpack.c.l.b16 %v199
      %v356 = vunpack.c.h.b16 %v199
      %v357 = vunpack.c.l.b16 %v200
      %v358 = vunpack.c.h.b16 %v200
      %v359 = vunpack.c.l.b16 %v201
      %v360 = vunpack.c.h.b16 %v201
      %v361 = vunpack.c.l.b16 %v202
      %v362 = vunpack.c.h.b16 %v202
      %v363 = vunpack.c.l.b16 %v203
      %v364 = vunpack.c.h.b16 %v203
      %v365 = vunpack.c.l.b16 %v204
      %v366 = vunpack.c.h.b16 %v204
      %v367 = vunpack.c.l.b16 %v205
      %v368 = vunpack.c.h.b16 %v205
      %v369 = vunpack.c.l.b16 %v206
      %v370 = vunpack.c.h.b16 %v206
      %v371 = vunpack.c.l.b16 %v207
      %v372 = vunpack.c.h.b16 %v207
      %v373 = vunpack.c.l.b16 %v208
      %v374 = vunpack.c.h.b16 %v208
      %v375 = vunpack.c.l.b16 %v209
      %v376 = vunpack.c.h.b16 %v209
      %v377 = vpack.c.b16 %v317, %v313
      %v378 = vpack.c.b16 %v318, %v314
      %v379 = vpack.c.b16 %v319, %v315
      %v380 = vpack.c.b16 %v320, %v316
      %v381 = vpack.c.b16 %v325, %v321
      %v382 = vpack.c.b16 %v326, %v322
      %v383 = vpack.c.b16 %v327, %v323
      %v384 = vpack.c.b16 %v328, %v324
      %v385 = vpack.c.b16 %v333, %v329
      %v386 = vpack.c.b16 %v334, %v330
      %v387 = vpack.c.b16 %v335, %v331
      %v388 = vpack.c.b16 %v336, %v332
      %v389 = vpack.c.b16 %v341, %v337
      %v390 = vpack.c.b16 %v342, %v338
      %v391 = vpack.c.b16 %v343, %v339
      %v392 = vpack.c.b16 %v344, %v340
      %v393 = vpack.c.b16 %v349, %v345
      %v394 = vpack.c.b16 %v350, %v346
      %v395 = vpack.c.b16 %v351, %v347
      %v396 = vpack.c.b16 %v352, %v348
      %v397 = vpack.c.b16 %v357, %v353
      %v398 = vpack.c.b16 %v358, %v354
      %v399 = vpack.c.b16 %v359, %v355
      %v400 = vpack.c.b16 %v360, %v356
      %v401 = vpack.c.b16 %v365, %v361
      %v402 = vpack.c.b16 %v366, %v362
      %v403 = vpack.c.b16 %v367, %v363
      %v404 = vpack.c.b16 %v368, %v364
      %v405 = vpack.c.b16 %v373, %v369
      %v406 = vpack.c.b16 %v374, %v370
      %v407 = vpack.c.b16 %v375, %v371
      %v408 = vpack.c.b16 %v376, %v372
      %v505 = vunpack.c.l.b16 %v210
      %v506 = vunpack.c.l.b16 %v211
      %v507 = vunpack.c.l.b16 %v212
      %v508 = vunpack.c.l.b16 %v213
      %v509 = vunpack.c.l.b16 %v214
      %v510 = vunpack.c.l.b16 %v215
      %v511 = vunpack.c.l.b16 %v216
      %v512 = vunpack.c.l.b16 %v217
      %v513 = vunpack.c.l.b16 %v218
      %v514 = vunpack.c.l.b16 %v219
      %v515 = vunpack.c.l.b16 %v220
      %v516 = vunpack.c.l.b16 %v221
      %v517 = vunpack.c.l.b16 %v222
      %v518 = vunpack.c.l.b16 %v223
      %v519 = vunpack.c.l.b16 %v224
      %v520 = vunpack.c.l.b16 %v225
      %v521 = vunpack.c.l.b16 %v226
      %v522 = vunpack.c.l.b16 %v227
      %v523 = vunpack.c.l.b16 %v228
      %v524 = vunpack.c.l.b16 %v229
      %v525 = vunpack.c.l.b16 %v230
      %v526 = vunpack.c.l.b16 %v231
      %v527 = vunpack.c.l.b16 %v232
      %v528 = vunpack.c.l.b16 %v233
      %v529 = vunpack.c.l.b16 %v234
      %v530 = vunpack.c.l.b16 %v235
      %v531 = vunpack.c.l.b16 %v236
      %v532 = vunpack.c.l.b16 %v237
      %v533 = vunpack.c.l.b16 %v238
      %v534 = vunpack.c.l.b16 %v239
      %v535 = vunpack.c.l.b16 %v240
      %v536 = vunpack.c.l.b16 %v241
      %v537 = vunpack.c.l.b16 %v242
      %v538 = vunpack.c.l.b16 %v243
      %v539 = vunpack.c.l.b16 %v244
      %v540 = vunpack.c.l.b16 %v245
      %v541 = vunpack.c.l.b16 %v246
      %v542 = vunpack.c.l.b16 %v247
      %v543 = vunpack.c.l.b16 %v248
      %v544 = vunpack.c.l.b16 %v249
      %v545 = vunpack.c.l.b16 %v250
      %v546 = vunpack.c.l.b16 %v251
      %v547 = vunpack.c.l.b16 %v252
      %v548 = vunpack.c.l.b16 %v253
      %v549 = vunpack.c.l.b16 %v254
      %v550 = vunpack.c.l.b16 %v255
      %v551 = vunpack.c.l.b16 %v256
      %v552 = vunpack.c.l.b16 %v257
      %v553 = vunpack.c.l.b16 %v258
      %v554 = vunpack.c.l.b16 %v259
      %v555 = vunpack.c.l.b16 %v260
      %v556 = vunpack.c.l.b16 %v261
      %v557 = vunpack.c.l.b16 %v262
      %v558 = vunpack.c.l.b16 %v263
      %v559 = vunpack.c.l.b16 %v264
      %v560 = vunpack.c.l.b16 %v265
      %v561 = vunpack.c.l.b16 %v266
      %v562 = vunpack.c.l.b16 %v267
      %v563 = vunpack.c.l.b16 %v268
      %v564 = vunpack.c.l.b16 %v269
      %v565 = vunpack.c.l.b16 %v270
      %v566 = vunpack.c.l.b16 %v271
      %v567 = vunpack.c.l.b16 %v272
      %v568 = vunpack.c.l.b16 %v273
      %v569 = vpack.c.b16 %v506, %v505
      %v570 = vpack.c.b16 %v508, %v507
      %v571 = vpack.c.b16 %v510, %v509
      %v572 = vpack.c.b16 %v512, %v511
      %v573 = vpack.c.b16 %v514, %v513
      %v574 = vpack.c.b16 %v516, %v515
      %v575 = vpack.c.b16 %v518, %v517
      %v576 = vpack.c.b16 %v520, %v519
      %v577 = vpack.c.b16 %v522, %v521
      %v578 = vpack.c.b16 %v524, %v523
      %v579 = vpack.c.b16 %v526, %v525
      %v580 = vpack.c.b16 %v528, %v527
      %v581 = vpack.c.b16 %v530, %v529
      %v582 = vpack.c.b16 %v532, %v531
      %v583 = vpack.c.b16 %v534, %v533
      %v584 = vpack.c.b16 %v536, %v535
      %v585 = vpack.c.b16 %v538, %v537
      %v586 = vpack.c.b16 %v540, %v539
      %v587 = vpack.c.b16 %v542, %v541
      %v588 = vpack.c.b16 %v544, %v543
      %v589 = vpack.c.b16 %v546, %v545
      %v590 = vpack.c.b16 %v548, %v547
      %v591 = vpack.c.b16 %v550, %v549
      %v592 = vpack.c.b16 %v552, %v551
      %v593 = vpack.c.b16 %v554, %v553
      %v594 = vpack.c.b16 %v556, %v555
      %v595 = vpack.c.b16 %v558, %v557
      %v596 = vpack.c.b16 %v560, %v559
      %v597 = vpack.c.b16 %v562, %v561
      %v598 = vpack.c.b16 %v564, %v563
      %v599 = vpack.c.b16 %v566, %v565
      %v600 = vpack.c.b16 %v568, %v567
      %633 = vmatprep.subr.bf16.mxu0 0
      %634 = vmatpush1.bf16.msra.mxu0 %v569
      %635 = vmatprep.subr.bf16.mxu0 0
      %636 = vmatpush1.bf16.msra.mxu0 %v570
      %637 = vmatprep.subr.bf16.mxu0 0
      %638 = vmatpush1.bf16.msra.mxu0 %v571
      %639 = vmatprep.subr.bf16.mxu0 0
      %640 = vmatpush1.bf16.msra.mxu0 %v572
      %641 = vmatprep.subr.bf16.mxu0 0
      %642 = vmatpush1.bf16.msra.mxu0 %v573
      %643 = vmatprep.subr.bf16.mxu0 0
      %644 = vmatpush1.bf16.msra.mxu0 %v574
      %645 = vmatprep.subr.bf16.mxu0 0
      %646 = vmatpush1.bf16.msra.mxu0 %v575
      %647 = vmatprep.subr.bf16.mxu0 0
      %648 = vmatpush1.bf16.msra.mxu0 %v576
      %649 = vmatprep.subr.bf16.mxu0 0
      %650 = vmatpush1.bf16.msra.mxu0 %v577
      %651 = vmatprep.subr.bf16.mxu0 0
      %652 = vmatpush1.bf16.msra.mxu0 %v578
      %653 = vmatprep.subr.bf16.mxu0 0
      %654 = vmatpush1.bf16.msra.mxu0 %v579
      %655 = vmatprep.subr.bf16.mxu0 0
      %656 = vmatpush1.bf16.msra.mxu0 %v580
      %657 = vmatprep.subr.bf16.mxu0 0
      %658 = vmatpush1.bf16.msra.mxu0 %v581
      %659 = vmatprep.subr.bf16.mxu0 0
      %660 = vmatpush1.bf16.msra.mxu0 %v582
      %661 = vmatprep.subr.bf16.mxu0 0
      %662 = vmatpush1.bf16.msra.mxu0 %v583
      %663 = vmatprep.subr.bf16.mxu0 0
      %664 = vmatpush1.bf16.msra.mxu0 %v584
      %665 = vmatprep.mubr.bf16.mxu0 %v378
      %666 = vmatmul.mubr.bf16.gmra.mrb[0].mxu0 %v377
      %v667 = vpop.f32.mrb[0].mxu0
      %v668 = vadd.f32 %v279, %v667
      %v669 = vpop.f32.mrb[0].mxu0
      %v670 = vpop.f32.mrb[0].mxu0
      %v671 = vadd.f32 %v279, %v670
      %v672 = vpop.f32.mrb[0].mxu0
      %673 = vmatprep.mubr.bf16.mxu0 %v382
      %674 = vmatmul.mubr.bf16.gmra.mrb[0].mxu0 %v381
      %v675 = vpop.f32.mrb[0].mxu0
      %v676 = vadd.f32 %v279, %v675
      %v677 = vpop.f32.mrb[0].mxu0
      %v678 = vpop.f32.mrb[0].mxu0
      %v679 = vadd.f32 %v279, %v678
      %v680 = vpop.f32.mrb[0].mxu0
      %681 = vmatprep.mubr.bf16.mxu0 %v386
      %682 = vmatmul.mubr.bf16.gmra.mrb[0].mxu0 %v385
      %v683 = vpop.f32.mrb[0].mxu0
      %v684 = vadd.f32 %v279, %v683
      %v685 = vpop.f32.mrb[0].mxu0
      %v686 = vpop.f32.mrb[0].mxu0
      %v687 = vadd.f32 %v279, %v686
      %v688 = vpop.f32.mrb[0].mxu0
      %689 = vmatprep.mubr.bf16.mxu0 %v390
      %690 = vmatmul.mubr.bf16.gmra.mrb[0].mxu0 %v389
      %v691 = vpop.f32.mrb[0].mxu0
      %v692 = vadd.f32 %v279, %v691
      %v693 = vpop.f32.mrb[0].mxu0
      %v694 = vpop.f32.mrb[0].mxu0
      %v695 = vadd.f32 %v279, %v694
      %v696 = vpop.f32.mrb[0].mxu0
      %697 = vmatprep.mubr.bf16.mxu0 %v394
      %698 = vmatmul.mubr.bf16.gmra.mrb[0].mxu0 %v393
      %v699 = vpop.f32.mrb[0].mxu0
      %v700 = vadd.f32 %v279, %v699
      %v701 = vpop.f32.mrb[0].mxu0
      %v702 = vpop.f32.mrb[0].mxu0
      %v703 = vadd.f32 %v279, %v702
      %v704 = vpop.f32.mrb[0].mxu0
      %705 = vmatprep.mubr.bf16.mxu0 %v398
      %706 = vmatmul.mubr.bf16.gmra.mrb[0].mxu0 %v397
      %v707 = vpop.f32.mrb[0].mxu0
      %v708 = vadd.f32 %v279, %v707
      %v709 = vpop.f32.mrb[0].mxu0
      %v710 = vpop.f32.mrb[0].mxu0
      %v711 = vadd.f32 %v279, %v710
      %v712 = vpop.f32.mrb[0].mxu0
      %713 = vmatprep.mubr.bf16.mxu0 %v402
      %714 = vmatmul.mubr.bf16.gmra.mrb[0].mxu0 %v401
      %v715 = vpop.f32.mrb[0].mxu0
      %v716 = vadd.f32 %v279, %v715
      %v717 = vpop.f32.mrb[0].mxu0
      %v718 = vpop.f32.mrb[0].mxu0
      %v719 = vadd.f32 %v279, %v718
      %v720 = vpop.f32.mrb[0].mxu0
      %721 = vmatprep.mubr.bf16.mxu0 %v406
      %722 = vmatmul.mubr.bf16.gmra.mrb[0].mxu0 %v405
      %v723 = vpop.f32.mrb[0].mxu0
      %v724 = vadd.f32 %v279, %v723
      %v725 = vpop.f32.mrb[0].mxu0
      %v726 = vpop.f32.mrb[0].mxu0
      %v727 = vadd.f32 %v279, %v726
      %v728 = vpop.f32.mrb[0].mxu0
      %729 = vdwg.mxu0
      %730 = vmatprep.subr.bf16.mxu0 0
      %731 = vmatpush1.bf16.msra.mxu0 %v585
      %732 = vmatprep.subr.bf16.mxu0 0
      %733 = vmatpush1.bf16.msra.mxu0 %v586
      %734 = vmatprep.subr.bf16.mxu0 0
      %735 = vmatpush1.bf16.msra.mxu0 %v587
      %736 = vmatprep.subr.bf16.mxu0 0
      %737 = vmatpush1.bf16.msra.mxu0 %v588
      %738 = vmatprep.subr.bf16.mxu0 0
      %739 = vmatpush1.bf16.msra.mxu0 %v589
      %740 = vmatprep.subr.bf16.mxu0 0
      %741 = vmatpush1.bf16.msra.mxu0 %v590
      %742 = vmatprep.subr.bf16.mxu0 0
      %743 = vmatpush1.bf16.msra.mxu0 %v591
      %744 = vmatprep.subr.bf16.mxu0 0
      %745 = vmatpush1.bf16.msra.mxu0 %v592
      %746 = vmatprep.subr.bf16.mxu0 0
      %747 = vmatpush1.bf16.msra.mxu0 %v593
      %748 = vmatprep.subr.bf16.mxu0 0
      %749 = vmatpush1.bf16.msra.mxu0 %v594
      %750 = vmatprep.subr.bf16.mxu0 0
      %751 = vmatpush1.bf16.msra.mxu0 %v595
      %752 = vmatprep.subr.bf16.mxu0 0
      %753 = vmatpush1.bf16.msra.mxu0 %v596
      %754 = vmatprep.subr.bf16.mxu0 0
      %755 = vmatpush1.bf16.msra.mxu0 %v597
      %756 = vmatprep.subr.bf16.mxu0 0
      %757 = vmatpush1.bf16.msra.mxu0 %v598
      %758 = vmatprep.subr.bf16.mxu0 0
      %759 = vmatpush1.bf16.msra.mxu0 %v599
      %760 = vmatprep.subr.bf16.mxu0 0
      %761 = vmatpush1.bf16.msra.mxu0 %v600
      %762 = vmatprep.mubr.bf16.mxu0 %v380
      %763 = vmatmul.mubr.bf16.gmra.mrb[0].mxu0 %v379
      %v764 = vpop.f32.mrb[0].mxu0
      %v765 = vadd.f32 %v668, %v764
      %v766 = vpop.f32.mrb[0].mxu0
      %v767 = vpop.f32.mrb[0].mxu0
      %v768 = vadd.f32 %v671, %v767
      %v769 = vpop.f32.mrb[0].mxu0
      %770 = vmatprep.mubr.bf16.mxu0 %v384
      %771 = vmatmul.mubr.bf16.gmra.mrb[0].mxu0 %v383
      %v772 = vpop.f32.mrb[0].mxu0
      %v773 = vadd.f32 %v676, %v772
      %v774 = vpop.f32.mrb[0].mxu0
      %v775 = vpop.f32.mrb[0].mxu0
      %v776 = vadd.f32 %v679, %v775
      %v777 = vpop.f32.mrb[0].mxu0
      %778 = vmatprep.mubr.bf16.mxu0 %v388
      %779 = vmatmul.mubr.bf16.gmra.mrb[0].mxu0 %v387
      %v780 = vpop.f32.mrb[0].mxu0
      %v781 = vadd.f32 %v684, %v780
      %v782 = vpop.f32.mrb[0].mxu0
      %v783 = vpop.f32.mrb[0].mxu0
      %v784 = vadd.f32 %v687, %v783
      %v785 = vpop.f32.mrb[0].mxu0
      %786 = vmatprep.mubr.bf16.mxu0 %v392
      %787 = vmatmul.mubr.bf16.gmra.mrb[0].mxu0 %v391
      %v788 = vpop.f32.mrb[0].mxu0
      %v789 = vadd.f32 %v692, %v788
      %v790 = vpop.f32.mrb[0].mxu0
      %v791 = vpop.f32.mrb[0].mxu0
      %v792 = vadd.f32 %v695, %v791
      %v793 = vpop.f32.mrb[0].mxu0
      %794 = vmatprep.mubr.bf16.mxu0 %v396
      %795 = vmatmul.mubr.bf16.gmra.mrb[0].mxu0 %v395
      %v796 = vpop.f32.mrb[0].mxu0
      %v797 = vadd.f32 %v700, %v796
      %v798 = vpop.f32.mrb[0].mxu0
      %v799 = vpop.f32.mrb[0].mxu0
      %v800 = vadd.f32 %v703, %v799
      %v801 = vpop.f32.mrb[0].mxu0
      %802 = vmatprep.mubr.bf16.mxu0 %v400
      %803 = vmatmul.mubr.bf16.gmra.mrb[0].mxu0 %v399
      %v804 = vpop.f32.mrb[0].mxu0
      %v805 = vadd.f32 %v708, %v804
      %v806 = vpop.f32.mrb[0].mxu0
      %v807 = vpop.f32.mrb[0].mxu0
      %v808 = vadd.f32 %v711, %v807
      %v809 = vpop.f32.mrb[0].mxu0
      %810 = vmatprep.mubr.bf16.mxu0 %v404
      %811 = vmatmul.mubr.bf16.gmra.mrb[0].mxu0 %v403
      %v812 = vpop.f32.mrb[0].mxu0
      %v813 = vadd.f32 %v716, %v812
      %v814 = vpop.f32.mrb[0].mxu0
      %v815 = vpop.f32.mrb[0].mxu0
      %v816 = vadd.f32 %v719, %v815
      %v817 = vpop.f32.mrb[0].mxu0
      %818 = vmatprep.mubr.bf16.mxu0 %v408
      %819 = vmatmul.mubr.bf16.gmra.mrb[0].mxu0 %v407
      %v820 = vpop.f32.mrb[0].mxu0
      %v821 = vadd.f32 %v724, %v820
      %v822 = vpop.f32.mrb[0].mxu0
      %v823 = vpop.f32.mrb[0].mxu0
      %v824 = vadd.f32 %v727, %v823
      %v825 = vpop.f32.mrb[0].mxu0
      %826 = vdwg.mxu0
      %v827 = vmax.f32 %v765, 0.0
      %v828 = vmax.f32 %v768, 0.0
      %v829 = vmax.f32 %v773, 0.0
      %v830 = vmax.f32 %v776, 0.0
      %v831 = vmax.f32 %v781, 0.0
      %v832 = vmax.f32 %v784, 0.0
      %v833 = vmax.f32 %v789, 0.0
      %v834 = vmax.f32 %v792, 0.0
      %v835 = vmax.f32 %v797, 0.0
      %v836 = vmax.f32 %v800, 0.0
      %v837 = vmax.f32 %v805, 0.0
      %v838 = vmax.f32 %v808, 0.0
      %v839 = vmax.f32 %v813, 0.0
      %v840 = vmax.f32 %v816, 0.0
      %v841 = vmax.f32 %v821, 0.0
      %v842 = vmax.f32 %v824, 0.0
      %v843 = vpack.c.bf16 %v828, %v827
      %v844 = vpack.c.bf16 %v830, %v829
      %v845 = vpack.c.bf16 %v832, %v831
      %v846 = vpack.c.bf16 %v834, %v833
      %v847 = vpack.c.bf16 %v836, %v835
      %v848 = vpack.c.bf16 %v838, %v837
      %v849 = vpack.c.bf16 %v840, %v839
      %v850 = vpack.c.bf16 %v842, %v841
      %v859 = vunpack.c.l.b16 %v843
      %v860 = vunpack.c.h.b16 %v843
      %v861 = vunpack.c.l.b16 %v844
      %v862 = vunpack.c.h.b16 %v844
      %v863 = vunpack.c.l.b16 %v845
      %v864 = vunpack.c.h.b16 %v845
      %v865 = vunpack.c.l.b16 %v846
      %v866 = vunpack.c.h.b16 %v846
      %v867 = vunpack.c.l.b16 %v847
      %v868 = vunpack.c.h.b16 %v847
      %v869 = vunpack.c.l.b16 %v848
      %v870 = vunpack.c.h.b16 %v848
      %v871 = vunpack.c.l.b16 %v849
      %v872 = vunpack.c.h.b16 %v849
      %v873 = vunpack.c.l.b16 %v850
      %v874 = vunpack.c.h.b16 %v850
      %v875 = vpack.c.b16 %v859, %v859
      %v876 = vpack.c.b16 %v860, %v860
      %v877 = vpack.c.b16 %v861, %v861
      %v878 = vpack.c.b16 %v862, %v862
      %v879 = vpack.c.b16 %v863, %v863
      %v880 = vpack.c.b16 %v864, %v864
      %v881 = vpack.c.b16 %v865, %v865
      %v882 = vpack.c.b16 %v866, %v866
      %v883 = vpack.c.b16 %v867, %v867
      %v884 = vpack.c.b16 %v868, %v868
      %v885 = vpack.c.b16 %v869, %v869
      %v886 = vpack.c.b16 %v870, %v870
      %v887 = vpack.c.b16 %v871, %v871
      %v888 = vpack.c.b16 %v872, %v872
      %v889 = vpack.c.b16 %v873, %v873
      %v890 = vpack.c.b16 %v874, %v874
      %907 = vst [vmem:[%s175] sm:$0xf] %v875
      %908 = vst [vmem:[%s175 + $0x4] sm:$0xf] %v876
      %909 = vst [vmem:[%s175 + $0x8] sm:$0xf] %v877
      %910 = vst [vmem:[%s175 + $0xc] sm:$0xf] %v878
      %911 = vst [vmem:[%s175 + $0x10] sm:$0xf] %v879
      %912 = vst [vmem:[%s175 + $0x14] sm:$0xf] %v880
      %913 = vst [vmem:[%s175 + $0x18] sm:$0xf] %v881
      %914 = vst [vmem:[%s175 + $0x1c] sm:$0xf] %v882
      %915 = vst [vmem:[%s175 + $0x20] sm:$0xf] %v883
      %916 = vst [vmem:[%s175 + $0x24] sm:$0xf] %v884
      %917 = vst [vmem:[%s175 + $0x28] sm:$0xf] %v885
      %918 = vst [vmem:[%s175 + $0x2c] sm:$0xf] %v886
      %919 = vst [vmem:[%s175 + $0x30] sm:$0xf] %v887
      %920 = vst [vmem:[%s175 + $0x34] sm:$0xf] %v888
      %921 = vst [vmem:[%s175 + $0x38] sm:$0xf] %v889
      %922 = vst [vmem:[%s175 + $0x3c] sm:$0xf] %v890
      %s923 = smul.u32 16, %s14
      %p924 = scmp.lt.s32.totalorder %s923, 31
      %s925 = scalar_select %p924, %s923, 31
      %s926 = smul.addr %s925, 4
      %s927 = scalar_lea.vmem %s3, %s926
      // Predicated region
      $region33: #{convnet_forward.5} parent=31 // pred_check
        %p928 = pneg %p100
      $region34: #{convnet_forward.5} parent=31 // pred_check_branch
        %930 = sbr.rel (%p928) target = $region36
      $region35: #{convnet_forward.5} parent=31 // pred_region
        %s931 = smul.u32 16, %s14
      $region36: #{convnet_forward.5} parent=31 // pred_fallthru
        _
    $region32: #{convnet_forward.5} parent=5 // pred_fallthru
      _
    %p932 = scmp.le.s32.totalorder 2, %s9
    // Predicated region
    $region37: #{convnet_forward.5} parent=5 // pred_check
      %p933 = pneg %p932
    $region38: #{convnet_forward.5} parent=5 // pred_check_branch
      %935 = sbr.rel (%p933) target = $region40
    $region39: #{convnet_forward.5} parent=5 // pred_region
      %s936 = ssub.s32 %s9, 2
      // Predicated region
      $region41: #{convnet_forward.5} parent=39 // pred_check
        %p937 = pneg %p106
      $region42: #{convnet_forward.5} parent=39 // pred_check_branch
        %939 = sbr.rel (%p937) target = $region44
      $region43: #{convnet_forward.5} parent=39 // pred_region
        %s940 = smul.u32 16, %s15
        %p941 = scmp.lt.s32.totalorder %s940, 31
        %s942 = scalar_select %p941, %s940, 31
        %s943 = smul.addr %s942, 4
        %s944 = scalar_lea.vmem %s3, %s943
      $region44: #{convnet_forward.5} parent=39 // pred_fallthru
        _
    $region40: #{convnet_forward.5} parent=5 // pred_fallthru
      _
  $region6: #{convnet_forward.5} parent=0 // loop_footer
    %s13 = sadd.s32 1, %s9
  $region7: #{convnet_forward.5} parent=0 // loop_footer_branch
    %8 = sbr.rel target = $region3
  $region8: #{convnet_forward.5} parent=0 // loop_exit
    _

// kernel: convnet_forward.6
$region0: #{convnet_forward.6}
  #allocation0 [shape = 'u32[]', space=smem, size = 0x4, offset = 0x4, fixed_abs, tag = 'smem constant byte address 0x4 - core index']
  #allocation1 [shape = 'u32[144,128]{1,0:T(1,128)}', space=vmem, size = 0x12000, scoped, tag = 'internal scratch']
  %s0 = inlined_call_operand.vmem [shape: bf16[128,576], index: 0, kind: input, shape index: {}]
  %s1 = inlined_call_operand.vmem [shape: bf16[576,128], index: 1, kind: input, shape index: {}]
  %s2 = inlined_call_operand.vmem [shape: f32[1,128], index: 2, kind: input, shape index: {}]
  %s3 = inlined_call_operand.vmem [shape: bf16[128,128], index: 3, kind: output, shape index: {}]
  %s4 = sld [smem:[#allocation0]]
  $region22: #{convnet_forward.6} parent=0
    _
  %s6 = ssub.s32 1, %s4
  %s7 = scalar_select 0, %s6, %s4
  // Predicated region
  $region2: #{convnet_forward.6} parent=0 // pred_check
    _
  $region3: #{convnet_forward.6} parent=0 // pred_check_branch
    %9 = sbr.rel (0) target = $region5
  $region4: #{convnet_forward.6} parent=0 // pred_region
    _
  $region5: #{convnet_forward.6} parent=0 // pred_fallthru
    _
  // Predicated region
  $region6: #{convnet_forward.6} parent=0 // pred_check
    _
  $region7: #{convnet_forward.6} parent=0 // pred_check_branch
    %11 = sbr.rel (0) target = $region9
  $region8: #{convnet_forward.6} parent=0 // pred_region
    _
  $region9: #{convnet_forward.6} parent=0 // pred_fallthru
    _
  // Predicated region
  $region10: #{convnet_forward.6} parent=0 // pred_check
    _
  $region11: #{convnet_forward.6} parent=0 // pred_check_branch
    %13 = sbr.rel (0) target = $region13
  $region12: #{convnet_forward.6} parent=0 // pred_region
    _
  $region13: #{convnet_forward.6} parent=0 // pred_fallthru
    _
  %v15 = vld [vmem:[%s0] sm:$0xff]
  %v16 = vld [vmem:[%s0 + $0x8] sm:$0xff]
  %v17 = vld [vmem:[%s0 + $0x10] sm:$0xf]
  %v18 = vld [vmem:[%s0 + $0x14] sm:$0xff]
  %v19 = vld [vmem:[%s0 + $0x1c] sm:$0xff]
  %v20 = vld [vmem:[%s0 + $0x24] sm:$0xf]
  %v21 = vld [vmem:[%s0 + $0x28] sm:$0xff]
  %v22 = vld [vmem:[%s0 + $0x30] sm:$0xff]
  %v23 = vld [vmem:[%s0 + $0x38] sm:$0xf]
  %v24 = vld [vmem:[%s0 + $0x3c] sm:$0xff]
  %v25 = vld [vmem:[%s0 + $0x44] sm:$0xff]
  %v26 = vld [vmem:[%s0 + $0x4c] sm:$0xf]
  %v27 = vld [vmem:[%s0 + $0x50] sm:$0xff]
  %v28 = vld [vmem:[%s0 + $0x58] sm:$0xff]
  %v29 = vld [vmem:[%s0 + $0x60] sm:$0xf]
  %v30 = vld [vmem:[%s0 + $0x64] sm:$0xff]
  %v31 = vld [vmem:[%s0 + $0x6c] sm:$0xff]
  %v32 = vld [vmem:[%s0 + $0x74] sm:$0xf]
  %v33 = vld [vmem:[%s0 + $0x78] sm:$0xff]
  %v34 = vld [vmem:[%s0 + $0x80] sm:$0xff]
  %v35 = vld [vmem:[%s0 + $0x88] sm:$0xf]
  %v36 = vld [vmem:[%s0 + $0x8c] sm:$0xff]
  %v37 = vld [vmem:[%s0 + $0x94] sm:$0xff]
  %v38 = vld [vmem:[%s0 + $0x9c] sm:$0xf]
  %v39 = vld [vmem:[%s0 + $0xa0] sm:$0xff]
  %v40 = vld [vmem:[%s0 + $0xa8] sm:$0xff]
  %v41 = vld [vmem:[%s0 + $0xb0] sm:$0xf]
  %v42 = vld [vmem:[%s0 + $0xb4] sm:$0xff]
  %v43 = vld [vmem:[%s0 + $0xbc] sm:$0xff]
  %v44 = vld [vmem:[%s0 + $0xc4] sm:$0xf]
  %v45 = vld [vmem:[%s0 + $0xc8] sm:$0xff]
  %v46 = vld [vmem:[%s0 + $0xd0] sm:$0xff]
  %v47 = vld [vmem:[%s0 + $0xd8] sm:$0xf]
  %v48 = vld [vmem:[%s0 + $0xdc] sm:$0xff]
  %v49 = vld [vmem:[%s0 + $0xe4] sm:$0xff]
  %v50 = vld [vmem:[%s0 + $0xec] sm:$0xf]
  %v51 = vld [vmem:[%s0 + $0xf0] sm:$0xff]
  %v52 = vld [vmem:[%s0 + $0xf8] sm:$0xff]
  %v53 = vld [vmem:[%s0 + $0x100] sm:$0xf]
  %v54 = vld [vmem:[%s0 + $0x104] sm:$0xff]
  %v55 = vld [vmem:[%s0 + $0x10c] sm:$0xff]
  %v56 = vld [vmem:[%s0 + $0x114] sm:$0xf]
  %v57 = vld [vmem:[%s0 + $0x118] sm:$0xff]
  %v58 = vld [vmem:[%s0 + $0x120] sm:$0xff]
  %v59 = vld [vmem:[%s0 + $0x128] sm:$0xf]
  %v60 = vld [vmem:[%s0 + $0x12c] sm:$0xff]
  %v61 = vld [vmem:[%s0 + $0x134] sm:$0xff]
  %v62 = vld [vmem:[%s0 + $0x13c] sm:$0xf]
  %v63 = vld [vmem:[%s1] sm:$0xf]
  %v64 = vld [vmem:[%s1 + $0x4] sm:$0xf]
  %v65 = vld [vmem:[%s1 + $0x8] sm:$0xf]
  %v66 = vld [vmem:[%s1 + $0xc] sm:$0xf]
  %v67 = vld [vmem:[%s1 + $0x10] sm:$0xf]
  %v68 = vld [vmem:[%s1 + $0x14] sm:$0xf]
  %v69 = vld [vmem:[%s1 + $0x18] sm:$0xf]
  %v70 = vld [vmem:[%s1 + $0x1c] sm:$0xf]
  %v71 = vld [vmem:[%s1 + $0x20] sm:$0xf]
  %v72 = vld [vmem:[%s1 + $0x24] sm:$0xf]
  %v73 = vld [vmem:[%s1 + $0x28] sm:$0xf]
  %v74 = vld [vmem:[%s1 + $0x2c] sm:$0xf]
  %v75 = vld [vmem:[%s1 + $0x30] sm:$0xf]
  %v76 = vld [vmem:[%s1 + $0x34] sm:$0xf]
  %v77 = vld [vmem:[%s1 + $0x38] sm:$0xf]
  %v78 = vld [vmem:[%s1 + $0x3c] sm:$0xf]
  %v79 = vld [vmem:[%s1 + $0x40] sm:$0xf]
  %v80 = vld [vmem:[%s1 + $0x44] sm:$0xf]
  %v81 = vld [vmem:[%s1 + $0x48] sm:$0xf]
  %v82 = vld [vmem:[%s1 + $0x4c] sm:$0xf]
  %v83 = vld [vmem:[%s1 + $0x50] sm:$0xf]
  %v84 = vld [vmem:[%s1 + $0x54] sm:$0xf]
  %v85 = vld [vmem:[%s1 + $0x58] sm:$0xf]
  %v86 = vld [vmem:[%s1 + $0x5c] sm:$0xf]
  %v87 = vld [vmem:[%s1 + $0x60] sm:$0xf]
  %v88 = vld [vmem:[%s1 + $0x64] sm:$0xf]
  %v89 = vld [vmem:[%s1 + $0x68] sm:$0xf]
  %v90 = vld [vmem:[%s1 + $0x6c] sm:$0xf]
  %v91 = vld [vmem:[%s1 + $0x70] sm:$0xf]
  %v92 = vld [vmem:[%s1 + $0x74] sm:$0xf]
  %v93 = vld [vmem:[%s1 + $0x78] sm:$0xf]
  %v94 = vld [vmem:[%s1 + $0x7c] sm:$0xf]
  %v95 = vld [vmem:[%s1 + $0x80] sm:$0xf]
  %v96 = vld [vmem:[%s1 + $0x84] sm:$0xf]
  %v97 = vld [vmem:[%s1 + $0x88] sm:$0xf]
  %v98 = vld [vmem:[%s1 + $0x8c] sm:$0xf]
  %v99 = vld [vmem:[%s1 + $0x90] sm:$0xf]
  %v100 = vld [vmem:[%s1 + $0x94] sm:$0xf]
  %v101 = vld [vmem:[%s1 + $0x98] sm:$0xf]
  %v102 = vld [vmem:[%s1 + $0x9c] sm:$0xf]
  %v103 = vld [vmem:[%s1 + $0xa0] sm:$0xf]
  %v104 = vld [vmem:[%s1 + $0xa4] sm:$0xf]
  %v105 = vld [vmem:[%s1 + $0xa8] sm:$0xf]
  %v106 = vld [vmem:[%s1 + $0xac] sm:$0xf]
  %v107 = vld [vmem:[%s1 + $0xb0] sm:$0xf]
  %v108 = vld [vmem:[%s1 + $0xb4] sm:$0xf]
  %v109 = vld [vmem:[%s1 + $0xb8] sm:$0xf]
  %v110 = vld [vmem:[%s1 + $0xbc] sm:$0xf]
  %v111 = vld [vmem:[%s1 + $0xc0] sm:$0xf]
  %v112 = vld [vmem:[%s1 + $0xc4] sm:$0xf]
  %v113 = vld [vmem:[%s1 + $0xc8] sm:$0xf]
  %v114 = vld [vmem:[%s1 + $0xcc] sm:$0xf]
  %v115 = vld [vmem:[%s1 + $0xd0] sm:$0xf]
  %v116 = vld [vmem:[%s1 + $0xd4] sm:$0xf]
  %v117 = vld [vmem:[%s1 + $0xd8] sm:$0xf]
  %v118 = vld [vmem:[%s1 + $0xdc] sm:$0xf]
  %v119 = vld [vmem:[%s1 + $0xe0] sm:$0xf]
  %v120 = vld [vmem:[%s1 + $0xe4] sm:$0xf]
  %v121 = vld [vmem:[%s1 + $0xe8] sm:$0xf]
  %v122 = vld [vmem:[%s1 + $0xec] sm:$0xf]
  %v123 = vld [vmem:[%s1 + $0xf0] sm:$0xf]
  %v124 = vld [vmem:[%s1 + $0xf4] sm:$0xf]
  %v125 = vld [vmem:[%s1 + $0xf8] sm:$0xf]
  %v126 = vld [vmem:[%s1 + $0xfc] sm:$0xf]
  %v127 = vld [vmem:[%s1 + $0x100] sm:$0xf]
  %v128 = vld [vmem:[%s1 + $0x104] sm:$0xf]
  %v129 = vld [vmem:[%s1 + $0x108] sm:$0xf]
  %v130 = vld [vmem:[%s1 + $0x10c] sm:$0xf]
  %v131 = vld [vmem:[%s1 + $0x110] sm:$0xf]
  %v132 = vld [vmem:[%s1 + $0x114] sm:$0xf]
  %v133 = vld [vmem:[%s1 + $0x118] sm:$0xf]
  %v134 = vld [vmem:[%s1 + $0x11c] sm:$0xf]
  %v135 = vld [vmem:[%s2] sm:$0x1]
  %v137 = vlaneseq
  %v138 = vshrl.u32 %v137, 7
  %v139 = vsub.s32 0, %v138
  %v140 = vrot.slane %v135, %v139
  %v190 = vunpack.c.l.b16 %v15
  %v191 = vunpack.c.h.b16 %v15
  %v192 = vunpack.c.l.b16 %v16
  %v193 = vunpack.c.h.b16 %v16
  %v194 = vunpack.c.l.b16 %v17
  %v195 = vunpack.c.l.b16 %v18
  %v196 = vunpack.c.h.b16 %v18
  %v197 = vunpack.c.l.b16 %v19
  %v198 = vunpack.c.h.b16 %v19
  %v199 = vunpack.c.l.b16 %v20
  %v200 = vunpack.c.l.b16 %v21
  %v201 = vunpack.c.h.b16 %v21
  %v202 = vunpack.c.l.b16 %v22
  %v203 = vunpack.c.h.b16 %v22
  %v204 = vunpack.c.l.b16 %v23
  %v205 = vunpack.c.l.b16 %v24
  %v206 = vunpack.c.h.b16 %v24
  %v207 = vunpack.c.l.b16 %v25
  %v208 = vunpack.c.h.b16 %v25
  %v209 = vunpack.c.l.b16 %v26
  %v210 = vunpack.c.l.b16 %v27
  %v211 = vunpack.c.h.b16 %v27
  %v212 = vunpack.c.l.b16 %v28
  %v213 = vunpack.c.h.b16 %v28
  %v214 = vunpack.c.l.b16 %v29
  %v215 = vunpack.c.l.b16 %v30
  %v216 = vunpack.c.h.b16 %v30
  %v217 = vunpack.c.l.b16 %v31
  %v218 = vunpack.c.h.b16 %v31
  %v219 = vunpack.c.l.b16 %v32
  %v220 = vunpack.c.l.b16 %v33
  %v221 = vunpack.c.h.b16 %v33
  %v222 = vunpack.c.l.b16 %v34
  %v223 = vunpack.c.h.b16 %v34
  %v224 = vunpack.c.l.b16 %v35
  %v225 = vunpack.c.l.b16 %v36
  %v226 = vunpack.c.h.b16 %v36
  %v227 = vunpack.c.l.b16 %v37
  %v228 = vunpack.c.h.b16 %v37
  %v229 = vunpack.c.l.b16 %v38
  %v230 = vunpack.c.l.b16 %v39
  %v231 = vunpack.c.h.b16 %v39
  %v232 = vunpack.c.l.b16 %v40
  %v233 = vunpack.c.h.b16 %v40
  %v234 = vunpack.c.l.b16 %v41
  %v235 = vunpack.c.l.b16 %v42
  %v236 = vunpack.c.h.b16 %v42
  %v237 = vunpack.c.l.b16 %v43
  %v238 = vunpack.c.h.b16 %v43
  %v239 = vunpack.c.l.b16 %v44
  %v240 = vunpack.c.l.b16 %v45
  %v241 = vunpack.c.h.b16 %v45
  %v242 = vunpack.c.l.b16 %v46
  %v243 = vunpack.c.h.b16 %v46
  %v244 = vunpack.c.l.b16 %v47
  %v245 = vunpack.c.l.b16 %v48
  %v246 = vunpack.c.h.b16 %v48
  %v247 = vunpack.c.l.b16 %v49
  %v248 = vunpack.c.h.b16 %v49
  %v249 = vunpack.c.l.b16 %v50
  %v250 = vunpack.c.l.b16 %v51
  %v251 = vunpack.c.h.b16 %v51
  %v252 = vunpack.c.l.b16 %v52
  %v253 = vunpack.c.h.b16 %v52
  %v254 = vunpack.c.l.b16 %v53
  %v255 = vunpack.c.l.b16 %v54
  %v256 = vunpack.c.h.b16 %v54
  %v257 = vunpack.c.l.b16 %v55
  %v258 = vunpack.c.h.b16 %v55
  %v259 = vunpack.c.l.b16 %v56
  %v260 = vunpack.c.l.b16 %v57
  %v261 = vunpack.c.h.b16 %v57
  %v262 = vunpack.c.l.b16 %v58
  %v263 = vunpack.c.h.b16 %v58
  %v264 = vunpack.c.l.b16 %v59
  %v265 = vunpack.c.l.b16 %v60
  %v266 = vunpack.c.h.b16 %v60
  %v267 = vunpack.c.l.b16 %v61
  %v268 = vunpack.c.h.b16 %v61
  %v269 = vunpack.c.l.b16 %v62
  %v270 = vpack.c.b16 %v195, %v190
  %v271 = vpack.c.b16 %v196, %v191
  %v272 = vpack.c.b16 %v197, %v192
  %v273 = vpack.c.b16 %v198, %v193
  %v274 = vpack.c.b16 %v199, %v194
  %v275 = vpack.c.b16 %v205, %v200
  %v276 = vpack.c.b16 %v206, %v201
  %v277 = vpack.c.b16 %v207, %v202
  %v278 = vpack.c.b16 %v208, %v203
  %v279 = vpack.c.b16 %v209, %v204
  %v280 = vpack.c.b16 %v215, %v210
  %v281 = vpack.c.b16 %v216, %v211
  %v282 = vpack.c.b16 %v217, %v212
  %v283 = vpack.c.b16 %v218, %v213
  %v284 = vpack.c.b16 %v219, %v214
  %v285 = vpack.c.b16 %v225, %v220
  %v286 = vpack.c.b16 %v226, %v221
  %v287 = vpack.c.b16 %v227, %v222
  %v288 = vpack.c.b16 %v228, %v223
  %v289 = vpack.c.b16 %v229, %v224
  %v290 = vpack.c.b16 %v235, %v230
  %v291 = vpack.c.b16 %v236, %v231
  %v292 = vpack.c.b16 %v237, %v232
  %v293 = vpack.c.b16 %v238, %v233
  %v294 = vpack.c.b16 %v239, %v234
  %v295 = vpack.c.b16 %v245, %v240
  %v296 = vpack.c.b16 %v246, %v241
  %v297 = vpack.c.b16 %v247, %v242
  %v298 = vpack.c.b16 %v248, %v243
  %v299 = vpack.c.b16 %v249, %v244
  %v300 = vpack.c.b16 %v255, %v250
  %v301 = vpack.c.b16 %v256, %v251
  %v302 = vpack.c.b16 %v257, %v252
  %v303 = vpack.c.b16 %v258, %v253
  %v304 = vpack.c.b16 %v259, %v254
  %v305 = vpack.c.b16 %v265, %v260
  %v306 = vpack.c.b16 %v266, %v261
  %v307 = vpack.c.b16 %v267, %v262
  %v308 = vpack.c.b16 %v268, %v263
  %v309 = vpack.c.b16 %v269, %v264
  %v414 = vunpack.c.l.b16 %v63
  %v415 = vunpack.c.l.b16 %v64
  %v416 = vunpack.c.l.b16 %v65
  %v417 = vunpack.c.l.b16 %v66
  %v418 = vunpack.c.l.b16 %v67
  %v419 = vunpack.c.l.b16 %v68
  %v420 = vunpack.c.l.b16 %v69
  %v421 = vunpack.c.l.b16 %v70
  %v422 = vunpack.c.l.b16 %v71
  %v423 = vunpack.c.l.b16 %v72
  %v424 = vunpack.c.l.b16 %v73
  %v425 = vunpack.c.l.b16 %v74
  %v426 = vunpack.c.l.b16 %v75
  %v427 = vunpack.c.l.b16 %v76
  %v428 = vunpack.c.l.b16 %v77
  %v429 = vunpack.c.l.b16 %v78
  %v430 = vunpack.c.l.b16 %v79
  %v431 = vunpack.c.l.b16 %v80
  %v432 = vunpack.c.l.b16 %v81
  %v433 = vunpack.c.l.b16 %v82
  %v434 = vunpack.c.l.b16 %v83
  %v435 = vunpack.c.l.b16 %v84
  %v436 = vunpack.c.l.b16 %v85
  %v437 = vunpack.c.l.b16 %v86
  %v438 = vunpack.c.l.b16 %v87
  %v439 = vunpack.c.l.b16 %v88
  %v440 = vunpack.c.l.b16 %v89
  %v441 = vunpack.c.l.b16 %v90
  %v442 = vunpack.c.l.b16 %v91
  %v443 = vunpack.c.l.b16 %v92
  %v444 = vunpack.c.l.b16 %v93
  %v445 = vunpack.c.l.b16 %v94
  %v446 = vunpack.c.l.b16 %v95
  %v447 = vunpack.c.l.b16 %v96
  %v448 = vunpack.c.l.b16 %v97
  %v449 = vunpack.c.l.b16 %v98
  %v450 = vunpack.c.l.b16 %v99
  %v451 = vunpack.c.l.b16 %v100
  %v452 = vunpack.c.l.b16 %v101
  %v453 = vunpack.c.l.b16 %v102
  %v454 = vunpack.c.l.b16 %v103
  %v455 = vunpack.c.l.b16 %v104
  %v456 = vunpack.c.l.b16 %v105
  %v457 = vunpack.c.l.b16 %v106
  %v458 = vunpack.c.l.b16 %v107
  %v459 = vunpack.c.l.b16 %v108
  %v460 = vunpack.c.l.b16 %v109
  %v461 = vunpack.c.l.b16 %v110
  %v462 = vunpack.c.l.b16 %v111
  %v463 = vunpack.c.l.b16 %v112
  %v464 = vunpack.c.l.b16 %v113
  %v465 = vunpack.c.l.b16 %v114
  %v466 = vunpack.c.l.b16 %v115
  %v467 = vunpack.c.l.b16 %v116
  %v468 = vunpack.c.l.b16 %v117
  %v469 = vunpack.c.l.b16 %v118
  %v470 = vunpack.c.l.b16 %v119
  %v471 = vunpack.c.l.b16 %v120
  %v472 = vunpack.c.l.b16 %v121
  %v473 = vunpack.c.l.b16 %v122
  %v474 = vunpack.c.l.b16 %v123
  %v475 = vunpack.c.l.b16 %v124
  %v476 = vunpack.c.l.b16 %v125
  %v477 = vunpack.c.l.b16 %v126
  %v478 = vunpack.c.l.b16 %v127
  %v479 = vunpack.c.l.b16 %v128
  %v480 = vunpack.c.l.b16 %v129
  %v481 = vunpack.c.l.b16 %v130
  %v482 = vunpack.c.l.b16 %v131
  %v483 = vunpack.c.l.b16 %v132
  %v484 = vunpack.c.l.b16 %v133
  %v485 = vunpack.c.l.b16 %v134
  %v486 = vpack.c.b16 %v415, %v414
  %v487 = vpack.c.b16 %v417, %v416
  %v488 = vpack.c.b16 %v419, %v418
  %v489 = vpack.c.b16 %v421, %v420
  %v490 = vpack.c.b16 %v423, %v422
  %v491 = vpack.c.b16 %v425, %v424
  %v492 = vpack.c.b16 %v427, %v426
  %v493 = vpack.c.b16 %v429, %v428
  %v494 = vpack.c.b16 %v431, %v430
  %v495 = vpack.c.b16 %v433, %v432
  %v496 = vpack.c.b16 %v435, %v434
  %v497 = vpack.c.b16 %v437, %v436
  %v498 = vpack.c.b16 %v439, %v438
  %v499 = vpack.c.b16 %v441, %v440
  %v500 = vpack.c.b16 %v443, %v442
  %v501 = vpack.c.b16 %v445, %v444
  %v502 = vpack.c.b16 %v447, %v446
  %v503 = vpack.c.b16 %v449, %v448
  %v504 = vpack.c.b16 %v451, %v450
  %v505 = vpack.c.b16 %v453, %v452
  %v506 = vpack.c.b16 %v455, %v454
  %v507 = vpack.c.b16 %v457, %v456
  %v508 = vpack.c.b16 %v459, %v458
  %v509 = vpack.c.b16 %v461, %v460
  %v510 = vpack.c.b16 %v463, %v462
  %v511 = vpack.c.b16 %v465, %v464
  %v512 = vpack.c.b16 %v467, %v466
  %v513 = vpack.c.b16 %v469, %v468
  %v514 = vpack.c.b16 %v471, %v470
  %v515 = vpack.c.b16 %v473, %v472
  %v516 = vpack.c.b16 %v475, %v474
  %v517 = vpack.c.b16 %v477, %v476
  %v518 = vpack.c.b16 %v479, %v478
  %v519 = vpack.c.b16 %v481, %v480
  %v520 = vpack.c.b16 %v483, %v482
  %v521 = vpack.c.b16 %v485, %v484
  %vm558 = vcmask 523264
  %v560 = vsel %vm558, %v274, 0
  %v563 = vsel %vm558, %v279, 0
  %v566 = vsel %vm558, %v284, 0
  %v569 = vsel %vm558, %v289, 0
  %v572 = vsel %vm558, %v294, 0
  %v575 = vsel %vm558, %v299, 0
  %v578 = vsel %vm558, %v304, 0
  %v581 = vsel %vm558, %v309, 0
  %583 = vmatprep.subr.bf16.mxu0 0
  %584 = vmatpush1.bf16.msra.mxu0 %v486
  %585 = vmatprep.subr.bf16.mxu0 0
  %586 = vmatpush1.bf16.msra.mxu0 %v487
  %587 = vmatprep.subr.bf16.mxu0 0
  %588 = vmatpush1.bf16.msra.mxu0 %v488
  %589 = vmatprep.subr.bf16.mxu0 0
  %590 = vmatpush1.bf16.msra.mxu0 %v489
  %591 = vmatprep.subr.bf16.mxu0 0
  %592 = vmatpush1.bf16.msra.mxu0 %v490
  %593 = vmatprep.subr.bf16.mxu0 0
  %594 = vmatpush1.bf16.msra.mxu0 %v491
  %595 = vmatprep.subr.bf16.mxu0 0
  %596 = vmatpush1.bf16.msra.mxu0 %v492
  %597 = vmatprep.subr.bf16.mxu0 0
  %598 = vmatpush1.bf16.msra.mxu0 %v493
  %599 = vmatprep.subr.bf16.mxu0 0
  %600 = vmatpush1.bf16.msra.mxu0 %v494
  %601 = vmatprep.subr.bf16.mxu0 0
  %602 = vmatpush1.bf16.msra.mxu0 %v495
  %603 = vmatprep.subr.bf16.mxu0 0
  %604 = vmatpush1.bf16.msra.mxu0 %v496
  %605 = vmatprep.subr.bf16.mxu0 0
  %606 = vmatpush1.bf16.msra.mxu0 %v497
  %607 = vmatprep.subr.bf16.mxu0 0
  %608 = vmatpush1.bf16.msra.mxu0 %v498
  %609 = vmatprep.subr.bf16.mxu0 0
  %610 = vmatpush1.bf16.msra.mxu0 %v499
  %611 = vmatprep.subr.bf16.mxu0 0
  %612 = vmatpush1.bf16.msra.mxu0 %v500
  %613 = vmatprep.subr.bf16.mxu0 0
  %614 = vmatpush1.bf16.msra.mxu0 %v501
  %615 = vmatprep.mubr.bf16.mxu0 %v271
  %616 = vmatmul.mubr.bf16.gmra.mrb[0].mxu0 %v270
  %v617 = vpop.f32.mrb[0].mxu0
  %v618 = vadd.f32 %v140, %v617
  %v619 = vpop.f32.mrb[0].mxu0
  %v620 = vpop.f32.mrb[0].mxu0
  %v621 = vadd.f32 %v140, %v620
  %v622 = vpop.f32.mrb[0].mxu0
  %623 = vmatprep.mubr.bf16.mxu0 %v276
  %624 = vmatmul.mubr.bf16.gmra.mrb[0].mxu0 %v275
  %v625 = vpop.f32.mrb[0].mxu0
  %v626 = vadd.f32 %v140, %v625
  %v627 = vpop.f32.mrb[0].mxu0
  %v628 = vpop.f32.mrb[0].mxu0
  %v629 = vadd.f32 %v140, %v628
  %v630 = vpop.f32.mrb[0].mxu0
  %631 = vmatprep.mubr.bf16.mxu0 %v281
  %632 = vmatmul.mubr.bf16.gmra.mrb[0].mxu0 %v280
  %v633 = vpop.f32.mrb[0].mxu0
  %v634 = vadd.f32 %v140, %v633
  %v635 = vpop.f32.mrb[0].mxu0
  %v636 = vpop.f32.mrb[0].mxu0
  %v637 = vadd.f32 %v140, %v636
  %v638 = vpop.f32.mrb[0].mxu0
  %639 = vmatprep.mubr.bf16.mxu0 %v286
  %640 = vmatmul.mubr.bf16.gmra.mrb[0].mxu0 %v285
  %v641 = vpop.f32.mrb[0].mxu0
  %v642 = vadd.f32 %v140, %v641
  %v643 = vpop.f32.mrb[0].mxu0
  %v644 = vpop.f32.mrb[0].mxu0
  %v645 = vadd.f32 %v140, %v644
  %v646 = vpop.f32.mrb[0].mxu0
  %647 = vmatprep.mubr.bf16.mxu0 %v291
  %648 = vmatmul.mubr.bf16.gmra.mrb[0].mxu0 %v290
  %v649 = vpop.f32.mrb[0].mxu0
  %v650 = vadd.f32 %v140, %v649
  %v651 = vpop.f32.mrb[0].mxu0
  %v652 = vpop.f32.mrb[0].mxu0
  %v653 = vadd.f32 %v140, %v652
  %v654 = vpop.f32.mrb[0].mxu0
  %655 = vmatprep.mubr.bf16.mxu0 %v296
  %656 = vmatmul.mubr.bf16.gmra.mrb[0].mxu0 %v295
  %v657 = vpop.f32.mrb[0].mxu0
  %v658 = vadd.f32 %v140, %v657
  %v659 = vpop.f32.mrb[0].mxu0
  %v660 = vpop.f32.mrb[0].mxu0
  %v661 = vadd.f32 %v140, %v660
  %v662 = vpop.f32.mrb[0].mxu0
  %663 = vmatprep.mubr.bf16.mxu0 %v301
  %664 = vmatmul.mubr.bf16.gmra.mrb[0].mxu0 %v300
  %v665 = vpop.f32.mrb[0].mxu0
  %v666 = vadd.f32 %v140, %v665
  %v667 = vpop.f32.mrb[0].mxu0
  %v668 = vpop.f32.mrb[0].mxu0
  %v669 = vadd.f32 %v140, %v668
  %v670 = vpop.f32.mrb[0].mxu0
  %671 = vmatprep.mubr.bf16.mxu0 %v306
  %672 = vmatmul.mubr.bf16.gmra.mrb[0].mxu0 %v305
  %v673 = vpop.f32.mrb[0].mxu0
  %v674 = vadd.f32 %v140, %v673
  %v675 = vpop.f32.mrb[0].mxu0
  %v676 = vpop.f32.mrb[0].mxu0
  %v677 = vadd.f32 %v140, %v676
  %v678 = vpop.f32.mrb[0].mxu0
  %679 = vdwg.mxu0
  %680 = vmatprep.subr.bf16.mxu0 0
  %681 = vmatpush1.bf16.msra.mxu0 %v502
  %682 = vmatprep.subr.bf16.mxu0 0
  %683 = vmatpush1.bf16.msra.mxu0 %v503
  %684 = vmatprep.subr.bf16.mxu0 0
  %685 = vmatpush1.bf16.msra.mxu0 %v504
  %686 = vmatprep.subr.bf16.mxu0 0
  %687 = vmatpush1.bf16.msra.mxu0 %v505
  %688 = vmatprep.subr.bf16.mxu0 0
  %689 = vmatpush1.bf16.msra.mxu0 %v506
  %690 = vmatprep.subr.bf16.mxu0 0
  %691 = vmatpush1.bf16.msra.mxu0 %v507
  %692 = vmatprep.subr.bf16.mxu0 0
  %693 = vmatpush1.bf16.msra.mxu0 %v508
  %694 = vmatprep.subr.bf16.mxu0 0
  %695 = vmatpush1.bf16.msra.mxu0 %v509
  %696 = vmatprep.subr.bf16.mxu0 0
  %697 = vmatpush1.bf16.msra.mxu0 %v510
  %698 = vmatprep.subr.bf16.mxu0 0
  %699 = vmatpush1.bf16.msra.mxu0 %v511
  %700 = vmatprep.subr.bf16.mxu0 0
  %701 = vmatpush1.bf16.msra.mxu0 %v512
  %702 = vmatprep.subr.bf16.mxu0 0
  %703 = vmatpush1.bf16.msra.mxu0 %v513
  %704 = vmatprep.subr.bf16.mxu0 0
  %705 = vmatpush1.bf16.msra.mxu0 %v514
  %706 = vmatprep.subr.bf16.mxu0 0
  %707 = vmatpush1.bf16.msra.mxu0 %v515
  %708 = vmatprep.subr.bf16.mxu0 0
  %709 = vmatpush1.bf16.msra.mxu0 %v516
  %710 = vmatprep.subr.bf16.mxu0 0
  %711 = vmatpush1.bf16.msra.mxu0 %v517
  %712 = vmatprep.mubr.bf16.mxu0 %v273
  %713 = vmatmul.mubr.bf16.gmra.mrb[0].mxu0 %v272
  %v714 = vpop.f32.mrb[0].mxu0
  %v715 = vadd.f32 %v618, %v714
  %v716 = vpop.f32.mrb[0].mxu0
  %v717 = vpop.f32.mrb[0].mxu0
  %v718 = vadd.f32 %v621, %v717
  %v719 = vpop.f32.mrb[0].mxu0
  %720 = vmatprep.mubr.bf16.mxu0 %v278
  %721 = vmatmul.mubr.bf16.gmra.mrb[0].mxu0 %v277
  %v722 = vpop.f32.mrb[0].mxu0
  %v723 = vadd.f32 %v626, %v722
  %v724 = vpop.f32.mrb[0].mxu0
  %v725 = vpop.f32.mrb[0].mxu0
  %v726 = vadd.f32 %v629, %v725
  %v727 = vpop.f32.mrb[0].mxu0
  %728 = vmatprep.mubr.bf16.mxu0 %v283
  %729 = vmatmul.mubr.bf16.gmra.mrb[0].mxu0 %v282
  %v730 = vpop.f32.mrb[0].mxu0
  %v731 = vadd.f32 %v634, %v730
  %v732 = vpop.f32.mrb[0].mxu0
  %v733 = vpop.f32.mrb[0].mxu0
  %v734 = vadd.f32 %v637, %v733
  %v735 = vpop.f32.mrb[0].mxu0
  %736 = vmatprep.mubr.bf16.mxu0 %v288
  %737 = vmatmul.mubr.bf16.gmra.mrb[0].mxu0 %v287
  %v738 = vpop.f32.mrb[0].mxu0
  %v739 = vadd.f32 %v642, %v738
  %v740 = vpop.f32.mrb[0].mxu0
  %v741 = vpop.f32.mrb[0].mxu0
  %v742 = vadd.f32 %v645, %v741
  %v743 = vpop.f32.mrb[0].mxu0
  %744 = vmatprep.mubr.bf16.mxu0 %v293
  %745 = vmatmul.mubr.bf16.gmra.mrb[0].mxu0 %v292
  %v746 = vpop.f32.mrb[0].mxu0
  %v747 = vadd.f32 %v650, %v746
  %v748 = vpop.f32.mrb[0].mxu0
  %v749 = vpop.f32.mrb[0].mxu0
  %v750 = vadd.f32 %v653, %v749
  %v751 = vpop.f32.mrb[0].mxu0
  %752 = vmatprep.mubr.bf16.mxu0 %v298
  %753 = vmatmul.mubr.bf16.gmra.mrb[0].mxu0 %v297
  %v754 = vpop.f32.mrb[0].mxu0
  %v755 = vadd.f32 %v658, %v754
  %v756 = vpop.f32.mrb[0].mxu0
  %v757 = vpop.f32.mrb[0].mxu0
  %v758 = vadd.f32 %v661, %v757
  %v759 = vpop.f32.mrb[0].mxu0
  %760 = vmatprep.mubr.bf16.mxu0 %v303
  %761 = vmatmul.mubr.bf16.gmra.mrb[0].mxu0 %v302
  %v762 = vpop.f32.mrb[0].mxu0
  %v763 = vadd.f32 %v666, %v762
  %v764 = vpop.f32.mrb[0].mxu0
  %v765 = vpop.f32.mrb[0].mxu0
  %v766 = vadd.f32 %v669, %v765
  %v767 = vpop.f32.mrb[0].mxu0
  %768 = vmatprep.mubr.bf16.mxu0 %v308
  %769 = vmatmul.mubr.bf16.gmra.mrb[0].mxu0 %v307
  %v770 = vpop.f32.mrb[0].mxu0
  %v771 = vadd.f32 %v674, %v770
  %v772 = vpop.f32.mrb[0].mxu0
  %v773 = vpop.f32.mrb[0].mxu0
  %v774 = vadd.f32 %v677, %v773
  %v775 = vpop.f32.mrb[0].mxu0
  %776 = vdwg.mxu0
  %777 = vmatprep.subr.bf16.mxu0 0
  %778 = vmatpush1.bf16.msra.mxu0 %v518
  %779 = vmatprep.subr.bf16.mxu0 0
  %780 = vmatpush1.bf16.msra.mxu0 %v519
  %781 = vmatprep.subr.bf16.mxu0 0
  %782 = vmatpush1.bf16.msra.mxu0 %v520
  %783 = vmatprep.subr.bf16.mxu0 0
  %784 = vmatpush1.bf16.msra.mxu0 %v521
  %785 = vmatprep.subr.bf16.mxu0 0
  %786 = vmatpush1.bf16.msra.mxu0 0
  %787 = vmatprep.subr.bf16.mxu0 0
  %788 = vmatpush1.bf16.msra.mxu0 0
  %789 = vmatprep.subr.bf16.mxu0 0
  %790 = vmatpush1.bf16.msra.mxu0 0
  %791 = vmatprep.subr.bf16.mxu0 0
  %792 = vmatpush1.bf16.msra.mxu0 0
  %793 = vmatprep.subr.bf16.mxu0 0
  %794 = vmatpush1.bf16.msra.mxu0 0
  %795 = vmatprep.subr.bf16.mxu0 0
  %796 = vmatpush1.bf16.msra.mxu0 0
  %797 = vmatprep.subr.bf16.mxu0 0
  %798 = vmatpush1.bf16.msra.mxu0 0
  %799 = vmatprep.subr.bf16.mxu0 0
  %800 = vmatpush1.bf16.msra.mxu0 0
  %801 = vmatprep.subr.bf16.mxu0 0
  %802 = vmatpush1.bf16.msra.mxu0 0
  %803 = vmatprep.subr.bf16.mxu0 0
  %804 = vmatpush1.bf16.msra.mxu0 0
  %805 = vmatprep.subr.bf16.mxu0 0
  %806 = vmatpush1.bf16.msra.mxu0 0
  %807 = vmatprep.subr.bf16.mxu0 0
  %808 = vmatpush1.bf16.msra.mxu0 0
  %809 = vmatprep.mubr.bf16.mxu0 0
  %810 = vmatmul.mubr.bf16.gmra.mrb[0].mxu0 %v560
  %v811 = vpop.f32.mrb[0].mxu0
  %v812 = vadd.f32 %v715, %v811
  %v813 = vpop.f32.mrb[0].mxu0
  %v814 = vpop.f32.mrb[0].mxu0
  %v815 = vadd.f32 %v718, %v814
  %v816 = vpop.f32.mrb[0].mxu0
  %817 = vmatprep.mubr.bf16.mxu0 0
  %818 = vmatmul.mubr.bf16.gmra.mrb[0].mxu0 %v563
  %v819 = vpop.f32.mrb[0].mxu0
  %v820 = vadd.f32 %v723, %v819
  %v821 = vpop.f32.mrb[0].mxu0
  %v822 = vpop.f32.mrb[0].mxu0
  %v823 = vadd.f32 %v726, %v822
  %v824 = vpop.f32.mrb[0].mxu0
  %825 = vmatprep.mubr.bf16.mxu0 0
  %826 = vmatmul.mubr.bf16.gmra.mrb[0].mxu0 %v566
  %v827 = vpop.f32.mrb[0].mxu0
  %v828 = vadd.f32 %v731, %v827
  %v829 = vpop.f32.mrb[0].mxu0
  %v830 = vpop.f32.mrb[0].mxu0
  %v831 = vadd.f32 %v734, %v830
  %v832 = vpop.f32.mrb[0].mxu0
  %833 = vmatprep.mubr.bf16.mxu0 0
  %834 = vmatmul.mubr.bf16.gmra.mrb[0].mxu0 %v569
  %v835 = vpop.f32.mrb[0].mxu0
  %v836 = vadd.f32 %v739, %v835
  %v837 = vpop.f32.mrb[0].mxu0
  %v838 = vpop.f32.mrb[0].mxu0
  %v839 = vadd.f32 %v742, %v838
  %v840 = vpop.f32.mrb[0].mxu0
  %841 = vmatprep.mubr.bf16.mxu0 0
  %842 = vmatmul.mubr.bf16.gmra.mrb[0].mxu0 %v572
  %v843 = vpop.f32.mrb[0].mxu0
  %v844 = vadd.f32 %v747, %v843
  %v845 = vpop.f32.mrb[0].mxu0
  %v846 = vpop.f32.mrb[0].mxu0
  %v847 = vadd.f32 %v750, %v846
  %v848 = vpop.f32.mrb[0].mxu0
  %849 = vmatprep.mubr.bf16.mxu0 0
  %850 = vmatmul.mubr.bf16.gmra.mrb[0].mxu0 %v575
  %v851 = vpop.f32.mrb[0].mxu0
  %v852 = vadd.f32 %v755, %v851
  %v853 = vpop.f32.mrb[0].mxu0
  %v854 = vpop.f32.mrb[0].mxu0
  %v855 = vadd.f32 %v758, %v854
  %v856 = vpop.f32.mrb[0].mxu0
  %857 = vmatprep.mubr.bf16.mxu0 0
  %858 = vmatmul.mubr.bf16.gmra.mrb[0].mxu0 %v578
  %v859 = vpop.f32.mrb[0].mxu0
  %v860 = vadd.f32 %v763, %v859
  %v861 = vpop.f32.mrb[0].mxu0
  %v862 = vpop.f32.mrb[0].mxu0
  %v863 = vadd.f32 %v766, %v862
  %v864 = vpop.f32.mrb[0].mxu0
  %865 = vmatprep.mubr.bf16.mxu0 0
  %866 = vmatmul.mubr.bf16.gmra.mrb[0].mxu0 %v581
  %v867 = vpop.f32.mrb[0].mxu0
  %v868 = vadd.f32 %v771, %v867
  %v869 = vpop.f32.mrb[0].mxu0
  %v870 = vpop.f32.mrb[0].mxu0
  %v871 = vadd.f32 %v774, %v870
  %v872 = vpop.f32.mrb[0].mxu0
  %873 = vdwg.mxu0
  %v874 = vmax.f32 %v812, 0.0
  %v875 = vmax.f32 %v815, 0.0
  %v876 = vmax.f32 %v820, 0.0
  %v877 = vmax.f32 %v823, 0.0
  %v878 = vmax.f32 %v828, 0.0
  %v879 = vmax.f32 %v831, 0.0
  %v880 = vmax.f32 %v836, 0.0
  %v881 = vmax.f32 %v839, 0.0
  %v882 = vmax.f32 %v844, 0.0
  %v883 = vmax.f32 %v847, 0.0
  %v884 = vmax.f32 %v852, 0.0
  %v885 = vmax.f32 %v855, 0.0
  %v886 = vmax.f32 %v860, 0.0
  %v887 = vmax.f32 %v863, 0.0
  %v888 = vmax.f32 %v868, 0.0
  %v889 = vmax.f32 %v871, 0.0
  %v890 = vpack.c.bf16 %v875, %v874
  %v891 = vpack.c.bf16 %v877, %v876
  %v892 = vpack.c.bf16 %v879, %v878
  %v893 = vpack.c.bf16 %v881, %v880
  %v894 = vpack.c.bf16 %v883, %v882
  %v895 = vpack.c.bf16 %v885, %v884
  %v896 = vpack.c.bf16 %v887, %v886
  %v897 = vpack.c.bf16 %v889, %v888
  %v906 = vunpack.c.l.b16 %v890
  %v907 = vunpack.c.h.b16 %v890
  %v908 = vunpack.c.l.b16 %v891
  %v909 = vunpack.c.h.b16 %v891
  %v910 = vunpack.c.l.b16 %v892
  %v911 = vunpack.c.h.b16 %v892
  %v912 = vunpack.c.l.b16 %v893
  %v913 = vunpack.c.h.b16 %v893
  %v914 = vunpack.c.l.b16 %v894
  %v915 = vunpack.c.h.b16 %v894
  %v916 = vunpack.c.l.b16 %v895
  %v917 = vunpack.c.h.b16 %v895
  %v918 = vunpack.c.l.b16 %v896
  %v919 = vunpack.c.h.b16 %v896
  %v920 = vunpack.c.l.b16 %v897
  %v921 = vunpack.c.h.b16 %v897
  %v922 = vpack.c.b16 %v906, %v906
  %v923 = vpack.c.b16 %v907, %v907
  %v924 = vpack.c.b16 %v908, %v908
  %v925 = vpack.c.b16 %v909, %v909
  %v926 = vpack.c.b16 %v910, %v910
  %v927 = vpack.c.b16 %v911, %v911
  %v928 = vpack.c.b16 %v912, %v912
  %v929 = vpack.c.b16 %v913, %v913
  %v930 = vpack.c.b16 %v914, %v914
  %v931 = vpack.c.b16 %v915, %v915
  %v932 = vpack.c.b16 %v916, %v916
  %v933 = vpack.c.b16 %v917, %v917
  %v934 = vpack.c.b16 %v918, %v918
  %v935 = vpack.c.b16 %v919, %v919
  %v936 = vpack.c.b16 %v920, %v920
  %v937 = vpack.c.b16 %v921, %v921
  %954 = vst [vmem:[%s3] sm:$0xf] %v922
  %955 = vst [vmem:[%s3 + $0x4] sm:$0xf] %v923
  %956 = vst [vmem:[%s3 + $0x8] sm:$0xf] %v924
  %957 = vst [vmem:[%s3 + $0xc] sm:$0xf] %v925
  %958 = vst [vmem:[%s3 + $0x10] sm:$0xf] %v926
  %959 = vst [vmem:[%s3 + $0x14] sm:$0xf] %v927
  %960 = vst [vmem:[%s3 + $0x18] sm:$0xf] %v928
  %961 = vst [vmem:[%s3 + $0x1c] sm:$0xf] %v929
  %962 = vst [vmem:[%s3 + $0x20] sm:$0xf] %v930
  %963 = vst [vmem:[%s3 + $0x24] sm:$0xf] %v931
  %964 = vst [vmem:[%s3 + $0x28] sm:$0xf] %v932
  %965 = vst [vmem:[%s3 + $0x2c] sm:$0xf] %v933
  %966 = vst [vmem:[%s3 + $0x30] sm:$0xf] %v934
  %967 = vst [vmem:[%s3 + $0x34] sm:$0xf] %v935
  %968 = vst [vmem:[%s3 + $0x38] sm:$0xf] %v936
  %969 = vst [vmem:[%s3 + $0x3c] sm:$0xf] %v937
  // Predicated region
  $region14: #{convnet_forward.6} parent=0 // pred_check
    _
  $region15: #{convnet_forward.6} parent=0 // pred_check_branch
    %971 = sbr.rel (0) target = $region17
  $region16: #{convnet_forward.6} parent=0 // pred_region
    _
  $region17: #{convnet_forward.6} parent=0 // pred_fallthru
    _
  // Predicated region
  $region18: #{convnet_forward.6} parent=0 // pred_check
    _
  $region19: #{convnet_forward.6} parent=0 // pred_check_branch
    %973 = sbr.rel (0) target = $region21
  $region20: #{convnet_forward.6} parent=0 // pred_region
    _
  $region21: #{convnet_forward.6} parent=0 // pred_fallthru
    _

// kernel: convnet_forward.7
$region0: #{convnet_forward.7}
  #allocation0 [shape = 'u32[]', space=smem, size = 0x4, offset = 0x4, fixed_abs, tag = 'smem constant byte address 0x4 - core index']
  #allocation1 [shape = 'u32[144,128]{1,0:T(1,128)}', space=vmem, size = 0x12000, scoped, tag = 'internal scratch']
  %s0 = inlined_call_operand.vmem [shape: bf16[128,3136], index: 0, kind: input, shape index: {}]
  %s1 = inlined_call_operand.vmem [shape: bf16[3136,512], index: 1, kind: input, shape index: {}]
  %s2 = inlined_call_operand.vmem [shape: f32[1,512], index: 2, kind: input, shape index: {}]
  %s3 = inlined_call_operand.vmem [shape: f32[128,512], index: 3, kind: output, shape index: {}]
  %s4 = sld [smem:[#allocation0]]
  $region22: #{convnet_forward.7} parent=0
    _
  %s6 = ssub.s32 1, %s4
  %s7 = scalar_select 0, %s6, %s4
  // Predicated region
  $region2: #{convnet_forward.7} parent=0 // pred_check
    _
  $region3: #{convnet_forward.7} parent=0 // pred_check_branch
    %9 = sbr.rel (0) target = $region5
  $region4: #{convnet_forward.7} parent=0 // pred_region
    _
  $region5: #{convnet_forward.7} parent=0 // pred_fallthru
    _
  // Predicated region
  $region6: #{convnet_forward.7} parent=0 // pred_check
    _
  $region7: #{convnet_forward.7} parent=0 // pred_check_branch
    %11 = sbr.rel (0) target = $region9
  $region8: #{convnet_forward.7} parent=0 // pred_region
    _
  $region9: #{convnet_forward.7} parent=0 // pred_fallthru
    _
  // Predicated region
  $region10: #{convnet_forward.7} parent=0 // pred_check
    _
  $region11: #{convnet_forward.7} parent=0 // pred_check_branch
    %13 = sbr.rel (0) target = $region13
  $region12: #{convnet_forward.7} parent=0 // pred_region
    _
  $region13: #{convnet_forward.7} parent=0 // pred_fallthru
    _
  %v15 = vld [vmem:[%s0] sm:$0xff]
  %v16 = vld [vmem:[%s0 + $0x8] sm:$0xff]
  %v17 = vld [vmem:[%s0 + $0x10] sm:$0xff]
  %v18 = vld [vmem:[%s0 + $0x18] sm:$0xff]
  %v19 = vld [vmem:[%s0 + $0x20] sm:$0xff]
  %v20 = vld [vmem:[%s0 + $0x28] sm:$0xff]
  %v21 = vld [vmem:[%s0 + $0x30] sm:$0xff]
  %v22 = vld [vmem:[%s0 + $0x38] sm:$0xff]
  %v23 = vld [vmem:[%s0 + $0x40] sm:$0xff]
  %v24 = vld [vmem:[%s0 + $0x48] sm:$0xff]
  %v25 = vld [vmem:[%s0 + $0x50] sm:$0xff]
  %v26 = vld [vmem:[%s0 + $0x58] sm:$0xff]
  %v27 = vld [vmem:[%s0 + $0x60] sm:$0xf]
  %v28 = vld [vmem:[%s0 + $0x64] sm:$0xff]
  %v29 = vld [vmem:[%s0 + $0x6c] sm:$0xff]
  %v30 = vld [vmem:[%s0 + $0x74] sm:$0xff]
  %v31 = vld [vmem:[%s0 + $0x7c] sm:$0xff]
  %v32 = vld [vmem:[%s0 + $0x84] sm:$0xff]
  %v33 = vld [vmem:[%s0 + $0x8c] sm:$0xff]
  %v34 = vld [vmem:[%s0 + $0x94] sm:$0xff]
  %v35 = vld [vmem:[%s0 + $0x9c] sm:$0xff]
  %v36 = vld [vmem:[%s0 + $0xa4] sm:$0xff]
  %v37 = vld [vmem:[%s0 + $0xac] sm:$0xff]
  %v38 = vld [vmem:[%s0 + $0xb4] sm:$0xff]
  %v39 = vld [vmem:[%s0 + $0xbc] sm:$0xff]
  %v40 = vld [vmem:[%s0 + $0xc4] sm:$0xf]
  %v41 = vld [vmem:[%s0 + $0xc8] sm:$0xff]
  %v42 = vld [vmem:[%s0 + $0xd0] sm:$0xff]
  %v43 = vld [vmem:[%s0 + $0xd8] sm:$0xff]
  %v44 = vld [vmem:[%s0 + $0xe0] sm:$0xff]
  %v45 = vld [vmem:[%s0 + $0xe8] sm:$0xff]
  %v46 = vld [vmem:[%s0 + $0xf0] sm:$0xff]
  %v47 = vld [vmem:[%s0 + $0xf8] sm:$0xff]
  %v48 = vld [vmem:[%s0 + $0x100] sm:$0xff]
  %v49 = vld [vmem:[%s0 + $0x108] sm:$0xff]
  %v50 = vld [vmem:[%s0 + $0x110] sm:$0xff]
  %v51 = vld [vmem:[%s0 + $0x118] sm:$0xff]
  %v52 = vld [vmem:[%s0 + $0x120] sm:$0xff]
  %v53 = vld [vmem:[%s0 + $0x128] sm:$0xf]
  %v54 = vld [vmem:[%s0 + $0x12c] sm:$0xff]
  %v55 = vld [vmem:[%s0 + $0x134] sm:$0xff]
  %v56 = vld [vmem:[%s0 + $0x13c] sm:$0xff]
  %v57 = vld [vmem:[%s0 + $0x144] sm:$0xff]
  %v58 = vld [vmem:[%s0 + $0x14c] sm:$0xff]
  %v59 = vld [vmem:[%s0 + $0x154] sm:$0xff]
  %v60 = vld [vmem:[%s0 + $0x15c] sm:$0xff]
  %v61 = vld [vmem:[%s0 + $0x164] sm:$0xff]
  %v62 = vld [vmem:[%s0 + $0x16c] sm:$0xff]
  %v63 = vld [vmem:[%s0 + $0x174] sm:$0xff]
  %v64 = vld [vmem:[%s0 + $0x17c] sm:$0xff]
  %v65 = vld [vmem:[%s0 + $0x184] sm:$0xff]
  %v66 = vld [vmem:[%s0 + $0x18c] sm:$0xf]
  %v67 = vld [vmem:[%s0 + $0x190] sm:$0xff]
  %v68 = vld [vmem:[%s0 + $0x198] sm:$0xff]
  %v69 = vld [vmem:[%s0 + $0x1a0] sm:$0xff]
  %v70 = vld [vmem:[%s0 + $0x1a8] sm:$0xff]
  %v71 = vld [vmem:[%s0 + $0x1b0] sm:$0xff]
  %v72 = vld [vmem:[%s0 + $0x1b8] sm:$0xff]
  %v73 = vld [vmem:[%s0 + $0x1c0] sm:$0xff]
  %v74 = vld [vmem:[%s0 + $0x1c8] sm:$0xff]
  %v75 = vld [vmem:[%s0 + $0x1d0] sm:$0xff]
  %v76 = vld [vmem:[%s0 + $0x1d8] sm:$0xff]
  %v77 = vld [vmem:[%s0 + $0x1e0] sm:$0xff]
  %v78 = vld [vmem:[%s0 + $0x1e8] sm:$0xff]
  %v79 = vld [vmem:[%s0 + $0x1f0] sm:$0xf]
  %v80 = vld [vmem:[%s0 + $0x1f4] sm:$0xff]
  %v81 = vld [vmem:[%s0 + $0x1fc] sm:$0xff]
  %v82 = vld [vmem:[%s0 + $0x204] sm:$0xff]
  %v83 = vld [vmem:[%s0 + $0x20c] sm:$0xff]
  %v84 = vld [vmem:[%s0 + $0x214] sm:$0xff]
  %v85 = vld [vmem:[%s0 + $0x21c] sm:$0xff]
  %v86 = vld [vmem:[%s0 + $0x224] sm:$0xff]
  %v87 = vld [vmem:[%s0 + $0x22c] sm:$0xff]
  %v88 = vld [vmem:[%s0 + $0x234] sm:$0xff]
  %v89 = vld [vmem:[%s0 + $0x23c] sm:$0xff]
  %v90 = vld [vmem:[%s0 + $0x244] sm:$0xff]
  %v91 = vld [vmem:[%s0 + $0x24c] sm:$0xff]
  %v92 = vld [vmem:[%s0 + $0x254] sm:$0xf]
  %v93 = vld [vmem:[%s0 + $0x258] sm:$0xff]
  %v94 = vld [vmem:[%s0 + $0x260] sm:$0xff]
  %v95 = vld [vmem:[%s0 + $0x268] sm:$0xff]
  %v96 = vld [vmem:[%s0 + $0x270] sm:$0xff]
  %v97 = vld [vmem:[%s0 + $0x278] sm:$0xff]
  %v98 = vld [vmem:[%s0 + $0x280] sm:$0xff]
  %v99 = vld [vmem:[%s0 + $0x288] sm:$0xff]
  %v100 = vld [vmem:[%s0 + $0x290] sm:$0xff]
  %v101 = vld [vmem:[%s0 + $0x298] sm:$0xff]
  %v102 = vld [vmem:[%s0 + $0x2a0] sm:$0xff]
  %v103 = vld [vmem:[%s0 + $0x2a8] sm:$0xff]
  %v104 = vld [vmem:[%s0 + $0x2b0] sm:$0xff]
  %v105 = vld [vmem:[%s0 + $0x2b8] sm:$0xf]
  %v106 = vld [vmem:[%s0 + $0x2bc] sm:$0xff]
  %v107 = vld [vmem:[%s0 + $0x2c4] sm:$0xff]
  %v108 = vld [vmem:[%s0 + $0x2cc] sm:$0xff]
  %v109 = vld [vmem:[%s0 + $0x2d4] sm:$0xff]
  %v110 = vld [vmem:[%s0 + $0x2dc] sm:$0xff]
  %v111 = vld [vmem:[%s0 + $0x2e4] sm:$0xff]
  %v112 = vld [vmem:[%s0 + $0x2ec] sm:$0xff]
  %v113 = vld [vmem:[%s0 + $0x2f4] sm:$0xff]
  %v114 = vld [vmem:[%s0 + $0x2fc] sm:$0xff]
  %v115 = vld [vmem:[%s0 + $0x304] sm:$0xff]
  %v116 = vld [vmem:[%s0 + $0x30c] sm:$0xff]
  %v117 = vld [vmem:[%s0 + $0x314] sm:$0xff]
  %v118 = vld [vmem:[%s0 + $0x31c] sm:$0xf]
  %v119 = vld [vmem:[%s0 + $0x320] sm:$0xff]
  %v120 = vld [vmem:[%s0 + $0x328] sm:$0xff]
  %v121 = vld [vmem:[%s0 + $0x330] sm:$0xff]
  %v122 = vld [vmem:[%s0 + $0x338] sm:$0xff]
  %v123 = vld [vmem:[%s0 + $0x340] sm:$0xff]
  %v124 = vld [vmem:[%s0 + $0x348] sm:$0xff]
  %v125 = vld [vmem:[%s0 + $0x350] sm:$0xff]
  %v126 = vld [vmem:[%s0 + $0x358] sm:$0xff]
  %v127 = vld [vmem:[%s0 + $0x360] sm:$0xff]
  %v128 = vld [vmem:[%s0 + $0x368] sm:$0xff]
  %v129 = vld [vmem:[%s0 + $0x370] sm:$0xff]
  %v130 = vld [vmem:[%s0 + $0x378] sm:$0xff]
  %v131 = vld [vmem:[%s0 + $0x380] sm:$0xf]
  %v132 = vld [vmem:[%s0 + $0x384] sm:$0xff]
  %v133 = vld [vmem:[%s0 + $0x38c] sm:$0xff]
  %v134 = vld [vmem:[%s0 + $0x394] sm:$0xff]
  %v135 = vld [vmem:[%s0 + $0x39c] sm:$0xff]
  %v136 = vld [vmem:[%s0 + $0x3a4] sm:$0xff]
  %v137 = vld [vmem:[%s0 + $0x3ac] sm:$0xff]
  %v138 = vld [vmem:[%s0 + $0x3b4] sm:$0xff]
  %v139 = vld [vmem:[%s0 + $0x3bc] sm:$0xff]
  %v140 = vld [vmem:[%s0 + $0x3c4] sm:$0xff]
  %v141 = vld [vmem:[%s0 + $0x3cc] sm:$0xff]
  %v142 = vld [vmem:[%s0 + $0x3d4] sm:$0xff]
  %v143 = vld [vmem:[%s0 + $0x3dc] sm:$0xff]
  %v144 = vld [vmem:[%s0 + $0x3e4] sm:$0xf]
  %v145 = vld [vmem:[%s0 + $0x3e8] sm:$0xff]
  %v146 = vld [vmem:[%s0 + $0x3f0] sm:$0xff]
  %v147 = vld [vmem:[%s0 + $0x3f8] sm:$0xff]
  %v148 = vld [vmem:[%s0 + $0x400] sm:$0xff]
  %v149 = vld [vmem:[%s0 + $0x408] sm:$0xff]
  %v150 = vld [vmem:[%s0 + $0x410] sm:$0xff]
  %v151 = vld [vmem:[%s0 + $0x418] sm:$0xff]
  %v152 = vld [vmem:[%s0 + $0x420] sm:$0xff]
  %v153 = vld [vmem:[%s0 + $0x428] sm:$0xff]
  %v154 = vld [vmem:[%s0 + $0x430] sm:$0xff]
  %v155 = vld [vmem:[%s0 + $0x438] sm:$0xff]
  %v156 = vld [vmem:[%s0 + $0x440] sm:$0xff]
  %v157 = vld [vmem:[%s0 + $0x448] sm:$0xf]
  %v158 = vld [vmem:[%s0 + $0x44c] sm:$0xff]
  %v159 = vld [vmem:[%s0 + $0x454] sm:$0xff]
  %v160 = vld [vmem:[%s0 + $0x45c] sm:$0xff]
  %v161 = vld [vmem:[%s0 + $0x464] sm:$0xff]
  %v162 = vld [vmem:[%s0 + $0x46c] sm:$0xff]
  %v163 = vld [vmem:[%s0 + $0x474] sm:$0xff]
  %v164 = vld [vmem:[%s0 + $0x47c] sm:$0xff]
  %v165 = vld [vmem:[%s0 + $0x484] sm:$0xff]
  %v166 = vld [vmem:[%s0 + $0x48c] sm:$0xff]
  %v167 = vld [vmem:[%s0 + $0x494] sm:$0xff]
  %v168 = vld [vmem:[%s0 + $0x49c] sm:$0xff]
  %v169 = vld [vmem:[%s0 + $0x4a4] sm:$0xff]
  %v170 = vld [vmem:[%s0 + $0x4ac] sm:$0xf]
  %v171 = vld [vmem:[%s0 + $0x4b0] sm:$0xff]
  %v172 = vld [vmem:[%s0 + $0x4b8] sm:$0xff]
  %v173 = vld [vmem:[%s0 + $0x4c0] sm:$0xff]
  %v174 = vld [vmem:[%s0 + $0x4c8] sm:$0xff]
  %v175 = vld [vmem:[%s0 + $0x4d0] sm:$0xff]
  %v176 = vld [vmem:[%s0 + $0x4d8] sm:$0xff]
  %v177 = vld [vmem:[%s0 + $0x4e0] sm:$0xff]
  %v178 = vld [vmem:[%s0 + $0x4e8] sm:$0xff]
  %v179 = vld [vmem:[%s0 + $0x4f0] sm:$0xff]
  %v180 = vld [vmem:[%s0 + $0x4f8] sm:$0xff]
  %v181 = vld [vmem:[%s0 + $0x500] sm:$0xff]
  %v182 = vld [vmem:[%s0 + $0x508] sm:$0xff]
  %v183 = vld [vmem:[%s0 + $0x510] sm:$0xf]
  %v184 = vld [vmem:[%s0 + $0x514] sm:$0xff]
  %v185 = vld [vmem:[%s0 + $0x51c] sm:$0xff]
  %v186 = vld [vmem:[%s0 + $0x524] sm:$0xff]
  %v187 = vld [vmem:[%s0 + $0x52c] sm:$0xff]
  %v188 = vld [vmem:[%s0 + $0x534] sm:$0xff]
  %v189 = vld [vmem:[%s0 + $0x53c] sm:$0xff]
  %v190 = vld [vmem:[%s0 + $0x544] sm:$0xff]
  %v191 = vld [vmem:[%s0 + $0x54c] sm:$0xff]
  %v192 = vld [vmem:[%s0 + $0x554] sm:$0xff]
  %v193 = vld [vmem:[%s0 + $0x55c] sm:$0xff]
  %v194 = vld [vmem:[%s0 + $0x564] sm:$0xff]
  %v195 = vld [vmem:[%s0 + $0x56c] sm:$0xff]
  %v196 = vld [vmem:[%s0 + $0x574] sm:$0xf]
  %v197 = vld [vmem:[%s0 + $0x578] sm:$0xff]
  %v198 = vld [vmem:[%s0 + $0x580] sm:$0xff]
  %v199 = vld [vmem:[%s0 + $0x588] sm:$0xff]
  %v200 = vld [vmem:[%s0 + $0x590] sm:$0xff]
  %v201 = vld [vmem:[%s0 + $0x598] sm:$0xff]
  %v202 = vld [vmem:[%s0 + $0x5a0] sm:$0xff]
  %v203 = vld [vmem:[%s0 + $0x5a8] sm:$0xff]
  %v204 = vld [vmem:[%s0 + $0x5b0] sm:$0xff]
  %v205 = vld [vmem:[%s0 + $0x5b8] sm:$0xff]
  %v206 = vld [vmem:[%s0 + $0x5c0] sm:$0xff]
  %v207 = vld [vmem:[%s0 + $0x5c8] sm:$0xff]
  %v208 = vld [vmem:[%s0 + $0x5d0] sm:$0xff]
  %v209 = vld [vmem:[%s0 + $0x5d8] sm:$0xf]
  %v210 = vld [vmem:[%s0 + $0x5dc] sm:$0xff]
  %v211 = vld [vmem:[%s0 + $0x5e4] sm:$0xff]
  %v212 = vld [vmem:[%s0 + $0x5ec] sm:$0xff]
  %v213 = vld [vmem:[%s0 + $0x5f4] sm:$0xff]
  %v214 = vld [vmem:[%s0 + $0x5fc] sm:$0xff]
  %v215 = vld [vmem:[%s0 + $0x604] sm:$0xff]
  %v216 = vld [vmem:[%s0 + $0x60c] sm:$0xff]
  %v217 = vld [vmem:[%s0 + $0x614] sm:$0xff]
  %v218 = vld [vmem:[%s0 + $0x61c] sm:$0xff]
  %v219 = vld [vmem:[%s0 + $0x624] sm:$0xff]
  %v220 = vld [vmem:[%s0 + $0x62c] sm:$0xff]
  %v221 = vld [vmem:[%s0 + $0x634] sm:$0xff]
  %v222 = vld [vmem:[%s0 + $0x63c] sm:$0xf]
  %v223 = vld [vmem:[%s1] sm:$0xff]
  %v224 = vld [vmem:[%s1 + $0x8] sm:$0xff]
  %v225 = vld [vmem:[%s1 + $0x10] sm:$0xff]
  %v226 = vld [vmem:[%s1 + $0x18] sm:$0xff]
  %v227 = vld [vmem:[%s1 + $0x20] sm:$0xff]
  %v228 = vld [vmem:[%s1 + $0x28] sm:$0xff]
  %v229 = vld [vmem:[%s1 + $0x30] sm:$0xff]
  %v230 = vld [vmem:[%s1 + $0x38] sm:$0xff]
  %v231 = vld [vmem:[%s1 + $0x40] sm:$0xff]
  %v232 = vld [vmem:[%s1 + $0x48] sm:$0xff]
  %v233 = vld [vmem:[%s1 + $0x50] sm:$0xff]
  %v234 = vld [vmem:[%s1 + $0x58] sm:$0xff]
  %v235 = vld [vmem:[%s1 + $0x60] sm:$0xff]
  %v236 = vld [vmem:[%s1 + $0x68] sm:$0xff]
  %v237 = vld [vmem:[%s1 + $0x70] sm:$0xff]
  %v238 = vld [vmem:[%s1 + $0x78] sm:$0xff]
  %v239 = vld [vmem:[%s1 + $0x80] sm:$0xff]
  %v240 = vld [vmem:[%s1 + $0x88] sm:$0xff]
  %v241 = vld [vmem:[%s1 + $0x90] sm:$0xff]
  %v242 = vld [vmem:[%s1 + $0x98] sm:$0xff]
  %v243 = vld [vmem:[%s1 + $0xa0] sm:$0xff]
  %v244 = vld [vmem:[%s1 + $0xa8] sm:$0xff]
  %v245 = vld [vmem:[%s1 + $0xb0] sm:$0xff]
  %v246 = vld [vmem:[%s1 + $0xb8] sm:$0xff]
  %v247 = vld [vmem:[%s1 + $0xc0] sm:$0xff]
  %v248 = vld [vmem:[%s1 + $0xc8] sm:$0xff]
  %v249 = vld [vmem:[%s1 + $0xd0] sm:$0xff]
  %v250 = vld [vmem:[%s1 + $0xd8] sm:$0xff]
  %v251 = vld [vmem:[%s1 + $0xe0] sm:$0xff]
  %v252 = vld [vmem:[%s1 + $0xe8] sm:$0xff]
  %v253 = vld [vmem:[%s1 + $0xf0] sm:$0xff]
  %v254 = vld [vmem:[%s1 + $0xf8] sm:$0xff]
  %v255 = vld [vmem:[%s1 + $0x100] sm:$0xff]
  %v256 = vld [vmem:[%s1 + $0x108] sm:$0xff]
  %v257 = vld [vmem:[%s1 + $0x110] sm:$0xff]
  %v258 = vld [vmem:[%s1 + $0x118] sm:$0xff]
  %v259 = vld [vmem:[%s1 + $0x120] sm:$0xff]
  %v260 = vld [vmem:[%s1 + $0x128] sm:$0xff]
  %v261 = vld [vmem:[%s1 + $0x130] sm:$0xff]
  %v262 = vld [vmem:[%s1 + $0x138] sm:$0xff]
  %v263 = vld [vmem:[%s1 + $0x140] sm:$0xff]
  %v264 = vld [vmem:[%s1 + $0x148] sm:$0xff]
  %v265 = vld [vmem:[%s1 + $0x150] sm:$0xff]
  %v266 = vld [vmem:[%s1 + $0x158] sm:$0xff]
  %v267 = vld [vmem:[%s1 + $0x160] sm:$0xff]
  %v268 = vld [vmem:[%s1 + $0x168] sm:$0xff]
  %v269 = vld [vmem:[%s1 + $0x170] sm:$0xff]
  %v270 = vld [vmem:[%s1 + $0x178] sm:$0xff]
  %v271 = vld [vmem:[%s1 + $0x180] sm:$0xff]
  %v272 = vld [vmem:[%s1 + $0x188] sm:$0xff]
  %v273 = vld [vmem:[%s1 + $0x190] sm:$0xff]
  %v274 = vld [vmem:[%s1 + $0x198] sm:$0xff]
  %v275 = vld [vmem:[%s1 + $0x1a0] sm:$0xff]
  %v276 = vld [vmem:[%s1 + $0x1a8] sm:$0xff]
  %v277 = vld [vmem:[%s1 + $0x1b0] sm:$0xff]
  %v278 = vld [vmem:[%s1 + $0x1b8] sm:$0xff]
  %v279 = vld [vmem:[%s1 + $0x1c0] sm:$0xff]
  %v280 = vld [vmem:[%s1 + $0x1c8] sm:$0xff]
  %v281 = vld [vmem:[%s1 + $0x1d0] sm:$0xff]
  %v282 = vld [vmem:[%s1 + $0x1d8] sm:$0xff]
  %v283 = vld [vmem:[%s1 + $0x1e0] sm:$0xff]
  %v284 = vld [vmem:[%s1 + $0x1e8] sm:$0xff]
  %v285 = vld [vmem:[%s1 + $0x1f0] sm:$0xff]
  %v286 = vld [vmem:[%s1 + $0x1f8] sm:$0xff]
  %v287 = vld [vmem:[%s1 + $0x200] sm:$0xff]
  %v288 = vld [vmem:[%s1 + $0x208] sm:$0xff]
  %v289 = vld [vmem:[%s1 + $0x210] sm:$0xff]
  %v290 = vld [vmem:[%s1 + $0x218] sm:$0xff]
  %v291 = vld [vmem:[%s1 + $0x220] sm:$0xff]
  %v292 = vld [vmem:[%s1 + $0x228] sm:$0xff]
  %v293 = vld [vmem:[%s1 + $0x230] sm:$0xff]
  %v294 = vld [vmem:[%s1 + $0x238] sm:$0xff]
  %v295 = vld [vmem:[%s1 + $0x240] sm:$0xff]
  %v296 = vld [vmem:[%s1 + $0x248] sm:$0xff]
  %v297 = vld [vmem:[%s1 + $0x250] sm:$0xff]
  %v298 = vld [vmem:[%s1 + $0x258] sm:$0xff]
  %v299 = vld [vmem:[%s1 + $0x260] sm:$0xff]
  %v300 = vld [vmem:[%s1 + $0x268] sm:$0xff]
  %v301 = vld [vmem:[%s1 + $0x270] sm:$0xff]
  %v302 = vld [vmem:[%s1 + $0x278] sm:$0xff]
  %v303 = vld [vmem:[%s1 + $0x280] sm:$0xff]
  %v304 = vld [vmem:[%s1 + $0x288] sm:$0xff]
  %v305 = vld [vmem:[%s1 + $0x290] sm:$0xff]
  %v306 = vld [vmem:[%s1 + $0x298] sm:$0xff]
  %v307 = vld [vmem:[%s1 + $0x2a0] sm:$0xff]
  %v308 = vld [vmem:[%s1 + $0x2a8] sm:$0xff]
  %v309 = vld [vmem:[%s1 + $0x2b0] sm:$0xff]
  %v310 = vld [vmem:[%s1 + $0x2b8] sm:$0xff]
  %v311 = vld [vmem:[%s1 + $0x2c0] sm:$0xff]
  %v312 = vld [vmem:[%s1 + $0x2c8] sm:$0xff]
  %v313 = vld [vmem:[%s1 + $0x2d0] sm:$0xff]
  %v314 = vld [vmem:[%s1 + $0x2d8] sm:$0xff]
  %v315 = vld [vmem:[%s1 + $0x2e0] sm:$0xff]
  %v316 = vld [vmem:[%s1 + $0x2e8] sm:$0xff]
  %v317 = vld [vmem:[%s1 + $0x2f0] sm:$0xff]
  %v318 = vld [vmem:[%s1 + $0x2f8] sm:$0xff]
  %v319 = vld [vmem:[%s1 + $0x300] sm:$0xff]
  %v320 = vld [vmem:[%s1 + $0x308] sm:$0xff]
  %v321 = vld [vmem:[%s1 + $0x310] sm:$0xff]
  %v322 = vld [vmem:[%s1 + $0x318] sm:$0xff]
  %v323 = vld [vmem:[%s1 + $0x320] sm:$0xff]
  %v324 = vld [vmem:[%s1 + $0x328] sm:$0xff]
  %v325 = vld [vmem:[%s1 + $0x330] sm:$0xff]
  %v326 = vld [vmem:[%s1 + $0x338] sm:$0xff]
  %v327 = vld [vmem:[%s1 + $0x340] sm:$0xff]
  %v328 = vld [vmem:[%s1 + $0x348] sm:$0xff]
  %v329 = vld [vmem:[%s1 + $0x350] sm:$0xff]
  %v330 = vld [vmem:[%s1 + $0x358] sm:$0xff]
  %v331 = vld [vmem:[%s1 + $0x360] sm:$0xff]
  %v332 = vld [vmem:[%s1 + $0x368] sm:$0xff]
  %v333 = vld [vmem:[%s1 + $0x370] sm:$0xff]
  %v334 = vld [vmem:[%s1 + $0x378] sm:$0xff]
  %v335 = vld [vmem:[%s1 + $0x380] sm:$0xff]
  %v336 = vld [vmem:[%s1 + $0x388] sm:$0xff]
  %v337 = vld [vmem:[%s1 + $0x390] sm:$0xff]
  %v338 = vld [vmem:[%s1 + $0x398] sm:$0xff]
  %v339 = vld [vmem:[%s1 + $0x3a0] sm:$0xff]
  %v340 = vld [vmem:[%s1 + $0x3a8] sm:$0xff]
  %v341 = vld [vmem:[%s1 + $0x3b0] sm:$0xff]
  %v342 = vld [vmem:[%s1 + $0x3b8] sm:$0xff]
  %v343 = vld [vmem:[%s1 + $0x3c0] sm:$0xff]
  %v344 = vld [vmem:[%s1 + $0x3c8] sm:$0xff]
  %v345 = vld [vmem:[%s1 + $0x3d0] sm:$0xff]
  %v346 = vld [vmem:[%s1 + $0x3d8] sm:$0xff]
  %v347 = vld [vmem:[%s1 + $0x3e0] sm:$0xff]
  %v348 = vld [vmem:[%s1 + $0x3e8] sm:$0xff]
  %v349 = vld [vmem:[%s1 + $0x3f0] sm:$0xff]
  %v350 = vld [vmem:[%s1 + $0x3f8] sm:$0xff]
  %v351 = vld [vmem:[%s1 + $0x400] sm:$0xff]
  %v352 = vld [vmem:[%s1 + $0x408] sm:$0xff]
  %v353 = vld [vmem:[%s1 + $0x410] sm:$0xff]
  %v354 = vld [vmem:[%s1 + $0x418] sm:$0xff]
  %v355 = vld [vmem:[%s1 + $0x420] sm:$0xff]
  %v356 = vld [vmem:[%s1 + $0x428] sm:$0xff]
  %v357 = vld [vmem:[%s1 + $0x430] sm:$0xff]
  %v358 = vld [vmem:[%s1 + $0x438] sm:$0xff]
  %v359 = vld [vmem:[%s1 + $0x440] sm:$0xff]
  %v360 = vld [vmem:[%s1 + $0x448] sm:$0xff]
  %v361 = vld [vmem:[%s1 + $0x450] sm:$0xff]
  %v362 = vld [vmem:[%s1 + $0x458] sm:$0xff]
  %v363 = vld [vmem:[%s1 + $0x460] sm:$0xff]
  %v364 = vld [vmem:[%s1 + $0x468] sm:$0xff]
  %v365 = vld [vmem:[%s1 + $0x470] sm:$0xff]
  %v366 = vld [vmem:[%s1 + $0x478] sm:$0xff]
  %v367 = vld [vmem:[%s1 + $0x480] sm:$0xff]
  %v368 = vld [vmem:[%s1 + $0x488] sm:$0xff]
  %v369 = vld [vmem:[%s1 + $0x490] sm:$0xff]
  %v370 = vld [vmem:[%s1 + $0x498] sm:$0xff]
  %v371 = vld [vmem:[%s1 + $0x4a0] sm:$0xff]
  %v372 = vld [vmem:[%s1 + $0x4a8] sm:$0xff]
  %v373 = vld [vmem:[%s1 + $0x4b0] sm:$0xff]
  %v374 = vld [vmem:[%s1 + $0x4b8] sm:$0xff]
  %v375 = vld [vmem:[%s1 + $0x4c0] sm:$0xff]
  %v376 = vld [vmem:[%s1 + $0x4c8] sm:$0xff]
  %v377 = vld [vmem:[%s1 + $0x4d0] sm:$0xff]
  %v378 = vld [vmem:[%s1 + $0x4d8] sm:$0xff]
  %v379 = vld [vmem:[%s1 + $0x4e0] sm:$0xff]
  %v380 = vld [vmem:[%s1 + $0x4e8] sm:$0xff]
  %v381 = vld [vmem:[%s1 + $0x4f0] sm:$0xff]
  %v382 = vld [vmem:[%s1 + $0x4f8] sm:$0xff]
  %v383 = vld [vmem:[%s1 + $0x500] sm:$0xff]
  %v384 = vld [vmem:[%s1 + $0x508] sm:$0xff]
  %v385 = vld [vmem:[%s1 + $0x510] sm:$0xff]
  %v386 = vld [vmem:[%s1 + $0x518] sm:$0xff]
  %v387 = vld [vmem:[%s1 + $0x520] sm:$0xff]
  %v388 = vld [vmem:[%s1 + $0x528] sm:$0xff]
  %v389 = vld [vmem:[%s1 + $0x530] sm:$0xff]
  %v390 = vld [vmem:[%s1 + $0x538] sm:$0xff]
  %v391 = vld [vmem:[%s1 + $0x540] sm:$0xff]
  %v392 = vld [vmem:[%s1 + $0x548] sm:$0xff]
  %v393 = vld [vmem:[%s1 + $0x550] sm:$0xff]
  %v394 = vld [vmem:[%s1 + $0x558] sm:$0xff]
  %v395 = vld [vmem:[%s1 + $0x560] sm:$0xff]
  %v396 = vld [vmem:[%s1 + $0x568] sm:$0xff]
  %v397 = vld [vmem:[%s1 + $0x570] sm:$0xff]
  %v398 = vld [vmem:[%s1 + $0x578] sm:$0xff]
  %v399 = vld [vmem:[%s1 + $0x580] sm:$0xff]
  %v400 = vld [vmem:[%s1 + $0x588] sm:$0xff]
  %v401 = vld [vmem:[%s1 + $0x590] sm:$0xff]
  %v402 = vld [vmem:[%s1 + $0x598] sm:$0xff]
  %v403 = vld [vmem:[%s1 + $0x5a0] sm:$0xff]
  %v404 = vld [vmem:[%s1 + $0x5a8] sm:$0xff]
  %v405 = vld [vmem:[%s1 + $0x5b0] sm:$0xff]
  %v406 = vld [vmem:[%s1 + $0x5b8] sm:$0xff]
  %v407 = vld [vmem:[%s1 + $0x5c0] sm:$0xff]
  %v408 = vld [vmem:[%s1 + $0x5c8] sm:$0xff]
  %v409 = vld [vmem:[%s1 + $0x5d0] sm:$0xff]
  %v410 = vld [vmem:[%s1 + $0x5d8] sm:$0xff]
  %v411 = vld [vmem:[%s1 + $0x5e0] sm:$0xff]
  %v412 = vld [vmem:[%s1 + $0x5e8] sm:$0xff]
  %v413 = vld [vmem:[%s1 + $0x5f0] sm:$0xff]
  %v414 = vld [vmem:[%s1 + $0x5f8] sm:$0xff]
  %v415 = vld [vmem:[%s1 + $0x600] sm:$0xff]
  %v416 = vld [vmem:[%s1 + $0x608] sm:$0xff]
  %v417 = vld [vmem:[%s1 + $0x610] sm:$0xff]
  %v418 = vld [vmem:[%s1 + $0x618] sm:$0xff]
  %v419 = vld [vmem:[%s1 + $0x620] sm:$0xff]
  %v420 = vld [vmem:[%s1 + $0x628] sm:$0xff]
  %v421 = vld [vmem:[%s1 + $0x630] sm:$0xff]
  %v422 = vld [vmem:[%s1 + $0x638] sm:$0xff]
  %v423 = vld [vmem:[%s1 + $0x640] sm:$0xff]
  %v424 = vld [vmem:[%s1 + $0x648] sm:$0xff]
  %v425 = vld [vmem:[%s1 + $0x650] sm:$0xff]
  %v426 = vld [vmem:[%s1 + $0x658] sm:$0xff]
  %v427 = vld [vmem:[%s1 + $0x660] sm:$0xff]
  %v428 = vld [vmem:[%s1 + $0x668] sm:$0xff]
  %v429 = vld [vmem:[%s1 + $0x670] sm:$0xff]
  %v430 = vld [vmem:[%s1 + $0x678] sm:$0xff]
  %v431 = vld [vmem:[%s1 + $0x680] sm:$0xff]
  %v432 = vld [vmem:[%s1 + $0x688] sm:$0xff]
  %v433 = vld [vmem:[%s1 + $0x690] sm:$0xff]
  %v434 = vld [vmem:[%s1 + $0x698] sm:$0xff]
  %v435 = vld [vmem:[%s1 + $0x6a0] sm:$0xff]
  %v436 = vld [vmem:[%s1 + $0x6a8] sm:$0xff]
  %v437 = vld [vmem:[%s1 + $0x6b0] sm:$0xff]
  %v438 = vld [vmem:[%s1 + $0x6b8] sm:$0xff]
  %v439 = vld [vmem:[%s1 + $0x6c0] sm:$0xff]
  %v440 = vld [vmem:[%s1 + $0x6c8] sm:$0xff]
  %v441 = vld [vmem:[%s1 + $0x6d0] sm:$0xff]
  %v442 = vld [vmem:[%s1 + $0x6d8] sm:$0xff]
  %v443 = vld [vmem:[%s1 + $0x6e0] sm:$0xff]
  %v444 = vld [vmem:[%s1 + $0x6e8] sm:$0xff]
  %v445 = vld [vmem:[%s1 + $0x6f0] sm:$0xff]
  %v446 = vld [vmem:[%s1 + $0x6f8] sm:$0xff]
  %v447 = vld [vmem:[%s1 + $0x700] sm:$0xff]
  %v448 = vld [vmem:[%s1 + $0x708] sm:$0xff]
  %v449 = vld [vmem:[%s1 + $0x710] sm:$0xff]
  %v450 = vld [vmem:[%s1 + $0x718] sm:$0xff]
  %v451 = vld [vmem:[%s1 + $0x720] sm:$0xff]
  %v452 = vld [vmem:[%s1 + $0x728] sm:$0xff]
  %v453 = vld [vmem:[%s1 + $0x730] sm:$0xff]
  %v454 = vld [vmem:[%s1 + $0x738] sm:$0xff]
  %v455 = vld [vmem:[%s1 + $0x740] sm:$0xff]
  %v456 = vld [vmem:[%s1 + $0x748] sm:$0xff]
  %v457 = vld [vmem:[%s1 + $0x750] sm:$0xff]
  %v458 = vld [vmem:[%s1 + $0x758] sm:$0xff]
  %v459 = vld [vmem:[%s1 + $0x760] sm:$0xff]
  %v460 = vld [vmem:[%s1 + $0x768] sm:$0xff]
  %v461 = vld [vmem:[%s1 + $0x770] sm:$0xff]
  %v462 = vld [vmem:[%s1 + $0x778] sm:$0xff]
  %v463 = vld [vmem:[%s1 + $0x780] sm:$0xff]
  %v464 = vld [vmem:[%s1 + $0x788] sm:$0xff]
  %v465 = vld [vmem:[%s1 + $0x790] sm:$0xff]
  %v466 = vld [vmem:[%s1 + $0x798] sm:$0xff]
  %v467 = vld [vmem:[%s1 + $0x7a0] sm:$0xff]
  %v468 = vld [vmem:[%s1 + $0x7a8] sm:$0xff]
  %v469 = vld [vmem:[%s1 + $0x7b0] sm:$0xff]
  %v470 = vld [vmem:[%s1 + $0x7b8] sm:$0xff]
  %v471 = vld [vmem:[%s1 + $0x7c0] sm:$0xff]
  %v472 = vld [vmem:[%s1 + $0x7c8] sm:$0xff]
  %v473 = vld [vmem:[%s1 + $0x7d0] sm:$0xff]
  %v474 = vld [vmem:[%s1 + $0x7d8] sm:$0xff]
  %v475 = vld [vmem:[%s1 + $0x7e0] sm:$0xff]
  %v476 = vld [vmem:[%s1 + $0x7e8] sm:$0xff]
  %v477 = vld [vmem:[%s1 + $0x7f0] sm:$0xff]
  %v478 = vld [vmem:[%s1 + $0x7f8] sm:$0xff]
  %v479 = vld [vmem:[%s1 + $0x800] sm:$0xff]
  %v480 = vld [vmem:[%s1 + $0x808] sm:$0xff]
  %v481 = vld [vmem:[%s1 + $0x810] sm:$0xff]
  %v482 = vld [vmem:[%s1 + $0x818] sm:$0xff]
  %v483 = vld [vmem:[%s1 + $0x820] sm:$0xff]
  %v484 = vld [vmem:[%s1 + $0x828] sm:$0xff]
  %v485 = vld [vmem:[%s1 + $0x830] sm:$0xff]
  %v486 = vld [vmem:[%s1 + $0x838] sm:$0xff]
  %v487 = vld [vmem:[%s1 + $0x840] sm:$0xff]
  %v488 = vld [vmem:[%s1 + $0x848] sm:$0xff]
  %v489 = vld [vmem:[%s1 + $0x850] sm:$0xff]
  %v490 = vld [vmem:[%s1 + $0x858] sm:$0xff]
  %v491 = vld [vmem:[%s1 + $0x860] sm:$0xff]
  %v492 = vld [vmem:[%s1 + $0x868] sm:$0xff]
  %v493 = vld [vmem:[%s1 + $0x870] sm:$0xff]
  %v494 = vld [vmem:[%s1 + $0x878] sm:$0xff]
  %v495 = vld [vmem:[%s1 + $0x880] sm:$0xff]
  %v496 = vld [vmem:[%s1 + $0x888] sm:$0xff]
  %v497 = vld [vmem:[%s1 + $0x890] sm:$0xff]
  %v498 = vld [vmem:[%s1 + $0x898] sm:$0xff]
  %v499 = vld [vmem:[%s1 + $0x8a0] sm:$0xff]
  %v500 = vld [vmem:[%s1 + $0x8a8] sm:$0xff]
  %v501 = vld [vmem:[%s1 + $0x8b0] sm:$0xff]
  %v502 = vld [vmem:[%s1 + $0x8b8] sm:$0xff]
  %v503 = vld [vmem:[%s1 + $0x8c0] sm:$0xff]
  %v504 = vld [vmem:[%s1 + $0x8c8] sm:$0xff]
  %v505 = vld [vmem:[%s1 + $0x8d0] sm:$0xff]
  %v506 = vld [vmem:[%s1 + $0x8d8] sm:$0xff]
  %v507 = vld [vmem:[%s1 + $0x8e0] sm:$0xff]
  %v508 = vld [vmem:[%s1 + $0x8e8] sm:$0xff]
  %v509 = vld [vmem:[%s1 + $0x8f0] sm:$0xff]
  %v510 = vld [vmem:[%s1 + $0x8f8] sm:$0xff]
  %v511 = vld [vmem:[%s1 + $0x900] sm:$0xff]
  %v512 = vld [vmem:[%s1 + $0x908] sm:$0xff]
  %v513 = vld [vmem:[%s1 + $0x910] sm:$0xff]
  %v514 = vld [vmem:[%s1 + $0x918] sm:$0xff]
  %v515 = vld [vmem:[%s1 + $0x920] sm:$0xff]
  %v516 = vld [vmem:[%s1 + $0x928] sm:$0xff]
  %v517 = vld [vmem:[%s1 + $0x930] sm:$0xff]
  %v518 = vld [vmem:[%s1 + $0x938] sm:$0xff]
  %v519 = vld [vmem:[%s1 + $0x940] sm:$0xff]
  %v520 = vld [vmem:[%s1 + $0x948] sm:$0xff]
  %v521 = vld [vmem:[%s1 + $0x950] sm:$0xff]
  %v522 = vld [vmem:[%s1 + $0x958] sm:$0xff]
  %v523 = vld [vmem:[%s1 + $0x960] sm:$0xff]
  %v524 = vld [vmem:[%s1 + $0x968] sm:$0xff]
  %v525 = vld [vmem:[%s1 + $0x970] sm:$0xff]
  %v526 = vld [vmem:[%s1 + $0x978] sm:$0xff]
  %v527 = vld [vmem:[%s1 + $0x980] sm:$0xff]
  %v528 = vld [vmem:[%s1 + $0x988] sm:$0xff]
  %v529 = vld [vmem:[%s1 + $0x990] sm:$0xff]
  %v530 = vld [vmem:[%s1 + $0x998] sm:$0xff]
  %v531 = vld [vmem:[%s1 + $0x9a0] sm:$0xff]
  %v532 = vld [vmem:[%s1 + $0x9a8] sm:$0xff]
  %v533 = vld [vmem:[%s1 + $0x9b0] sm:$0xff]
  %v534 = vld [vmem:[%s1 + $0x9b8] sm:$0xff]
  %v535 = vld [vmem:[%s1 + $0x9c0] sm:$0xff]
  %v536 = vld [vmem:[%s1 + $0x9c8] sm:$0xff]
  %v537 = vld [vmem:[%s1 + $0x9d0] sm:$0xff]
  %v538 = vld [vmem:[%s1 + $0x9d8] sm:$0xff]
  %v539 = vld [vmem:[%s1 + $0x9e0] sm:$0xff]
  %v540 = vld [vmem:[%s1 + $0x9e8] sm:$0xff]
  %v541 = vld [vmem:[%s1 + $0x9f0] sm:$0xff]
  %v542 = vld [vmem:[%s1 + $0x9f8] sm:$0xff]
  %v543 = vld [vmem:[%s1 + $0xa00] sm:$0xff]
  %v544 = vld [vmem:[%s1 + $0xa08] sm:$0xff]
  %v545 = vld [vmem:[%s1 + $0xa10] sm:$0xff]
  %v546 = vld [vmem:[%s1 + $0xa18] sm:$0xff]
  %v547 = vld [vmem:[%s1 + $0xa20] sm:$0xff]
  %v548 = vld [vmem:[%s1 + $0xa28] sm:$0xff]
  %v549 = vld [vmem:[%s1 + $0xa30] sm:$0xff]
  %v550 = vld [vmem:[%s1 + $0xa38] sm:$0xff]
  %v551 = vld [vmem:[%s1 + $0xa40] sm:$0xff]
  %v552 = vld [vmem:[%s1 + $0xa48] sm:$0xff]
  %v553 = vld [vmem:[%s1 + $0xa50] sm:$0xff]
  %v554 = vld [vmem:[%s1 + $0xa58] sm:$0xff]
  %v555 = vld [vmem:[%s1 + $0xa60] sm:$0xff]
  %v556 = vld [vmem:[%s1 + $0xa68] sm:$0xff]
  %v557 = vld [vmem:[%s1 + $0xa70] sm:$0xff]
  %v558 = vld [vmem:[%s1 + $0xa78] sm:$0xff]
  %v559 = vld [vmem:[%s1 + $0xa80] sm:$0xff]
  %v560 = vld [vmem:[%s1 + $0xa88] sm:$0xff]
  %v561 = vld [vmem:[%s1 + $0xa90] sm:$0xff]
  %v562 = vld [vmem:[%s1 + $0xa98] sm:$0xff]
  %v563 = vld [vmem:[%s1 + $0xaa0] sm:$0xff]
  %v564 = vld [vmem:[%s1 + $0xaa8] sm:$0xff]
  %v565 = vld [vmem:[%s1 + $0xab0] sm:$0xff]
  %v566 = vld [vmem:[%s1 + $0xab8] sm:$0xff]
  %v567 = vld [vmem:[%s1 + $0xac0] sm:$0xff]
  %v568 = vld [vmem:[%s1 + $0xac8] sm:$0xff]
  %v569 = vld [vmem:[%s1 + $0xad0] sm:$0xff]
  %v570 = vld [vmem:[%s1 + $0xad8] sm:$0xff]
  %v571 = vld [vmem:[%s1 + $0xae0] sm:$0xff]
  %v572 = vld [vmem:[%s1 + $0xae8] sm:$0xff]
  %v573 = vld [vmem:[%s1 + $0xaf0] sm:$0xff]
  %v574 = vld [vmem:[%s1 + $0xaf8] sm:$0xff]
  %v575 = vld [vmem:[%s1 + $0xb00] sm:$0xff]
  %v576 = vld [vmem:[%s1 + $0xb08] sm:$0xff]
  %v577 = vld [vmem:[%s1 + $0xb10] sm:$0xff]
  %v578 = vld [vmem:[%s1 + $0xb18] sm:$0xff]
  %v579 = vld [vmem:[%s1 + $0xb20] sm:$0xff]
  %v580 = vld [vmem:[%s1 + $0xb28] sm:$0xff]
  %v581 = vld [vmem:[%s1 + $0xb30] sm:$0xff]
  %v582 = vld [vmem:[%s1 + $0xb38] sm:$0xff]
  %v583 = vld [vmem:[%s1 + $0xb40] sm:$0xff]
  %v584 = vld [vmem:[%s1 + $0xb48] sm:$0xff]
  %v585 = vld [vmem:[%s1 + $0xb50] sm:$0xff]
  %v586 = vld [vmem:[%s1 + $0xb58] sm:$0xff]
  %v587 = vld [vmem:[%s1 + $0xb60] sm:$0xff]
  %v588 = vld [vmem:[%s1 + $0xb68] sm:$0xff]
  %v589 = vld [vmem:[%s1 + $0xb70] sm:$0xff]
  %v590 = vld [vmem:[%s1 + $0xb78] sm:$0xff]
  %v591 = vld [vmem:[%s1 + $0xb80] sm:$0xff]
  %v592 = vld [vmem:[%s1 + $0xb88] sm:$0xff]
  %v593 = vld [vmem:[%s1 + $0xb90] sm:$0xff]
  %v594 = vld [vmem:[%s1 + $0xb98] sm:$0xff]
  %v595 = vld [vmem:[%s1 + $0xba0] sm:$0xff]
  %v596 = vld [vmem:[%s1 + $0xba8] sm:$0xff]
  %v597 = vld [vmem:[%s1 + $0xbb0] sm:$0xff]
  %v598 = vld [vmem:[%s1 + $0xbb8] sm:$0xff]
  %v599 = vld [vmem:[%s1 + $0xbc0] sm:$0xff]
  %v600 = vld [vmem:[%s1 + $0xbc8] sm:$0xff]
  %v601 = vld [vmem:[%s1 + $0xbd0] sm:$0xff]
  %v602 = vld [vmem:[%s1 + $0xbd8] sm:$0xff]
  %v603 = vld [vmem:[%s1 + $0xbe0] sm:$0xff]
  %v604 = vld [vmem:[%s1 + $0xbe8] sm:$0xff]
  %v605 = vld [vmem:[%s1 + $0xbf0] sm:$0xff]
  %v606 = vld [vmem:[%s1 + $0xbf8] sm:$0xff]
  %v607 = vld [vmem:[%s1 + $0xc00] sm:$0xff]
  %v608 = vld [vmem:[%s1 + $0xc08] sm:$0xff]
  %v609 = vld [vmem:[%s1 + $0xc10] sm:$0xff]
  %v610 = vld [vmem:[%s1 + $0xc18] sm:$0xff]
  %v611 = vld [vmem:[%s1 + $0xc20] sm:$0xff]
  %v612 = vld [vmem:[%s1 + $0xc28] sm:$0xff]
  %v613 = vld [vmem:[%s1 + $0xc30] sm:$0xff]
  %v614 = vld [vmem:[%s1 + $0xc38] sm:$0xff]
  %v615 = vld [vmem:[%s1 + $0xc40] sm:$0xff]
  %v616 = vld [vmem:[%s1 + $0xc48] sm:$0xff]
  %v617 = vld [vmem:[%s1 + $0xc50] sm:$0xff]
  %v618 = vld [vmem:[%s1 + $0xc58] sm:$0xff]
  %v619 = vld [vmem:[%s1 + $0xc60] sm:$0xff]
  %v620 = vld [vmem:[%s1 + $0xc68] sm:$0xff]
  %v621 = vld [vmem:[%s1 + $0xc70] sm:$0xff]
  %v622 = vld [vmem:[%s1 + $0xc78] sm:$0xff]
  %v623 = vld [vmem:[%s1 + $0xc80] sm:$0xff]
  %v624 = vld [vmem:[%s1 + $0xc88] sm:$0xff]
  %v625 = vld [vmem:[%s1 + $0xc90] sm:$0xff]
  %v626 = vld [vmem:[%s1 + $0xc98] sm:$0xff]
  %v627 = vld [vmem:[%s1 + $0xca0] sm:$0xff]
  %v628 = vld [vmem:[%s1 + $0xca8] sm:$0xff]
  %v629 = vld [vmem:[%s1 + $0xcb0] sm:$0xff]
  %v630 = vld [vmem:[%s1 + $0xcb8] sm:$0xff]
  %v631 = vld [vmem:[%s1 + $0xcc0] sm:$0xff]
  %v632 = vld [vmem:[%s1 + $0xcc8] sm:$0xff]
  %v633 = vld [vmem:[%s1 + $0xcd0] sm:$0xff]
  %v634 = vld [vmem:[%s1 + $0xcd8] sm:$0xff]
  %v635 = vld [vmem:[%s1 + $0xce0] sm:$0xff]
  %v636 = vld [vmem:[%s1 + $0xce8] sm:$0xff]
  %v637 = vld [vmem:[%s1 + $0xcf0] sm:$0xff]
  %v638 = vld [vmem:[%s1 + $0xcf8] sm:$0xff]
  %v639 = vld [vmem:[%s1 + $0xd00] sm:$0xff]
  %v640 = vld [vmem:[%s1 + $0xd08] sm:$0xff]
  %v641 = vld [vmem:[%s1 + $0xd10] sm:$0xff]
  %v642 = vld [vmem:[%s1 + $0xd18] sm:$0xff]
  %v643 = vld [vmem:[%s1 + $0xd20] sm:$0xff]
  %v644 = vld [vmem:[%s1 + $0xd28] sm:$0xff]
  %v645 = vld [vmem:[%s1 + $0xd30] sm:$0xff]
  %v646 = vld [vmem:[%s1 + $0xd38] sm:$0xff]
  %v647 = vld [vmem:[%s1 + $0xd40] sm:$0xff]
  %v648 = vld [vmem:[%s1 + $0xd48] sm:$0xff]
  %v649 = vld [vmem:[%s1 + $0xd50] sm:$0xff]
  %v650 = vld [vmem:[%s1 + $0xd58] sm:$0xff]
  %v651 = vld [vmem:[%s1 + $0xd60] sm:$0xff]
  %v652 = vld [vmem:[%s1 + $0xd68] sm:$0xff]
  %v653 = vld [vmem:[%s1 + $0xd70] sm:$0xff]
  %v654 = vld [vmem:[%s1 + $0xd78] sm:$0xff]
  %v655 = vld [vmem:[%s1 + $0xd80] sm:$0xff]
  %v656 = vld [vmem:[%s1 + $0xd88] sm:$0xff]
  %v657 = vld [vmem:[%s1 + $0xd90] sm:$0xff]
  %v658 = vld [vmem:[%s1 + $0xd98] sm:$0xff]
  %v659 = vld [vmem:[%s1 + $0xda0] sm:$0xff]
  %v660 = vld [vmem:[%s1 + $0xda8] sm:$0xff]
  %v661 = vld [vmem:[%s1 + $0xdb0] sm:$0xff]
  %v662 = vld [vmem:[%s1 + $0xdb8] sm:$0xff]
  %v663 = vld [vmem:[%s1 + $0xdc0] sm:$0xff]
  %v664 = vld [vmem:[%s1 + $0xdc8] sm:$0xff]
  %v665 = vld [vmem:[%s1 + $0xdd0] sm:$0xff]
  %v666 = vld [vmem:[%s1 + $0xdd8] sm:$0xff]
  %v667 = vld [vmem:[%s1 + $0xde0] sm:$0xff]
  %v668 = vld [vmem:[%s1 + $0xde8] sm:$0xff]
  %v669 = vld [vmem:[%s1 + $0xdf0] sm:$0xff]
  %v670 = vld [vmem:[%s1 + $0xdf8] sm:$0xff]
  %v671 = vld [vmem:[%s1 + $0xe00] sm:$0xff]
  %v672 = vld [vmem:[%s1 + $0xe08] sm:$0xff]
  %v673 = vld [vmem:[%s1 + $0xe10] sm:$0xff]
  %v674 = vld [vmem:[%s1 + $0xe18] sm:$0xff]
  %v675 = vld [vmem:[%s1 + $0xe20] sm:$0xff]
  %v676 = vld [vmem:[%s1 + $0xe28] sm:$0xff]
  %v677 = vld [vmem:[%s1 + $0xe30] sm:$0xff]
  %v678 = vld [vmem:[%s1 + $0xe38] sm:$0xff]
  %v679 = vld [vmem:[%s1 + $0xe40] sm:$0xff]
  %v680 = vld [vmem:[%s1 + $0xe48] sm:$0xff]
  %v681 = vld [vmem:[%s1 + $0xe50] sm:$0xff]
  %v682 = vld [vmem:[%s1 + $0xe58] sm:$0xff]
  %v683 = vld [vmem:[%s1 + $0xe60] sm:$0xff]
  %v684 = vld [vmem:[%s1 + $0xe68] sm:$0xff]
  %v685 = vld [vmem:[%s1 + $0xe70] sm:$0xff]
  %v686 = vld [vmem:[%s1 + $0xe78] sm:$0xff]
  %v687 = vld [vmem:[%s1 + $0xe80] sm:$0xff]
  %v688 = vld [vmem:[%s1 + $0xe88] sm:$0xff]
  %v689 = vld [vmem:[%s1 + $0xe90] sm:$0xff]
  %v690 = vld [vmem:[%s1 + $0xe98] sm:$0xff]
  %v691 = vld [vmem:[%s1 + $0xea0] sm:$0xff]
  %v692 = vld [vmem:[%s1 + $0xea8] sm:$0xff]
  %v693 = vld [vmem:[%s1 + $0xeb0] sm:$0xff]
  %v694 = vld [vmem:[%s1 + $0xeb8] sm:$0xff]
  %v695 = vld [vmem:[%s1 + $0xec0] sm:$0xff]
  %v696 = vld [vmem:[%s1 + $0xec8] sm:$0xff]
  %v697 = vld [vmem:[%s1 + $0xed0] sm:$0xff]
  %v698 = vld [vmem:[%s1 + $0xed8] sm:$0xff]
  %v699 = vld [vmem:[%s1 + $0xee0] sm:$0xff]
  %v700 = vld [vmem:[%s1 + $0xee8] sm:$0xff]
  %v701 = vld [vmem:[%s1 + $0xef0] sm:$0xff]
  %v702 = vld [vmem:[%s1 + $0xef8] sm:$0xff]
  %v703 = vld [vmem:[%s1 + $0xf00] sm:$0xff]
  %v704 = vld [vmem:[%s1 + $0xf08] sm:$0xff]
  %v705 = vld [vmem:[%s1 + $0xf10] sm:$0xff]
  %v706 = vld [vmem:[%s1 + $0xf18] sm:$0xff]
  %v707 = vld [vmem:[%s1 + $0xf20] sm:$0xff]
  %v708 = vld [vmem:[%s1 + $0xf28] sm:$0xff]
  %v709 = vld [vmem:[%s1 + $0xf30] sm:$0xff]
  %v710 = vld [vmem:[%s1 + $0xf38] sm:$0xff]
  %v711 = vld [vmem:[%s1 + $0xf40] sm:$0xff]
  %v712 = vld [vmem:[%s1 + $0xf48] sm:$0xff]
  %v713 = vld [vmem:[%s1 + $0xf50] sm:$0xff]
  %v714 = vld [vmem:[%s1 + $0xf58] sm:$0xff]
  %v715 = vld [vmem:[%s1 + $0xf60] sm:$0xff]
  %v716 = vld [vmem:[%s1 + $0xf68] sm:$0xff]
  %v717 = vld [vmem:[%s1 + $0xf70] sm:$0xff]
  %v718 = vld [vmem:[%s1 + $0xf78] sm:$0xff]
  %v719 = vld [vmem:[%s1 + $0xf80] sm:$0xff]
  %v720 = vld [vmem:[%s1 + $0xf88] sm:$0xff]
  %v721 = vld [vmem:[%s1 + $0xf90] sm:$0xff]
  %v722 = vld [vmem:[%s1 + $0xf98] sm:$0xff]
  %v723 = vld [vmem:[%s1 + $0xfa0] sm:$0xff]
  %v724 = vld [vmem:[%s1 + $0xfa8] sm:$0xff]
  %v725 = vld [vmem:[%s1 + $0xfb0] sm:$0xff]
  %v726 = vld [vmem:[%s1 + $0xfb8] sm:$0xff]
  %v727 = vld [vmem:[%s1 + $0xfc0] sm:$0xff]
  %v728 = vld [vmem:[%s1 + $0xfc8] sm:$0xff]
  %v729 = vld [vmem:[%s1 + $0xfd0] sm:$0xff]
  %v730 = vld [vmem:[%s1 + $0xfd8] sm:$0xff]
  %v731 = vld [vmem:[%s1 + $0xfe0] sm:$0xff]
  %v732 = vld [vmem:[%s1 + $0xfe8] sm:$0xff]
  %v733 = vld [vmem:[%s1 + $0xff0] sm:$0xff]
  %v734 = vld [vmem:[%s1 + $0xff8] sm:$0xff]
  %v735 = vld [vmem:[%s1 + $0x1000] sm:$0xff]
  %v736 = vld [vmem:[%s1 + $0x1008] sm:$0xff]
  %v737 = vld [vmem:[%s1 + $0x1010] sm:$0xff]
  %v738 = vld [vmem:[%s1 + $0x1018] sm:$0xff]
  %v739 = vld [vmem:[%s1 + $0x1020] sm:$0xff]
  %v740 = vld [vmem:[%s1 + $0x1028] sm:$0xff]
  %v741 = vld [vmem:[%s1 + $0x1030] sm:$0xff]
  %v742 = vld [vmem:[%s1 + $0x1038] sm:$0xff]
  %v743 = vld [vmem:[%s1 + $0x1040] sm:$0xff]
  %v744 = vld [vmem:[%s1 + $0x1048] sm:$0xff]
  %v745 = vld [vmem:[%s1 + $0x1050] sm:$0xff]
  %v746 = vld [vmem:[%s1 + $0x1058] sm:$0xff]
  %v747 = vld [vmem:[%s1 + $0x1060] sm:$0xff]
  %v748 = vld [vmem:[%s1 + $0x1068] sm:$0xff]
  %v749 = vld [vmem:[%s1 + $0x1070] sm:$0xff]
  %v750 = vld [vmem:[%s1 + $0x1078] sm:$0xff]
  %v751 = vld [vmem:[%s1 + $0x1080] sm:$0xff]
  %v752 = vld [vmem:[%s1 + $0x1088] sm:$0xff]
  %v753 = vld [vmem:[%s1 + $0x1090] sm:$0xff]
  %v754 = vld [vmem:[%s1 + $0x1098] sm:$0xff]
  %v755 = vld [vmem:[%s1 + $0x10a0] sm:$0xff]
  %v756 = vld [vmem:[%s1 + $0x10a8] sm:$0xff]
  %v757 = vld [vmem:[%s1 + $0x10b0] sm:$0xff]
  %v758 = vld [vmem:[%s1 + $0x10b8] sm:$0xff]
  %v759 = vld [vmem:[%s1 + $0x10c0] sm:$0xff]
  %v760 = vld [vmem:[%s1 + $0x10c8] sm:$0xff]
  %v761 = vld [vmem:[%s1 + $0x10d0] sm:$0xff]
  %v762 = vld [vmem:[%s1 + $0x10d8] sm:$0xff]
  %v763 = vld [vmem:[%s1 + $0x10e0] sm:$0xff]
  %v764 = vld [vmem:[%s1 + $0x10e8] sm:$0xff]
  %v765 = vld [vmem:[%s1 + $0x10f0] sm:$0xff]
  %v766 = vld [vmem:[%s1 + $0x10f8] sm:$0xff]
  %v767 = vld [vmem:[%s1 + $0x1100] sm:$0xff]
  %v768 = vld [vmem:[%s1 + $0x1108] sm:$0xff]
  %v769 = vld [vmem:[%s1 + $0x1110] sm:$0xff]
  %v770 = vld [vmem:[%s1 + $0x1118] sm:$0xff]
  %v771 = vld [vmem:[%s1 + $0x1120] sm:$0xff]
  %v772 = vld [vmem:[%s1 + $0x1128] sm:$0xff]
  %v773 = vld [vmem:[%s1 + $0x1130] sm:$0xff]
  %v774 = vld [vmem:[%s1 + $0x1138] sm:$0xff]
  %v775 = vld [vmem:[%s1 + $0x1140] sm:$0xff]
  %v776 = vld [vmem:[%s1 + $0x1148] sm:$0xff]
  %v777 = vld [vmem:[%s1 + $0x1150] sm:$0xff]
  %v778 = vld [vmem:[%s1 + $0x1158] sm:$0xff]
  %v779 = vld [vmem:[%s1 + $0x1160] sm:$0xff]
  %v780 = vld [vmem:[%s1 + $0x1168] sm:$0xff]
  %v781 = vld [vmem:[%s1 + $0x1170] sm:$0xff]
  %v782 = vld [vmem:[%s1 + $0x1178] sm:$0xff]
  %v783 = vld [vmem:[%s1 + $0x1180] sm:$0xff]
  %v784 = vld [vmem:[%s1 + $0x1188] sm:$0xff]
  %v785 = vld [vmem:[%s1 + $0x1190] sm:$0xff]
  %v786 = vld [vmem:[%s1 + $0x1198] sm:$0xff]
  %v787 = vld [vmem:[%s1 + $0x11a0] sm:$0xff]
  %v788 = vld [vmem:[%s1 + $0x11a8] sm:$0xff]
  %v789 = vld [vmem:[%s1 + $0x11b0] sm:$0xff]
  %v790 = vld [vmem:[%s1 + $0x11b8] sm:$0xff]
  %v791 = vld [vmem:[%s1 + $0x11c0] sm:$0xff]
  %v792 = vld [vmem:[%s1 + $0x11c8] sm:$0xff]
  %v793 = vld [vmem:[%s1 + $0x11d0] sm:$0xff]
  %v794 = vld [vmem:[%s1 + $0x11d8] sm:$0xff]
  %v795 = vld [vmem:[%s1 + $0x11e0] sm:$0xff]
  %v796 = vld [vmem:[%s1 + $0x11e8] sm:$0xff]
  %v797 = vld [vmem:[%s1 + $0x11f0] sm:$0xff]
  %v798 = vld [vmem:[%s1 + $0x11f8] sm:$0xff]
  %v799 = vld [vmem:[%s1 + $0x1200] sm:$0xff]
  %v800 = vld [vmem:[%s1 + $0x1208] sm:$0xff]
  %v801 = vld [vmem:[%s1 + $0x1210] sm:$0xff]
  %v802 = vld [vmem:[%s1 + $0x1218] sm:$0xff]
  %v803 = vld [vmem:[%s1 + $0x1220] sm:$0xff]
  %v804 = vld [vmem:[%s1 + $0x1228] sm:$0xff]
  %v805 = vld [vmem:[%s1 + $0x1230] sm:$0xff]
  %v806 = vld [vmem:[%s1 + $0x1238] sm:$0xff]
  %v807 = vld [vmem:[%s1 + $0x1240] sm:$0xff]
  %v808 = vld [vmem:[%s1 + $0x1248] sm:$0xff]
  %v809 = vld [vmem:[%s1 + $0x1250] sm:$0xff]
  %v810 = vld [vmem:[%s1 + $0x1258] sm:$0xff]
  %v811 = vld [vmem:[%s1 + $0x1260] sm:$0xff]
  %v812 = vld [vmem:[%s1 + $0x1268] sm:$0xff]
  %v813 = vld [vmem:[%s1 + $0x1270] sm:$0xff]
  %v814 = vld [vmem:[%s1 + $0x1278] sm:$0xff]
  %v815 = vld [vmem:[%s1 + $0x1280] sm:$0xff]
  %v816 = vld [vmem:[%s1 + $0x1288] sm:$0xff]
  %v817 = vld [vmem:[%s1 + $0x1290] sm:$0xff]
  %v818 = vld [vmem:[%s1 + $0x1298] sm:$0xff]
  %v819 = vld [vmem:[%s1 + $0x12a0] sm:$0xff]
  %v820 = vld [vmem:[%s1 + $0x12a8] sm:$0xff]
  %v821 = vld [vmem:[%s1 + $0x12b0] sm:$0xff]
  %v822 = vld [vmem:[%s1 + $0x12b8] sm:$0xff]
  %v823 = vld [vmem:[%s1 + $0x12c0] sm:$0xff]
  %v824 = vld [vmem:[%s1 + $0x12c8] sm:$0xff]
  %v825 = vld [vmem:[%s1 + $0x12d0] sm:$0xff]
  %v826 = vld [vmem:[%s1 + $0x12d8] sm:$0xff]
  %v827 = vld [vmem:[%s1 + $0x12e0] sm:$0xff]
  %v828 = vld [vmem:[%s1 + $0x12e8] sm:$0xff]
  %v829 = vld [vmem:[%s1 + $0x12f0] sm:$0xff]
  %v830 = vld [vmem:[%s1 + $0x12f8] sm:$0xff]
  %v831 = vld [vmem:[%s1 + $0x1300] sm:$0xff]
  %v832 = vld [vmem:[%s1 + $0x1308] sm:$0xff]
  %v833 = vld [vmem:[%s1 + $0x1310] sm:$0xff]
  %v834 = vld [vmem:[%s1 + $0x1318] sm:$0xff]
  %v835 = vld [vmem:[%s1 + $0x1320] sm:$0xff]
  %v836 = vld [vmem:[%s1 + $0x1328] sm:$0xff]
  %v837 = vld [vmem:[%s1 + $0x1330] sm:$0xff]
  %v838 = vld [vmem:[%s1 + $0x1338] sm:$0xff]
  %v839 = vld [vmem:[%s1 + $0x1340] sm:$0xff]
  %v840 = vld [vmem:[%s1 + $0x1348] sm:$0xff]
  %v841 = vld [vmem:[%s1 + $0x1350] sm:$0xff]
  %v842 = vld [vmem:[%s1 + $0x1358] sm:$0xff]
  %v843 = vld [vmem:[%s1 + $0x1360] sm:$0xff]
  %v844 = vld [vmem:[%s1 + $0x1368] sm:$0xff]
  %v845 = vld [vmem:[%s1 + $0x1370] sm:$0xff]
  %v846 = vld [vmem:[%s1 + $0x1378] sm:$0xff]
  %v847 = vld [vmem:[%s1 + $0x1380] sm:$0xff]
  %v848 = vld [vmem:[%s1 + $0x1388] sm:$0xff]
  %v849 = vld [vmem:[%s1 + $0x1390] sm:$0xff]
  %v850 = vld [vmem:[%s1 + $0x1398] sm:$0xff]
  %v851 = vld [vmem:[%s1 + $0x13a0] sm:$0xff]
  %v852 = vld [vmem:[%s1 + $0x13a8] sm:$0xff]
  %v853 = vld [vmem:[%s1 + $0x13b0] sm:$0xff]
  %v854 = vld [vmem:[%s1 + $0x13b8] sm:$0xff]
  %v855 = vld [vmem:[%s1 + $0x13c0] sm:$0xff]
  %v856 = vld [vmem:[%s1 + $0x13c8] sm:$0xff]
  %v857 = vld [vmem:[%s1 + $0x13d0] sm:$0xff]
  %v858 = vld [vmem:[%s1 + $0x13d8] sm:$0xff]
  %v859 = vld [vmem:[%s1 + $0x13e0] sm:$0xff]
  %v860 = vld [vmem:[%s1 + $0x13e8] sm:$0xff]
  %v861 = vld [vmem:[%s1 + $0x13f0] sm:$0xff]
  %v862 = vld [vmem:[%s1 + $0x13f8] sm:$0xff]
  %v863 = vld [vmem:[%s1 + $0x1400] sm:$0xff]
  %v864 = vld [vmem:[%s1 + $0x1408] sm:$0xff]
  %v865 = vld [vmem:[%s1 + $0x1410] sm:$0xff]
  %v866 = vld [vmem:[%s1 + $0x1418] sm:$0xff]
  %v867 = vld [vmem:[%s1 + $0x1420] sm:$0xff]
  %v868 = vld [vmem:[%s1 + $0x1428] sm:$0xff]
  %v869 = vld [vmem:[%s1 + $0x1430] sm:$0xff]
  %v870 = vld [vmem:[%s1 + $0x1438] sm:$0xff]
  %v871 = vld [vmem:[%s1 + $0x1440] sm:$0xff]
  %v872 = vld [vmem:[%s1 + $0x1448] sm:$0xff]
  %v873 = vld [vmem:[%s1 + $0x1450] sm:$0xff]
  %v874 = vld [vmem:[%s1 + $0x1458] sm:$0xff]
  %v875 = vld [vmem:[%s1 + $0x1460] sm:$0xff]
  %v876 = vld [vmem:[%s1 + $0x1468] sm:$0xff]
  %v877 = vld [vmem:[%s1 + $0x1470] sm:$0xff]
  %v878 = vld [vmem:[%s1 + $0x1478] sm:$0xff]
  %v879 = vld [vmem:[%s1 + $0x1480] sm:$0xff]
  %v880 = vld [vmem:[%s1 + $0x1488] sm:$0xff]
  %v881 = vld [vmem:[%s1 + $0x1490] sm:$0xff]
  %v882 = vld [vmem:[%s1 + $0x1498] sm:$0xff]
  %v883 = vld [vmem:[%s1 + $0x14a0] sm:$0xff]
  %v884 = vld [vmem:[%s1 + $0x14a8] sm:$0xff]
  %v885 = vld [vmem:[%s1 + $0x14b0] sm:$0xff]
  %v886 = vld [vmem:[%s1 + $0x14b8] sm:$0xff]
  %v887 = vld [vmem:[%s1 + $0x14c0] sm:$0xff]
  %v888 = vld [vmem:[%s1 + $0x14c8] sm:$0xff]
  %v889 = vld [vmem:[%s1 + $0x14d0] sm:$0xff]
  %v890 = vld [vmem:[%s1 + $0x14d8] sm:$0xff]
  %v891 = vld [vmem:[%s1 + $0x14e0] sm:$0xff]
  %v892 = vld [vmem:[%s1 + $0x14e8] sm:$0xff]
  %v893 = vld [vmem:[%s1 + $0x14f0] sm:$0xff]
  %v894 = vld [vmem:[%s1 + $0x14f8] sm:$0xff]
  %v895 = vld [vmem:[%s1 + $0x1500] sm:$0xff]
  %v896 = vld [vmem:[%s1 + $0x1508] sm:$0xff]
  %v897 = vld [vmem:[%s1 + $0x1510] sm:$0xff]
  %v898 = vld [vmem:[%s1 + $0x1518] sm:$0xff]
  %v899 = vld [vmem:[%s1 + $0x1520] sm:$0xff]
  %v900 = vld [vmem:[%s1 + $0x1528] sm:$0xff]
  %v901 = vld [vmem:[%s1 + $0x1530] sm:$0xff]
  %v902 = vld [vmem:[%s1 + $0x1538] sm:$0xff]
  %v903 = vld [vmem:[%s1 + $0x1540] sm:$0xff]
  %v904 = vld [vmem:[%s1 + $0x1548] sm:$0xff]
  %v905 = vld [vmem:[%s1 + $0x1550] sm:$0xff]
  %v906 = vld [vmem:[%s1 + $0x1558] sm:$0xff]
  %v907 = vld [vmem:[%s1 + $0x1560] sm:$0xff]
  %v908 = vld [vmem:[%s1 + $0x1568] sm:$0xff]
  %v909 = vld [vmem:[%s1 + $0x1570] sm:$0xff]
  %v910 = vld [vmem:[%s1 + $0x1578] sm:$0xff]
  %v911 = vld [vmem:[%s1 + $0x1580] sm:$0xff]
  %v912 = vld [vmem:[%s1 + $0x1588] sm:$0xff]
  %v913 = vld [vmem:[%s1 + $0x1590] sm:$0xff]
  %v914 = vld [vmem:[%s1 + $0x1598] sm:$0xff]
  %v915 = vld [vmem:[%s1 + $0x15a0] sm:$0xff]
  %v916 = vld [vmem:[%s1 + $0x15a8] sm:$0xff]
  %v917 = vld [vmem:[%s1 + $0x15b0] sm:$0xff]
  %v918 = vld [vmem:[%s1 + $0x15b8] sm:$0xff]
  %v919 = vld [vmem:[%s1 + $0x15c0] sm:$0xff]
  %v920 = vld [vmem:[%s1 + $0x15c8] sm:$0xff]
  %v921 = vld [vmem:[%s1 + $0x15d0] sm:$0xff]
  %v922 = vld [vmem:[%s1 + $0x15d8] sm:$0xff]
  %v923 = vld [vmem:[%s1 + $0x15e0] sm:$0xff]
  %v924 = vld [vmem:[%s1 + $0x15e8] sm:$0xff]
  %v925 = vld [vmem:[%s1 + $0x15f0] sm:$0xff]
  %v926 = vld [vmem:[%s1 + $0x15f8] sm:$0xff]
  %v927 = vld [vmem:[%s1 + $0x1600] sm:$0xff]
  %v928 = vld [vmem:[%s1 + $0x1608] sm:$0xff]
  %v929 = vld [vmem:[%s1 + $0x1610] sm:$0xff]
  %v930 = vld [vmem:[%s1 + $0x1618] sm:$0xff]
  %v931 = vld [vmem:[%s1 + $0x1620] sm:$0xff]
  %v932 = vld [vmem:[%s1 + $0x1628] sm:$0xff]
  %v933 = vld [vmem:[%s1 + $0x1630] sm:$0xff]
  %v934 = vld [vmem:[%s1 + $0x1638] sm:$0xff]
  %v935 = vld [vmem:[%s1 + $0x1640] sm:$0xff]
  %v936 = vld [vmem:[%s1 + $0x1648] sm:$0xff]
  %v937 = vld [vmem:[%s1 + $0x1650] sm:$0xff]
  %v938 = vld [vmem:[%s1 + $0x1658] sm:$0xff]
  %v939 = vld [vmem:[%s1 + $0x1660] sm:$0xff]
  %v940 = vld [vmem:[%s1 + $0x1668] sm:$0xff]
  %v941 = vld [vmem:[%s1 + $0x1670] sm:$0xff]
  %v942 = vld [vmem:[%s1 + $0x1678] sm:$0xff]
  %v943 = vld [vmem:[%s1 + $0x1680] sm:$0xff]
  %v944 = vld [vmem:[%s1 + $0x1688] sm:$0xff]
  %v945 = vld [vmem:[%s1 + $0x1690] sm:$0xff]
  %v946 = vld [vmem:[%s1 + $0x1698] sm:$0xff]
  %v947 = vld [vmem:[%s1 + $0x16a0] sm:$0xff]
  %v948 = vld [vmem:[%s1 + $0x16a8] sm:$0xff]
  %v949 = vld [vmem:[%s1 + $0x16b0] sm:$0xff]
  %v950 = vld [vmem:[%s1 + $0x16b8] sm:$0xff]
  %v951 = vld [vmem:[%s1 + $0x16c0] sm:$0xff]
  %v952 = vld [vmem:[%s1 + $0x16c8] sm:$0xff]
  %v953 = vld [vmem:[%s1 + $0x16d0] sm:$0xff]
  %v954 = vld [vmem:[%s1 + $0x16d8] sm:$0xff]
  %v955 = vld [vmem:[%s1 + $0x16e0] sm:$0xff]
  %v956 = vld [vmem:[%s1 + $0x16e8] sm:$0xff]
  %v957 = vld [vmem:[%s1 + $0x16f0] sm:$0xff]
  %v958 = vld [vmem:[%s1 + $0x16f8] sm:$0xff]
  %v959 = vld [vmem:[%s1 + $0x1700] sm:$0xff]
  %v960 = vld [vmem:[%s1 + $0x1708] sm:$0xff]
  %v961 = vld [vmem:[%s1 + $0x1710] sm:$0xff]
  %v962 = vld [vmem:[%s1 + $0x1718] sm:$0xff]
  %v963 = vld [vmem:[%s1 + $0x1720] sm:$0xff]
  %v964 = vld [vmem:[%s1 + $0x1728] sm:$0xff]
  %v965 = vld [vmem:[%s1 + $0x1730] sm:$0xff]
  %v966 = vld [vmem:[%s1 + $0x1738] sm:$0xff]
  %v967 = vld [vmem:[%s1 + $0x1740] sm:$0xff]
  %v968 = vld [vmem:[%s1 + $0x1748] sm:$0xff]
  %v969 = vld [vmem:[%s1 + $0x1750] sm:$0xff]
  %v970 = vld [vmem:[%s1 + $0x1758] sm:$0xff]
  %v971 = vld [vmem:[%s1 + $0x1760] sm:$0xff]
  %v972 = vld [vmem:[%s1 + $0x1768] sm:$0xff]
  %v973 = vld [vmem:[%s1 + $0x1770] sm:$0xff]
  %v974 = vld [vmem:[%s1 + $0x1778] sm:$0xff]
  %v975 = vld [vmem:[%s1 + $0x1780] sm:$0xff]
  %v976 = vld [vmem:[%s1 + $0x1788] sm:$0xff]
  %v977 = vld [vmem:[%s1 + $0x1790] sm:$0xff]
  %v978 = vld [vmem:[%s1 + $0x1798] sm:$0xff]
  %v979 = vld [vmem:[%s1 + $0x17a0] sm:$0xff]
  %v980 = vld [vmem:[%s1 + $0x17a8] sm:$0xff]
  %v981 = vld [vmem:[%s1 + $0x17b0] sm:$0xff]
  %v982 = vld [vmem:[%s1 + $0x17b8] sm:$0xff]
  %v983 = vld [vmem:[%s1 + $0x17c0] sm:$0xff]
  %v984 = vld [vmem:[%s1 + $0x17c8] sm:$0xff]
  %v985 = vld [vmem:[%s1 + $0x17d0] sm:$0xff]
  %v986 = vld [vmem:[%s1 + $0x17d8] sm:$0xff]
  %v987 = vld [vmem:[%s1 + $0x17e0] sm:$0xff]
  %v988 = vld [vmem:[%s1 + $0x17e8] sm:$0xff]
  %v989 = vld [vmem:[%s1 + $0x17f0] sm:$0xff]
  %v990 = vld [vmem:[%s1 + $0x17f8] sm:$0xff]
  %v991 = vld [vmem:[%s1 + $0x1800] sm:$0xff]
  %v992 = vld [vmem:[%s1 + $0x1808] sm:$0xff]
  %v993 = vld [vmem:[%s1 + $0x1810] sm:$0xff]
  %v994 = vld [vmem:[%s1 + $0x1818] sm:$0xff]
  %v995 = vld [vmem:[%s1 + $0x1820] sm:$0xff]
  %v996 = vld [vmem:[%s1 + $0x1828] sm:$0xff]
  %v997 = vld [vmem:[%s1 + $0x1830] sm:$0xff]
  %v998 = vld [vmem:[%s1 + $0x1838] sm:$0xff]
  %v999 = vld [vmem:[%s1 + $0x1840] sm:$0xff]
  %v1000 = vld [vmem:[%s1 + $0x1848] sm:$0xff]
  %v1001 = vld [vmem:[%s1 + $0x1850] sm:$0xff]
  %v1002 = vld [vmem:[%s1 + $0x1858] sm:$0xff]
  %v1003 = vld [vmem:[%s1 + $0x1860] sm:$0xff]
  %v1004 = vld [vmem:[%s1 + $0x1868] sm:$0xff]
  %v1005 = vld [vmem:[%s1 + $0x1870] sm:$0xff]
  %v1006 = vld [vmem:[%s1 + $0x1878] sm:$0xff]
  %v1007 = vld [vmem:[%s2] sm:$0xf]
  %v1009 = vlaneseq
  %v1010 = vshrl.u32 %v1009, 7
  %v1011 = vsub.s32 0, %v1010
  %v1012 = vrot.slane %v1007, %v1011
  %v1013 = vlaneseq
  %v1014 = vshrl.u32 %v1013, 7
  %v1015 = vsub.s32 1, %v1014
  %v1016 = vrot.slane %v1007, %v1015
  %v1017 = vlaneseq
  %v1018 = vshrl.u32 %v1017, 7
  %v1019 = vsub.s32 2, %v1018
  %v1020 = vrot.slane %v1007, %v1019
  %v1021 = vlaneseq
  %v1022 = vshrl.u32 %v1021, 7
  %v1023 = vsub.s32 3, %v1022
  %v1024 = vrot.slane %v1007, %v1023
  %v1237 = vunpack.c.l.b16 %v15
  %v1238 = vunpack.c.h.b16 %v15
  %v1239 = vunpack.c.l.b16 %v16
  %v1240 = vunpack.c.h.b16 %v16
  %v1241 = vunpack.c.l.b16 %v17
  %v1242 = vunpack.c.h.b16 %v17
  %v1243 = vunpack.c.l.b16 %v18
  %v1244 = vunpack.c.h.b16 %v18
  %v1245 = vunpack.c.l.b16 %v19
  %v1246 = vunpack.c.h.b16 %v19
  %v1247 = vunpack.c.l.b16 %v20
  %v1248 = vunpack.c.h.b16 %v20
  %v1249 = vunpack.c.l.b16 %v21
  %v1250 = vunpack.c.h.b16 %v21
  %v1251 = vunpack.c.l.b16 %v22
  %v1252 = vunpack.c.h.b16 %v22
  %v1253 = vunpack.c.l.b16 %v23
  %v1254 = vunpack.c.h.b16 %v23
  %v1255 = vunpack.c.l.b16 %v24
  %v1256 = vunpack.c.h.b16 %v24
  %v1257 = vunpack.c.l.b16 %v25
  %v1258 = vunpack.c.h.b16 %v25
  %v1259 = vunpack.c.l.b16 %v26
  %v1260 = vunpack.c.h.b16 %v26
  %v1261 = vunpack.c.l.b16 %v27
  %v1262 = vunpack.c.l.b16 %v28
  %v1263 = vunpack.c.h.b16 %v28
  %v1264 = vunpack.c.l.b16 %v29
  %v1265 = vunpack.c.h.b16 %v29
  %v1266 = vunpack.c.l.b16 %v30
  %v1267 = vunpack.c.h.b16 %v30
  %v1268 = vunpack.c.l.b16 %v31
  %v1269 = vunpack.c.h.b16 %v31
  %v1270 = vunpack.c.l.b16 %v32
  %v1271 = vunpack.c.h.b16 %v32
  %v1272 = vunpack.c.l.b16 %v33
  %v1273 = vunpack.c.h.b16 %v33
  %v1274 = vunpack.c.l.b16 %v34
  %v1275 = vunpack.c.h.b16 %v34
  %v1276 = vunpack.c.l.b16 %v35
  %v1277 = vunpack.c.h.b16 %v35
  %v1278 = vunpack.c.l.b16 %v36
  %v1279 = vunpack.c.h.b16 %v36
  %v1280 = vunpack.c.l.b16 %v37
  %v1281 = vunpack.c.h.b16 %v37
  %v1282 = vunpack.c.l.b16 %v38
  %v1283 = vunpack.c.h.b16 %v38
  %v1284 = vunpack.c.l.b16 %v39
  %v1285 = vunpack.c.h.b16 %v39
  %v1286 = vunpack.c.l.b16 %v40
  %v1287 = vunpack.c.l.b16 %v41
  %v1288 = vunpack.c.h.b16 %v41
  %v1289 = vunpack.c.l.b16 %v42
  %v1290 = vunpack.c.h.b16 %v42
  %v1291 = vunpack.c.l.b16 %v43
  %v1292 = vunpack.c.h.b16 %v43
  %v1293 = vunpack.c.l.b16 %v44
  %v1294 = vunpack.c.h.b16 %v44
  %v1295 = vunpack.c.l.b16 %v45
  %v1296 = vunpack.c.h.b16 %v45
  %v1297 = vunpack.c.l.b16 %v46
  %v1298 = vunpack.c.h.b16 %v46
  %v1299 = vunpack.c.l.b16 %v47
  %v1300 = vunpack.c.h.b16 %v47
  %v1301 = vunpack.c.l.b16 %v48
  %v1302 = vunpack.c.h.b16 %v48
  %v1303 = vunpack.c.l.b16 %v49
  %v1304 = vunpack.c.h.b16 %v49
  %v1305 = vunpack.c.l.b16 %v50
  %v1306 = vunpack.c.h.b16 %v50
  %v1307 = vunpack.c.l.b16 %v51
  %v1308 = vunpack.c.h.b16 %v51
  %v1309 = vunpack.c.l.b16 %v52
  %v1310 = vunpack.c.h.b16 %v52
  %v1311 = vunpack.c.l.b16 %v53
  %v1312 = vunpack.c.l.b16 %v54
  %v1313 = vunpack.c.h.b16 %v54
  %v1314 = vunpack.c.l.b16 %v55
  %v1315 = vunpack.c.h.b16 %v55
  %v1316 = vunpack.c.l.b16 %v56
  %v1317 = vunpack.c.h.b16 %v56
  %v1318 = vunpack.c.l.b16 %v57
  %v1319 = vunpack.c.h.b16 %v57
  %v1320 = vunpack.c.l.b16 %v58
  %v1321 = vunpack.c.h.b16 %v58
  %v1322 = vunpack.c.l.b16 %v59
  %v1323 = vunpack.c.h.b16 %v59
  %v1324 = vunpack.c.l.b16 %v60
  %v1325 = vunpack.c.h.b16 %v60
  %v1326 = vunpack.c.l.b16 %v61
  %v1327 = vunpack.c.h.b16 %v61
  %v1328 = vunpack.c.l.b16 %v62
  %v1329 = vunpack.c.h.b16 %v62
  %v1330 = vunpack.c.l.b16 %v63
  %v1331 = vunpack.c.h.b16 %v63
  %v1332 = vunpack.c.l.b16 %v64
  %v1333 = vunpack.c.h.b16 %v64
  %v1334 = vunpack.c.l.b16 %v65
  %v1335 = vunpack.c.h.b16 %v65
  %v1336 = vunpack.c.l.b16 %v66
  %v1337 = vunpack.c.l.b16 %v67
  %v1338 = vunpack.c.h.b16 %v67
  %v1339 = vunpack.c.l.b16 %v68
  %v1340 = vunpack.c.h.b16 %v68
  %v1341 = vunpack.c.l.b16 %v69
  %v1342 = vunpack.c.h.b16 %v69
  %v1343 = vunpack.c.l.b16 %v70
  %v1344 = vunpack.c.h.b16 %v70
  %v1345 = vunpack.c.l.b16 %v71
  %v1346 = vunpack.c.h.b16 %v71
  %v1347 = vunpack.c.l.b16 %v72
  %v1348 = vunpack.c.h.b16 %v72
  %v1349 = vunpack.c.l.b16 %v73
  %v1350 = vunpack.c.h.b16 %v73
  %v1351 = vunpack.c.l.b16 %v74
  %v1352 = vunpack.c.h.b16 %v74
  %v1353 = vunpack.c.l.b16 %v75
  %v1354 = vunpack.c.h.b16 %v75
  %v1355 = vunpack.c.l.b16 %v76
  %v1356 = vunpack.c.h.b16 %v76
  %v1357 = vunpack.c.l.b16 %v77
  %v1358 = vunpack.c.h.b16 %v77
  %v1359 = vunpack.c.l.b16 %v78
  %v1360 = vunpack.c.h.b16 %v78
  %v1361 = vunpack.c.l.b16 %v79
  %v1362 = vunpack.c.l.b16 %v80
  %v1363 = vunpack.c.h.b16 %v80
  %v1364 = vunpack.c.l.b16 %v81
  %v1365 = vunpack.c.h.b16 %v81
  %v1366 = vunpack.c.l.b16 %v82
  %v1367 = vunpack.c.h.b16 %v82
  %v1368 = vunpack.c.l.b16 %v83
  %v1369 = vunpack.c.h.b16 %v83
  %v1370 = vunpack.c.l.b16 %v84
  %v1371 = vunpack.c.h.b16 %v84
  %v1372 = vunpack.c.l.b16 %v85
  %v1373 = vunpack.c.h.b16 %v85
  %v1374 = vunpack.c.l.b16 %v86
  %v1375 = vunpack.c.h.b16 %v86
  %v1376 = vunpack.c.l.b16 %v87
  %v1377 = vunpack.c.h.b16 %v87
  %v1378 = vunpack.c.l.b16 %v88
  %v1379 = vunpack.c.h.b16 %v88
  %v1380 = vunpack.c.l.b16 %v89
  %v1381 = vunpack.c.h.b16 %v89
  %v1382 = vunpack.c.l.b16 %v90
  %v1383 = vunpack.c.h.b16 %v90
  %v1384 = vunpack.c.l.b16 %v91
  %v1385 = vunpack.c.h.b16 %v91
  %v1386 = vunpack.c.l.b16 %v92
  %v1387 = vunpack.c.l.b16 %v93
  %v1388 = vunpack.c.h.b16 %v93
  %v1389 = vunpack.c.l.b16 %v94
  %v1390 = vunpack.c.h.b16 %v94
  %v1391 = vunpack.c.l.b16 %v95
  %v1392 = vunpack.c.h.b16 %v95
  %v1393 = vunpack.c.l.b16 %v96
  %v1394 = vunpack.c.h.b16 %v96
  %v1395 = vunpack.c.l.b16 %v97
  %v1396 = vunpack.c.h.b16 %v97
  %v1397 = vunpack.c.l.b16 %v98
  %v1398 = vunpack.c.h.b16 %v98
  %v1399 = vunpack.c.l.b16 %v99
  %v1400 = vunpack.c.h.b16 %v99
  %v1401 = vunpack.c.l.b16 %v100
  %v1402 = vunpack.c.h.b16 %v100
  %v1403 = vunpack.c.l.b16 %v101
  %v1404 = vunpack.c.h.b16 %v101
  %v1405 = vunpack.c.l.b16 %v102
  %v1406 = vunpack.c.h.b16 %v102
  %v1407 = vunpack.c.l.b16 %v103
  %v1408 = vunpack.c.h.b16 %v103
  %v1409 = vunpack.c.l.b16 %v104
  %v1410 = vunpack.c.h.b16 %v104
  %v1411 = vunpack.c.l.b16 %v105
  %v1412 = vunpack.c.l.b16 %v106
  %v1413 = vunpack.c.h.b16 %v106
  %v1414 = vunpack.c.l.b16 %v107
  %v1415 = vunpack.c.h.b16 %v107
  %v1416 = vunpack.c.l.b16 %v108
  %v1417 = vunpack.c.h.b16 %v108
  %v1418 = vunpack.c.l.b16 %v109
  %v1419 = vunpack.c.h.b16 %v109
  %v1420 = vunpack.c.l.b16 %v110
  %v1421 = vunpack.c.h.b16 %v110
  %v1422 = vunpack.c.l.b16 %v111
  %v1423 = vunpack.c.h.b16 %v111
  %v1424 = vunpack.c.l.b16 %v112
  %v1425 = vunpack.c.h.b16 %v112
  %v1426 = vunpack.c.l.b16 %v113
  %v1427 = vunpack.c.h.b16 %v113
  %v1428 = vunpack.c.l.b16 %v114
  %v1429 = vunpack.c.h.b16 %v114
  %v1430 = vunpack.c.l.b16 %v115
  %v1431 = vunpack.c.h.b16 %v115
  %v1432 = vunpack.c.l.b16 %v116
  %v1433 = vunpack.c.h.b16 %v116
  %v1434 = vunpack.c.l.b16 %v117
  %v1435 = vunpack.c.h.b16 %v117
  %v1436 = vunpack.c.l.b16 %v118
  %v1437 = vunpack.c.l.b16 %v119
  %v1438 = vunpack.c.h.b16 %v119
  %v1439 = vunpack.c.l.b16 %v120
  %v1440 = vunpack.c.h.b16 %v120
  %v1441 = vunpack.c.l.b16 %v121
  %v1442 = vunpack.c.h.b16 %v121
  %v1443 = vunpack.c.l.b16 %v122
  %v1444 = vunpack.c.h.b16 %v122
  %v1445 = vunpack.c.l.b16 %v123
  %v1446 = vunpack.c.h.b16 %v123
  %v1447 = vunpack.c.l.b16 %v124
  %v1448 = vunpack.c.h.b16 %v124
  %v1449 = vunpack.c.l.b16 %v125
  %v1450 = vunpack.c.h.b16 %v125
  %v1451 = vunpack.c.l.b16 %v126
  %v1452 = vunpack.c.h.b16 %v126
  %v1453 = vunpack.c.l.b16 %v127
  %v1454 = vunpack.c.h.b16 %v127
  %v1455 = vunpack.c.l.b16 %v128
  %v1456 = vunpack.c.h.b16 %v128
  %v1457 = vunpack.c.l.b16 %v129
  %v1458 = vunpack.c.h.b16 %v129
  %v1459 = vunpack.c.l.b16 %v130
  %v1460 = vunpack.c.h.b16 %v130
  %v1461 = vunpack.c.l.b16 %v131
  %v1462 = vunpack.c.l.b16 %v132
  %v1463 = vunpack.c.h.b16 %v132
  %v1464 = vunpack.c.l.b16 %v133
  %v1465 = vunpack.c.h.b16 %v133
  %v1466 = vunpack.c.l.b16 %v134
  %v1467 = vunpack.c.h.b16 %v134
  %v1468 = vunpack.c.l.b16 %v135
  %v1469 = vunpack.c.h.b16 %v135
  %v1470 = vunpack.c.l.b16 %v136
  %v1471 = vunpack.c.h.b16 %v136
  %v1472 = vunpack.c.l.b16 %v137
  %v1473 = vunpack.c.h.b16 %v137
  %v1474 = vunpack.c.l.b16 %v138
  %v1475 = vunpack.c.h.b16 %v138
  %v1476 = vunpack.c.l.b16 %v139
  %v1477 = vunpack.c.h.b16 %v139
  %v1478 = vunpack.c.l.b16 %v140
  %v1479 = vunpack.c.h.b16 %v140
  %v1480 = vunpack.c.l.b16 %v141
  %v1481 = vunpack.c.h.b16 %v141
  %v1482 = vunpack.c.l.b16 %v142
  %v1483 = vunpack.c.h.b16 %v142
  %v1484 = vunpack.c.l.b16 %v143
  %v1485 = vunpack.c.h.b16 %v143
  %v1486 = vunpack.c.l.b16 %v144
  %v1487 = vunpack.c.l.b16 %v145
  %v1488 = vunpack.c.h.b16 %v145
  %v1489 = vunpack.c.l.b16 %v146
  %v1490 = vunpack.c.h.b16 %v146
  %v1491 = vunpack.c.l.b16 %v147
  %v1492 = vunpack.c.h.b16 %v147
  %v1493 = vunpack.c.l.b16 %v148
  %v1494 = vunpack.c.h.b16 %v148
  %v1495 = vunpack.c.l.b16 %v149
  %v1496 = vunpack.c.h.b16 %v149
  %v1497 = vunpack.c.l.b16 %v150
  %v1498 = vunpack.c.h.b16 %v150
  %v1499 = vunpack.c.l.b16 %v151
  %v1500 = vunpack.c.h.b16 %v151
  %v1501 = vunpack.c.l.b16 %v152
  %v1502 = vunpack.c.h.b16 %v152
  %v1503 = vunpack.c.l.b16 %v153
  %v1504 = vunpack.c.h.b16 %v153
  %v1505 = vunpack.c.l.b16 %v154
  %v1506 = vunpack.c.h.b16 %v154
  %v1507 = vunpack.c.l.b16 %v155
  %v1508 = vunpack.c.h.b16 %v155
  %v1509 = vunpack.c.l.b16 %v156
  %v1510 = vunpack.c.h.b16 %v156
  %v1511 = vunpack.c.l.b16 %v157
  %v1512 = vunpack.c.l.b16 %v158
  %v1513 = vunpack.c.h.b16 %v158
  %v1514 = vunpack.c.l.b16 %v159
  %v1515 = vunpack.c.h.b16 %v159
  %v1516 = vunpack.c.l.b16 %v160
  %v1517 = vunpack.c.h.b16 %v160
  %v1518 = vunpack.c.l.b16 %v161
  %v1519 = vunpack.c.h.b16 %v161
  %v1520 = vunpack.c.l.b16 %v162
  %v1521 = vunpack.c.h.b16 %v162
  %v1522 = vunpack.c.l.b16 %v163
  %v1523 = vunpack.c.h.b16 %v163
  %v1524 = vunpack.c.l.b16 %v164
  %v1525 = vunpack.c.h.b16 %v164
  %v1526 = vunpack.c.l.b16 %v165
  %v1527 = vunpack.c.h.b16 %v165
  %v1528 = vunpack.c.l.b16 %v166
  %v1529 = vunpack.c.h.b16 %v166
  %v1530 = vunpack.c.l.b16 %v167
  %v1531 = vunpack.c.h.b16 %v167
  %v1532 = vunpack.c.l.b16 %v168
  %v1533 = vunpack.c.h.b16 %v168
  %v1534 = vunpack.c.l.b16 %v169
  %v1535 = vunpack.c.h.b16 %v169
  %v1536 = vunpack.c.l.b16 %v170
  %v1537 = vunpack.c.l.b16 %v171
  %v1538 = vunpack.c.h.b16 %v171
  %v1539 = vunpack.c.l.b16 %v172
  %v1540 = vunpack.c.h.b16 %v172
  %v1541 = vunpack.c.l.b16 %v173
  %v1542 = vunpack.c.h.b16 %v173
  %v1543 = vunpack.c.l.b16 %v174
  %v1544 = vunpack.c.h.b16 %v174
  %v1545 = vunpack.c.l.b16 %v175
  %v1546 = vunpack.c.h.b16 %v175
  %v1547 = vunpack.c.l.b16 %v176
  %v1548 = vunpack.c.h.b16 %v176
  %v1549 = vunpack.c.l.b16 %v177
  %v1550 = vunpack.c.h.b16 %v177
  %v1551 = vunpack.c.l.b16 %v178
  %v1552 = vunpack.c.h.b16 %v178
  %v1553 = vunpack.c.l.b16 %v179
  %v1554 = vunpack.c.h.b16 %v179
  %v1555 = vunpack.c.l.b16 %v180
  %v1556 = vunpack.c.h.b16 %v180
  %v1557 = vunpack.c.l.b16 %v181
  %v1558 = vunpack.c.h.b16 %v181
  %v1559 = vunpack.c.l.b16 %v182
  %v1560 = vunpack.c.h.b16 %v182
  %v1561 = vunpack.c.l.b16 %v183
  %v1562 = vunpack.c.l.b16 %v184
  %v1563 = vunpack.c.h.b16 %v184
  %v1564 = vunpack.c.l.b16 %v185
  %v1565 = vunpack.c.h.b16 %v185
  %v1566 = vunpack.c.l.b16 %v186
  %v1567 = vunpack.c.h.b16 %v186
  %v1568 = vunpack.c.l.b16 %v187
  %v1569 = vunpack.c.h.b16 %v187
  %v1570 = vunpack.c.l.b16 %v188
  %v1571 = vunpack.c.h.b16 %v188
  %v1572 = vunpack.c.l.b16 %v189
  %v1573 = vunpack.c.h.b16 %v189
  %v1574 = vunpack.c.l.b16 %v190
  %v1575 = vunpack.c.h.b16 %v190
  %v1576 = vunpack.c.l.b16 %v191
  %v1577 = vunpack.c.h.b16 %v191
  %v1578 = vunpack.c.l.b16 %v192
  %v1579 = vunpack.c.h.b16 %v192
  %v1580 = vunpack.c.l.b16 %v193
  %v1581 = vunpack.c.h.b16 %v193
  %v1582 = vunpack.c.l.b16 %v194
  %v1583 = vunpack.c.h.b16 %v194
  %v1584 = vunpack.c.l.b16 %v195
  %v1585 = vunpack.c.h.b16 %v195
  %v1586 = vunpack.c.l.b16 %v196
  %v1587 = vunpack.c.l.b16 %v197
  %v1588 = vunpack.c.h.b16 %v197
  %v1589 = vunpack.c.l.b16 %v198
  %v1590 = vunpack.c.h.b16 %v198
  %v1591 = vunpack.c.l.b16 %v199
  %v1592 = vunpack.c.h.b16 %v199
  %v1593 = vunpack.c.l.b16 %v200
  %v1594 = vunpack.c.h.b16 %v200
  %v1595 = vunpack.c.l.b16 %v201
  %v1596 = vunpack.c.h.b16 %v201
  %v1597 = vunpack.c.l.b16 %v202
  %v1598 = vunpack.c.h.b16 %v202
  %v1599 = vunpack.c.l.b16 %v203
  %v1600 = vunpack.c.h.b16 %v203
  %v1601 = vunpack.c.l.b16 %v204
  %v1602 = vunpack.c.h.b16 %v204
  %v1603 = vunpack.c.l.b16 %v205
  %v1604 = vunpack.c.h.b16 %v205
  %v1605 = vunpack.c.l.b16 %v206
  %v1606 = vunpack.c.h.b16 %v206
  %v1607 = vunpack.c.l.b16 %v207
  %v1608 = vunpack.c.h.b16 %v207
  %v1609 = vunpack.c.l.b16 %v208
  %v1610 = vunpack.c.h.b16 %v208
  %v1611 = vunpack.c.l.b16 %v209
  %v1612 = vunpack.c.l.b16 %v210
  %v1613 = vunpack.c.h.b16 %v210
  %v1614 = vunpack.c.l.b16 %v211
  %v1615 = vunpack.c.h.b16 %v211
  %v1616 = vunpack.c.l.b16 %v212
  %v1617 = vunpack.c.h.b16 %v212
  %v1618 = vunpack.c.l.b16 %v213
  %v1619 = vunpack.c.h.b16 %v213
  %v1620 = vunpack.c.l.b16 %v214
  %v1621 = vunpack.c.h.b16 %v214
  %v1622 = vunpack.c.l.b16 %v215
  %v1623 = vunpack.c.h.b16 %v215
  %v1624 = vunpack.c.l.b16 %v216
  %v1625 = vunpack.c.h.b16 %v216
  %v1626 = vunpack.c.l.b16 %v217
  %v1627 = vunpack.c.h.b16 %v217
  %v1628 = vunpack.c.l.b16 %v218
  %v1629 = vunpack.c.h.b16 %v218
  %v1630 = vunpack.c.l.b16 %v219
  %v1631 = vunpack.c.h.b16 %v219
  %v1632 = vunpack.c.l.b16 %v220
  %v1633 = vunpack.c.h.b16 %v220
  %v1634 = vunpack.c.l.b16 %v221
  %v1635 = vunpack.c.h.b16 %v221
  %v1636 = vunpack.c.l.b16 %v222
  %v1637 = vpack.c.b16 %v1262, %v1237
  %v1638 = vpack.c.b16 %v1263, %v1238
  %v1639 = vpack.c.b16 %v1264, %v1239
  %v1640 = vpack.c.b16 %v1265, %v1240
  %v1641 = vpack.c.b16 %v1266, %v1241
  %v1642 = vpack.c.b16 %v1267, %v1242
  %v1643 = vpack.c.b16 %v1268, %v1243
  %v1644 = vpack.c.b16 %v1269, %v1244
  %v1645 = vpack.c.b16 %v1270, %v1245
  %v1646 = vpack.c.b16 %v1271, %v1246
  %v1647 = vpack.c.b16 %v1272, %v1247
  %v1648 = vpack.c.b16 %v1273, %v1248
  %v1649 = vpack.c.b16 %v1274, %v1249
  %v1650 = vpack.c.b16 %v1275, %v1250
  %v1651 = vpack.c.b16 %v1276, %v1251
  %v1652 = vpack.c.b16 %v1277, %v1252
  %v1653 = vpack.c.b16 %v1278, %v1253
  %v1654 = vpack.c.b16 %v1279, %v1254
  %v1655 = vpack.c.b16 %v1280, %v1255
  %v1656 = vpack.c.b16 %v1281, %v1256
  %v1657 = vpack.c.b16 %v1282, %v1257
  %v1658 = vpack.c.b16 %v1283, %v1258
  %v1659 = vpack.c.b16 %v1284, %v1259
  %v1660 = vpack.c.b16 %v1285, %v1260
  %v1661 = vpack.c.b16 %v1286, %v1261
  %v1662 = vpack.c.b16 %v1312, %v1287
  %v1663 = vpack.c.b16 %v1313, %v1288
  %v1664 = vpack.c.b16 %v1314, %v1289
  %v1665 = vpack.c.b16 %v1315, %v1290
  %v1666 = vpack.c.b16 %v1316, %v1291
  %v1667 = vpack.c.b16 %v1317, %v1292
  %v1668 = vpack.c.b16 %v1318, %v1293
  %v1669 = vpack.c.b16 %v1319, %v1294
  %v1670 = vpack.c.b16 %v1320, %v1295
  %v1671 = vpack.c.b16 %v1321, %v1296
  %v1672 = vpack.c.b16 %v1322, %v1297
  %v1673 = vpack.c.b16 %v1323, %v1298
  %v1674 = vpack.c.b16 %v1324, %v1299
  %v1675 = vpack.c.b16 %v1325, %v1300
  %v1676 = vpack.c.b16 %v1326, %v1301
  %v1677 = vpack.c.b16 %v1327, %v1302
  %v1678 = vpack.c.b16 %v1328, %v1303
  %v1679 = vpack.c.b16 %v1329, %v1304
  %v1680 = vpack.c.b16 %v1330, %v1305
  %v1681 = vpack.c.b16 %v1331, %v1306
  %v1682 = vpack.c.b16 %v1332, %v1307
  %v1683 = vpack.c.b16 %v1333, %v1308
  %v1684 = vpack.c.b16 %v1334, %v1309
  %v1685 = vpack.c.b16 %v1335, %v1310
  %v1686 = vpack.c.b16 %v1336, %v1311
  %v1687 = vpack.c.b16 %v1362, %v1337
  %v1688 = vpack.c.b16 %v1363, %v1338
  %v1689 = vpack.c.b16 %v1364, %v1339
  %v1690 = vpack.c.b16 %v1365, %v1340
  %v1691 = vpack.c.b16 %v1366, %v1341
  %v1692 = vpack.c.b16 %v1367, %v1342
  %v1693 = vpack.c.b16 %v1368, %v1343
  %v1694 = vpack.c.b16 %v1369, %v1344
  %v1695 = vpack.c.b16 %v1370, %v1345
  %v1696 = vpack.c.b16 %v1371, %v1346
  %v1697 = vpack.c.b16 %v1372, %v1347
  %v1698 = vpack.c.b16 %v1373, %v1348
  %v1699 = vpack.c.b16 %v1374, %v1349
  %v1700 = vpack.c.b16 %v1375, %v1350
  %v1701 = vpack.c.b16 %v1376, %v1351
  %v1702 = vpack.c.b16 %v1377, %v1352
  %v1703 = vpack.c.b16 %v1378, %v1353
  %v1704 = vpack.c.b16 %v1379, %v1354
  %v1705 = vpack.c.b16 %v1380, %v1355
  %v1706 = vpack.c.b16 %v1381, %v1356
  %v1707 = vpack.c.b16 %v1382, %v1357
  %v1708 = vpack.c.b16 %v1383, %v1358
  %v1709 = vpack.c.b16 %v1384, %v1359
  %v1710 = vpack.c.b16 %v1385, %v1360
  %v1711 = vpack.c.b16 %v1386, %v1361
  %v1712 = vpack.c.b16 %v1412, %v1387
  %v1713 = vpack.c.b16 %v1413, %v1388
  %v1714 = vpack.c.b16 %v1414, %v1389
  %v1715 = vpack.c.b16 %v1415, %v1390
  %v1716 = vpack.c.b16 %v1416, %v1391
  %v1717 = vpack.c.b16 %v1417, %v1392
  %v1718 = vpack.c.b16 %v1418, %v1393
  %v1719 = vpack.c.b16 %v1419, %v1394
  %v1720 = vpack.c.b16 %v1420, %v1395
  %v1721 = vpack.c.b16 %v1421, %v1396
  %v1722 = vpack.c.b16 %v1422, %v1397
  %v1723 = vpack.c.b16 %v1423, %v1398
  %v1724 = vpack.c.b16 %v1424, %v1399
  %v1725 = vpack.c.b16 %v1425, %v1400
  %v1726 = vpack.c.b16 %v1426, %v1401
  %v1727 = vpack.c.b16 %v1427, %v1402
  %v1728 = vpack.c.b16 %v1428, %v1403
  %v1729 = vpack.c.b16 %v1429, %v1404
  %v1730 = vpack.c.b16 %v1430, %v1405
  %v1731 = vpack.c.b16 %v1431, %v1406
  %v1732 = vpack.c.b16 %v1432, %v1407
  %v1733 = vpack.c.b16 %v1433, %v1408
  %v1734 = vpack.c.b16 %v1434, %v1409
  %v1735 = vpack.c.b16 %v1435, %v1410
  %v1736 = vpack.c.b16 %v1436, %v1411
  %v1737 = vpack.c.b16 %v1462, %v1437
  %v1738 = vpack.c.b16 %v1463, %v1438
  %v1739 = vpack.c.b16 %v1464, %v1439
  %v1740 = vpack.c.b16 %v1465, %v1440
  %v1741 = vpack.c.b16 %v1466, %v1441
  %v1742 = vpack.c.b16 %v1467, %v1442
  %v1743 = vpack.c.b16 %v1468, %v1443
  %v1744 = vpack.c.b16 %v1469, %v1444
  %v1745 = vpack.c.b16 %v1470, %v1445
  %v1746 = vpack.c.b16 %v1471, %v1446
  %v1747 = vpack.c.b16 %v1472, %v1447
  %v1748 = vpack.c.b16 %v1473, %v1448
  %v1749 = vpack.c.b16 %v1474, %v1449
  %v1750 = vpack.c.b16 %v1475, %v1450
  %v1751 = vpack.c.b16 %v1476, %v1451
  %v1752 = vpack.c.b16 %v1477, %v1452
  %v1753 = vpack.c.b16 %v1478, %v1453
  %v1754 = vpack.c.b16 %v1479, %v1454
  %v1755 = vpack.c.b16 %v1480, %v1455
  %v1756 = vpack.c.b16 %v1481, %v1456
  %v1757 = vpack.c.b16 %v1482, %v1457
  %v1758 = vpack.c.b16 %v1483, %v1458
  %v1759 = vpack.c.b16 %v1484, %v1459
  %v1760 = vpack.c.b16 %v1485, %v1460
  %v1761 = vpack.c.b16 %v1486, %v1461
  %v1762 = vpack.c.b16 %v1512, %v1487
  %v1763 = vpack.c.b16 %v1513, %v1488
  %v1764 = vpack.c.b16 %v1514, %v1489
  %v1765 = vpack.c.b16 %v1515, %v1490
  %v1766 = vpack.c.b16 %v1516, %v1491
  %v1767 = vpack.c.b16 %v1517, %v1492
  %v1768 = vpack.c.b16 %v1518, %v1493
  %v1769 = vpack.c.b16 %v1519, %v1494
  %v1770 = vpack.c.b16 %v1520, %v1495
  %v1771 = vpack.c.b16 %v1521, %v1496
  %v1772 = vpack.c.b16 %v1522, %v1497
  %v1773 = vpack.c.b16 %v1523, %v1498
  %v1774 = vpack.c.b16 %v1524, %v1499
  %v1775 = vpack.c.b16 %v1525, %v1500
  %v1776 = vpack.c.b16 %v1526, %v1501
  %v1777 = vpack.c.b16 %v1527, %v1502
  %v1778 = vpack.c.b16 %v1528, %v1503
  %v1779 = vpack.c.b16 %v1529, %v1504
  %v1780 = vpack.c.b16 %v1530, %v1505
  %v1781 = vpack.c.b16 %v1531, %v1506
  %v1782 = vpack.c.b16 %v1532, %v1507
  %v1783 = vpack.c.b16 %v1533, %v1508
  %v1784 = vpack.c.b16 %v1534, %v1509
  %v1785 = vpack.c.b16 %v1535, %v1510
  %v1786 = vpack.c.b16 %v1536, %v1511
  %v1787 = vpack.c.b16 %v1562, %v1537
  %v1788 = vpack.c.b16 %v1563, %v1538
  %v1789 = vpack.c.b16 %v1564, %v1539
  %v1790 = vpack.c.b16 %v1565, %v1540
  %v1791 = vpack.c.b16 %v1566, %v1541
  %v1792 = vpack.c.b16 %v1567, %v1542
  %v1793 = vpack.c.b16 %v1568, %v1543
  %v1794 = vpack.c.b16 %v1569, %v1544
  %v1795 = vpack.c.b16 %v1570, %v1545
  %v1796 = vpack.c.b16 %v1571, %v1546
  %v1797 = vpack.c.b16 %v1572, %v1547
  %v1798 = vpack.c.b16 %v1573, %v1548
  %v1799 = vpack.c.b16 %v1574, %v1549
  %v1800 = vpack.c.b16 %v1575, %v1550
  %v1801 = vpack.c.b16 %v1576, %v1551
  %v1802 = vpack.c.b16 %v1577, %v1552
  %v1803 = vpack.c.b16 %v1578, %v1553
  %v1804 = vpack.c.b16 %v1579, %v1554
  %v1805 = vpack.c.b16 %v1580, %v1555
  %v1806 = vpack.c.b16 %v1581, %v1556
  %v1807 = vpack.c.b16 %v1582, %v1557
  %v1808 = vpack.c.b16 %v1583, %v1558
  %v1809 = vpack.c.b16 %v1584, %v1559
  %v1810 = vpack.c.b16 %v1585, %v1560
  %v1811 = vpack.c.b16 %v1586, %v1561
  %v1812 = vpack.c.b16 %v1612, %v1587
  %v1813 = vpack.c.b16 %v1613, %v1588
  %v1814 = vpack.c.b16 %v1614, %v1589
  %v1815 = vpack.c.b16 %v1615, %v1590
  %v1816 = vpack.c.b16 %v1616, %v1591
  %v1817 = vpack.c.b16 %v1617, %v1592
  %v1818 = vpack.c.b16 %v1618, %v1593
  %v1819 = vpack.c.b16 %v1619, %v1594
  %v1820 = vpack.c.b16 %v1620, %v1595
  %v1821 = vpack.c.b16 %v1621, %v1596
  %v1822 = vpack.c.b16 %v1622, %v1597
  %v1823 = vpack.c.b16 %v1623, %v1598
  %v1824 = vpack.c.b16 %v1624, %v1599
  %v1825 = vpack.c.b16 %v1625, %v1600
  %v1826 = vpack.c.b16 %v1626, %v1601
  %v1827 = vpack.c.b16 %v1627, %v1602
  %v1828 = vpack.c.b16 %v1628, %v1603
  %v1829 = vpack.c.b16 %v1629, %v1604
  %v1830 = vpack.c.b16 %v1630, %v1605
  %v1831 = vpack.c.b16 %v1631, %v1606
  %v1832 = vpack.c.b16 %v1632, %v1607
  %v1833 = vpack.c.b16 %v1633, %v1608
  %v1834 = vpack.c.b16 %v1634, %v1609
  %v1835 = vpack.c.b16 %v1635, %v1610
  %v1836 = vpack.c.b16 %v1636, %v1611
  %v2813 = vunpack.c.l.b16 %v223
  %v2814 = vunpack.c.h.b16 %v223
  %v2815 = vunpack.c.l.b16 %v224
  %v2816 = vunpack.c.h.b16 %v224
  %v2817 = vunpack.c.l.b16 %v225
  %v2818 = vunpack.c.h.b16 %v225
  %v2819 = vunpack.c.l.b16 %v226
  %v2820 = vunpack.c.h.b16 %v226
  %v2821 = vunpack.c.l.b16 %v227
  %v2822 = vunpack.c.h.b16 %v227
  %v2823 = vunpack.c.l.b16 %v228
  %v2824 = vunpack.c.h.b16 %v228
  %v2825 = vunpack.c.l.b16 %v229
  %v2826 = vunpack.c.h.b16 %v229
  %v2827 = vunpack.c.l.b16 %v230
  %v2828 = vunpack.c.h.b16 %v230
  %v2829 = vunpack.c.l.b16 %v231
  %v2830 = vunpack.c.h.b16 %v231
  %v2831 = vunpack.c.l.b16 %v232
  %v2832 = vunpack.c.h.b16 %v232
  %v2833 = vunpack.c.l.b16 %v233
  %v2834 = vunpack.c.h.b16 %v233
  %v2835 = vunpack.c.l.b16 %v234
  %v2836 = vunpack.c.h.b16 %v234
  %v2837 = vunpack.c.l.b16 %v235
  %v2838 = vunpack.c.h.b16 %v235
  %v2839 = vunpack.c.l.b16 %v236
  %v2840 = vunpack.c.h.b16 %v236
  %v2841 = vunpack.c.l.b16 %v237
  %v2842 = vunpack.c.h.b16 %v237
  %v2843 = vunpack.c.l.b16 %v238
  %v2844 = vunpack.c.h.b16 %v238
  %v2845 = vunpack.c.l.b16 %v239
  %v2846 = vunpack.c.h.b16 %v239
  %v2847 = vunpack.c.l.b16 %v240
  %v2848 = vunpack.c.h.b16 %v240
  %v2849 = vunpack.c.l.b16 %v241
  %v2850 = vunpack.c.h.b16 %v241
  %v2851 = vunpack.c.l.b16 %v242
  %v2852 = vunpack.c.h.b16 %v242
  %v2853 = vunpack.c.l.b16 %v243
  %v2854 = vunpack.c.h.b16 %v243
  %v2855 = vunpack.c.l.b16 %v244
  %v2856 = vunpack.c.h.b16 %v244
  %v2857 = vunpack.c.l.b16 %v245
  %v2858 = vunpack.c.h.b16 %v245
  %v2859 = vunpack.c.l.b16 %v246
  %v2860 = vunpack.c.h.b16 %v246
  %v2861 = vunpack.c.l.b16 %v247
  %v2862 = vunpack.c.h.b16 %v247
  %v2863 = vunpack.c.l.b16 %v248
  %v2864 = vunpack.c.h.b16 %v248
  %v2865 = vunpack.c.l.b16 %v249
  %v2866 = vunpack.c.h.b16 %v249
  %v2867 = vunpack.c.l.b16 %v250
  %v2868 = vunpack.c.h.b16 %v250
  %v2869 = vunpack.c.l.b16 %v251
  %v2870 = vunpack.c.h.b16 %v251
  %v2871 = vunpack.c.l.b16 %v252
  %v2872 = vunpack.c.h.b16 %v252
  %v2873 = vunpack.c.l.b16 %v253
  %v2874 = vunpack.c.h.b16 %v253
  %v2875 = vunpack.c.l.b16 %v254
  %v2876 = vunpack.c.h.b16 %v254
  %v2877 = vunpack.c.l.b16 %v255
  %v2878 = vunpack.c.h.b16 %v255
  %v2879 = vunpack.c.l.b16 %v256
  %v2880 = vunpack.c.h.b16 %v256
  %v2881 = vunpack.c.l.b16 %v257
  %v2882 = vunpack.c.h.b16 %v257
  %v2883 = vunpack.c.l.b16 %v258
  %v2884 = vunpack.c.h.b16 %v258
  %v2885 = vunpack.c.l.b16 %v259
  %v2886 = vunpack.c.h.b16 %v259
  %v2887 = vunpack.c.l.b16 %v260
  %v2888 = vunpack.c.h.b16 %v260
  %v2889 = vunpack.c.l.b16 %v261
  %v2890 = vunpack.c.h.b16 %v261
  %v2891 = vunpack.c.l.b16 %v262
  %v2892 = vunpack.c.h.b16 %v262
  %v2893 = vunpack.c.l.b16 %v263
  %v2894 = vunpack.c.h.b16 %v263
  %v2895 = vunpack.c.l.b16 %v264
  %v2896 = vunpack.c.h.b16 %v264
  %v2897 = vunpack.c.l.b16 %v265
  %v2898 = vunpack.c.h.b16 %v265
  %v2899 = vunpack.c.l.b16 %v266
  %v2900 = vunpack.c.h.b16 %v266
  %v2901 = vunpack.c.l.b16 %v267
  %v2902 = vunpack.c.h.b16 %v267
  %v2903 = vunpack.c.l.b16 %v268
  %v2904 = vunpack.c.h.b16 %v268
  %v2905 = vunpack.c.l.b16 %v269
  %v2906 = vunpack.c.h.b16 %v269
  %v2907 = vunpack.c.l.b16 %v270
  %v2908 = vunpack.c.h.b16 %v270
  %v2909 = vunpack.c.l.b16 %v271
  %v2910 = vunpack.c.h.b16 %v271
  %v2911 = vunpack.c.l.b16 %v272
  %v2912 = vunpack.c.h.b16 %v272
  %v2913 = vunpack.c.l.b16 %v273
  %v2914 = vunpack.c.h.b16 %v273
  %v2915 = vunpack.c.l.b16 %v274
  %v2916 = vunpack.c.h.b16 %v274
  %v2917 = vunpack.c.l.b16 %v275
  %v2918 = vunpack.c.h.b16 %v275
  %v2919 = vunpack.c.l.b16 %v276
  %v2920 = vunpack.c.h.b16 %v276
  %v2921 = vunpack.c.l.b16 %v277
  %v2922 = vunpack.c.h.b16 %v277
  %v2923 = vunpack.c.l.b16 %v278
  %v2924 = vunpack.c.h.b16 %v278
  %v2925 = vunpack.c.l.b16 %v279
  %v2926 = vunpack.c.h.b16 %v279
  %v2927 = vunpack.c.l.b16 %v280
  %v2928 = vunpack.c.h.b16 %v280
  %v2929 = vunpack.c.l.b16 %v281
  %v2930 = vunpack.c.h.b16 %v281
  %v2931 = vunpack.c.l.b16 %v282
  %v2932 = vunpack.c.h.b16 %v282
  %v2933 = vunpack.c.l.b16 %v283
  %v2934 = vunpack.c.h.b16 %v283
  %v2935 = vunpack.c.l.b16 %v284
  %v2936 = vunpack.c.h.b16 %v284
  %v2937 = vunpack.c.l.b16 %v285
  %v2938 = vunpack.c.h.b16 %v285
  %v2939 = vunpack.c.l.b16 %v286
  %v2940 = vunpack.c.h.b16 %v286
  %v2941 = vunpack.c.l.b16 %v287
  %v2942 = vunpack.c.h.b16 %v287
  %v2943 = vunpack.c.l.b16 %v288
  %v2944 = vunpack.c.h.b16 %v288
  %v2945 = vunpack.c.l.b16 %v289
  %v2946 = vunpack.c.h.b16 %v289
  %v2947 = vunpack.c.l.b16 %v290
  %v2948 = vunpack.c.h.b16 %v290
  %v2949 = vunpack.c.l.b16 %v291
  %v2950 = vunpack.c.h.b16 %v291
  %v2951 = vunpack.c.l.b16 %v292
  %v2952 = vunpack.c.h.b16 %v292
  %v2953 = vunpack.c.l.b16 %v293
  %v2954 = vunpack.c.h.b16 %v293
  %v2955 = vunpack.c.l.b16 %v294
  %v2956 = vunpack.c.h.b16 %v294
  %v2957 = vunpack.c.l.b16 %v295
  %v2958 = vunpack.c.h.b16 %v295
  %v2959 = vunpack.c.l.b16 %v296
  %v2960 = vunpack.c.h.b16 %v296
  %v2961 = vunpack.c.l.b16 %v297
  %v2962 = vunpack.c.h.b16 %v297
  %v2963 = vunpack.c.l.b16 %v298
  %v2964 = vunpack.c.h.b16 %v298
  %v2965 = vunpack.c.l.b16 %v299
  %v2966 = vunpack.c.h.b16 %v299
  %v2967 = vunpack.c.l.b16 %v300
  %v2968 = vunpack.c.h.b16 %v300
  %v2969 = vunpack.c.l.b16 %v301
  %v2970 = vunpack.c.h.b16 %v301
  %v2971 = vunpack.c.l.b16 %v302
  %v2972 = vunpack.c.h.b16 %v302
  %v2973 = vunpack.c.l.b16 %v303
  %v2974 = vunpack.c.h.b16 %v303
  %v2975 = vunpack.c.l.b16 %v304
  %v2976 = vunpack.c.h.b16 %v304
  %v2977 = vunpack.c.l.b16 %v305
  %v2978 = vunpack.c.h.b16 %v305
  %v2979 = vunpack.c.l.b16 %v306
  %v2980 = vunpack.c.h.b16 %v306
  %v2981 = vunpack.c.l.b16 %v307
  %v2982 = vunpack.c.h.b16 %v307
  %v2983 = vunpack.c.l.b16 %v308
  %v2984 = vunpack.c.h.b16 %v308
  %v2985 = vunpack.c.l.b16 %v309
  %v2986 = vunpack.c.h.b16 %v309
  %v2987 = vunpack.c.l.b16 %v310
  %v2988 = vunpack.c.h.b16 %v310
  %v2989 = vunpack.c.l.b16 %v311
  %v2990 = vunpack.c.h.b16 %v311
  %v2991 = vunpack.c.l.b16 %v312
  %v2992 = vunpack.c.h.b16 %v312
  %v2993 = vunpack.c.l.b16 %v313
  %v2994 = vunpack.c.h.b16 %v313
  %v2995 = vunpack.c.l.b16 %v314
  %v2996 = vunpack.c.h.b16 %v314
  %v2997 = vunpack.c.l.b16 %v315
  %v2998 = vunpack.c.h.b16 %v315
  %v2999 = vunpack.c.l.b16 %v316
  %v3000 = vunpack.c.h.b16 %v316
  %v3001 = vunpack.c.l.b16 %v317
  %v3002 = vunpack.c.h.b16 %v317
  %v3003 = vunpack.c.l.b16 %v318
  %v3004 = vunpack.c.h.b16 %v318
  %v3005 = vunpack.c.l.b16 %v319
  %v3006 = vunpack.c.h.b16 %v319
  %v3007 = vunpack.c.l.b16 %v320
  %v3008 = vunpack.c.h.b16 %v320
  %v3009 = vunpack.c.l.b16 %v321
  %v3010 = vunpack.c.h.b16 %v321
  %v3011 = vunpack.c.l.b16 %v322
  %v3012 = vunpack.c.h.b16 %v322
  %v3013 = vunpack.c.l.b16 %v323
  %v3014 = vunpack.c.h.b16 %v323
  %v3015 = vunpack.c.l.b16 %v324
  %v3016 = vunpack.c.h.b16 %v324
  %v3017 = vunpack.c.l.b16 %v325
  %v3018 = vunpack.c.h.b16 %v325
  %v3019 = vunpack.c.l.b16 %v326
  %v3020 = vunpack.c.h.b16 %v326
  %v3021 = vunpack.c.l.b16 %v327
  %v3022 = vunpack.c.h.b16 %v327
  %v3023 = vunpack.c.l.b16 %v328
  %v3024 = vunpack.c.h.b16 %v328
  %v3025 = vunpack.c.l.b16 %v329
  %v3026 = vunpack.c.h.b16 %v329
  %v3027 = vunpack.c.l.b16 %v330
  %v3028 = vunpack.c.h.b16 %v330
  %v3029 = vunpack.c.l.b16 %v331
  %v3030 = vunpack.c.h.b16 %v331
  %v3031 = vunpack.c.l.b16 %v332
  %v3032 = vunpack.c.h.b16 %v332
  %v3033 = vunpack.c.l.b16 %v333
  %v3034 = vunpack.c.h.b16 %v333
  %v3035 = vunpack.c.l.b16 %v334
  %v3036 = vunpack.c.h.b16 %v334
  %v3037 = vunpack.c.l.b16 %v335
  %v3038 = vunpack.c.h.b16 %v335
  %v3039 = vunpack.c.l.b16 %v336
  %v3040 = vunpack.c.h.b16 %v336
  %v3041 = vunpack.c.l.b16 %v337
  %v3042 = vunpack.c.h.b16 %v337
  %v3043 = vunpack.c.l.b16 %v338
  %v3044 = vunpack.c.h.b16 %v338
  %v3045 = vunpack.c.l.b16 %v339
  %v3046 = vunpack.c.h.b16 %v339
  %v3047 = vunpack.c.l.b16 %v340
  %v3048 = vunpack.c.h.b16 %v340
  %v3049 = vunpack.c.l.b16 %v341
  %v3050 = vunpack.c.h.b16 %v341
  %v3051 = vunpack.c.l.b16 %v342
  %v3052 = vunpack.c.h.b16 %v342
  %v3053 = vunpack.c.l.b16 %v343
  %v3054 = vunpack.c.h.b16 %v343
  %v3055 = vunpack.c.l.b16 %v344
  %v3056 = vunpack.c.h.b16 %v344
  %v3057 = vunpack.c.l.b16 %v345
  %v3058 = vunpack.c.h.b16 %v345
  %v3059 = vunpack.c.l.b16 %v346
  %v3060 = vunpack.c.h.b16 %v346
  %v3061 = vunpack.c.l.b16 %v347
  %v3062 = vunpack.c.h.b16 %v347
  %v3063 = vunpack.c.l.b16 %v348
  %v3064 = vunpack.c.h.b16 %v348
  %v3065 = vunpack.c.l.b16 %v349
  %v3066 = vunpack.c.h.b16 %v349
  %v3067 = vunpack.c.l.b16 %v350
  %v3068 = vunpack.c.h.b16 %v350
  %v3069 = vunpack.c.l.b16 %v351
  %v3070 = vunpack.c.h.b16 %v351
  %v3071 = vunpack.c.l.b16 %v352
  %v3072 = vunpack.c.h.b16 %v352
  %v3073 = vunpack.c.l.b16 %v353
  %v3074 = vunpack.c.h.b16 %v353
  %v3075 = vunpack.c.l.b16 %v354
  %v3076 = vunpack.c.h.b16 %v354
  %v3077 = vunpack.c.l.b16 %v355
  %v3078 = vunpack.c.h.b16 %v355
  %v3079 = vunpack.c.l.b16 %v356
  %v3080 = vunpack.c.h.b16 %v356
  %v3081 = vunpack.c.l.b16 %v357
  %v3082 = vunpack.c.h.b16 %v357
  %v3083 = vunpack.c.l.b16 %v358
  %v3084 = vunpack.c.h.b16 %v358
  %v3085 = vunpack.c.l.b16 %v359
  %v3086 = vunpack.c.h.b16 %v359
  %v3087 = vunpack.c.l.b16 %v360
  %v3088 = vunpack.c.h.b16 %v360
  %v3089 = vunpack.c.l.b16 %v361
  %v3090 = vunpack.c.h.b16 %v361
  %v3091 = vunpack.c.l.b16 %v362
  %v3092 = vunpack.c.h.b16 %v362
  %v3093 = vunpack.c.l.b16 %v363
  %v3094 = vunpack.c.h.b16 %v363
  %v3095 = vunpack.c.l.b16 %v364
  %v3096 = vunpack.c.h.b16 %v364
  %v3097 = vunpack.c.l.b16 %v365
  %v3098 = vunpack.c.h.b16 %v365
  %v3099 = vunpack.c.l.b16 %v366
  %v3100 = vunpack.c.h.b16 %v366
  %v3101 = vunpack.c.l.b16 %v367
  %v3102 = vunpack.c.h.b16 %v367
  %v3103 = vunpack.c.l.b16 %v368
  %v3104 = vunpack.c.h.b16 %v368
  %v3105 = vunpack.c.l.b16 %v369
  %v3106 = vunpack.c.h.b16 %v369
  %v3107 = vunpack.c.l.b16 %v370
  %v3108 = vunpack.c.h.b16 %v370
  %v3109 = vunpack.c.l.b16 %v371
  %v3110 = vunpack.c.h.b16 %v371
  %v3111 = vunpack.c.l.b16 %v372
  %v3112 = vunpack.c.h.b16 %v372
  %v3113 = vunpack.c.l.b16 %v373
  %v3114 = vunpack.c.h.b16 %v373
  %v3115 = vunpack.c.l.b16 %v374
  %v3116 = vunpack.c.h.b16 %v374
  %v3117 = vunpack.c.l.b16 %v375
  %v3118 = vunpack.c.h.b16 %v375
  %v3119 = vunpack.c.l.b16 %v376
  %v3120 = vunpack.c.h.b16 %v376
  %v3121 = vunpack.c.l.b16 %v377
  %v3122 = vunpack.c.h.b16 %v377
  %v3123 = vunpack.c.l.b16 %v378
  %v3124 = vunpack.c.h.b16 %v378
  %v3125 = vunpack.c.l.b16 %v379
  %v3126 = vunpack.c.h.b16 %v379
  %v3127 = vunpack.c.l.b16 %v380
  %v3128 = vunpack.c.h.b16 %v380
  %v3129 = vunpack.c.l.b16 %v381
  %v3130 = vunpack.c.h.b16 %v381
  %v3131 = vunpack.c.l.b16 %v382
  %v3132 = vunpack.c.h.b16 %v382
  %v3133 = vunpack.c.l.b16 %v383
  %v3134 = vunpack.c.h.b16 %v383
  %v3135 = vunpack.c.l.b16 %v384
  %v3136 = vunpack.c.h.b16 %v384
  %v3137 = vunpack.c.l.b16 %v385
  %v3138 = vunpack.c.h.b16 %v385
  %v3139 = vunpack.c.l.b16 %v386
  %v3140 = vunpack.c.h.b16 %v386
  %v3141 = vunpack.c.l.b16 %v387
  %v3142 = vunpack.c.h.b16 %v387
  %v3143 = vunpack.c.l.b16 %v388
  %v3144 = vunpack.c.h.b16 %v388
  %v3145 = vunpack.c.l.b16 %v389
  %v3146 = vunpack.c.h.b16 %v389
  %v3147 = vunpack.c.l.b16 %v390
  %v3148 = vunpack.c.h.b16 %v390
  %v3149 = vunpack.c.l.b16 %v391
  %v3150 = vunpack.c.h.b16 %v391
  %v3151 = vunpack.c.l.b16 %v392
  %v3152 = vunpack.c.h.b16 %v392
  %v3153 = vunpack.c.l.b16 %v393
  %v3154 = vunpack.c.h.b16 %v393
  %v3155 = vunpack.c.l.b16 %v394
  %v3156 = vunpack.c.h.b16 %v394
  %v3157 = vunpack.c.l.b16 %v395
  %v3158 = vunpack.c.h.b16 %v395
  %v3159 = vunpack.c.l.b16 %v396
  %v3160 = vunpack.c.h.b16 %v396
  %v3161 = vunpack.c.l.b16 %v397
  %v3162 = vunpack.c.h.b16 %v397
  %v3163 = vunpack.c.l.b16 %v398
  %v3164 = vunpack.c.h.b16 %v398
  %v3165 = vunpack.c.l.b16 %v399
  %v3166 = vunpack.c.h.b16 %v399
  %v3167 = vunpack.c.l.b16 %v400
  %v3168 = vunpack.c.h.b16 %v400
  %v3169 = vunpack.c.l.b16 %v401
  %v3170 = vunpack.c.h.b16 %v401
  %v3171 = vunpack.c.l.b16 %v402
  %v3172 = vunpack.c.h.b16 %v402
  %v3173 = vunpack.c.l.b16 %v403
  %v3174 = vunpack.c.h.b16 %v403
  %v3175 = vunpack.c.l.b16 %v404
  %v3176 = vunpack.c.h.b16 %v404
  %v3177 = vunpack.c.l.b16 %v405
  %v3178 = vunpack.c.h.b16 %v405
  %v3179 = vunpack.c.l.b16 %v406
  %v3180 = vunpack.c.h.b16 %v406
  %v3181 = vunpack.c.l.b16 %v407
  %v3182 = vunpack.c.h.b16 %v407
  %v3183 = vunpack.c.l.b16 %v408
  %v3184 = vunpack.c.h.b16 %v408
  %v3185 = vunpack.c.l.b16 %v409
  %v3186 = vunpack.c.h.b16 %v409
  %v3187 = vunpack.c.l.b16 %v410
  %v3188 = vunpack.c.h.b16 %v410
  %v3189 = vunpack.c.l.b16 %v411
  %v3190 = vunpack.c.h.b16 %v411
  %v3191 = vunpack.c.l.b16 %v412
  %v3192 = vunpack.c.h.b16 %v412
  %v3193 = vunpack.c.l.b16 %v413
  %v3194 = vunpack.c.h.b16 %v413
  %v3195 = vunpack.c.l.b16 %v414
  %v3196 = vunpack.c.h.b16 %v414
  %v3197 = vunpack.c.l.b16 %v415
  %v3198 = vunpack.c.h.b16 %v415
  %v3199 = vunpack.c.l.b16 %v416
  %v3200 = vunpack.c.h.b16 %v416
  %v3201 = vunpack.c.l.b16 %v417
  %v3202 = vunpack.c.h.b16 %v417
  %v3203 = vunpack.c.l.b16 %v418
  %v3204 = vunpack.c.h.b16 %v418
  %v3205 = vunpack.c.l.b16 %v419
  %v3206 = vunpack.c.h.b16 %v419
  %v3207 = vunpack.c.l.b16 %v420
  %v3208 = vunpack.c.h.b16 %v420
  %v3209 = vunpack.c.l.b16 %v421
  %v3210 = vunpack.c.h.b16 %v421
  %v3211 = vunpack.c.l.b16 %v422
  %v3212 = vunpack.c.h.b16 %v422
  %v3213 = vunpack.c.l.b16 %v423
  %v3214 = vunpack.c.h.b16 %v423
  %v3215 = vunpack.c.l.b16 %v424
  %v3216 = vunpack.c.h.b16 %v424
  %v3217 = vunpack.c.l.b16 %v425
  %v3218 = vunpack.c.h.b16 %v425
  %v3219 = vunpack.c.l.b16 %v426
  %v3220 = vunpack.c.h.b16 %v426
  %v3221 = vunpack.c.l.b16 %v427
  %v3222 = vunpack.c.h.b16 %v427
  %v3223 = vunpack.c.l.b16 %v428
  %v3224 = vunpack.c.h.b16 %v428
  %v3225 = vunpack.c.l.b16 %v429
  %v3226 = vunpack.c.h.b16 %v429
  %v3227 = vunpack.c.l.b16 %v430
  %v3228 = vunpack.c.h.b16 %v430
  %v3229 = vunpack.c.l.b16 %v431
  %v3230 = vunpack.c.h.b16 %v431
  %v3231 = vunpack.c.l.b16 %v432
  %v3232 = vunpack.c.h.b16 %v432
  %v3233 = vunpack.c.l.b16 %v433
  %v3234 = vunpack.c.h.b16 %v433
  %v3235 = vunpack.c.l.b16 %v434
  %v3236 = vunpack.c.h.b16 %v434
  %v3237 = vunpack.c.l.b16 %v435
  %v3238 = vunpack.c.h.b16 %v435
  %v3239 = vunpack.c.l.b16 %v436
  %v3240 = vunpack.c.h.b16 %v436
  %v3241 = vunpack.c.l.b16 %v437
  %v3242 = vunpack.c.h.b16 %v437
  %v3243 = vunpack.c.l.b16 %v438
  %v3244 = vunpack.c.h.b16 %v438
  %v3245 = vunpack.c.l.b16 %v439
  %v3246 = vunpack.c.h.b16 %v439
  %v3247 = vunpack.c.l.b16 %v440
  %v3248 = vunpack.c.h.b16 %v440
  %v3249 = vunpack.c.l.b16 %v441
  %v3250 = vunpack.c.h.b16 %v441
  %v3251 = vunpack.c.l.b16 %v442
  %v3252 = vunpack.c.h.b16 %v442
  %v3253 = vunpack.c.l.b16 %v443
  %v3254 = vunpack.c.h.b16 %v443
  %v3255 = vunpack.c.l.b16 %v444
  %v3256 = vunpack.c.h.b16 %v444
  %v3257 = vunpack.c.l.b16 %v445
  %v3258 = vunpack.c.h.b16 %v445
  %v3259 = vunpack.c.l.b16 %v446
  %v3260 = vunpack.c.h.b16 %v446
  %v3261 = vunpack.c.l.b16 %v447
  %v3262 = vunpack.c.h.b16 %v447
  %v3263 = vunpack.c.l.b16 %v448
  %v3264 = vunpack.c.h.b16 %v448
  %v3265 = vunpack.c.l.b16 %v449
  %v3266 = vunpack.c.h.b16 %v449
  %v3267 = vunpack.c.l.b16 %v450
  %v3268 = vunpack.c.h.b16 %v450
  %v3269 = vunpack.c.l.b16 %v451
  %v3270 = vunpack.c.h.b16 %v451
  %v3271 = vunpack.c.l.b16 %v452
  %v3272 = vunpack.c.h.b16 %v452
  %v3273 = vunpack.c.l.b16 %v453
  %v3274 = vunpack.c.h.b16 %v453
  %v3275 = vunpack.c.l.b16 %v454
  %v3276 = vunpack.c.h.b16 %v454
  %v3277 = vunpack.c.l.b16 %v455
  %v3278 = vunpack.c.h.b16 %v455
  %v3279 = vunpack.c.l.b16 %v456
  %v3280 = vunpack.c.h.b16 %v456
  %v3281 = vunpack.c.l.b16 %v457
  %v3282 = vunpack.c.h.b16 %v457
  %v3283 = vunpack.c.l.b16 %v458
  %v3284 = vunpack.c.h.b16 %v458
  %v3285 = vunpack.c.l.b16 %v459
  %v3286 = vunpack.c.h.b16 %v459
  %v3287 = vunpack.c.l.b16 %v460
  %v3288 = vunpack.c.h.b16 %v460
  %v3289 = vunpack.c.l.b16 %v461
  %v3290 = vunpack.c.h.b16 %v461
  %v3291 = vunpack.c.l.b16 %v462
  %v3292 = vunpack.c.h.b16 %v462
  %v3293 = vunpack.c.l.b16 %v463
  %v3294 = vunpack.c.h.b16 %v463
  %v3295 = vunpack.c.l.b16 %v464
  %v3296 = vunpack.c.h.b16 %v464
  %v3297 = vunpack.c.l.b16 %v465
  %v3298 = vunpack.c.h.b16 %v465
  %v3299 = vunpack.c.l.b16 %v466
  %v3300 = vunpack.c.h.b16 %v466
  %v3301 = vunpack.c.l.b16 %v467
  %v3302 = vunpack.c.h.b16 %v467
  %v3303 = vunpack.c.l.b16 %v468
  %v3304 = vunpack.c.h.b16 %v468
  %v3305 = vunpack.c.l.b16 %v469
  %v3306 = vunpack.c.h.b16 %v469
  %v3307 = vunpack.c.l.b16 %v470
  %v3308 = vunpack.c.h.b16 %v470
  %v3309 = vunpack.c.l.b16 %v471
  %v3310 = vunpack.c.h.b16 %v471
  %v3311 = vunpack.c.l.b16 %v472
  %v3312 = vunpack.c.h.b16 %v472
  %v3313 = vunpack.c.l.b16 %v473
  %v3314 = vunpack.c.h.b16 %v473
  %v3315 = vunpack.c.l.b16 %v474
  %v3316 = vunpack.c.h.b16 %v474
  %v3317 = vunpack.c.l.b16 %v475
  %v3318 = vunpack.c.h.b16 %v475
  %v3319 = vunpack.c.l.b16 %v476
  %v3320 = vunpack.c.h.b16 %v476
  %v3321 = vunpack.c.l.b16 %v477
  %v3322 = vunpack.c.h.b16 %v477
  %v3323 = vunpack.c.l.b16 %v478
  %v3324 = vunpack.c.h.b16 %v478
  %v3325 = vunpack.c.l.b16 %v479
  %v3326 = vunpack.c.h.b16 %v479
  %v3327 = vunpack.c.l.b16 %v480
  %v3328 = vunpack.c.h.b16 %v480
  %v3329 = vunpack.c.l.b16 %v481
  %v3330 = vunpack.c.h.b16 %v481
  %v3331 = vunpack.c.l.b16 %v482
  %v3332 = vunpack.c.h.b16 %v482
  %v3333 = vunpack.c.l.b16 %v483
  %v3334 = vunpack.c.h.b16 %v483
  %v3335 = vunpack.c.l.b16 %v484
  %v3336 = vunpack.c.h.b16 %v484
  %v3337 = vunpack.c.l.b16 %v485
  %v3338 = vunpack.c.h.b16 %v485
  %v3339 = vunpack.c.l.b16 %v486
  %v3340 = vunpack.c.h.b16 %v486
  %v3341 = vunpack.c.l.b16 %v487
  %v3342 = vunpack.c.h.b16 %v487
  %v3343 = vunpack.c.l.b16 %v488
  %v3344 = vunpack.c.h.b16 %v488
  %v3345 = vunpack.c.l.b16 %v489
  %v3346 = vunpack.c.h.b16 %v489
  %v3347 = vunpack.c.l.b16 %v490
  %v3348 = vunpack.c.h.b16 %v490
  %v3349 = vunpack.c.l.b16 %v491
  %v3350 = vunpack.c.h.b16 %v491
  %v3351 = vunpack.c.l.b16 %v492
  %v3352 = vunpack.c.h.b16 %v492
  %v3353 = vunpack.c.l.b16 %v493
  %v3354 = vunpack.c.h.b16 %v493
  %v3355 = vunpack.c.l.b16 %v494
  %v3356 = vunpack.c.h.b16 %v494
  %v3357 = vunpack.c.l.b16 %v495
  %v3358 = vunpack.c.h.b16 %v495
  %v3359 = vunpack.c.l.b16 %v496
  %v3360 = vunpack.c.h.b16 %v496
  %v3361 = vunpack.c.l.b16 %v497
  %v3362 = vunpack.c.h.b16 %v497
  %v3363 = vunpack.c.l.b16 %v498
  %v3364 = vunpack.c.h.b16 %v498
  %v3365 = vunpack.c.l.b16 %v499
  %v3366 = vunpack.c.h.b16 %v499
  %v3367 = vunpack.c.l.b16 %v500
  %v3368 = vunpack.c.h.b16 %v500
  %v3369 = vunpack.c.l.b16 %v501
  %v3370 = vunpack.c.h.b16 %v501
  %v3371 = vunpack.c.l.b16 %v502
  %v3372 = vunpack.c.h.b16 %v502
  %v3373 = vunpack.c.l.b16 %v503
  %v3374 = vunpack.c.h.b16 %v503
  %v3375 = vunpack.c.l.b16 %v504
  %v3376 = vunpack.c.h.b16 %v504
  %v3377 = vunpack.c.l.b16 %v505
  %v3378 = vunpack.c.h.b16 %v505
  %v3379 = vunpack.c.l.b16 %v506
  %v3380 = vunpack.c.h.b16 %v506
  %v3381 = vunpack.c.l.b16 %v507
  %v3382 = vunpack.c.h.b16 %v507
  %v3383 = vunpack.c.l.b16 %v508
  %v3384 = vunpack.c.h.b16 %v508
  %v3385 = vunpack.c.l.b16 %v509
  %v3386 = vunpack.c.h.b16 %v509
  %v3387 = vunpack.c.l.b16 %v510
  %v3388 = vunpack.c.h.b16 %v510
  %v3389 = vunpack.c.l.b16 %v511
  %v3390 = vunpack.c.h.b16 %v511
  %v3391 = vunpack.c.l.b16 %v512
  %v3392 = vunpack.c.h.b16 %v512
  %v3393 = vunpack.c.l.b16 %v513
  %v3394 = vunpack.c.h.b16 %v513
  %v3395 = vunpack.c.l.b16 %v514
  %v3396 = vunpack.c.h.b16 %v514
  %v3397 = vunpack.c.l.b16 %v515
  %v3398 = vunpack.c.h.b16 %v515
  %v3399 = vunpack.c.l.b16 %v516
  %v3400 = vunpack.c.h.b16 %v516
  %v3401 = vunpack.c.l.b16 %v517
  %v3402 = vunpack.c.h.b16 %v517
  %v3403 = vunpack.c.l.b16 %v518
  %v3404 = vunpack.c.h.b16 %v518
  %v3405 = vunpack.c.l.b16 %v519
  %v3406 = vunpack.c.h.b16 %v519
  %v3407 = vunpack.c.l.b16 %v520
  %v3408 = vunpack.c.h.b16 %v520
  %v3409 = vunpack.c.l.b16 %v521
  %v3410 = vunpack.c.h.b16 %v521
  %v3411 = vunpack.c.l.b16 %v522
  %v3412 = vunpack.c.h.b16 %v522
  %v3413 = vunpack.c.l.b16 %v523
  %v3414 = vunpack.c.h.b16 %v523
  %v3415 = vunpack.c.l.b16 %v524
  %v3416 = vunpack.c.h.b16 %v524
  %v3417 = vunpack.c.l.b16 %v525
  %v3418 = vunpack.c.h.b16 %v525
  %v3419 = vunpack.c.l.b16 %v526
  %v3420 = vunpack.c.h.b16 %v526
  %v3421 = vunpack.c.l.b16 %v527
  %v3422 = vunpack.c.h.b16 %v527
  %v3423 = vunpack.c.l.b16 %v528
  %v3424 = vunpack.c.h.b16 %v528
  %v3425 = vunpack.c.l.b16 %v529
  %v3426 = vunpack.c.h.b16 %v529
  %v3427 = vunpack.c.l.b16 %v530
  %v3428 = vunpack.c.h.b16 %v530
  %v3429 = vunpack.c.l.b16 %v531
  %v3430 = vunpack.c.h.b16 %v531
  %v3431 = vunpack.c.l.b16 %v532
  %v3432 = vunpack.c.h.b16 %v532
  %v3433 = vunpack.c.l.b16 %v533
  %v3434 = vunpack.c.h.b16 %v533
  %v3435 = vunpack.c.l.b16 %v534
  %v3436 = vunpack.c.h.b16 %v534
  %v3437 = vunpack.c.l.b16 %v535
  %v3438 = vunpack.c.h.b16 %v535
  %v3439 = vunpack.c.l.b16 %v536
  %v3440 = vunpack.c.h.b16 %v536
  %v3441 = vunpack.c.l.b16 %v537
  %v3442 = vunpack.c.h.b16 %v537
  %v3443 = vunpack.c.l.b16 %v538
  %v3444 = vunpack.c.h.b16 %v538
  %v3445 = vunpack.c.l.b16 %v539
  %v3446 = vunpack.c.h.b16 %v539
  %v3447 = vunpack.c.l.b16 %v540
  %v3448 = vunpack.c.h.b16 %v540
  %v3449 = vunpack.c.l.b16 %v541
  %v3450 = vunpack.c.h.b16 %v541
  %v3451 = vunpack.c.l.b16 %v542
  %v3452 = vunpack.c.h.b16 %v542
  %v3453 = vunpack.c.l.b16 %v543
  %v3454 = vunpack.c.h.b16 %v543
  %v3455 = vunpack.c.l.b16 %v544
  %v3456 = vunpack.c.h.b16 %v544
  %v3457 = vunpack.c.l.b16 %v545
  %v3458 = vunpack.c.h.b16 %v545
  %v3459 = vunpack.c.l.b16 %v546
  %v3460 = vunpack.c.h.b16 %v546
  %v3461 = vunpack.c.l.b16 %v547
  %v3462 = vunpack.c.h.b16 %v547
  %v3463 = vunpack.c.l.b16 %v548
  %v3464 = vunpack.c.h.b16 %v548
  %v3465 = vunpack.c.l.b16 %v549
  %v3466 = vunpack.c.h.b16 %v549
  %v3467 = vunpack.c.l.b16 %v550
  %v3468 = vunpack.c.h.b16 %v550
  %v3469 = vunpack.c.l.b16 %v551
  %v3470 = vunpack.c.h.b16 %v551
  %v3471 = vunpack.c.l.b16 %v552
  %v3472 = vunpack.c.h.b16 %v552
  %v3473 = vunpack.c.l.b16 %v553
  %v3474 = vunpack.c.h.b16 %v553
  %v3475 = vunpack.c.l.b16 %v554
  %v3476 = vunpack.c.h.b16 %v554
  %v3477 = vunpack.c.l.b16 %v555
  %v3478 = vunpack.c.h.b16 %v555
  %v3479 = vunpack.c.l.b16 %v556
  %v3480 = vunpack.c.h.b16 %v556
  %v3481 = vunpack.c.l.b16 %v557
  %v3482 = vunpack.c.h.b16 %v557
  %v3483 = vunpack.c.l.b16 %v558
  %v3484 = vunpack.c.h.b16 %v558
  %v3485 = vunpack.c.l.b16 %v559
  %v3486 = vunpack.c.h.b16 %v559
  %v3487 = vunpack.c.l.b16 %v560
  %v3488 = vunpack.c.h.b16 %v560
  %v3489 = vunpack.c.l.b16 %v561
  %v3490 = vunpack.c.h.b16 %v561
  %v3491 = vunpack.c.l.b16 %v562
  %v3492 = vunpack.c.h.b16 %v562
  %v3493 = vunpack.c.l.b16 %v563
  %v3494 = vunpack.c.h.b16 %v563
  %v3495 = vunpack.c.l.b16 %v564
  %v3496 = vunpack.c.h.b16 %v564
  %v3497 = vunpack.c.l.b16 %v565
  %v3498 = vunpack.c.h.b16 %v565
  %v3499 = vunpack.c.l.b16 %v566
  %v3500 = vunpack.c.h.b16 %v566
  %v3501 = vunpack.c.l.b16 %v567
  %v3502 = vunpack.c.h.b16 %v567
  %v3503 = vunpack.c.l.b16 %v568
  %v3504 = vunpack.c.h.b16 %v568
  %v3505 = vunpack.c.l.b16 %v569
  %v3506 = vunpack.c.h.b16 %v569
  %v3507 = vunpack.c.l.b16 %v570
  %v3508 = vunpack.c.h.b16 %v570
  %v3509 = vunpack.c.l.b16 %v571
  %v3510 = vunpack.c.h.b16 %v571
  %v3511 = vunpack.c.l.b16 %v572
  %v3512 = vunpack.c.h.b16 %v572
  %v3513 = vunpack.c.l.b16 %v573
  %v3514 = vunpack.c.h.b16 %v573
  %v3515 = vunpack.c.l.b16 %v574
  %v3516 = vunpack.c.h.b16 %v574
  %v3517 = vunpack.c.l.b16 %v575
  %v3518 = vunpack.c.h.b16 %v575
  %v3519 = vunpack.c.l.b16 %v576
  %v3520 = vunpack.c.h.b16 %v576
  %v3521 = vunpack.c.l.b16 %v577
  %v3522 = vunpack.c.h.b16 %v577
  %v3523 = vunpack.c.l.b16 %v578
  %v3524 = vunpack.c.h.b16 %v578
  %v3525 = vunpack.c.l.b16 %v579
  %v3526 = vunpack.c.h.b16 %v579
  %v3527 = vunpack.c.l.b16 %v580
  %v3528 = vunpack.c.h.b16 %v580
  %v3529 = vunpack.c.l.b16 %v581
  %v3530 = vunpack.c.h.b16 %v581
  %v3531 = vunpack.c.l.b16 %v582
  %v3532 = vunpack.c.h.b16 %v582
  %v3533 = vunpack.c.l.b16 %v583
  %v3534 = vunpack.c.h.b16 %v583
  %v3535 = vunpack.c.l.b16 %v584
  %v3536 = vunpack.c.h.b16 %v584
  %v3537 = vunpack.c.l.b16 %v585
  %v3538 = vunpack.c.h.b16 %v585
  %v3539 = vunpack.c.l.b16 %v586
  %v3540 = vunpack.c.h.b16 %v586
  %v3541 = vunpack.c.l.b16 %v587
  %v3542 = vunpack.c.h.b16 %v587
  %v3543 = vunpack.c.l.b16 %v588
  %v3544 = vunpack.c.h.b16 %v588
  %v3545 = vunpack.c.l.b16 %v589
  %v3546 = vunpack.c.h.b16 %v589
  %v3547 = vunpack.c.l.b16 %v590
  %v3548 = vunpack.c.h.b16 %v590
  %v3549 = vunpack.c.l.b16 %v591
  %v3550 = vunpack.c.h.b16 %v591
  %v3551 = vunpack.c.l.b16 %v592
  %v3552 = vunpack.c.h.b16 %v592
  %v3553 = vunpack.c.l.b16 %v593
  %v3554 = vunpack.c.h.b16 %v593
  %v3555 = vunpack.c.l.b16 %v594
  %v3556 = vunpack.c.h.b16 %v594
  %v3557 = vunpack.c.l.b16 %v595
  %v3558 = vunpack.c.h.b16 %v595
  %v3559 = vunpack.c.l.b16 %v596
  %v3560 = vunpack.c.h.b16 %v596
  %v3561 = vunpack.c.l.b16 %v597
  %v3562 = vunpack.c.h.b16 %v597
  %v3563 = vunpack.c.l.b16 %v598
  %v3564 = vunpack.c.h.b16 %v598
  %v3565 = vunpack.c.l.b16 %v599
  %v3566 = vunpack.c.h.b16 %v599
  %v3567 = vunpack.c.l.b16 %v600
  %v3568 = vunpack.c.h.b16 %v600
  %v3569 = vunpack.c.l.b16 %v601
  %v3570 = vunpack.c.h.b16 %v601
  %v3571 = vunpack.c.l.b16 %v602
  %v3572 = vunpack.c.h.b16 %v602
  %v3573 = vunpack.c.l.b16 %v603
  %v3574 = vunpack.c.h.b16 %v603
  %v3575 = vunpack.c.l.b16 %v604
  %v3576 = vunpack.c.h.b16 %v604
  %v3577 = vunpack.c.l.b16 %v605
  %v3578 = vunpack.c.h.b16 %v605
  %v3579 = vunpack.c.l.b16 %v606
  %v3580 = vunpack.c.h.b16 %v606
  %v3581 = vunpack.c.l.b16 %v607
  %v3582 = vunpack.c.h.b16 %v607
  %v3583 = vunpack.c.l.b16 %v608
  %v3584 = vunpack.c.h.b16 %v608
  %v3585 = vunpack.c.l.b16 %v609
  %v3586 = vunpack.c.h.b16 %v609
  %v3587 = vunpack.c.l.b16 %v610
  %v3588 = vunpack.c.h.b16 %v610
  %v3589 = vunpack.c.l.b16 %v611
  %v3590 = vunpack.c.h.b16 %v611
  %v3591 = vunpack.c.l.b16 %v612
  %v3592 = vunpack.c.h.b16 %v612
  %v3593 = vunpack.c.l.b16 %v613
  %v3594 = vunpack.c.h.b16 %v613
  %v3595 = vunpack.c.l.b16 %v614
  %v3596 = vunpack.c.h.b16 %v614
  %v3597 = vunpack.c.l.b16 %v615
  %v3598 = vunpack.c.h.b16 %v615
  %v3599 = vunpack.c.l.b16 %v616
  %v3600 = vunpack.c.h.b16 %v616
  %v3601 = vunpack.c.l.b16 %v617
  %v3602 = vunpack.c.h.b16 %v617
  %v3603 = vunpack.c.l.b16 %v618
  %v3604 = vunpack.c.h.b16 %v618
  %v3605 = vunpack.c.l.b16 %v619
  %v3606 = vunpack.c.h.b16 %v619
  %v3607 = vunpack.c.l.b16 %v620
  %v3608 = vunpack.c.h.b16 %v620
  %v3609 = vunpack.c.l.b16 %v621
  %v3610 = vunpack.c.h.b16 %v621
  %v3611 = vunpack.c.l.b16 %v622
  %v3612 = vunpack.c.h.b16 %v622
  %v3613 = vunpack.c.l.b16 %v623
  %v3614 = vunpack.c.h.b16 %v623
  %v3615 = vunpack.c.l.b16 %v624
  %v3616 = vunpack.c.h.b16 %v624
  %v3617 = vunpack.c.l.b16 %v625
  %v3618 = vunpack.c.h.b16 %v625
  %v3619 = vunpack.c.l.b16 %v626
  %v3620 = vunpack.c.h.b16 %v626
  %v3621 = vunpack.c.l.b16 %v627
  %v3622 = vunpack.c.h.b16 %v627
  %v3623 = vunpack.c.l.b16 %v628
  %v3624 = vunpack.c.h.b16 %v628
  %v3625 = vunpack.c.l.b16 %v629
  %v3626 = vunpack.c.h.b16 %v629
  %v3627 = vunpack.c.l.b16 %v630
  %v3628 = vunpack.c.h.b16 %v630
  %v3629 = vunpack.c.l.b16 %v631
  %v3630 = vunpack.c.h.b16 %v631
  %v3631 = vunpack.c.l.b16 %v632
  %v3632 = vunpack.c.h.b16 %v632
  %v3633 = vunpack.c.l.b16 %v633
  %v3634 = vunpack.c.h.b16 %v633
  %v3635 = vunpack.c.l.b16 %v634
  %v3636 = vunpack.c.h.b16 %v634
  %v3637 = vunpack.c.l.b16 %v635
  %v3638 = vunpack.c.h.b16 %v635
  %v3639 = vunpack.c.l.b16 %v636
  %v3640 = vunpack.c.h.b16 %v636
  %v3641 = vunpack.c.l.b16 %v637
  %v3642 = vunpack.c.h.b16 %v637
  %v3643 = vunpack.c.l.b16 %v638
  %v3644 = vunpack.c.h.b16 %v638
  %v3645 = vunpack.c.l.b16 %v639
  %v3646 = vunpack.c.h.b16 %v639
  %v3647 = vunpack.c.l.b16 %v640
  %v3648 = vunpack.c.h.b16 %v640
  %v3649 = vunpack.c.l.b16 %v641
  %v3650 = vunpack.c.h.b16 %v641
  %v3651 = vunpack.c.l.b16 %v642
  %v3652 = vunpack.c.h.b16 %v642
  %v3653 = vunpack.c.l.b16 %v643
  %v3654 = vunpack.c.h.b16 %v643
  %v3655 = vunpack.c.l.b16 %v644
  %v3656 = vunpack.c.h.b16 %v644
  %v3657 = vunpack.c.l.b16 %v645
  %v3658 = vunpack.c.h.b16 %v645
  %v3659 = vunpack.c.l.b16 %v646
  %v3660 = vunpack.c.h.b16 %v646
  %v3661 = vunpack.c.l.b16 %v647
  %v3662 = vunpack.c.h.b16 %v647
  %v3663 = vunpack.c.l.b16 %v648
  %v3664 = vunpack.c.h.b16 %v648
  %v3665 = vunpack.c.l.b16 %v649
  %v3666 = vunpack.c.h.b16 %v649
  %v3667 = vunpack.c.l.b16 %v650
  %v3668 = vunpack.c.h.b16 %v650
  %v3669 = vunpack.c.l.b16 %v651
  %v3670 = vunpack.c.h.b16 %v651
  %v3671 = vunpack.c.l.b16 %v652
  %v3672 = vunpack.c.h.b16 %v652
  %v3673 = vunpack.c.l.b16 %v653
  %v3674 = vunpack.c.h.b16 %v653
  %v3675 = vunpack.c.l.b16 %v654
  %v3676 = vunpack.c.h.b16 %v654
  %v3677 = vunpack.c.l.b16 %v655
  %v3678 = vunpack.c.h.b16 %v655
  %v3679 = vunpack.c.l.b16 %v656
  %v3680 = vunpack.c.h.b16 %v656
  %v3681 = vunpack.c.l.b16 %v657
  %v3682 = vunpack.c.h.b16 %v657
  %v3683 = vunpack.c.l.b16 %v658
  %v3684 = vunpack.c.h.b16 %v658
  %v3685 = vunpack.c.l.b16 %v659
  %v3686 = vunpack.c.h.b16 %v659
  %v3687 = vunpack.c.l.b16 %v660
  %v3688 = vunpack.c.h.b16 %v660
  %v3689 = vunpack.c.l.b16 %v661
  %v3690 = vunpack.c.h.b16 %v661
  %v3691 = vunpack.c.l.b16 %v662
  %v3692 = vunpack.c.h.b16 %v662
  %v3693 = vunpack.c.l.b16 %v663
  %v3694 = vunpack.c.h.b16 %v663
  %v3695 = vunpack.c.l.b16 %v664
  %v3696 = vunpack.c.h.b16 %v664
  %v3697 = vunpack.c.l.b16 %v665
  %v3698 = vunpack.c.h.b16 %v665
  %v3699 = vunpack.c.l.b16 %v666
  %v3700 = vunpack.c.h.b16 %v666
  %v3701 = vunpack.c.l.b16 %v667
  %v3702 = vunpack.c.h.b16 %v667
  %v3703 = vunpack.c.l.b16 %v668
  %v3704 = vunpack.c.h.b16 %v668
  %v3705 = vunpack.c.l.b16 %v669
  %v3706 = vunpack.c.h.b16 %v669
  %v3707 = vunpack.c.l.b16 %v670
  %v3708 = vunpack.c.h.b16 %v670
  %v3709 = vunpack.c.l.b16 %v671
  %v3710 = vunpack.c.h.b16 %v671
  %v3711 = vunpack.c.l.b16 %v672
  %v3712 = vunpack.c.h.b16 %v672
  %v3713 = vunpack.c.l.b16 %v673
  %v3714 = vunpack.c.h.b16 %v673
  %v3715 = vunpack.c.l.b16 %v674
  %v3716 = vunpack.c.h.b16 %v674
  %v3717 = vunpack.c.l.b16 %v675
  %v3718 = vunpack.c.h.b16 %v675
  %v3719 = vunpack.c.l.b16 %v676
  %v3720 = vunpack.c.h.b16 %v676
  %v3721 = vunpack.c.l.b16 %v677
  %v3722 = vunpack.c.h.b16 %v677
  %v3723 = vunpack.c.l.b16 %v678
  %v3724 = vunpack.c.h.b16 %v678
  %v3725 = vunpack.c.l.b16 %v679
  %v3726 = vunpack.c.h.b16 %v679
  %v3727 = vunpack.c.l.b16 %v680
  %v3728 = vunpack.c.h.b16 %v680
  %v3729 = vunpack.c.l.b16 %v681
  %v3730 = vunpack.c.h.b16 %v681
  %v3731 = vunpack.c.l.b16 %v682
  %v3732 = vunpack.c.h.b16 %v682
  %v3733 = vunpack.c.l.b16 %v683
  %v3734 = vunpack.c.h.b16 %v683
  %v3735 = vunpack.c.l.b16 %v684
  %v3736 = vunpack.c.h.b16 %v684
  %v3737 = vunpack.c.l.b16 %v685
  %v3738 = vunpack.c.h.b16 %v685
  %v3739 = vunpack.c.l.b16 %v686
  %v3740 = vunpack.c.h.b16 %v686
  %v3741 = vunpack.c.l.b16 %v687
  %v3742 = vunpack.c.h.b16 %v687
  %v3743 = vunpack.c.l.b16 %v688
  %v3744 = vunpack.c.h.b16 %v688
  %v3745 = vunpack.c.l.b16 %v689
  %v3746 = vunpack.c.h.b16 %v689
  %v3747 = vunpack.c.l.b16 %v690
  %v3748 = vunpack.c.h.b16 %v690
  %v3749 = vunpack.c.l.b16 %v691
  %v3750 = vunpack.c.h.b16 %v691
  %v3751 = vunpack.c.l.b16 %v692
  %v3752 = vunpack.c.h.b16 %v692
  %v3753 = vunpack.c.l.b16 %v693
  %v3754 = vunpack.c.h.b16 %v693
  %v3755 = vunpack.c.l.b16 %v694
  %v3756 = vunpack.c.h.b16 %v694
  %v3757 = vunpack.c.l.b16 %v695
  %v3758 = vunpack.c.h.b16 %v695
  %v3759 = vunpack.c.l.b16 %v696
  %v3760 = vunpack.c.h.b16 %v696
  %v3761 = vunpack.c.l.b16 %v697
  %v3762 = vunpack.c.h.b16 %v697
  %v3763 = vunpack.c.l.b16 %v698
  %v3764 = vunpack.c.h.b16 %v698
  %v3765 = vunpack.c.l.b16 %v699
  %v3766 = vunpack.c.h.b16 %v699
  %v3767 = vunpack.c.l.b16 %v700
  %v3768 = vunpack.c.h.b16 %v700
  %v3769 = vunpack.c.l.b16 %v701
  %v3770 = vunpack.c.h.b16 %v701
  %v3771 = vunpack.c.l.b16 %v702
  %v3772 = vunpack.c.h.b16 %v702
  %v3773 = vunpack.c.l.b16 %v703
  %v3774 = vunpack.c.h.b16 %v703
  %v3775 = vunpack.c.l.b16 %v704
  %v3776 = vunpack.c.h.b16 %v704
  %v3777 = vunpack.c.l.b16 %v705
  %v3778 = vunpack.c.h.b16 %v705
  %v3779 = vunpack.c.l.b16 %v706
  %v3780 = vunpack.c.h.b16 %v706
  %v3781 = vunpack.c.l.b16 %v707
  %v3782 = vunpack.c.h.b16 %v707
  %v3783 = vunpack.c.l.b16 %v708
  %v3784 = vunpack.c.h.b16 %v708
  %v3785 = vunpack.c.l.b16 %v709
  %v3786 = vunpack.c.h.b16 %v709
  %v3787 = vunpack.c.l.b16 %v710
  %v3788 = vunpack.c.h.b16 %v710
  %v3789 = vunpack.c.l.b16 %v711
  %v3790 = vunpack.c.h.b16 %v711
  %v3791 = vunpack.c.l.b16 %v712
  %v3792 = vunpack.c.h.b16 %v712
  %v3793 = vunpack.c.l.b16 %v713
  %v3794 = vunpack.c.h.b16 %v713
  %v3795 = vunpack.c.l.b16 %v714
  %v3796 = vunpack.c.h.b16 %v714
  %v3797 = vunpack.c.l.b16 %v715
  %v3798 = vunpack.c.h.b16 %v715
  %v3799 = vunpack.c.l.b16 %v716
  %v3800 = vunpack.c.h.b16 %v716
  %v3801 = vunpack.c.l.b16 %v717
  %v3802 = vunpack.c.h.b16 %v717
  %v3803 = vunpack.c.l.b16 %v718
  %v3804 = vunpack.c.h.b16 %v718
  %v3805 = vunpack.c.l.b16 %v719
  %v3806 = vunpack.c.h.b16 %v719
  %v3807 = vunpack.c.l.b16 %v720
  %v3808 = vunpack.c.h.b16 %v720
  %v3809 = vunpack.c.l.b16 %v721
  %v3810 = vunpack.c.h.b16 %v721
  %v3811 = vunpack.c.l.b16 %v722
  %v3812 = vunpack.c.h.b16 %v722
  %v3813 = vunpack.c.l.b16 %v723
  %v3814 = vunpack.c.h.b16 %v723
  %v3815 = vunpack.c.l.b16 %v724
  %v3816 = vunpack.c.h.b16 %v724
  %v3817 = vunpack.c.l.b16 %v725
  %v3818 = vunpack.c.h.b16 %v725
  %v3819 = vunpack.c.l.b16 %v726
  %v3820 = vunpack.c.h.b16 %v726
  %v3821 = vunpack.c.l.b16 %v727
  %v3822 = vunpack.c.h.b16 %v727
  %v3823 = vunpack.c.l.b16 %v728
  %v3824 = vunpack.c.h.b16 %v728
  %v3825 = vunpack.c.l.b16 %v729
  %v3826 = vunpack.c.h.b16 %v729
  %v3827 = vunpack.c.l.b16 %v730
  %v3828 = vunpack.c.h.b16 %v730
  %v3829 = vunpack.c.l.b16 %v731
  %v3830 = vunpack.c.h.b16 %v731
  %v3831 = vunpack.c.l.b16 %v732
  %v3832 = vunpack.c.h.b16 %v732
  %v3833 = vunpack.c.l.b16 %v733
  %v3834 = vunpack.c.h.b16 %v733
  %v3835 = vunpack.c.l.b16 %v734
  %v3836 = vunpack.c.h.b16 %v734
  %v3837 = vunpack.c.l.b16 %v735
  %v3838 = vunpack.c.h.b16 %v735
  %v3839 = vunpack.c.l.b16 %v736
  %v3840 = vunpack.c.h.b16 %v736
  %v3841 = vunpack.c.l.b16 %v737
  %v3842 = vunpack.c.h.b16 %v737
  %v3843 = vunpack.c.l.b16 %v738
  %v3844 = vunpack.c.h.b16 %v738
  %v3845 = vunpack.c.l.b16 %v739
  %v3846 = vunpack.c.h.b16 %v739
  %v3847 = vunpack.c.l.b16 %v740
  %v3848 = vunpack.c.h.b16 %v740
  %v3849 = vunpack.c.l.b16 %v741
  %v3850 = vunpack.c.h.b16 %v741
  %v3851 = vunpack.c.l.b16 %v742
  %v3852 = vunpack.c.h.b16 %v742
  %v3853 = vunpack.c.l.b16 %v743
  %v3854 = vunpack.c.h.b16 %v743
  %v3855 = vunpack.c.l.b16 %v744
  %v3856 = vunpack.c.h.b16 %v744
  %v3857 = vunpack.c.l.b16 %v745
  %v3858 = vunpack.c.h.b16 %v745
  %v3859 = vunpack.c.l.b16 %v746
  %v3860 = vunpack.c.h.b16 %v746
  %v3861 = vunpack.c.l.b16 %v747
  %v3862 = vunpack.c.h.b16 %v747
  %v3863 = vunpack.c.l.b16 %v748
  %v3864 = vunpack.c.h.b16 %v748
  %v3865 = vunpack.c.l.b16 %v749
  %v3866 = vunpack.c.h.b16 %v749
  %v3867 = vunpack.c.l.b16 %v750
  %v3868 = vunpack.c.h.b16 %v750
  %v3869 = vunpack.c.l.b16 %v751
  %v3870 = vunpack.c.h.b16 %v751
  %v3871 = vunpack.c.l.b16 %v752
  %v3872 = vunpack.c.h.b16 %v752
  %v3873 = vunpack.c.l.b16 %v753
  %v3874 = vunpack.c.h.b16 %v753
  %v3875 = vunpack.c.l.b16 %v754
  %v3876 = vunpack.c.h.b16 %v754
  %v3877 = vunpack.c.l.b16 %v755
  %v3878 = vunpack.c.h.b16 %v755
  %v3879 = vunpack.c.l.b16 %v756
  %v3880 = vunpack.c.h.b16 %v756
  %v3881 = vunpack.c.l.b16 %v757
  %v3882 = vunpack.c.h.b16 %v757
  %v3883 = vunpack.c.l.b16 %v758
  %v3884 = vunpack.c.h.b16 %v758
  %v3885 = vunpack.c.l.b16 %v759
  %v3886 = vunpack.c.h.b16 %v759
  %v3887 = vunpack.c.l.b16 %v760
  %v3888 = vunpack.c.h.b16 %v760
  %v3889 = vunpack.c.l.b16 %v761
  %v3890 = vunpack.c.h.b16 %v761
  %v3891 = vunpack.c.l.b16 %v762
  %v3892 = vunpack.c.h.b16 %v762
  %v3893 = vunpack.c.l.b16 %v763
  %v3894 = vunpack.c.h.b16 %v763
  %v3895 = vunpack.c.l.b16 %v764
  %v3896 = vunpack.c.h.b16 %v764
  %v3897 = vunpack.c.l.b16 %v765
  %v3898 = vunpack.c.h.b16 %v765
  %v3899 = vunpack.c.l.b16 %v766
  %v3900 = vunpack.c.h.b16 %v766
  %v3901 = vunpack.c.l.b16 %v767
  %v3902 = vunpack.c.h.b16 %v767
  %v3903 = vunpack.c.l.b16 %v768
  %v3904 = vunpack.c.h.b16 %v768
  %v3905 = vunpack.c.l.b16 %v769
  %v3906 = vunpack.c.h.b16 %v769
  %v3907 = vunpack.c.l.b16 %v770
  %v3908 = vunpack.c.h.b16 %v770
  %v3909 = vunpack.c.l.b16 %v771
  %v3910 = vunpack.c.h.b16 %v771
  %v3911 = vunpack.c.l.b16 %v772
  %v3912 = vunpack.c.h.b16 %v772
  %v3913 = vunpack.c.l.b16 %v773
  %v3914 = vunpack.c.h.b16 %v773
  %v3915 = vunpack.c.l.b16 %v774
  %v3916 = vunpack.c.h.b16 %v774
  %v3917 = vunpack.c.l.b16 %v775
  %v3918 = vunpack.c.h.b16 %v775
  %v3919 = vunpack.c.l.b16 %v776
  %v3920 = vunpack.c.h.b16 %v776
  %v3921 = vunpack.c.l.b16 %v777
  %v3922 = vunpack.c.h.b16 %v777
  %v3923 = vunpack.c.l.b16 %v778
  %v3924 = vunpack.c.h.b16 %v778
  %v3925 = vunpack.c.l.b16 %v779
  %v3926 = vunpack.c.h.b16 %v779
  %v3927 = vunpack.c.l.b16 %v780
  %v3928 = vunpack.c.h.b16 %v780
  %v3929 = vunpack.c.l.b16 %v781
  %v3930 = vunpack.c.h.b16 %v781
  %v3931 = vunpack.c.l.b16 %v782
  %v3932 = vunpack.c.h.b16 %v782
  %v3933 = vunpack.c.l.b16 %v783
  %v3934 = vunpack.c.h.b16 %v783
  %v3935 = vunpack.c.l.b16 %v784
  %v3936 = vunpack.c.h.b16 %v784
  %v3937 = vunpack.c.l.b16 %v785
  %v3938 = vunpack.c.h.b16 %v785
  %v3939 = vunpack.c.l.b16 %v786
  %v3940 = vunpack.c.h.b16 %v786
  %v3941 = vunpack.c.l.b16 %v787
  %v3942 = vunpack.c.h.b16 %v787
  %v3943 = vunpack.c.l.b16 %v788
  %v3944 = vunpack.c.h.b16 %v788
  %v3945 = vunpack.c.l.b16 %v789
  %v3946 = vunpack.c.h.b16 %v789
  %v3947 = vunpack.c.l.b16 %v790
  %v3948 = vunpack.c.h.b16 %v790
  %v3949 = vunpack.c.l.b16 %v791
  %v3950 = vunpack.c.h.b16 %v791
  %v3951 = vunpack.c.l.b16 %v792
  %v3952 = vunpack.c.h.b16 %v792
  %v3953 = vunpack.c.l.b16 %v793
  %v3954 = vunpack.c.h.b16 %v793
  %v3955 = vunpack.c.l.b16 %v794
  %v3956 = vunpack.c.h.b16 %v794
  %v3957 = vunpack.c.l.b16 %v795
  %v3958 = vunpack.c.h.b16 %v795
  %v3959 = vunpack.c.l.b16 %v796
  %v3960 = vunpack.c.h.b16 %v796
  %v3961 = vunpack.c.l.b16 %v797
  %v3962 = vunpack.c.h.b16 %v797
  %v3963 = vunpack.c.l.b16 %v798
  %v3964 = vunpack.c.h.b16 %v798
  %v3965 = vunpack.c.l.b16 %v799
  %v3966 = vunpack.c.h.b16 %v799
  %v3967 = vunpack.c.l.b16 %v800
  %v3968 = vunpack.c.h.b16 %v800
  %v3969 = vunpack.c.l.b16 %v801
  %v3970 = vunpack.c.h.b16 %v801
  %v3971 = vunpack.c.l.b16 %v802
  %v3972 = vunpack.c.h.b16 %v802
  %v3973 = vunpack.c.l.b16 %v803
  %v3974 = vunpack.c.h.b16 %v803
  %v3975 = vunpack.c.l.b16 %v804
  %v3976 = vunpack.c.h.b16 %v804
  %v3977 = vunpack.c.l.b16 %v805
  %v3978 = vunpack.c.h.b16 %v805
  %v3979 = vunpack.c.l.b16 %v806
  %v3980 = vunpack.c.h.b16 %v806
  %v3981 = vunpack.c.l.b16 %v807
  %v3982 = vunpack.c.h.b16 %v807
  %v3983 = vunpack.c.l.b16 %v808
  %v3984 = vunpack.c.h.b16 %v808
  %v3985 = vunpack.c.l.b16 %v809
  %v3986 = vunpack.c.h.b16 %v809
  %v3987 = vunpack.c.l.b16 %v810
  %v3988 = vunpack.c.h.b16 %v810
  %v3989 = vunpack.c.l.b16 %v811
  %v3990 = vunpack.c.h.b16 %v811
  %v3991 = vunpack.c.l.b16 %v812
  %v3992 = vunpack.c.h.b16 %v812
  %v3993 = vunpack.c.l.b16 %v813
  %v3994 = vunpack.c.h.b16 %v813
  %v3995 = vunpack.c.l.b16 %v814
  %v3996 = vunpack.c.h.b16 %v814
  %v3997 = vunpack.c.l.b16 %v815
  %v3998 = vunpack.c.h.b16 %v815
  %v3999 = vunpack.c.l.b16 %v816
  %v4000 = vunpack.c.h.b16 %v816
  %v4001 = vunpack.c.l.b16 %v817
  %v4002 = vunpack.c.h.b16 %v817
  %v4003 = vunpack.c.l.b16 %v818
  %v4004 = vunpack.c.h.b16 %v818
  %v4005 = vunpack.c.l.b16 %v819
  %v4006 = vunpack.c.h.b16 %v819
  %v4007 = vunpack.c.l.b16 %v820
  %v4008 = vunpack.c.h.b16 %v820
  %v4009 = vunpack.c.l.b16 %v821
  %v4010 = vunpack.c.h.b16 %v821
  %v4011 = vunpack.c.l.b16 %v822
  %v4012 = vunpack.c.h.b16 %v822
  %v4013 = vunpack.c.l.b16 %v823
  %v4014 = vunpack.c.h.b16 %v823
  %v4015 = vunpack.c.l.b16 %v824
  %v4016 = vunpack.c.h.b16 %v824
  %v4017 = vunpack.c.l.b16 %v825
  %v4018 = vunpack.c.h.b16 %v825
  %v4019 = vunpack.c.l.b16 %v826
  %v4020 = vunpack.c.h.b16 %v826
  %v4021 = vunpack.c.l.b16 %v827
  %v4022 = vunpack.c.h.b16 %v827
  %v4023 = vunpack.c.l.b16 %v828
  %v4024 = vunpack.c.h.b16 %v828
  %v4025 = vunpack.c.l.b16 %v829
  %v4026 = vunpack.c.h.b16 %v829
  %v4027 = vunpack.c.l.b16 %v830
  %v4028 = vunpack.c.h.b16 %v830
  %v4029 = vunpack.c.l.b16 %v831
  %v4030 = vunpack.c.h.b16 %v831
  %v4031 = vunpack.c.l.b16 %v832
  %v4032 = vunpack.c.h.b16 %v832
  %v4033 = vunpack.c.l.b16 %v833
  %v4034 = vunpack.c.h.b16 %v833
  %v4035 = vunpack.c.l.b16 %v834
  %v4036 = vunpack.c.h.b16 %v834
  %v4037 = vunpack.c.l.b16 %v835
  %v4038 = vunpack.c.h.b16 %v835
  %v4039 = vunpack.c.l.b16 %v836
  %v4040 = vunpack.c.h.b16 %v836
  %v4041 = vunpack.c.l.b16 %v837
  %v4042 = vunpack.c.h.b16 %v837
  %v4043 = vunpack.c.l.b16 %v838
  %v4044 = vunpack.c.h.b16 %v838
  %v4045 = vunpack.c.l.b16 %v839
  %v4046 = vunpack.c.h.b16 %v839
  %v4047 = vunpack.c.l.b16 %v840
  %v4048 = vunpack.c.h.b16 %v840
  %v4049 = vunpack.c.l.b16 %v841
  %v4050 = vunpack.c.h.b16 %v841
  %v4051 = vunpack.c.l.b16 %v842
  %v4052 = vunpack.c.h.b16 %v842
  %v4053 = vunpack.c.l.b16 %v843
  %v4054 = vunpack.c.h.b16 %v843
  %v4055 = vunpack.c.l.b16 %v844
  %v4056 = vunpack.c.h.b16 %v844
  %v4057 = vunpack.c.l.b16 %v845
  %v4058 = vunpack.c.h.b16 %v845
  %v4059 = vunpack.c.l.b16 %v846
  %v4060 = vunpack.c.h.b16 %v846
  %v4061 = vunpack.c.l.b16 %v847
  %v4062 = vunpack.c.h.b16 %v847
  %v4063 = vunpack.c.l.b16 %v848
  %v4064 = vunpack.c.h.b16 %v848
  %v4065 = vunpack.c.l.b16 %v849
  %v4066 = vunpack.c.h.b16 %v849
  %v4067 = vunpack.c.l.b16 %v850
  %v4068 = vunpack.c.h.b16 %v850
  %v4069 = vunpack.c.l.b16 %v851
  %v4070 = vunpack.c.h.b16 %v851
  %v4071 = vunpack.c.l.b16 %v852
  %v4072 = vunpack.c.h.b16 %v852
  %v4073 = vunpack.c.l.b16 %v853
  %v4074 = vunpack.c.h.b16 %v853
  %v4075 = vunpack.c.l.b16 %v854
  %v4076 = vunpack.c.h.b16 %v854
  %v4077 = vunpack.c.l.b16 %v855
  %v4078 = vunpack.c.h.b16 %v855
  %v4079 = vunpack.c.l.b16 %v856
  %v4080 = vunpack.c.h.b16 %v856
  %v4081 = vunpack.c.l.b16 %v857
  %v4082 = vunpack.c.h.b16 %v857
  %v4083 = vunpack.c.l.b16 %v858
  %v4084 = vunpack.c.h.b16 %v858
  %v4085 = vunpack.c.l.b16 %v859
  %v4086 = vunpack.c.h.b16 %v859
  %v4087 = vunpack.c.l.b16 %v860
  %v4088 = vunpack.c.h.b16 %v860
  %v4089 = vunpack.c.l.b16 %v861
  %v4090 = vunpack.c.h.b16 %v861
  %v4091 = vunpack.c.l.b16 %v862
  %v4092 = vunpack.c.h.b16 %v862
  %v4093 = vunpack.c.l.b16 %v863
  %v4094 = vunpack.c.h.b16 %v863
  %v4095 = vunpack.c.l.b16 %v864
  %v4096 = vunpack.c.h.b16 %v864
  %v4097 = vunpack.c.l.b16 %v865
  %v4098 = vunpack.c.h.b16 %v865
  %v4099 = vunpack.c.l.b16 %v866
  %v4100 = vunpack.c.h.b16 %v866
  %v4101 = vunpack.c.l.b16 %v867
  %v4102 = vunpack.c.h.b16 %v867
  %v4103 = vunpack.c.l.b16 %v868
  %v4104 = vunpack.c.h.b16 %v868
  %v4105 = vunpack.c.l.b16 %v869
  %v4106 = vunpack.c.h.b16 %v869
  %v4107 = vunpack.c.l.b16 %v870
  %v4108 = vunpack.c.h.b16 %v870
  %v4109 = vunpack.c.l.b16 %v871
  %v4110 = vunpack.c.h.b16 %v871
  %v4111 = vunpack.c.l.b16 %v872
  %v4112 = vunpack.c.h.b16 %v872
  %v4113 = vunpack.c.l.b16 %v873
  %v4114 = vunpack.c.h.b16 %v873
  %v4115 = vunpack.c.l.b16 %v874
  %v4116 = vunpack.c.h.b16 %v874
  %v4117 = vunpack.c.l.b16 %v875
  %v4118 = vunpack.c.h.b16 %v875
  %v4119 = vunpack.c.l.b16 %v876
  %v4120 = vunpack.c.h.b16 %v876
  %v4121 = vunpack.c.l.b16 %v877
  %v4122 = vunpack.c.h.b16 %v877
  %v4123 = vunpack.c.l.b16 %v878
  %v4124 = vunpack.c.h.b16 %v878
  %v4125 = vunpack.c.l.b16 %v879
  %v4126 = vunpack.c.h.b16 %v879
  %v4127 = vunpack.c.l.b16 %v880
  %v4128 = vunpack.c.h.b16 %v880
  %v4129 = vunpack.c.l.b16 %v881
  %v4130 = vunpack.c.h.b16 %v881
  %v4131 = vunpack.c.l.b16 %v882
  %v4132 = vunpack.c.h.b16 %v882
  %v4133 = vunpack.c.l.b16 %v883
  %v4134 = vunpack.c.h.b16 %v883
  %v4135 = vunpack.c.l.b16 %v884
  %v4136 = vunpack.c.h.b16 %v884
  %v4137 = vunpack.c.l.b16 %v885
  %v4138 = vunpack.c.h.b16 %v885
  %v4139 = vunpack.c.l.b16 %v886
  %v4140 = vunpack.c.h.b16 %v886
  %v4141 = vunpack.c.l.b16 %v887
  %v4142 = vunpack.c.h.b16 %v887
  %v4143 = vunpack.c.l.b16 %v888
  %v4144 = vunpack.c.h.b16 %v888
  %v4145 = vunpack.c.l.b16 %v889
  %v4146 = vunpack.c.h.b16 %v889
  %v4147 = vunpack.c.l.b16 %v890
  %v4148 = vunpack.c.h.b16 %v890
  %v4149 = vunpack.c.l.b16 %v891
  %v4150 = vunpack.c.h.b16 %v891
  %v4151 = vunpack.c.l.b16 %v892
  %v4152 = vunpack.c.h.b16 %v892
  %v4153 = vunpack.c.l.b16 %v893
  %v4154 = vunpack.c.h.b16 %v893
  %v4155 = vunpack.c.l.b16 %v894
  %v4156 = vunpack.c.h.b16 %v894
  %v4157 = vunpack.c.l.b16 %v895
  %v4158 = vunpack.c.h.b16 %v895
  %v4159 = vunpack.c.l.b16 %v896
  %v4160 = vunpack.c.h.b16 %v896
  %v4161 = vunpack.c.l.b16 %v897
  %v4162 = vunpack.c.h.b16 %v897
  %v4163 = vunpack.c.l.b16 %v898
  %v4164 = vunpack.c.h.b16 %v898
  %v4165 = vunpack.c.l.b16 %v899
  %v4166 = vunpack.c.h.b16 %v899
  %v4167 = vunpack.c.l.b16 %v900
  %v4168 = vunpack.c.h.b16 %v900
  %v4169 = vunpack.c.l.b16 %v901
  %v4170 = vunpack.c.h.b16 %v901
  %v4171 = vunpack.c.l.b16 %v902
  %v4172 = vunpack.c.h.b16 %v902
  %v4173 = vunpack.c.l.b16 %v903
  %v4174 = vunpack.c.h.b16 %v903
  %v4175 = vunpack.c.l.b16 %v904
  %v4176 = vunpack.c.h.b16 %v904
  %v4177 = vunpack.c.l.b16 %v905
  %v4178 = vunpack.c.h.b16 %v905
  %v4179 = vunpack.c.l.b16 %v906
  %v4180 = vunpack.c.h.b16 %v906
  %v4181 = vunpack.c.l.b16 %v907
  %v4182 = vunpack.c.h.b16 %v907
  %v4183 = vunpack.c.l.b16 %v908
  %v4184 = vunpack.c.h.b16 %v908
  %v4185 = vunpack.c.l.b16 %v909
  %v4186 = vunpack.c.h.b16 %v909
  %v4187 = vunpack.c.l.b16 %v910
  %v4188 = vunpack.c.h.b16 %v910
  %v4189 = vunpack.c.l.b16 %v911
  %v4190 = vunpack.c.h.b16 %v911
  %v4191 = vunpack.c.l.b16 %v912
  %v4192 = vunpack.c.h.b16 %v912
  %v4193 = vunpack.c.l.b16 %v913
  %v4194 = vunpack.c.h.b16 %v913
  %v4195 = vunpack.c.l.b16 %v914
  %v4196 = vunpack.c.h.b16 %v914
  %v4197 = vunpack.c.l.b16 %v915
  %v4198 = vunpack.c.h.b16 %v915
  %v4199 = vunpack.c.l.b16 %v916
  %v4200 = vunpack.c.h.b16 %v916
  %v4201 = vunpack.c.l.b16 %v917
  %v4202 = vunpack.c.h.b16 %v917
  %v4203 = vunpack.c.l.b16 %v918
  %v4204 = vunpack.c.h.b16 %v918
  %v4205 = vunpack.c.l.b16 %v919
  %v4206 = vunpack.c.h.b16 %v919
  %v4207 = vunpack.c.l.b16 %v920
  %v4208 = vunpack.c.h.b16 %v920
  %v4209 = vunpack.c.l.b16 %v921
  %v4210 = vunpack.c.h.b16 %v921
  %v4211 = vunpack.c.l.b16 %v922
  %v4212 = vunpack.c.h.b16 %v922
  %v4213 = vunpack.c.l.b16 %v923
  %v4214 = vunpack.c.h.b16 %v923
  %v4215 = vunpack.c.l.b16 %v924
  %v4216 = vunpack.c.h.b16 %v924
  %v4217 = vunpack.c.l.b16 %v925
  %v4218 = vunpack.c.h.b16 %v925
  %v4219 = vunpack.c.l.b16 %v926
  %v4220 = vunpack.c.h.b16 %v926
  %v4221 = vunpack.c.l.b16 %v927
  %v4222 = vunpack.c.h.b16 %v927
  %v4223 = vunpack.c.l.b16 %v928
  %v4224 = vunpack.c.h.b16 %v928
  %v4225 = vunpack.c.l.b16 %v929
  %v4226 = vunpack.c.h.b16 %v929
  %v4227 = vunpack.c.l.b16 %v930
  %v4228 = vunpack.c.h.b16 %v930
  %v4229 = vunpack.c.l.b16 %v931
  %v4230 = vunpack.c.h.b16 %v931
  %v4231 = vunpack.c.l.b16 %v932
  %v4232 = vunpack.c.h.b16 %v932
  %v4233 = vunpack.c.l.b16 %v933
  %v4234 = vunpack.c.h.b16 %v933
  %v4235 = vunpack.c.l.b16 %v934
  %v4236 = vunpack.c.h.b16 %v934
  %v4237 = vunpack.c.l.b16 %v935
  %v4238 = vunpack.c.h.b16 %v935
  %v4239 = vunpack.c.l.b16 %v936
  %v4240 = vunpack.c.h.b16 %v936
  %v4241 = vunpack.c.l.b16 %v937
  %v4242 = vunpack.c.h.b16 %v937
  %v4243 = vunpack.c.l.b16 %v938
  %v4244 = vunpack.c.h.b16 %v938
  %v4245 = vunpack.c.l.b16 %v939
  %v4246 = vunpack.c.h.b16 %v939
  %v4247 = vunpack.c.l.b16 %v940
  %v4248 = vunpack.c.h.b16 %v940
  %v4249 = vunpack.c.l.b16 %v941
  %v4250 = vunpack.c.h.b16 %v941
  %v4251 = vunpack.c.l.b16 %v942
  %v4252 = vunpack.c.h.b16 %v942
  %v4253 = vunpack.c.l.b16 %v943
  %v4254 = vunpack.c.h.b16 %v943
  %v4255 = vunpack.c.l.b16 %v944
  %v4256 = vunpack.c.h.b16 %v944
  %v4257 = vunpack.c.l.b16 %v945
  %v4258 = vunpack.c.h.b16 %v945
  %v4259 = vunpack.c.l.b16 %v946
  %v4260 = vunpack.c.h.b16 %v946
  %v4261 = vunpack.c.l.b16 %v947
  %v4262 = vunpack.c.h.b16 %v947
  %v4263 = vunpack.c.l.b16 %v948
  %v4264 = vunpack.c.h.b16 %v948
  %v4265 = vunpack.c.l.b16 %v949
  %v4266 = vunpack.c.h.b16 %v949
  %v4267 = vunpack.c.l.b16 %v950
  %v4268 = vunpack.c.h.b16 %v950
  %v4269 = vunpack.c.l.b16 %v951
  %v4270 = vunpack.c.h.b16 %v951
  %v4271 = vunpack.c.l.b16 %v952
  %v4272 = vunpack.c.h.b16 %v952
  %v4273 = vunpack.c.l.b16 %v953
  %v4274 = vunpack.c.h.b16 %v953
  %v4275 = vunpack.c.l.b16 %v954
  %v4276 = vunpack.c.h.b16 %v954
  %v4277 = vunpack.c.l.b16 %v955
  %v4278 = vunpack.c.h.b16 %v955
  %v4279 = vunpack.c.l.b16 %v956
  %v4280 = vunpack.c.h.b16 %v956
  %v4281 = vunpack.c.l.b16 %v957
  %v4282 = vunpack.c.h.b16 %v957
  %v4283 = vunpack.c.l.b16 %v958
  %v4284 = vunpack.c.h.b16 %v958
  %v4285 = vunpack.c.l.b16 %v959
  %v4286 = vunpack.c.h.b16 %v959
  %v4287 = vunpack.c.l.b16 %v960
  %v4288 = vunpack.c.h.b16 %v960
  %v4289 = vunpack.c.l.b16 %v961
  %v4290 = vunpack.c.h.b16 %v961
  %v4291 = vunpack.c.l.b16 %v962
  %v4292 = vunpack.c.h.b16 %v962
  %v4293 = vunpack.c.l.b16 %v963
  %v4294 = vunpack.c.h.b16 %v963
  %v4295 = vunpack.c.l.b16 %v964
  %v4296 = vunpack.c.h.b16 %v964
  %v4297 = vunpack.c.l.b16 %v965
  %v4298 = vunpack.c.h.b16 %v965
  %v4299 = vunpack.c.l.b16 %v966
  %v4300 = vunpack.c.h.b16 %v966
  %v4301 = vunpack.c.l.b16 %v967
  %v4302 = vunpack.c.h.b16 %v967
  %v4303 = vunpack.c.l.b16 %v968
  %v4304 = vunpack.c.h.b16 %v968
  %v4305 = vunpack.c.l.b16 %v969
  %v4306 = vunpack.c.h.b16 %v969
  %v4307 = vunpack.c.l.b16 %v970
  %v4308 = vunpack.c.h.b16 %v970
  %v4309 = vunpack.c.l.b16 %v971
  %v4310 = vunpack.c.h.b16 %v971
  %v4311 = vunpack.c.l.b16 %v972
  %v4312 = vunpack.c.h.b16 %v972
  %v4313 = vunpack.c.l.b16 %v973
  %v4314 = vunpack.c.h.b16 %v973
  %v4315 = vunpack.c.l.b16 %v974
  %v4316 = vunpack.c.h.b16 %v974
  %v4317 = vunpack.c.l.b16 %v975
  %v4318 = vunpack.c.h.b16 %v975
  %v4319 = vunpack.c.l.b16 %v976
  %v4320 = vunpack.c.h.b16 %v976
  %v4321 = vunpack.c.l.b16 %v977
  %v4322 = vunpack.c.h.b16 %v977
  %v4323 = vunpack.c.l.b16 %v978
  %v4324 = vunpack.c.h.b16 %v978
  %v4325 = vunpack.c.l.b16 %v979
  %v4326 = vunpack.c.h.b16 %v979
  %v4327 = vunpack.c.l.b16 %v980
  %v4328 = vunpack.c.h.b16 %v980
  %v4329 = vunpack.c.l.b16 %v981
  %v4330 = vunpack.c.h.b16 %v981
  %v4331 = vunpack.c.l.b16 %v982
  %v4332 = vunpack.c.h.b16 %v982
  %v4333 = vunpack.c.l.b16 %v983
  %v4334 = vunpack.c.h.b16 %v983
  %v4335 = vunpack.c.l.b16 %v984
  %v4336 = vunpack.c.h.b16 %v984
  %v4337 = vunpack.c.l.b16 %v985
  %v4338 = vunpack.c.h.b16 %v985
  %v4339 = vunpack.c.l.b16 %v986
  %v4340 = vunpack.c.h.b16 %v986
  %v4341 = vunpack.c.l.b16 %v987
  %v4342 = vunpack.c.h.b16 %v987
  %v4343 = vunpack.c.l.b16 %v988
  %v4344 = vunpack.c.h.b16 %v988
  %v4345 = vunpack.c.l.b16 %v989
  %v4346 = vunpack.c.h.b16 %v989
  %v4347 = vunpack.c.l.b16 %v990
  %v4348 = vunpack.c.h.b16 %v990
  %v4349 = vunpack.c.l.b16 %v991
  %v4350 = vunpack.c.h.b16 %v991
  %v4351 = vunpack.c.l.b16 %v992
  %v4352 = vunpack.c.h.b16 %v992
  %v4353 = vunpack.c.l.b16 %v993
  %v4354 = vunpack.c.h.b16 %v993
  %v4355 = vunpack.c.l.b16 %v994
  %v4356 = vunpack.c.h.b16 %v994
  %v4357 = vunpack.c.l.b16 %v995
  %v4358 = vunpack.c.h.b16 %v995
  %v4359 = vunpack.c.l.b16 %v996
  %v4360 = vunpack.c.h.b16 %v996
  %v4361 = vunpack.c.l.b16 %v997
  %v4362 = vunpack.c.h.b16 %v997
  %v4363 = vunpack.c.l.b16 %v998
  %v4364 = vunpack.c.h.b16 %v998
  %v4365 = vunpack.c.l.b16 %v999
  %v4366 = vunpack.c.h.b16 %v999
  %v4367 = vunpack.c.l.b16 %v1000
  %v4368 = vunpack.c.h.b16 %v1000
  %v4369 = vunpack.c.l.b16 %v1001
  %v4370 = vunpack.c.h.b16 %v1001
  %v4371 = vunpack.c.l.b16 %v1002
  %v4372 = vunpack.c.h.b16 %v1002
  %v4373 = vunpack.c.l.b16 %v1003
  %v4374 = vunpack.c.h.b16 %v1003
  %v4375 = vunpack.c.l.b16 %v1004
  %v4376 = vunpack.c.h.b16 %v1004
  %v4377 = vunpack.c.l.b16 %v1005
  %v4378 = vunpack.c.h.b16 %v1005
  %v4379 = vunpack.c.l.b16 %v1006
  %v4380 = vunpack.c.h.b16 %v1006
  %v4381 = vpack.c.b16 %v2817, %v2813
  %v4382 = vpack.c.b16 %v2818, %v2814
  %v4383 = vpack.c.b16 %v2819, %v2815
  %v4384 = vpack.c.b16 %v2820, %v2816
  %v4385 = vpack.c.b16 %v2825, %v2821
  %v4386 = vpack.c.b16 %v2826, %v2822
  %v4387 = vpack.c.b16 %v2827, %v2823
  %v4388 = vpack.c.b16 %v2828, %v2824
  %v4389 = vpack.c.b16 %v2833, %v2829
  %v4390 = vpack.c.b16 %v2834, %v2830
  %v4391 = vpack.c.b16 %v2835, %v2831
  %v4392 = vpack.c.b16 %v2836, %v2832
  %v4393 = vpack.c.b16 %v2841, %v2837
  %v4394 = vpack.c.b16 %v2842, %v2838
  %v4395 = vpack.c.b16 %v2843, %v2839
  %v4396 = vpack.c.b16 %v2844, %v2840
  %v4397 = vpack.c.b16 %v2849, %v2845
  %v4398 = vpack.c.b16 %v2850, %v2846
  %v4399 = vpack.c.b16 %v2851, %v2847
  %v4400 = vpack.c.b16 %v2852, %v2848
  %v4401 = vpack.c.b16 %v2857, %v2853
  %v4402 = vpack.c.b16 %v2858, %v2854
  %v4403 = vpack.c.b16 %v2859, %v2855
  %v4404 = vpack.c.b16 %v2860, %v2856
  %v4405 = vpack.c.b16 %v2865, %v2861
  %v4406 = vpack.c.b16 %v2866, %v2862
  %v4407 = vpack.c.b16 %v2867, %v2863
  %v4408 = vpack.c.b16 %v2868, %v2864
  %v4409 = vpack.c.b16 %v2873, %v2869
  %v4410 = vpack.c.b16 %v2874, %v2870
  %v4411 = vpack.c.b16 %v2875, %v2871
  %v4412 = vpack.c.b16 %v2876, %v2872
  %v4413 = vpack.c.b16 %v2881, %v2877
  %v4414 = vpack.c.b16 %v2882, %v2878
  %v4415 = vpack.c.b16 %v2883, %v2879
  %v4416 = vpack.c.b16 %v2884, %v2880
  %v4417 = vpack.c.b16 %v2889, %v2885
  %v4418 = vpack.c.b16 %v2890, %v2886
  %v4419 = vpack.c.b16 %v2891, %v2887
  %v4420 = vpack.c.b16 %v2892, %v2888
  %v4421 = vpack.c.b16 %v2897, %v2893
  %v4422 = vpack.c.b16 %v2898, %v2894
  %v4423 = vpack.c.b16 %v2899, %v2895
  %v4424 = vpack.c.b16 %v2900, %v2896
  %v4425 = vpack.c.b16 %v2905, %v2901
  %v4426 = vpack.c.b16 %v2906, %v2902
  %v4427 = vpack.c.b16 %v2907, %v2903
  %v4428 = vpack.c.b16 %v2908, %v2904
  %v4429 = vpack.c.b16 %v2913, %v2909
  %v4430 = vpack.c.b16 %v2914, %v2910
  %v4431 = vpack.c.b16 %v2915, %v2911
  %v4432 = vpack.c.b16 %v2916, %v2912
  %v4433 = vpack.c.b16 %v2921, %v2917
  %v4434 = vpack.c.b16 %v2922, %v2918
  %v4435 = vpack.c.b16 %v2923, %v2919
  %v4436 = vpack.c.b16 %v2924, %v2920
  %v4437 = vpack.c.b16 %v2929, %v2925
  %v4438 = vpack.c.b16 %v2930, %v2926
  %v4439 = vpack.c.b16 %v2931, %v2927
  %v4440 = vpack.c.b16 %v2932, %v2928
  %v4441 = vpack.c.b16 %v2937, %v2933
  %v4442 = vpack.c.b16 %v2938, %v2934
  %v4443 = vpack.c.b16 %v2939, %v2935
  %v4444 = vpack.c.b16 %v2940, %v2936
  %v4445 = vpack.c.b16 %v2945, %v2941
  %v4446 = vpack.c.b16 %v2946, %v2942
  %v4447 = vpack.c.b16 %v2947, %v2943
  %v4448 = vpack.c.b16 %v2948, %v2944
  %v4449 = vpack.c.b16 %v2953, %v2949
  %v4450 = vpack.c.b16 %v2954, %v2950
  %v4451 = vpack.c.b16 %v2955, %v2951
  %v4452 = vpack.c.b16 %v2956, %v2952
  %v4453 = vpack.c.b16 %v2961, %v2957
  %v4454 = vpack.c.b16 %v2962, %v2958
  %v4455 = vpack.c.b16 %v2963, %v2959
  %v4456 = vpack.c.b16 %v2964, %v2960
  %v4457 = vpack.c.b16 %v2969, %v2965
  %v4458 = vpack.c.b16 %v2970, %v2966
  %v4459 = vpack.c.b16 %v2971, %v2967
  %v4460 = vpack.c.b16 %v2972, %v2968
  %v4461 = vpack.c.b16 %v2977, %v2973
  %v4462 = vpack.c.b16 %v2978, %v2974
  %v4463 = vpack.c.b16 %v2979, %v2975
  %v4464 = vpack.c.b16 %v2980, %v2976
  %v4465 = vpack.c.b16 %v2985, %v2981
  %v4466 = vpack.c.b16 %v2986, %v2982
  %v4467 = vpack.c.b16 %v2987, %v2983
  %v4468 = vpack.c.b16 %v2988, %v2984
  %v4469 = vpack.c.b16 %v2993, %v2989
  %v4470 = vpack.c.b16 %v2994, %v2990
  %v4471 = vpack.c.b16 %v2995, %v2991
  %v4472 = vpack.c.b16 %v2996, %v2992
  %v4473 = vpack.c.b16 %v3001, %v2997
  %v4474 = vpack.c.b16 %v3002, %v2998
  %v4475 = vpack.c.b16 %v3003, %v2999
  %v4476 = vpack.c.b16 %v3004, %v3000
  %v4477 = vpack.c.b16 %v3009, %v3005
  %v4478 = vpack.c.b16 %v3010, %v3006
  %v4479 = vpack.c.b16 %v3011, %v3007
  %v4480 = vpack.c.b16 %v3012, %v3008
  %v4481 = vpack.c.b16 %v3017, %v3013
  %v4482 = vpack.c.b16 %v3018, %v3014
  %v4483 = vpack.c.b16 %v3019, %v3015
  %v4484 = vpack.c.b16 %v3020, %v3016
  %v4485 = vpack.c.b16 %v3025, %v3021
  %v4486 = vpack.c.b16 %v3026, %v3022
  %v4487 = vpack.c.b16 %v3027, %v3023
  %v4488 = vpack.c.b16 %v3028, %v3024
  %v4489 = vpack.c.b16 %v3033, %v3029
  %v4490 = vpack.c.b16 %v3034, %v3030
  %v4491 = vpack.c.b16 %v3035, %v3031
  %v4492 = vpack.c.b16 %v3036, %v3032
  %v4493 = vpack.c.b16 %v3041, %v3037
  %v4494 = vpack.c.b16 %v3042, %v3038
  %v4495 = vpack.c.b16 %v3043, %v3039
  %v4496 = vpack.c.b16 %v3044, %v3040
  %v4497 = vpack.c.b16 %v3049, %v3045
  %v4498 = vpack.c.b16 %v3050, %v3046
  %v4499 = vpack.c.b16 %v3051, %v3047
  %v4500 = vpack.c.b16 %v3052, %v3048
  %v4501 = vpack.c.b16 %v3057, %v3053
  %v4502 = vpack.c.b16 %v3058, %v3054
  %v4503 = vpack.c.b16 %v3059, %v3055
  %v4504 = vpack.c.b16 %v3060, %v3056
  %v4505 = vpack.c.b16 %v3065, %v3061
  %v4506 = vpack.c.b16 %v3066, %v3062
  %v4507 = vpack.c.b16 %v3067, %v3063
  %v4508 = vpack.c.b16 %v3068, %v3064
  %v4509 = vpack.c.b16 %v3073, %v3069
  %v4510 = vpack.c.b16 %v3074, %v3070
  %v4511 = vpack.c.b16 %v3075, %v3071
  %v4512 = vpack.c.b16 %v3076, %v3072
  %v4513 = vpack.c.b16 %v3081, %v3077
  %v4514 = vpack.c.b16 %v3082, %v3078
  %v4515 = vpack.c.b16 %v3083, %v3079
  %v4516 = vpack.c.b16 %v3084, %v3080
  %v4517 = vpack.c.b16 %v3089, %v3085
  %v4518 = vpack.c.b16 %v3090, %v3086
  %v4519 = vpack.c.b16 %v3091, %v3087
  %v4520 = vpack.c.b16 %v3092, %v3088
  %v4521 = vpack.c.b16 %v3097, %v3093
  %v4522 = vpack.c.b16 %v3098, %v3094
  %v4523 = vpack.c.b16 %v3099, %v3095
  %v4524 = vpack.c.b16 %v3100, %v3096
  %v4525 = vpack.c.b16 %v3105, %v3101
  %v4526 = vpack.c.b16 %v3106, %v3102
  %v4527 = vpack.c.b16 %v3107, %v3103
  %v4528 = vpack.c.b16 %v3108, %v3104
  %v4529 = vpack.c.b16 %v3113, %v3109
  %v4530 = vpack.c.b16 %v3114, %v3110
  %v4531 = vpack.c.b16 %v3115, %v3111
  %v4532 = vpack.c.b16 %v3116, %v3112
  %v4533 = vpack.c.b16 %v3121, %v3117
  %v4534 = vpack.c.b16 %v3122, %v3118
  %v4535 = vpack.c.b16 %v3123, %v3119
  %v4536 = vpack.c.b16 %v3124, %v3120
  %v4537 = vpack.c.b16 %v3129, %v3125
  %v4538 = vpack.c.b16 %v3130, %v3126
  %v4539 = vpack.c.b16 %v3131, %v3127
  %v4540 = vpack.c.b16 %v3132, %v3128
  %v4541 = vpack.c.b16 %v3137, %v3133
  %v4542 = vpack.c.b16 %v3138, %v3134
  %v4543 = vpack.c.b16 %v3139, %v3135
  %v4544 = vpack.c.b16 %v3140, %v3136
  %v4545 = vpack.c.b16 %v3145, %v3141
  %v4546 = vpack.c.b16 %v3146, %v3142
  %v4547 = vpack.c.b16 %v3147, %v3143
  %v4548 = vpack.c.b16 %v3148, %v3144
  %v4549 = vpack.c.b16 %v3153, %v3149
  %v4550 = vpack.c.b16 %v3154, %v3150
  %v4551 = vpack.c.b16 %v3155, %v3151
  %v4552 = vpack.c.b16 %v3156, %v3152
  %v4553 = vpack.c.b16 %v3161, %v3157
  %v4554 = vpack.c.b16 %v3162, %v3158
  %v4555 = vpack.c.b16 %v3163, %v3159
  %v4556 = vpack.c.b16 %v3164, %v3160
  %v4557 = vpack.c.b16 %v3169, %v3165
  %v4558 = vpack.c.b16 %v3170, %v3166
  %v4559 = vpack.c.b16 %v3171, %v3167
  %v4560 = vpack.c.b16 %v3172, %v3168
  %v4561 = vpack.c.b16 %v3177, %v3173
  %v4562 = vpack.c.b16 %v3178, %v3174
  %v4563 = vpack.c.b16 %v3179, %v3175
  %v4564 = vpack.c.b16 %v3180, %v3176
  %v4565 = vpack.c.b16 %v3185, %v3181
  %v4566 = vpack.c.b16 %v3186, %v3182
  %v4567 = vpack.c.b16 %v3187, %v3183
  %v4568 = vpack.c.b16 %v3188, %v3184
  %v4569 = vpack.c.b16 %v3193, %v3189
  %v4570 = vpack.c.b16 %v3194, %v3190
  %v4571 = vpack.c.b16 %v3195, %v3191
  %v4572 = vpack.c.b16 %v3196, %v3192
  %v4573 = vpack.c.b16 %v3201, %v3197
  %v4574 = vpack.c.b16 %v3202, %v3198
  %v4575 = vpack.c.b16 %v3203, %v3199
  %v4576 = vpack.c.b16 %v3204, %v3200
  %v4577 = vpack.c.b16 %v3209, %v3205
  %v4578 = vpack.c.b16 %v3210, %v3206
  %v4579 = vpack.c.b16 %v3211, %v3207
  %v4580 = vpack.c.b16 %v3212, %v3208
  %v4581 = vpack.c.b16 %v3217, %v3213
  %v4582 = vpack.c.b16 %v3218, %v3214
  %v4583 = vpack.c.b16 %v3219, %v3215
  %v4584 = vpack.c.b16 %v3220, %v3216
  %v4585 = vpack.c.b16 %v3225, %v3221
  %v4586 = vpack.c.b16 %v3226, %v3222
  %v4587 = vpack.c.b16 %v3227, %v3223
  %v4588 = vpack.c.b16 %v3228, %v3224
  %v4589 = vpack.c.b16 %v3233, %v3229
  %v4590 = vpack.c.b16 %v3234, %v3230
  %v4591 = vpack.c.b16 %v3235, %v3231
  %v4592 = vpack.c.b16 %v3236, %v3232
  %v4593 = vpack.c.b16 %v3241, %v3237
  %v4594 = vpack.c.b16 %v3242, %v3238
  %v4595 = vpack.c.b16 %v3243, %v3239
  %v4596 = vpack.c.b16 %v3244, %v3240
  %v4597 = vpack.c.b16 %v3249, %v3245
  %v4598 = vpack.c.b16 %v3250, %v3246
  %v4599 = vpack.c.b16 %v3251, %v3247
  %v4600 = vpack.c.b16 %v3252, %v3248
  %v4601 = vpack.c.b16 %v3257, %v3253
  %v4602 = vpack.c.b16 %v3258, %v3254
  %v4603 = vpack.c.b16 %v3259, %v3255
  %v4604 = vpack.c.b16 %v3260, %v3256
  %v4605 = vpack.c.b16 %v3265, %v3261
  %v4606 = vpack.c.b16 %v3266, %v3262
  %v4607 = vpack.c.b16 %v3267, %v3263
  %v4608 = vpack.c.b16 %v3268, %v3264
  %v4609 = vpack.c.b16 %v3273, %v3269
  %v4610 = vpack.c.b16 %v3274, %v3270
  %v4611 = vpack.c.b16 %v3275, %v3271
  %v4612 = vpack.c.b16 %v3276, %v3272
  %v4613 = vpack.c.b16 %v3281, %v3277
  %v4614 = vpack.c.b16 %v3282, %v3278
  %v4615 = vpack.c.b16 %v3283, %v3279
  %v4616 = vpack.c.b16 %v3284, %v3280
  %v4617 = vpack.c.b16 %v3289, %v3285
  %v4618 = vpack.c.b16 %v3290, %v3286
  %v4619 = vpack.c.b16 %v3291, %v3287
  %v4620 = vpack.c.b16 %v3292, %v3288
  %v4621 = vpack.c.b16 %v3297, %v3293
  %v4622 = vpack.c.b16 %v3298, %v3294
  %v4623 = vpack.c.b16 %v3299, %v3295
  %v4624 = vpack.c.b16 %v3300, %v3296
  %v4625 = vpack.c.b16 %v3305, %v3301
  %v4626 = vpack.c.b16 %v3306, %v3302
  %v4627 = vpack.c.b16 %v3307, %v3303
  %v4628 = vpack.c.b16 %v3308, %v3304
  %v4629 = vpack.c.b16 %v3313, %v3309
  %v4630 = vpack.c.b16 %v3314, %v3310
  %v4631 = vpack.c.b16 %v3315, %v3311
  %v4632 = vpack.c.b16 %v3316, %v3312
  %v4633 = vpack.c.b16 %v3321, %v3317
  %v4634 = vpack.c.b16 %v3322, %v3318
  %v4635 = vpack.c.b16 %v3323, %v3319
  %v4636 = vpack.c.b16 %v3324, %v3320
  %v4637 = vpack.c.b16 %v3329, %v3325
  %v4638 = vpack.c.b16 %v3330, %v3326
  %v4639 = vpack.c.b16 %v3331, %v3327
  %v4640 = vpack.c.b16 %v3332, %v3328
  %v4641 = vpack.c.b16 %v3337, %v3333
  %v4642 = vpack.c.b16 %v3338, %v3334
  %v4643 = vpack.c.b16 %v3339, %v3335
  %v4644 = vpack.c.b16 %v3340, %v3336
  %v4645 = vpack.c.b16 %v3345, %v3341
  %v4646 = vpack.c.b16 %v3346, %v3342
  %v4647 = vpack.c.b16 %v3347, %v3343
  %v4648 = vpack.c.b16 %v3348, %v3344
  %v4649 = vpack.c.b16 %v3353, %v3349
  %v4650 = vpack.c.b16 %v3354, %v3350
  %v4651 = vpack.c.b16 %v3355, %v3351
  %v4652 = vpack.c.b16 %v3356, %v3352
  %v4653 = vpack.c.b16 %v3361, %v3357
  %v4654 = vpack.c.b16 %v3362, %v3358
  %v4655 = vpack.c.b16 %v3363, %v3359
  %v4656 = vpack.c.b16 %v3364, %v3360
  %v4657 = vpack.c.b16 %v3369, %v3365
  %v4658 = vpack.c.b16 %v3370, %v3366
  %v4659 = vpack.c.b16 %v3371, %v3367
  %v4660 = vpack.c.b16 %v3372, %v3368
  %v4661 = vpack.c.b16 %v3377, %v3373
  %v4662 = vpack.c.b16 %v3378, %v3374
  %v4663 = vpack.c.b16 %v3379, %v3375
  %v4664 = vpack.c.b16 %v3380, %v3376
  %v4665 = vpack.c.b16 %v3385, %v3381
  %v4666 = vpack.c.b16 %v3386, %v3382
  %v4667 = vpack.c.b16 %v3387, %v3383
  %v4668 = vpack.c.b16 %v3388, %v3384
  %v4669 = vpack.c.b16 %v3393, %v3389
  %v4670 = vpack.c.b16 %v3394, %v3390
  %v4671 = vpack.c.b16 %v3395, %v3391
  %v4672 = vpack.c.b16 %v3396, %v3392
  %v4673 = vpack.c.b16 %v3401, %v3397
  %v4674 = vpack.c.b16 %v3402, %v3398
  %v4675 = vpack.c.b16 %v3403, %v3399
  %v4676 = vpack.c.b16 %v3404, %v3400
  %v4677 = vpack.c.b16 %v3409, %v3405
  %v4678 = vpack.c.b16 %v3410, %v3406
  %v4679 = vpack.c.b16 %v3411, %v3407
  %v4680 = vpack.c.b16 %v3412, %v3408
  %v4681 = vpack.c.b16 %v3417, %v3413
  %v4682 = vpack.c.b16 %v3418, %v3414
  %v4683 = vpack.c.b16 %v3419, %v3415
  %v4684 = vpack.c.b16 %v3420, %v3416
  %v4685 = vpack.c.b16 %v3425, %v3421
  %v4686 = vpack.c.b16 %v3426, %v3422
  %v4687 = vpack.c.b16 %v3427, %v3423
  %v4688 = vpack.c.b16 %v3428, %v3424
  %v4689 = vpack.c.b16 %v3433, %v3429
  %v4690 = vpack.c.b16 %v3434, %v3430
  %v4691 = vpack.c.b16 %v3435, %v3431
  %v4692 = vpack.c.b16 %v3436, %v3432
  %v4693 = vpack.c.b16 %v3441, %v3437
  %v4694 = vpack.c.b16 %v3442, %v3438
  %v4695 = vpack.c.b16 %v3443, %v3439
  %v4696 = vpack.c.b16 %v3444, %v3440
  %v4697 = vpack.c.b16 %v3449, %v3445
  %v4698 = vpack.c.b16 %v3450, %v3446
  %v4699 = vpack.c.b16 %v3451, %v3447
  %v4700 = vpack.c.b16 %v3452, %v3448
  %v4701 = vpack.c.b16 %v3457, %v3453
  %v4702 = vpack.c.b16 %v3458, %v3454
  %v4703 = vpack.c.b16 %v3459, %v3455
  %v4704 = vpack.c.b16 %v3460, %v3456
  %v4705 = vpack.c.b16 %v3465, %v3461
  %v4706 = vpack.c.b16 %v3466, %v3462
  %v4707 = vpack.c.b16 %v3467, %v3463
  %v4708 = vpack.c.b16 %v3468, %v3464
  %v4709 = vpack.c.b16 %v3473, %v3469
  %v4710 = vpack.c.b16 %v3474, %v3470
  %v4711 = vpack.c.b16 %v3475, %v3471
  %v4712 = vpack.c.b16 %v3476, %v3472
  %v4713 = vpack.c.b16 %v3481, %v3477
  %v4714 = vpack.c.b16 %v3482, %v3478
  %v4715 = vpack.c.b16 %v3483, %v3479
  %v4716 = vpack.c.b16 %v3484, %v3480
  %v4717 = vpack.c.b16 %v3489, %v3485
  %v4718 = vpack.c.b16 %v3490, %v3486
  %v4719 = vpack.c.b16 %v3491, %v3487
  %v4720 = vpack.c.b16 %v3492, %v3488
  %v4721 = vpack.c.b16 %v3497, %v3493
  %v4722 = vpack.c.b16 %v3498, %v3494
  %v4723 = vpack.c.b16 %v3499, %v3495
  %v4724 = vpack.c.b16 %v3500, %v3496
  %v4725 = vpack.c.b16 %v3505, %v3501
  %v4726 = vpack.c.b16 %v3506, %v3502
  %v4727 = vpack.c.b16 %v3507, %v3503
  %v4728 = vpack.c.b16 %v3508, %v3504
  %v4729 = vpack.c.b16 %v3513, %v3509
  %v4730 = vpack.c.b16 %v3514, %v3510
  %v4731 = vpack.c.b16 %v3515, %v3511
  %v4732 = vpack.c.b16 %v3516, %v3512
  %v4733 = vpack.c.b16 %v3521, %v3517
  %v4734 = vpack.c.b16 %v3522, %v3518
  %v4735 = vpack.c.b16 %v3523, %v3519
  %v4736 = vpack.c.b16 %v3524, %v3520
  %v4737 = vpack.c.b16 %v3529, %v3525
  %v4738 = vpack.c.b16 %v3530, %v3526
  %v4739 = vpack.c.b16 %v3531, %v3527
  %v4740 = vpack.c.b16 %v3532, %v3528
  %v4741 = vpack.c.b16 %v3537, %v3533
  %v4742 = vpack.c.b16 %v3538, %v3534
  %v4743 = vpack.c.b16 %v3539, %v3535
  %v4744 = vpack.c.b16 %v3540, %v3536
  %v4745 = vpack.c.b16 %v3545, %v3541
  %v4746 = vpack.c.b16 %v3546, %v3542
  %v4747 = vpack.c.b16 %v3547, %v3543
  %v4748 = vpack.c.b16 %v3548, %v3544
  %v4749 = vpack.c.b16 %v3553, %v3549
  %v4750 = vpack.c.b16 %v3554, %v3550
  %v4751 = vpack.c.b16 %v3555, %v3551
  %v4752 = vpack.c.b16 %v3556, %v3552
  %v4753 = vpack.c.b16 %v3561, %v3557
  %v4754 = vpack.c.b16 %v3562, %v3558
  %v4755 = vpack.c.b16 %v3563, %v3559
  %v4756 = vpack.c.b16 %v3564, %v3560
  %v4757 = vpack.c.b16 %v3569, %v3565
  %v4758 = vpack.c.b16 %v3570, %v3566
  %v4759 = vpack.c.b16 %v3571, %v3567
  %v4760 = vpack.c.b16 %v3572, %v3568
  %v4761 = vpack.c.b16 %v3577, %v3573
  %v4762 = vpack.c.b16 %v3578, %v3574
  %v4763 = vpack.c.b16 %v3579, %v3575
  %v4764 = vpack.c.b16 %v3580, %v3576
  %v4765 = vpack.c.b16 %v3585, %v3581
  %v4766 = vpack.c.b16 %v3586, %v3582
  %v4767 = vpack.c.b16 %v3587, %v3583
  %v4768 = vpack.c.b16 %v3588, %v3584
  %v4769 = vpack.c.b16 %v3593, %v3589
  %v4770 = vpack.c.b16 %v3594, %v3590
  %v4771 = vpack.c.b16 %v3595, %v3591
  %v4772 = vpack.c.b16 %v3596, %v3592
  %v4773 = vpack.c.b16 %v3601, %v3597
  %v4774 = vpack.c.b16 %v3602, %v3598
  %v4775 = vpack.c.b16 %v3603, %v3599
  %v4776 = vpack.c.b16 %v3604, %v3600
  %v4777 = vpack.c.b16 %v3609, %v3605
  %v4778 = vpack.c.b16 %v3610, %v3606
  %v4779 = vpack.c.b16 %v3611, %v3607
  %v4780 = vpack.c.b16 %v3612, %v3608
  %v4781 = vpack.c.b16 %v3617, %v3613
  %v4782 = vpack.c.b16 %v3618, %v3614
  %v4783 = vpack.c.b16 %v3619, %v3615
  %v4784 = vpack.c.b16 %v3620, %v3616
  %v4785 = vpack.c.b16 %v3625, %v3621
  %v4786 = vpack.c.b16 %v3626, %v3622
  %v4787 = vpack.c.b16 %v3627, %v3623
  %v4788 = vpack.c.b16 %v3628, %v3624
  %v4789 = vpack.c.b16 %v3633, %v3629
  %v4790 = vpack.c.b16 %v3634, %v3630
  %v4791 = vpack.c.b16 %v3635, %v3631
  %v4792 = vpack.c.b16 %v3636, %v3632
  %v4793 = vpack.c.b16 %v3641, %v3637
  %v4794 = vpack.c.b16 %v3642, %v3638
  %v4795 = vpack.c.b16 %v3643, %v3639
  %v4796 = vpack.c.b16 %v3644, %v3640
  %v4797 = vpack.c.b16 %v3649, %v3645
  %v4798 = vpack.c.b16 %v3650, %v3646
  %v4799 = vpack.c.b16 %v3651, %v3647
  %v4800 = vpack.c.b16 %v3652, %v3648
  %v4801 = vpack.c.b16 %v3657, %v3653
  %v4802 = vpack.c.b16 %v3658, %v3654
  %v4803 = vpack.c.b16 %v3659, %v3655
  %v4804 = vpack.c.b16 %v3660, %v3656
  %v4805 = vpack.c.b16 %v3665, %v3661
  %v4806 = vpack.c.b16 %v3666, %v3662
  %v4807 = vpack.c.b16 %v3667, %v3663
  %v4808 = vpack.c.b16 %v3668, %v3664
  %v4809 = vpack.c.b16 %v3673, %v3669
  %v4810 = vpack.c.b16 %v3674, %v3670
  %v4811 = vpack.c.b16 %v3675, %v3671
  %v4812 = vpack.c.b16 %v3676, %v3672
  %v4813 = vpack.c.b16 %v3681, %v3677
  %v4814 = vpack.c.b16 %v3682, %v3678
  %v4815 = vpack.c.b16 %v3683, %v3679
  %v4816 = vpack.c.b16 %v3684, %v3680
  %v4817 = vpack.c.b16 %v3689, %v3685
  %v4818 = vpack.c.b16 %v3690, %v3686
  %v4819 = vpack.c.b16 %v3691, %v3687
  %v4820 = vpack.c.b16 %v3692, %v3688
  %v4821 = vpack.c.b16 %v3697, %v3693
  %v4822 = vpack.c.b16 %v3698, %v3694
  %v4823 = vpack.c.b16 %v3699, %v3695
  %v4824 = vpack.c.b16 %v3700, %v3696
  %v4825 = vpack.c.b16 %v3705, %v3701
  %v4826 = vpack.c.b16 %v3706, %v3702
  %v4827 = vpack.c.b16 %v3707, %v3703
  %v4828 = vpack.c.b16 %v3708, %v3704
  %v4829 = vpack.c.b16 %v3713, %v3709
  %v4830 = vpack.c.b16 %v3714, %v3710
  %v4831 = vpack.c.b16 %v3715, %v3711
  %v4832 = vpack.c.b16 %v3716, %v3712
  %v4833 = vpack.c.b16 %v3721, %v3717
  %v4834 = vpack.c.b16 %v3722, %v3718
  %v4835 = vpack.c.b16 %v3723, %v3719
  %v4836 = vpack.c.b16 %v3724, %v3720
  %v4837 = vpack.c.b16 %v3729, %v3725
  %v4838 = vpack.c.b16 %v3730, %v3726
  %v4839 = vpack.c.b16 %v3731, %v3727
  %v4840 = vpack.c.b16 %v3732, %v3728
  %v4841 = vpack.c.b16 %v3737, %v3733
  %v4842 = vpack.c.b16 %v3738, %v3734
  %v4843 = vpack.c.b16 %v3739, %v3735
  %v4844 = vpack.c.b16 %v3740, %v3736
  %v4845 = vpack.c.b16 %v3745, %v3741
  %v4846 = vpack.c.b16 %v3746, %v3742
  %v4847 = vpack.c.b16 %v3747, %v3743
  %v4848 = vpack.c.b16 %v3748, %v3744
  %v4849 = vpack.c.b16 %v3753, %v3749
  %v4850 = vpack.c.b16 %v3754, %v3750
  %v4851 = vpack.c.b16 %v3755, %v3751
  %v4852 = vpack.c.b16 %v3756, %v3752
  %v4853 = vpack.c.b16 %v3761, %v3757
  %v4854 = vpack.c.b16 %v3762, %v3758
  %v4855 = vpack.c.b16 %v3763, %v3759
  %v4856 = vpack.c.b16 %v3764, %v3760
  %v4857 = vpack.c.b16 %v3769, %v3765
  %v4858 = vpack.c.b16 %v3770, %v3766
  %v4859 = vpack.c.b16 %v3771, %v3767
  %v4860 = vpack.c.b16 %v3772, %v3768
  %v4861 = vpack.c.b16 %v3777, %v3773
  %v4862 = vpack.c.b16 %v3778, %v3774
  %v4863 = vpack.c.b16 %v3779, %v3775
  %v4864 = vpack.c.b16 %v3780, %v3776
  %v4865 = vpack.c.b16 %v3785, %v3781
  %v4866 = vpack.c.b16 %v3786, %v3782
  %v4867 = vpack.c.b16 %v3787, %v3783
  %v4868 = vpack.c.b16 %v3788, %v3784
  %v4869 = vpack.c.b16 %v3793, %v3789
  %v4870 = vpack.c.b16 %v3794, %v3790
  %v4871 = vpack.c.b16 %v3795, %v3791
  %v4872 = vpack.c.b16 %v3796, %v3792
  %v4873 = vpack.c.b16 %v3801, %v3797
  %v4874 = vpack.c.b16 %v3802, %v3798
  %v4875 = vpack.c.b16 %v3803, %v3799
  %v4876 = vpack.c.b16 %v3804, %v3800
  %v4877 = vpack.c.b16 %v3809, %v3805
  %v4878 = vpack.c.b16 %v3810, %v3806
  %v4879 = vpack.c.b16 %v3811, %v3807
  %v4880 = vpack.c.b16 %v3812, %v3808
  %v4881 = vpack.c.b16 %v3817, %v3813
  %v4882 = vpack.c.b16 %v3818, %v3814
  %v4883 = vpack.c.b16 %v3819, %v3815
  %v4884 = vpack.c.b16 %v3820, %v3816
  %v4885 = vpack.c.b16 %v3825, %v3821
  %v4886 = vpack.c.b16 %v3826, %v3822
  %v4887 = vpack.c.b16 %v3827, %v3823
  %v4888 = vpack.c.b16 %v3828, %v3824
  %v4889 = vpack.c.b16 %v3833, %v3829
  %v4890 = vpack.c.b16 %v3834, %v3830
  %v4891 = vpack.c.b16 %v3835, %v3831
  %v4892 = vpack.c.b16 %v3836, %v3832
  %v4893 = vpack.c.b16 %v3841, %v3837
  %v4894 = vpack.c.b16 %v3842, %v3838
  %v4895 = vpack.c.b16 %v3843, %v3839
  %v4896 = vpack.c.b16 %v3844, %v3840
  %v4897 = vpack.c.b16 %v3849, %v3845
  %v4898 = vpack.c.b16 %v3850, %v3846
  %v4899 = vpack.c.b16 %v3851, %v3847
  %v4900 = vpack.c.b16 %v3852, %v3848
  %v4901 = vpack.c.b16 %v3857, %v3853
  %v4902 = vpack.c.b16 %v3858, %v3854
  %v4903 = vpack.c.b16 %v3859, %v3855
  %v4904 = vpack.c.b16 %v3860, %v3856
  %v4905 = vpack.c.b16 %v3865, %v3861
  %v4906 = vpack.c.b16 %v3866, %v3862
  %v4907 = vpack.c.b16 %v3867, %v3863
  %v4908 = vpack.c.b16 %v3868, %v3864
  %v4909 = vpack.c.b16 %v3873, %v3869
  %v4910 = vpack.c.b16 %v3874, %v3870
  %v4911 = vpack.c.b16 %v3875, %v3871
  %v4912 = vpack.c.b16 %v3876, %v3872
  %v4913 = vpack.c.b16 %v3881, %v3877
  %v4914 = vpack.c.b16 %v3882, %v3878
  %v4915 = vpack.c.b16 %v3883, %v3879
  %v4916 = vpack.c.b16 %v3884, %v3880
  %v4917 = vpack.c.b16 %v3889, %v3885
  %v4918 = vpack.c.b16 %v3890, %v3886
  %v4919 = vpack.c.b16 %v3891, %v3887
  %v4920 = vpack.c.b16 %v3892, %v3888
  %v4921 = vpack.c.b16 %v3897, %v3893
  %v4922 = vpack.c.b16 %v3898, %v3894
  %v4923 = vpack.c.b16 %v3899, %v3895
  %v4924 = vpack.c.b16 %v3900, %v3896
  %v4925 = vpack.c.b16 %v3905, %v3901
  %v4926 = vpack.c.b16 %v3906, %v3902
  %v4927 = vpack.c.b16 %v3907, %v3903
  %v4928 = vpack.c.b16 %v3908, %v3904
  %v4929 = vpack.c.b16 %v3913, %v3909
  %v4930 = vpack.c.b16 %v3914, %v3910
  %v4931 = vpack.c.b16 %v3915, %v3911
  %v4932 = vpack.c.b16 %v3916, %v3912
  %v4933 = vpack.c.b16 %v3921, %v3917
  %v4934 = vpack.c.b16 %v3922, %v3918
  %v4935 = vpack.c.b16 %v3923, %v3919
  %v4936 = vpack.c.b16 %v3924, %v3920
  %v4937 = vpack.c.b16 %v3929, %v3925
  %v4938 = vpack.c.b16 %v3930, %v3926
  %v4939 = vpack.c.b16 %v3931, %v3927
  %v4940 = vpack.c.b16 %v3932, %v3928
  %v4941 = vpack.c.b16 %v3937, %v3933
  %v4942 = vpack.c.b16 %v3938, %v3934
  %v4943 = vpack.c.b16 %v3939, %v3935
  %v4944 = vpack.c.b16 %v3940, %v3936
  %v4945 = vpack.c.b16 %v3945, %v3941
  %v4946 = vpack.c.b16 %v3946, %v3942
  %v4947 = vpack.c.b16 %v3947, %v3943
  %v4948 = vpack.c.b16 %v3948, %v3944
  %v4949 = vpack.c.b16 %v3953, %v3949
  %v4950 = vpack.c.b16 %v3954, %v3950
  %v4951 = vpack.c.b16 %v3955, %v3951
  %v4952 = vpack.c.b16 %v3956, %v3952
  %v4953 = vpack.c.b16 %v3961, %v3957
  %v4954 = vpack.c.b16 %v3962, %v3958
  %v4955 = vpack.c.b16 %v3963, %v3959
  %v4956 = vpack.c.b16 %v3964, %v3960
  %v4957 = vpack.c.b16 %v3969, %v3965
  %v4958 = vpack.c.b16 %v3970, %v3966
  %v4959 = vpack.c.b16 %v3971, %v3967
  %v4960 = vpack.c.b16 %v3972, %v3968
  %v4961 = vpack.c.b16 %v3977, %v3973
  %v4962 = vpack.c.b16 %v3978, %v3974
  %v4963 = vpack.c.b16 %v3979, %v3975
  %v4964 = vpack.c.b16 %v3980, %v3976
  %v4965 = vpack.c.b16 %v3985, %v3981
  %v4966 = vpack.c.b16 %v3986, %v3982
  %v4967 = vpack.c.b16 %v3987, %v3983
  %v4968 = vpack.c.b16 %v3988, %v3984
  %v4969 = vpack.c.b16 %v3993, %v3989
  %v4970 = vpack.c.b16 %v3994, %v3990
  %v4971 = vpack.c.b16 %v3995, %v3991
  %v4972 = vpack.c.b16 %v3996, %v3992
  %v4973 = vpack.c.b16 %v4001, %v3997
  %v4974 = vpack.c.b16 %v4002, %v3998
  %v4975 = vpack.c.b16 %v4003, %v3999
  %v4976 = vpack.c.b16 %v4004, %v4000
  %v4977 = vpack.c.b16 %v4009, %v4005
  %v4978 = vpack.c.b16 %v4010, %v4006
  %v4979 = vpack.c.b16 %v4011, %v4007
  %v4980 = vpack.c.b16 %v4012, %v4008
  %v4981 = vpack.c.b16 %v4017, %v4013
  %v4982 = vpack.c.b16 %v4018, %v4014
  %v4983 = vpack.c.b16 %v4019, %v4015
  %v4984 = vpack.c.b16 %v4020, %v4016
  %v4985 = vpack.c.b16 %v4025, %v4021
  %v4986 = vpack.c.b16 %v4026, %v4022
  %v4987 = vpack.c.b16 %v4027, %v4023
  %v4988 = vpack.c.b16 %v4028, %v4024
  %v4989 = vpack.c.b16 %v4033, %v4029
  %v4990 = vpack.c.b16 %v4034, %v4030
  %v4991 = vpack.c.b16 %v4035, %v4031
  %v4992 = vpack.c.b16 %v4036, %v4032
  %v4993 = vpack.c.b16 %v4041, %v4037
  %v4994 = vpack.c.b16 %v4042, %v4038
  %v4995 = vpack.c.b16 %v4043, %v4039
  %v4996 = vpack.c.b16 %v4044, %v4040
  %v4997 = vpack.c.b16 %v4049, %v4045
  %v4998 = vpack.c.b16 %v4050, %v4046
  %v4999 = vpack.c.b16 %v4051, %v4047
  %v5000 = vpack.c.b16 %v4052, %v4048
  %v5001 = vpack.c.b16 %v4057, %v4053
  %v5002 = vpack.c.b16 %v4058, %v4054
  %v5003 = vpack.c.b16 %v4059, %v4055
  %v5004 = vpack.c.b16 %v4060, %v4056
  %v5005 = vpack.c.b16 %v4065, %v4061
  %v5006 = vpack.c.b16 %v4066, %v4062
  %v5007 = vpack.c.b16 %v4067, %v4063
  %v5008 = vpack.c.b16 %v4068, %v4064
  %v5009 = vpack.c.b16 %v4073, %v4069
  %v5010 = vpack.c.b16 %v4074, %v4070
  %v5011 = vpack.c.b16 %v4075, %v4071
  %v5012 = vpack.c.b16 %v4076, %v4072
  %v5013 = vpack.c.b16 %v4081, %v4077
  %v5014 = vpack.c.b16 %v4082, %v4078
  %v5015 = vpack.c.b16 %v4083, %v4079
  %v5016 = vpack.c.b16 %v4084, %v4080
  %v5017 = vpack.c.b16 %v4089, %v4085
  %v5018 = vpack.c.b16 %v4090, %v4086
  %v5019 = vpack.c.b16 %v4091, %v4087
  %v5020 = vpack.c.b16 %v4092, %v4088
  %v5021 = vpack.c.b16 %v4097, %v4093
  %v5022 = vpack.c.b16 %v4098, %v4094
  %v5023 = vpack.c.b16 %v4099, %v4095
  %v5024 = vpack.c.b16 %v4100, %v4096
  %v5025 = vpack.c.b16 %v4105, %v4101
  %v5026 = vpack.c.b16 %v4106, %v4102
  %v5027 = vpack.c.b16 %v4107, %v4103
  %v5028 = vpack.c.b16 %v4108, %v4104
  %v5029 = vpack.c.b16 %v4113, %v4109
  %v5030 = vpack.c.b16 %v4114, %v4110
  %v5031 = vpack.c.b16 %v4115, %v4111
  %v5032 = vpack.c.b16 %v4116, %v4112
  %v5033 = vpack.c.b16 %v4121, %v4117
  %v5034 = vpack.c.b16 %v4122, %v4118
  %v5035 = vpack.c.b16 %v4123, %v4119
  %v5036 = vpack.c.b16 %v4124, %v4120
  %v5037 = vpack.c.b16 %v4129, %v4125
  %v5038 = vpack.c.b16 %v4130, %v4126
  %v5039 = vpack.c.b16 %v4131, %v4127
  %v5040 = vpack.c.b16 %v4132, %v4128
  %v5041 = vpack.c.b16 %v4137, %v4133
  %v5042 = vpack.c.b16 %v4138, %v4134
  %v5043 = vpack.c.b16 %v4139, %v4135
  %v5044 = vpack.c.b16 %v4140, %v4136
  %v5045 = vpack.c.b16 %v4145, %v4141
  %v5046 = vpack.c.b16 %v4146, %v4142
  %v5047 = vpack.c.b16 %v4147, %v4143
  %v5048 = vpack.c.b16 %v4148, %v4144
  %v5049 = vpack.c.b16 %v4153, %v4149
  %v5050 = vpack.c.b16 %v4154, %v4150
  %v5051 = vpack.c.b16 %v4155, %v4151
  %v5052 = vpack.c.b16 %v4156, %v4152
  %v5053 = vpack.c.b16 %v4161, %v4157
  %v5054 = vpack.c.b16 %v4162, %v4158
  %v5055 = vpack.c.b16 %v4163, %v4159
  %v5056 = vpack.c.b16 %v4164, %v4160
  %v5057 = vpack.c.b16 %v4169, %v4165
  %v5058 = vpack.c.b16 %v4170, %v4166
  %v5059 = vpack.c.b16 %v4171, %v4167
  %v5060 = vpack.c.b16 %v4172, %v4168
  %v5061 = vpack.c.b16 %v4177, %v4173
  %v5062 = vpack.c.b16 %v4178, %v4174
  %v5063 = vpack.c.b16 %v4179, %v4175
  %v5064 = vpack.c.b16 %v4180, %v4176
  %v5065 = vpack.c.b16 %v4185, %v4181
  %v5066 = vpack.c.b16 %v4186, %v4182
  %v5067 = vpack.c.b16 %v4187, %v4183
  %v5068 = vpack.c.b16 %v4188, %v4184
  %v5069 = vpack.c.b16 %v4193, %v4189
  %v5070 = vpack.c.b16 %v4194, %v4190
  %v5071 = vpack.c.b16 %v4195, %v4191
  %v5072 = vpack.c.b16 %v4196, %v4192
  %v5073 = vpack.c.b16 %v4201, %v4197
  %v5074 = vpack.c.b16 %v4202, %v4198
  %v5075 = vpack.c.b16 %v4203, %v4199
  %v5076 = vpack.c.b16 %v4204, %v4200
  %v5077 = vpack.c.b16 %v4209, %v4205
  %v5078 = vpack.c.b16 %v4210, %v4206
  %v5079 = vpack.c.b16 %v4211, %v4207
  %v5080 = vpack.c.b16 %v4212, %v4208
  %v5081 = vpack.c.b16 %v4217, %v4213
  %v5082 = vpack.c.b16 %v4218, %v4214
  %v5083 = vpack.c.b16 %v4219, %v4215
  %v5084 = vpack.c.b16 %v4220, %v4216
  %v5085 = vpack.c.b16 %v4225, %v4221
  %v5086 = vpack.c.b16 %v4226, %v4222
  %v5087 = vpack.c.b16 %v4227, %v4223
  %v5088 = vpack.c.b16 %v4228, %v4224
  %v5089 = vpack.c.b16 %v4233, %v4229
  %v5090 = vpack.c.b16 %v4234, %v4230
  %v5091 = vpack.c.b16 %v4235, %v4231
  %v5092 = vpack.c.b16 %v4236, %v4232
  %v5093 = vpack.c.b16 %v4241, %v4237
  %v5094 = vpack.c.b16 %v4242, %v4238
  %v5095 = vpack.c.b16 %v4243, %v4239
  %v5096 = vpack.c.b16 %v4244, %v4240
  %v5097 = vpack.c.b16 %v4249, %v4245
  %v5098 = vpack.c.b16 %v4250, %v4246
  %v5099 = vpack.c.b16 %v4251, %v4247
  %v5100 = vpack.c.b16 %v4252, %v4248
  %v5101 = vpack.c.b16 %v4257, %v4253
  %v5102 = vpack.c.b16 %v4258, %v4254
  %v5103 = vpack.c.b16 %v4259, %v4255
  %v5104 = vpack.c.b16 %v4260, %v4256
  %v5105 = vpack.c.b16 %v4265, %v4261
  %v5106 = vpack.c.b16 %v4266, %v4262
  %v5107 = vpack.c.b16 %v4267, %v4263
  %v5108 = vpack.c.b16 %v4268, %v4264
  %v5109 = vpack.c.b16 %v4273, %v4269
  %v5110 = vpack.c.b16 %v4274, %v4270
  %v5111 = vpack.c.b16 %v4275, %v4271
  %v5112 = vpack.c.b16 %v4276, %v4272
  %v5113 = vpack.c.b16 %v4281, %v4277
  %v5114 = vpack.c.b16 %v4282, %v4278
  %v5115 = vpack.c.b16 %v4283, %v4279
  %v5116 = vpack.c.b16 %v4284, %v4280
  %v5117 = vpack.c.b16 %v4289, %v4285
  %v5118 = vpack.c.b16 %v4290, %v4286
  %v5119 = vpack.c.b16 %v4291, %v4287
  %v5120 = vpack.c.b16 %v4292, %v4288
  %v5121 = vpack.c.b16 %v4297, %v4293
  %v5122 = vpack.c.b16 %v4298, %v4294
  %v5123 = vpack.c.b16 %v4299, %v4295
  %v5124 = vpack.c.b16 %v4300, %v4296
  %v5125 = vpack.c.b16 %v4305, %v4301
  %v5126 = vpack.c.b16 %v4306, %v4302
  %v5127 = vpack.c.b16 %v4307, %v4303
  %v5128 = vpack.c.b16 %v4308, %v4304
  %v5129 = vpack.c.b16 %v4313, %v4309
  %v5130 = vpack.c.b16 %v4314, %v4310
  %v5131 = vpack.c.b16 %v4315, %v4311
  %v5132 = vpack.c.b16 %v4316, %v4312
  %v5133 = vpack.c.b16 %v4321, %v4317
  %v5134 = vpack.c.b16 %v4322, %v4318
  %v5135 = vpack.c.b16 %v4323, %v4319
  %v5136 = vpack.c.b16 %v4324, %v4320
  %v5137 = vpack.c.b16 %v4329, %v4325
  %v5138 = vpack.c.b16 %v4330, %v4326
  %v5139 = vpack.c.b16 %v4331, %v4327
  %v5140 = vpack.c.b16 %v4332, %v4328
  %v5141 = vpack.c.b16 %v4337, %v4333
  %v5142 = vpack.c.b16 %v4338, %v4334
  %v5143 = vpack.c.b16 %v4339, %v4335
  %v5144 = vpack.c.b16 %v4340, %v4336
  %v5145 = vpack.c.b16 %v4345, %v4341
  %v5146 = vpack.c.b16 %v4346, %v4342
  %v5147 = vpack.c.b16 %v4347, %v4343
  %v5148 = vpack.c.b16 %v4348, %v4344
  %v5149 = vpack.c.b16 %v4353, %v4349
  %v5150 = vpack.c.b16 %v4354, %v4350
  %v5151 = vpack.c.b16 %v4355, %v4351
  %v5152 = vpack.c.b16 %v4356, %v4352
  %v5153 = vpack.c.b16 %v4361, %v4357
  %v5154 = vpack.c.b16 %v4362, %v4358
  %v5155 = vpack.c.b16 %v4363, %v4359
  %v5156 = vpack.c.b16 %v4364, %v4360
  %v5157 = vpack.c.b16 %v4369, %v4365
  %v5158 = vpack.c.b16 %v4370, %v4366
  %v5159 = vpack.c.b16 %v4371, %v4367
  %v5160 = vpack.c.b16 %v4372, %v4368
  %v5161 = vpack.c.b16 %v4377, %v4373
  %v5162 = vpack.c.b16 %v4378, %v4374
  %v5163 = vpack.c.b16 %v4379, %v4375
  %v5164 = vpack.c.b16 %v4380, %v4376
  %vm5949 = vcmask 523264
  %v5951 = vsel %vm5949, %v1661, 0
  %v5954 = vsel %vm5949, %v1686, 0
  %v5957 = vsel %vm5949, %v1711, 0
  %v5960 = vsel %vm5949, %v1736, 0
  %v5963 = vsel %vm5949, %v1761, 0
  %v5966 = vsel %vm5949, %v1786, 0
  %v5969 = vsel %vm5949, %v1811, 0
  %v5972 = vsel %vm5949, %v1836, 0
  %5974 = vmatprep.subr.bf16.mxu0 %v4382
  %5975 = vmatpush1.bf16.msra.mxu0 %v4381
  %5976 = vmatprep.subr.bf16.mxu0 %v4386
  %5977 = vmatpush1.bf16.msra.mxu0 %v4385
  %5978 = vmatprep.subr.bf16.mxu0 %v4390
  %5979 = vmatpush1.bf16.msra.mxu0 %v4389
  %5980 = vmatprep.subr.bf16.mxu0 %v4394
  %5981 = vmatpush1.bf16.msra.mxu0 %v4393
  %5982 = vmatprep.subr.bf16.mxu0 %v4398
  %5983 = vmatpush1.bf16.msra.mxu0 %v4397
  %5984 = vmatprep.subr.bf16.mxu0 %v4402
  %5985 = vmatpush1.bf16.msra.mxu0 %v4401
  %5986 = vmatprep.subr.bf16.mxu0 %v4406
  %5987 = vmatpush1.bf16.msra.mxu0 %v4405
  %5988 = vmatprep.subr.bf16.mxu0 %v4410
  %5989 = vmatpush1.bf16.msra.mxu0 %v4409
  %5990 = vmatprep.subr.bf16.mxu0 %v4414
  %5991 = vmatpush1.bf16.msra.mxu0 %v4413
  %5992 = vmatprep.subr.bf16.mxu0 %v4418
  %5993 = vmatpush1.bf16.msra.mxu0 %v4417
  %5994 = vmatprep.subr.bf16.mxu0 %v4422
  %5995 = vmatpush1.bf16.msra.mxu0 %v4421
  %5996 = vmatprep.subr.bf16.mxu0 %v4426
  %5997 = vmatpush1.bf16.msra.mxu0 %v4425
  %5998 = vmatprep.subr.bf16.mxu0 %v4430
  %5999 = vmatpush1.bf16.msra.mxu0 %v4429
  %6000 = vmatprep.subr.bf16.mxu0 %v4434
  %6001 = vmatpush1.bf16.msra.mxu0 %v4433
  %6002 = vmatprep.subr.bf16.mxu0 %v4438
  %6003 = vmatpush1.bf16.msra.mxu0 %v4437
  %6004 = vmatprep.subr.bf16.mxu0 %v4442
  %6005 = vmatpush1.bf16.msra.mxu0 %v4441
  %6006 = vmatprep.mubr.bf16.mxu0 %v1638
  %6007 = vmatmul.mubr.bf16.gmra.mrb[0].mxu0 %v1637
  %v6008 = vpop.f32.mrb[0].mxu0
  %v6009 = vadd.f32 %v1012, %v6008
  %v6010 = vpop.f32.mrb[0].mxu0
  %v6011 = vadd.f32 %v1016, %v6010
  %v6012 = vpop.f32.mrb[0].mxu0
  %v6013 = vadd.f32 %v1012, %v6012
  %v6014 = vpop.f32.mrb[0].mxu0
  %v6015 = vadd.f32 %v1016, %v6014
  %6016 = vmatprep.mubr.bf16.mxu0 %v1663
  %6017 = vmatmul.mubr.bf16.gmra.mrb[0].mxu0 %v1662
  %v6018 = vpop.f32.mrb[0].mxu0
  %v6019 = vadd.f32 %v1012, %v6018
  %v6020 = vpop.f32.mrb[0].mxu0
  %v6021 = vadd.f32 %v1016, %v6020
  %v6022 = vpop.f32.mrb[0].mxu0
  %v6023 = vadd.f32 %v1012, %v6022
  %v6024 = vpop.f32.mrb[0].mxu0
  %v6025 = vadd.f32 %v1016, %v6024
  %6026 = vmatprep.mubr.bf16.mxu0 %v1688
  %6027 = vmatmul.mubr.bf16.gmra.mrb[0].mxu0 %v1687
  %v6028 = vpop.f32.mrb[0].mxu0
  %v6029 = vadd.f32 %v1012, %v6028
  %v6030 = vpop.f32.mrb[0].mxu0
  %v6031 = vadd.f32 %v1016, %v6030
  %v6032 = vpop.f32.mrb[0].mxu0
  %v6033 = vadd.f32 %v1012, %v6032
  %v6034 = vpop.f32.mrb[0].mxu0
  %v6035 = vadd.f32 %v1016, %v6034
  %6036 = vmatprep.mubr.bf16.mxu0 %v1713
  %6037 = vmatmul.mubr.bf16.gmra.mrb[0].mxu0 %v1712
  %v6038 = vpop.f32.mrb[0].mxu0
  %v6039 = vadd.f32 %v1012, %v6038
  %v6040 = vpop.f32.mrb[0].mxu0
  %v6041 = vadd.f32 %v1016, %v6040
  %v6042 = vpop.f32.mrb[0].mxu0
  %v6043 = vadd.f32 %v1012, %v6042
  %v6044 = vpop.f32.mrb[0].mxu0
  %v6045 = vadd.f32 %v1016, %v6044
  %6046 = vmatprep.mubr.bf16.mxu0 %v1738
  %6047 = vmatmul.mubr.bf16.gmra.mrb[0].mxu0 %v1737
  %v6048 = vpop.f32.mrb[0].mxu0
  %v6049 = vadd.f32 %v1012, %v6048
  %v6050 = vpop.f32.mrb[0].mxu0
  %v6051 = vadd.f32 %v1016, %v6050
  %v6052 = vpop.f32.mrb[0].mxu0
  %v6053 = vadd.f32 %v1012, %v6052
  %v6054 = vpop.f32.mrb[0].mxu0
  %v6055 = vadd.f32 %v1016, %v6054
  %6056 = vmatprep.mubr.bf16.mxu0 %v1763
  %6057 = vmatmul.mubr.bf16.gmra.mrb[0].mxu0 %v1762
  %v6058 = vpop.f32.mrb[0].mxu0
  %v6059 = vadd.f32 %v1012, %v6058
  %v6060 = vpop.f32.mrb[0].mxu0
  %v6061 = vadd.f32 %v1016, %v6060
  %v6062 = vpop.f32.mrb[0].mxu0
  %v6063 = vadd.f32 %v1012, %v6062
  %v6064 = vpop.f32.mrb[0].mxu0
  %v6065 = vadd.f32 %v1016, %v6064
  %6066 = vmatprep.mubr.bf16.mxu0 %v1788
  %6067 = vmatmul.mubr.bf16.gmra.mrb[0].mxu0 %v1787
  %v6068 = vpop.f32.mrb[0].mxu0
  %v6069 = vadd.f32 %v1012, %v6068
  %v6070 = vpop.f32.mrb[0].mxu0
  %v6071 = vadd.f32 %v1016, %v6070
  %v6072 = vpop.f32.mrb[0].mxu0
  %v6073 = vadd.f32 %v1012, %v6072
  %v6074 = vpop.f32.mrb[0].mxu0
  %v6075 = vadd.f32 %v1016, %v6074
  %6076 = vmatprep.mubr.bf16.mxu0 %v1813
  %6077 = vmatmul.mubr.bf16.gmra.mrb[0].mxu0 %v1812
  %v6078 = vpop.f32.mrb[0].mxu0
  %v6079 = vadd.f32 %v1012, %v6078
  %v6080 = vpop.f32.mrb[0].mxu0
  %v6081 = vadd.f32 %v1016, %v6080
  %v6082 = vpop.f32.mrb[0].mxu0
  %v6083 = vadd.f32 %v1012, %v6082
  %v6084 = vpop.f32.mrb[0].mxu0
  %v6085 = vadd.f32 %v1016, %v6084
  %6086 = vdwg.mxu0
  %6087 = vmatprep.subr.bf16.mxu0 %v4446
  %6088 = vmatpush1.bf16.msra.mxu0 %v4445
  %6089 = vmatprep.subr.bf16.mxu0 %v4450
  %6090 = vmatpush1.bf16.msra.mxu0 %v4449
  %6091 = vmatprep.subr.bf16.mxu0 %v4454
  %6092 = vmatpush1.bf16.msra.mxu0 %v4453
  %6093 = vmatprep.subr.bf16.mxu0 %v4458
  %6094 = vmatpush1.bf16.msra.mxu0 %v4457
  %6095 = vmatprep.subr.bf16.mxu0 %v4462
  %6096 = vmatpush1.bf16.msra.mxu0 %v4461
  %6097 = vmatprep.subr.bf16.mxu0 %v4466
  %6098 = vmatpush1.bf16.msra.mxu0 %v4465
  %6099 = vmatprep.subr.bf16.mxu0 %v4470
  %6100 = vmatpush1.bf16.msra.mxu0 %v4469
  %6101 = vmatprep.subr.bf16.mxu0 %v4474
  %6102 = vmatpush1.bf16.msra.mxu0 %v4473
  %6103 = vmatprep.subr.bf16.mxu0 %v4478
  %6104 = vmatpush1.bf16.msra.mxu0 %v4477
  %6105 = vmatprep.subr.bf16.mxu0 %v4482
  %6106 = vmatpush1.bf16.msra.mxu0 %v4481
  %6107 = vmatprep.subr.bf16.mxu0 %v4486
  %6108 = vmatpush1.bf16.msra.mxu0 %v4485
  %6109 = vmatprep.subr.bf16.mxu0 %v4490
  %6110 = vmatpush1.bf16.msra.mxu0 %v4489
  %6111 = vmatprep.subr.bf16.mxu0 %v4494
  %6112 = vmatpush1.bf16.msra.mxu0 %v4493
  %6113 = vmatprep.subr.bf16.mxu0 %v4498
  %6114 = vmatpush1.bf16.msra.mxu0 %v4497
  %6115 = vmatprep.subr.bf16.mxu0 %v4502
  %6116 = vmatpush1.bf16.msra.mxu0 %v4501
  %6117 = vmatprep.subr.bf16.mxu0 %v4506
  %6118 = vmatpush1.bf16.msra.mxu0 %v4505
  %6119 = vmatprep.mubr.bf16.mxu0 %v1640
  %6120 = vmatmul.mubr.bf16.gmra.mrb[0].mxu0 %v1639
  %v6121 = vpop.f32.mrb[0].mxu0
  %v6122 = vadd.f32 %v6009, %v6121
  %v6123 = vpop.f32.mrb[0].mxu0
  %v6124 = vadd.f32 %v6011, %v6123
  %v6125 = vpop.f32.mrb[0].mxu0
  %v6126 = vadd.f32 %v6013, %v6125
  %v6127 = vpop.f32.mrb[0].mxu0
  %v6128 = vadd.f32 %v6015, %v6127
  %6129 = vmatprep.mubr.bf16.mxu0 %v1665
  %6130 = vmatmul.mubr.bf16.gmra.mrb[0].mxu0 %v1664
  %v6131 = vpop.f32.mrb[0].mxu0
  %v6132 = vadd.f32 %v6019, %v6131
  %v6133 = vpop.f32.mrb[0].mxu0
  %v6134 = vadd.f32 %v6021, %v6133
  %v6135 = vpop.f32.mrb[0].mxu0
  %v6136 = vadd.f32 %v6023, %v6135
  %v6137 = vpop.f32.mrb[0].mxu0
  %v6138 = vadd.f32 %v6025, %v6137
  %6139 = vmatprep.mubr.bf16.mxu0 %v1690
  %6140 = vmatmul.mubr.bf16.gmra.mrb[0].mxu0 %v1689
  %v6141 = vpop.f32.mrb[0].mxu0
  %v6142 = vadd.f32 %v6029, %v6141
  %v6143 = vpop.f32.mrb[0].mxu0
  %v6144 = vadd.f32 %v6031, %v6143
  %v6145 = vpop.f32.mrb[0].mxu0
  %v6146 = vadd.f32 %v6033, %v6145
  %v6147 = vpop.f32.mrb[0].mxu0
  %v6148 = vadd.f32 %v6035, %v6147
  %6149 = vmatprep.mubr.bf16.mxu0 %v1715
  %6150 = vmatmul.mubr.bf16.gmra.mrb[0].mxu0 %v1714
  %v6151 = vpop.f32.mrb[0].mxu0
  %v6152 = vadd.f32 %v6039, %v6151
  %v6153 = vpop.f32.mrb[0].mxu0
  %v6154 = vadd.f32 %v6041, %v6153
  %v6155 = vpop.f32.mrb[0].mxu0
  %v6156 = vadd.f32 %v6043, %v6155
  %v6157 = vpop.f32.mrb[0].mxu0
  %v6158 = vadd.f32 %v6045, %v6157
  %6159 = vmatprep.mubr.bf16.mxu0 %v1740
  %6160 = vmatmul.mubr.bf16.gmra.mrb[0].mxu0 %v1739
  %v6161 = vpop.f32.mrb[0].mxu0
  %v6162 = vadd.f32 %v6049, %v6161
  %v6163 = vpop.f32.mrb[0].mxu0
  %v6164 = vadd.f32 %v6051, %v6163
  %v6165 = vpop.f32.mrb[0].mxu0
  %v6166 = vadd.f32 %v6053, %v6165
  %v6167 = vpop.f32.mrb[0].mxu0
  %v6168 = vadd.f32 %v6055, %v6167
  %6169 = vmatprep.mubr.bf16.mxu0 %v1765
  %6170 = vmatmul.mubr.bf16.gmra.mrb[0].mxu0 %v1764
  %v6171 = vpop.f32.mrb[0].mxu0
  %v6172 = vadd.f32 %v6059, %v6171
  %v6173 = vpop.f32.mrb[0].mxu0
  %v6174 = vadd.f32 %v6061, %v6173
  %v6175 = vpop.f32.mrb[0].mxu0
  %v6176 = vadd.f32 %v6063, %v6175
  %v6177 = vpop.f32.mrb[0].mxu0
  %v6178 = vadd.f32 %v6065, %v6177
  %6179 = vmatprep.mubr.bf16.mxu0 %v1790
  %6180 = vmatmul.mubr.bf16.gmra.mrb[0].mxu0 %v1789
  %v6181 = vpop.f32.mrb[0].mxu0
  %v6182 = vadd.f32 %v6069, %v6181
  %v6183 = vpop.f32.mrb[0].mxu0
  %v6184 = vadd.f32 %v6071, %v6183
  %v6185 = vpop.f32.mrb[0].mxu0
  %v6186 = vadd.f32 %v6073, %v6185
  %v6187 = vpop.f32.mrb[0].mxu0
  %v6188 = vadd.f32 %v6075, %v6187
  %6189 = vmatprep.mubr.bf16.mxu0 %v1815
  %6190 = vmatmul.mubr.bf16.gmra.mrb[0].mxu0 %v1814
  %v6191 = vpop.f32.mrb[0].mxu0
  %v6192 = vadd.f32 %v6079, %v6191
  %v6193 = vpop.f32.mrb[0].mxu0
  %v6194 = vadd.f32 %v6081, %v6193
  %v6195 = vpop.f32.mrb[0].mxu0
  %v6196 = vadd.f32 %v6083, %v6195
  %v6197 = vpop.f32.mrb[0].mxu0
  %v6198 = vadd.f32 %v6085, %v6197
  %6199 = vdwg.mxu0
  %6200 = vmatprep.subr.bf16.mxu0 %v4510
  %6201 = vmatpush1.bf16.msra.mxu0 %v4509
  %6202 = vmatprep.subr.bf16.mxu0 %v4514
  %6203 = vmatpush1.bf16.msra.mxu0 %v4513
  %6204 = vmatprep.subr.bf16.mxu0 %v4518
  %6205 = vmatpush1.bf16.msra.mxu0 %v4517
  %6206 = vmatprep.subr.bf16.mxu0 %v4522
  %6207 = vmatpush1.bf16.msra.mxu0 %v4521
  %6208 = vmatprep.subr.bf16.mxu0 %v4526
  %6209 = vmatpush1.bf16.msra.mxu0 %v4525
  %6210 = vmatprep.subr.bf16.mxu0 %v4530
  %6211 = vmatpush1.bf16.msra.mxu0 %v4529
  %6212 = vmatprep.subr.bf16.mxu0 %v4534
  %6213 = vmatpush1.bf16.msra.mxu0 %v4533
  %6214 = vmatprep.subr.bf16.mxu0 %v4538
  %6215 = vmatpush1.bf16.msra.mxu0 %v4537
  %6216 = vmatprep.subr.bf16.mxu0 %v4542
  %6217 = vmatpush1.bf16.msra.mxu0 %v4541
  %6218 = vmatprep.subr.bf16.mxu0 %v4546
  %6219 = vmatpush1.bf16.msra.mxu0 %v4545
  %6220 = vmatprep.subr.bf16.mxu0 %v4550
  %6221 = vmatpush1.bf16.msra.mxu0 %v4549
  %6222 = vmatprep.subr.bf16.mxu0 %v4554
  %6223 = vmatpush1.bf16.msra.mxu0 %v4553
  %6224 = vmatprep.subr.bf16.mxu0 %v4558
  %6225 = vmatpush1.bf16.msra.mxu0 %v4557
  %6226 = vmatprep.subr.bf16.mxu0 %v4562
  %6227 = vmatpush1.bf16.msra.mxu0 %v4561
  %6228 = vmatprep.subr.bf16.mxu0 %v4566
  %6229 = vmatpush1.bf16.msra.mxu0 %v4565
  %6230 = vmatprep.subr.bf16.mxu0 %v4570
  %6231 = vmatpush1.bf16.msra.mxu0 %v4569
  %6232 = vmatprep.mubr.bf16.mxu0 %v1642
  %6233 = vmatmul.mubr.bf16.gmra.mrb[0].mxu0 %v1641
  %v6234 = vpop.f32.mrb[0].mxu0
  %v6235 = vadd.f32 %v6122, %v6234
  %v6236 = vpop.f32.mrb[0].mxu0
  %v6237 = vadd.f32 %v6124, %v6236
  %v6238 = vpop.f32.mrb[0].mxu0
  %v6239 = vadd.f32 %v6126, %v6238
  %v6240 = vpop.f32.mrb[0].mxu0
  %v6241 = vadd.f32 %v6128, %v6240
  %6242 = vmatprep.mubr.bf16.mxu0 %v1667
  %6243 = vmatmul.mubr.bf16.gmra.mrb[0].mxu0 %v1666
  %v6244 = vpop.f32.mrb[0].mxu0
  %v6245 = vadd.f32 %v6132, %v6244
  %v6246 = vpop.f32.mrb[0].mxu0
  %v6247 = vadd.f32 %v6134, %v6246
  %v6248 = vpop.f32.mrb[0].mxu0
  %v6249 = vadd.f32 %v6136, %v6248
  %v6250 = vpop.f32.mrb[0].mxu0
  %v6251 = vadd.f32 %v6138, %v6250
  %6252 = vmatprep.mubr.bf16.mxu0 %v1692
  %6253 = vmatmul.mubr.bf16.gmra.mrb[0].mxu0 %v1691
  %v6254 = vpop.f32.mrb[0].mxu0
  %v6255 = vadd.f32 %v6142, %v6254
  %v6256 = vpop.f32.mrb[0].mxu0
  %v6257 = vadd.f32 %v6144, %v6256
  %v6258 = vpop.f32.mrb[0].mxu0
  %v6259 = vadd.f32 %v6146, %v6258
  %v6260 = vpop.f32.mrb[0].mxu0
  %v6261 = vadd.f32 %v6148, %v6260
  %6262 = vmatprep.mubr.bf16.mxu0 %v1717
  %6263 = vmatmul.mubr.bf16.gmra.mrb[0].mxu0 %v1716
  %v6264 = vpop.f32.mrb[0].mxu0
  %v6265 = vadd.f32 %v6152, %v6264
  %v6266 = vpop.f32.mrb[0].mxu0
  %v6267 = vadd.f32 %v6154, %v6266
  %v6268 = vpop.f32.mrb[0].mxu0
  %v6269 = vadd.f32 %v6156, %v6268
  %v6270 = vpop.f32.mrb[0].mxu0
  %v6271 = vadd.f32 %v6158, %v6270
  %6272 = vmatprep.mubr.bf16.mxu0 %v1742
  %6273 = vmatmul.mubr.bf16.gmra.mrb[0].mxu0 %v1741
  %v6274 = vpop.f32.mrb[0].mxu0
  %v6275 = vadd.f32 %v6162, %v6274
  %v6276 = vpop.f32.mrb[0].mxu0
  %v6277 = vadd.f32 %v6164, %v6276
  %v6278 = vpop.f32.mrb[0].mxu0
  %v6279 = vadd.f32 %v6166, %v6278
  %v6280 = vpop.f32.mrb[0].mxu0
  %v6281 = vadd.f32 %v6168, %v6280
  %6282 = vmatprep.mubr.bf16.mxu0 %v1767
  %6283 = vmatmul.mubr.bf16.gmra.mrb[0].mxu0 %v1766
  %v6284 = vpop.f32.mrb[0].mxu0
  %v6285 = vadd.f32 %v6172, %v6284
  %v6286 = vpop.f32.mrb[0].mxu0
  %v6287 = vadd.f32 %v6174, %v6286
  %v6288 = vpop.f32.mrb[0].mxu0
  %v6289 = vadd.f32 %v6176, %v6288
  %v6290 = vpop.f32.mrb[0].mxu0
  %v6291 = vadd.f32 %v6178, %v6290
  %6292 = vmatprep.mubr.bf16.mxu0 %v1792
  %6293 = vmatmul.mubr.bf16.gmra.mrb[0].mxu0 %v1791
  %v6294 = vpop.f32.mrb[0].mxu0
  %v6295 = vadd.f32 %v6182, %v6294
  %v6296 = vpop.f32.mrb[0].mxu0
  %v6297 = vadd.f32 %v6184, %v6296
  %v6298 = vpop.f32.mrb[0].mxu0
  %v6299 = vadd.f32 %v6186, %v6298
  %v6300 = vpop.f32.mrb[0].mxu0
  %v6301 = vadd.f32 %v6188, %v6300
  %6302 = vmatprep.mubr.bf16.mxu0 %v1817
  %6303 = vmatmul.mubr.bf16.gmra.mrb[0].mxu0 %v1816
  %v6304 = vpop.f32.mrb[0].mxu0
  %v6305 = vadd.f32 %v6192, %v6304
  %v6306 = vpop.f32.mrb[0].mxu0
  %v6307 = vadd.f32 %v6194, %v6306
  %v6308 = vpop.f32.mrb[0].mxu0
  %v6309 = vadd.f32 %v6196, %v6308
  %v6310 = vpop.f32.mrb[0].mxu0
  %v6311 = vadd.f32 %v6198, %v6310
  %6312 = vdwg.mxu0
  %6313 = vmatprep.subr.bf16.mxu0 %v4574
  %6314 = vmatpush1.bf16.msra.mxu0 %v4573
  %6315 = vmatprep.subr.bf16.mxu0 %v4578
  %6316 = vmatpush1.bf16.msra.mxu0 %v4577
  %6317 = vmatprep.subr.bf16.mxu0 %v4582
  %6318 = vmatpush1.bf16.msra.mxu0 %v4581
  %6319 = vmatprep.subr.bf16.mxu0 %v4586
  %6320 = vmatpush1.bf16.msra.mxu0 %v4585
  %6321 = vmatprep.subr.bf16.mxu0 %v4590
  %6322 = vmatpush1.bf16.msra.mxu0 %v4589
  %6323 = vmatprep.subr.bf16.mxu0 %v4594
  %6324 = vmatpush1.bf16.msra.mxu0 %v4593
  %6325 = vmatprep.subr.bf16.mxu0 %v4598
  %6326 = vmatpush1.bf16.msra.mxu0 %v4597
  %6327 = vmatprep.subr.bf16.mxu0 %v4602
  %6328 = vmatpush1.bf16.msra.mxu0 %v4601
  %6329 = vmatprep.subr.bf16.mxu0 %v4606
  %6330 = vmatpush1.bf16.msra.mxu0 %v4605
  %6331 = vmatprep.subr.bf16.mxu0 %v4610
  %6332 = vmatpush1.bf16.msra.mxu0 %v4609
  %6333 = vmatprep.subr.bf16.mxu0 %v4614
  %6334 = vmatpush1.bf16.msra.mxu0 %v4613
  %6335 = vmatprep.subr.bf16.mxu0 %v4618
  %6336 = vmatpush1.bf16.msra.mxu0 %v4617
  %6337 = vmatprep.subr.bf16.mxu0 %v4622
  %6338 = vmatpush1.bf16.msra.mxu0 %v4621
  %6339 = vmatprep.subr.bf16.mxu0 %v4626
  %6340 = vmatpush1.bf16.msra.mxu0 %v4625
  %6341 = vmatprep.subr.bf16.mxu0 %v4630
  %6342 = vmatpush1.bf16.msra.mxu0 %v4629
  %6343 = vmatprep.subr.bf16.mxu0 %v4634
  %6344 = vmatpush1.bf16.msra.mxu0 %v4633
  %6345 = vmatprep.mubr.bf16.mxu0 %v1644
  %6346 = vmatmul.mubr.bf16.gmra.mrb[0].mxu0 %v1643
  %v6347 = vpop.f32.mrb[0].mxu0
  %v6348 = vadd.f32 %v6235, %v6347
  %v6349 = vpop.f32.mrb[0].mxu0
  %v6350 = vadd.f32 %v6237, %v6349
  %v6351 = vpop.f32.mrb[0].mxu0
  %v6352 = vadd.f32 %v6239, %v6351
  %v6353 = vpop.f32.mrb[0].mxu0
  %v6354 = vadd.f32 %v6241, %v6353
  %6355 = vmatprep.mubr.bf16.mxu0 %v1669
  %6356 = vmatmul.mubr.bf16.gmra.mrb[0].mxu0 %v1668
  %v6357 = vpop.f32.mrb[0].mxu0
  %v6358 = vadd.f32 %v6245, %v6357
  %v6359 = vpop.f32.mrb[0].mxu0
  %v6360 = vadd.f32 %v6247, %v6359
  %v6361 = vpop.f32.mrb[0].mxu0
  %v6362 = vadd.f32 %v6249, %v6361
  %v6363 = vpop.f32.mrb[0].mxu0
  %v6364 = vadd.f32 %v6251, %v6363
  %6365 = vmatprep.mubr.bf16.mxu0 %v1694
  %6366 = vmatmul.mubr.bf16.gmra.mrb[0].mxu0 %v1693
  %v6367 = vpop.f32.mrb[0].mxu0
  %v6368 = vadd.f32 %v6255, %v6367
  %v6369 = vpop.f32.mrb[0].mxu0
  %v6370 = vadd.f32 %v6257, %v6369
  %v6371 = vpop.f32.mrb[0].mxu0
  %v6372 = vadd.f32 %v6259, %v6371
  %v6373 = vpop.f32.mrb[0].mxu0
  %v6374 = vadd.f32 %v6261, %v6373
  %6375 = vmatprep.mubr.bf16.mxu0 %v1719
  %6376 = vmatmul.mubr.bf16.gmra.mrb[0].mxu0 %v1718
  %v6377 = vpop.f32.mrb[0].mxu0
  %v6378 = vadd.f32 %v6265, %v6377
  %v6379 = vpop.f32.mrb[0].mxu0
  %v6380 = vadd.f32 %v6267, %v6379
  %v6381 = vpop.f32.mrb[0].mxu0
  %v6382 = vadd.f32 %v6269, %v6381
  %v6383 = vpop.f32.mrb[0].mxu0
  %v6384 = vadd.f32 %v6271, %v6383
  %6385 = vmatprep.mubr.bf16.mxu0 %v1744
  %6386 = vmatmul.mubr.bf16.gmra.mrb[0].mxu0 %v1743
  %v6387 = vpop.f32.mrb[0].mxu0
  %v6388 = vadd.f32 %v6275, %v6387
  %v6389 = vpop.f32.mrb[0].mxu0
  %v6390 = vadd.f32 %v6277, %v6389
  %v6391 = vpop.f32.mrb[0].mxu0
  %v6392 = vadd.f32 %v6279, %v6391
  %v6393 = vpop.f32.mrb[0].mxu0
  %v6394 = vadd.f32 %v6281, %v6393
  %6395 = vmatprep.mubr.bf16.mxu0 %v1769
  %6396 = vmatmul.mubr.bf16.gmra.mrb[0].mxu0 %v1768
  %v6397 = vpop.f32.mrb[0].mxu0
  %v6398 = vadd.f32 %v6285, %v6397
  %v6399 = vpop.f32.mrb[0].mxu0
  %v6400 = vadd.f32 %v6287, %v6399
  %v6401 = vpop.f32.mrb[0].mxu0
  %v6402 = vadd.f32 %v6289, %v6401
  %v6403 = vpop.f32.mrb[0].mxu0
  %v6404 = vadd.f32 %v6291, %v6403
  %6405 = vmatprep.mubr.bf16.mxu0 %v1794
  %6406 = vmatmul.mubr.bf16.gmra.mrb[0].mxu0 %v1793
  %v6407 = vpop.f32.mrb[0].mxu0
  %v6408 = vadd.f32 %v6295, %v6407
  %v6409 = vpop.f32.mrb[0].mxu0
  %v6410 = vadd.f32 %v6297, %v6409
  %v6411 = vpop.f32.mrb[0].mxu0
  %v6412 = vadd.f32 %v6299, %v6411
  %v6413 = vpop.f32.mrb[0].mxu0
  %v6414 = vadd.f32 %v6301, %v6413
  %6415 = vmatprep.mubr.bf16.mxu0 %v1819
  %6416 = vmatmul.mubr.bf16.gmra.mrb[0].mxu0 %v1818
  %v6417 = vpop.f32.mrb[0].mxu0
  %v6418 = vadd.f32 %v6305, %v6417
  %v6419 = vpop.f32.mrb[0].mxu0
  %v6420 = vadd.f32 %v6307, %v6419
  %v6421 = vpop.f32.mrb[0].mxu0
  %v6422 = vadd.f32 %v6309, %v6421
  %v6423 = vpop.f32.mrb[0].mxu0
  %v6424 = vadd.f32 %v6311, %v6423
  %6425 = vdwg.mxu0
  %6426 = vmatprep.subr.bf16.mxu0 %v4638
  %6427 = vmatpush1.bf16.msra.mxu0 %v4637
  %6428 = vmatprep.subr.bf16.mxu0 %v4642
  %6429 = vmatpush1.bf16.msra.mxu0 %v4641
  %6430 = vmatprep.subr.bf16.mxu0 %v4646
  %6431 = vmatpush1.bf16.msra.mxu0 %v4645
  %6432 = vmatprep.subr.bf16.mxu0 %v4650
  %6433 = vmatpush1.bf16.msra.mxu0 %v4649
  %6434 = vmatprep.subr.bf16.mxu0 %v4654
  %6435 = vmatpush1.bf16.msra.mxu0 %v4653
  %6436 = vmatprep.subr.bf16.mxu0 %v4658
  %6437 = vmatpush1.bf16.msra.mxu0 %v4657
  %6438 = vmatprep.subr.bf16.mxu0 %v4662
  %6439 = vmatpush1.bf16.msra.mxu0 %v4661
  %6440 = vmatprep.subr.bf16.mxu0 %v4666
  %6441 = vmatpush1.bf16.msra.mxu0 %v4665
  %6442 = vmatprep.subr.bf16.mxu0 %v4670
  %6443 = vmatpush1.bf16.msra.mxu0 %v4669
  %6444 = vmatprep.subr.bf16.mxu0 %v4674
  %6445 = vmatpush1.bf16.msra.mxu0 %v4673
  %6446 = vmatprep.subr.bf16.mxu0 %v4678
  %6447 = vmatpush1.bf16.msra.mxu0 %v4677
  %6448 = vmatprep.subr.bf16.mxu0 %v4682
  %6449 = vmatpush1.bf16.msra.mxu0 %v4681
  %6450 = vmatprep.subr.bf16.mxu0 %v4686
  %6451 = vmatpush1.bf16.msra.mxu0 %v4685
  %6452 = vmatprep.subr.bf16.mxu0 %v4690
  %6453 = vmatpush1.bf16.msra.mxu0 %v4689
  %6454 = vmatprep.subr.bf16.mxu0 %v4694
  %6455 = vmatpush1.bf16.msra.mxu0 %v4693
  %6456 = vmatprep.subr.bf16.mxu0 %v4698
  %6457 = vmatpush1.bf16.msra.mxu0 %v4697
  %6458 = vmatprep.mubr.bf16.mxu0 %v1646
  %6459 = vmatmul.mubr.bf16.gmra.mrb[0].mxu0 %v1645
  %v6460 = vpop.f32.mrb[0].mxu0
  %v6461 = vadd.f32 %v6348, %v6460
  %v6462 = vpop.f32.mrb[0].mxu0
  %v6463 = vadd.f32 %v6350, %v6462
  %v6464 = vpop.f32.mrb[0].mxu0
  %v6465 = vadd.f32 %v6352, %v6464
  %v6466 = vpop.f32.mrb[0].mxu0
  %v6467 = vadd.f32 %v6354, %v6466
  %6468 = vmatprep.mubr.bf16.mxu0 %v1671
  %6469 = vmatmul.mubr.bf16.gmra.mrb[0].mxu0 %v1670
  %v6470 = vpop.f32.mrb[0].mxu0
  %v6471 = vadd.f32 %v6358, %v6470
  %v6472 = vpop.f32.mrb[0].mxu0
  %v6473 = vadd.f32 %v6360, %v6472
  %v6474 = vpop.f32.mrb[0].mxu0
  %v6475 = vadd.f32 %v6362, %v6474
  %v6476 = vpop.f32.mrb[0].mxu0
  %v6477 = vadd.f32 %v6364, %v6476
  %6478 = vmatprep.mubr.bf16.mxu0 %v1696
  %6479 = vmatmul.mubr.bf16.gmra.mrb[0].mxu0 %v1695
  %v6480 = vpop.f32.mrb[0].mxu0
  %v6481 = vadd.f32 %v6368, %v6480
  %v6482 = vpop.f32.mrb[0].mxu0
  %v6483 = vadd.f32 %v6370, %v6482
  %v6484 = vpop.f32.mrb[0].mxu0
  %v6485 = vadd.f32 %v6372, %v6484
  %v6486 = vpop.f32.mrb[0].mxu0
  %v6487 = vadd.f32 %v6374, %v6486
  %6488 = vmatprep.mubr.bf16.mxu0 %v1721
  %6489 = vmatmul.mubr.bf16.gmra.mrb[0].mxu0 %v1720
  %v6490 = vpop.f32.mrb[0].mxu0
  %v6491 = vadd.f32 %v6378, %v6490
  %v6492 = vpop.f32.mrb[0].mxu0
  %v6493 = vadd.f32 %v6380, %v6492
  %v6494 = vpop.f32.mrb[0].mxu0
  %v6495 = vadd.f32 %v6382, %v6494
  %v6496 = vpop.f32.mrb[0].mxu0
  %v6497 = vadd.f32 %v6384, %v6496
  %6498 = vmatprep.mubr.bf16.mxu0 %v1746
  %6499 = vmatmul.mubr.bf16.gmra.mrb[0].mxu0 %v1745
  %v6500 = vpop.f32.mrb[0].mxu0
  %v6501 = vadd.f32 %v6388, %v6500
  %v6502 = vpop.f32.mrb[0].mxu0
  %v6503 = vadd.f32 %v6390, %v6502
  %v6504 = vpop.f32.mrb[0].mxu0
  %v6505 = vadd.f32 %v6392, %v6504
  %v6506 = vpop.f32.mrb[0].mxu0
  %v6507 = vadd.f32 %v6394, %v6506
  %6508 = vmatprep.mubr.bf16.mxu0 %v1771
  %6509 = vmatmul.mubr.bf16.gmra.mrb[0].mxu0 %v1770
  %v6510 = vpop.f32.mrb[0].mxu0
  %v6511 = vadd.f32 %v6398, %v6510
  %v6512 = vpop.f32.mrb[0].mxu0
  %v6513 = vadd.f32 %v6400, %v6512
  %v6514 = vpop.f32.mrb[0].mxu0
  %v6515 = vadd.f32 %v6402, %v6514
  %v6516 = vpop.f32.mrb[0].mxu0
  %v6517 = vadd.f32 %v6404, %v6516
  %6518 = vmatprep.mubr.bf16.mxu0 %v1796
  %6519 = vmatmul.mubr.bf16.gmra.mrb[0].mxu0 %v1795
  %v6520 = vpop.f32.mrb[0].mxu0
  %v6521 = vadd.f32 %v6408, %v6520
  %v6522 = vpop.f32.mrb[0].mxu0
  %v6523 = vadd.f32 %v6410, %v6522
  %v6524 = vpop.f32.mrb[0].mxu0
  %v6525 = vadd.f32 %v6412, %v6524
  %v6526 = vpop.f32.mrb[0].mxu0
  %v6527 = vadd.f32 %v6414, %v6526
  %6528 = vmatprep.mubr.bf16.mxu0 %v1821
  %6529 = vmatmul.mubr.bf16.gmra.mrb[0].mxu0 %v1820
  %v6530 = vpop.f32.mrb[0].mxu0
  %v6531 = vadd.f32 %v6418, %v6530
  %v6532 = vpop.f32.mrb[0].mxu0
  %v6533 = vadd.f32 %v6420, %v6532
  %v6534 = vpop.f32.mrb[0].mxu0
  %v6535 = vadd.f32 %v6422, %v6534
  %v6536 = vpop.f32.mrb[0].mxu0
  %v6537 = vadd.f32 %v6424, %v6536
  %6538 = vdwg.mxu0
  %6539 = vmatprep.subr.bf16.mxu0 %v4702
  %6540 = vmatpush1.bf16.msra.mxu0 %v4701
  %6541 = vmatprep.subr.bf16.mxu0 %v4706
  %6542 = vmatpush1.bf16.msra.mxu0 %v4705
  %6543 = vmatprep.subr.bf16.mxu0 %v4710
  %6544 = vmatpush1.bf16.msra.mxu0 %v4709
  %6545 = vmatprep.subr.bf16.mxu0 %v4714
  %6546 = vmatpush1.bf16.msra.mxu0 %v4713
  %6547 = vmatprep.subr.bf16.mxu0 %v4718
  %6548 = vmatpush1.bf16.msra.mxu0 %v4717
  %6549 = vmatprep.subr.bf16.mxu0 %v4722
  %6550 = vmatpush1.bf16.msra.mxu0 %v4721
  %6551 = vmatprep.subr.bf16.mxu0 %v4726
  %6552 = vmatpush1.bf16.msra.mxu0 %v4725
  %6553 = vmatprep.subr.bf16.mxu0 %v4730
  %6554 = vmatpush1.bf16.msra.mxu0 %v4729
  %6555 = vmatprep.subr.bf16.mxu0 %v4734
  %6556 = vmatpush1.bf16.msra.mxu0 %v4733
  %6557 = vmatprep.subr.bf16.mxu0 %v4738
  %6558 = vmatpush1.bf16.msra.mxu0 %v4737
  %6559 = vmatprep.subr.bf16.mxu0 %v4742
  %6560 = vmatpush1.bf16.msra.mxu0 %v4741
  %6561 = vmatprep.subr.bf16.mxu0 %v4746
  %6562 = vmatpush1.bf16.msra.mxu0 %v4745
  %6563 = vmatprep.subr.bf16.mxu0 %v4750
  %6564 = vmatpush1.bf16.msra.mxu0 %v4749
  %6565 = vmatprep.subr.bf16.mxu0 %v4754
  %6566 = vmatpush1.bf16.msra.mxu0 %v4753
  %6567 = vmatprep.subr.bf16.mxu0 %v4758
  %6568 = vmatpush1.bf16.msra.mxu0 %v4757
  %6569 = vmatprep.subr.bf16.mxu0 %v4762
  %6570 = vmatpush1.bf16.msra.mxu0 %v4761
  %6571 = vmatprep.mubr.bf16.mxu0 %v1648
  %6572 = vmatmul.mubr.bf16.gmra.mrb[0].mxu0 %v1647
  %v6573 = vpop.f32.mrb[0].mxu0
  %v6574 = vadd.f32 %v6461, %v6573
  %v6575 = vpop.f32.mrb[0].mxu0
  %v6576 = vadd.f32 %v6463, %v6575
  %v6577 = vpop.f32.mrb[0].mxu0
  %v6578 = vadd.f32 %v6465, %v6577
  %v6579 = vpop.f32.mrb[0].mxu0
  %v6580 = vadd.f32 %v6467, %v6579
  %6581 = vmatprep.mubr.bf16.mxu0 %v1673
  %6582 = vmatmul.mubr.bf16.gmra.mrb[0].mxu0 %v1672
  %v6583 = vpop.f32.mrb[0].mxu0
  %v6584 = vadd.f32 %v6471, %v6583
  %v6585 = vpop.f32.mrb[0].mxu0
  %v6586 = vadd.f32 %v6473, %v6585
  %v6587 = vpop.f32.mrb[0].mxu0
  %v6588 = vadd.f32 %v6475, %v6587
  %v6589 = vpop.f32.mrb[0].mxu0
  %v6590 = vadd.f32 %v6477, %v6589
  %6591 = vmatprep.mubr.bf16.mxu0 %v1698
  %6592 = vmatmul.mubr.bf16.gmra.mrb[0].mxu0 %v1697
  %v6593 = vpop.f32.mrb[0].mxu0
  %v6594 = vadd.f32 %v6481, %v6593
  %v6595 = vpop.f32.mrb[0].mxu0
  %v6596 = vadd.f32 %v6483, %v6595
  %v6597 = vpop.f32.mrb[0].mxu0
  %v6598 = vadd.f32 %v6485, %v6597
  %v6599 = vpop.f32.mrb[0].mxu0
  %v6600 = vadd.f32 %v6487, %v6599
  %6601 = vmatprep.mubr.bf16.mxu0 %v1723
  %6602 = vmatmul.mubr.bf16.gmra.mrb[0].mxu0 %v1722
  %v6603 = vpop.f32.mrb[0].mxu0
  %v6604 = vadd.f32 %v6491, %v6603
  %v6605 = vpop.f32.mrb[0].mxu0
  %v6606 = vadd.f32 %v6493, %v6605
  %v6607 = vpop.f32.mrb[0].mxu0
  %v6608 = vadd.f32 %v6495, %v6607
  %v6609 = vpop.f32.mrb[0].mxu0
  %v6610 = vadd.f32 %v6497, %v6609
  %6611 = vmatprep.mubr.bf16.mxu0 %v1748
  %6612 = vmatmul.mubr.bf16.gmra.mrb[0].mxu0 %v1747
  %v6613 = vpop.f32.mrb[0].mxu0
  %v6614 = vadd.f32 %v6501, %v6613
  %v6615 = vpop.f32.mrb[0].mxu0
  %v6616 = vadd.f32 %v6503, %v6615
  %v6617 = vpop.f32.mrb[0].mxu0
  %v6618 = vadd.f32 %v6505, %v6617
  %v6619 = vpop.f32.mrb[0].mxu0
  %v6620 = vadd.f32 %v6507, %v6619
  %6621 = vmatprep.mubr.bf16.mxu0 %v1773
  %6622 = vmatmul.mubr.bf16.gmra.mrb[0].mxu0 %v1772
  %v6623 = vpop.f32.mrb[0].mxu0
  %v6624 = vadd.f32 %v6511, %v6623
  %v6625 = vpop.f32.mrb[0].mxu0
  %v6626 = vadd.f32 %v6513, %v6625
  %v6627 = vpop.f32.mrb[0].mxu0
  %v6628 = vadd.f32 %v6515, %v6627
  %v6629 = vpop.f32.mrb[0].mxu0
  %v6630 = vadd.f32 %v6517, %v6629
  %6631 = vmatprep.mubr.bf16.mxu0 %v1798
  %6632 = vmatmul.mubr.bf16.gmra.mrb[0].mxu0 %v1797
  %v6633 = vpop.f32.mrb[0].mxu0
  %v6634 = vadd.f32 %v6521, %v6633
  %v6635 = vpop.f32.mrb[0].mxu0
  %v6636 = vadd.f32 %v6523, %v6635
  %v6637 = vpop.f32.mrb[0].mxu0
  %v6638 = vadd.f32 %v6525, %v6637
  %v6639 = vpop.f32.mrb[0].mxu0
  %v6640 = vadd.f32 %v6527, %v6639
  %6641 = vmatprep.mubr.bf16.mxu0 %v1823
  %6642 = vmatmul.mubr.bf16.gmra.mrb[0].mxu0 %v1822
  %v6643 = vpop.f32.mrb[0].mxu0
  %v6644 = vadd.f32 %v6531, %v6643
  %v6645 = vpop.f32.mrb[0].mxu0
  %v6646 = vadd.f32 %v6533, %v6645
  %v6647 = vpop.f32.mrb[0].mxu0
  %v6648 = vadd.f32 %v6535, %v6647
  %v6649 = vpop.f32.mrb[0].mxu0
  %v6650 = vadd.f32 %v6537, %v6649
  %6651 = vdwg.mxu0
  %6652 = vmatprep.subr.bf16.mxu0 %v4766
  %6653 = vmatpush1.bf16.msra.mxu0 %v4765
  %6654 = vmatprep.subr.bf16.mxu0 %v4770
  %6655 = vmatpush1.bf16.msra.mxu0 %v4769
  %6656 = vmatprep.subr.bf16.mxu0 %v4774
  %6657 = vmatpush1.bf16.msra.mxu0 %v4773
  %6658 = vmatprep.subr.bf16.mxu0 %v4778
  %6659 = vmatpush1.bf16.msra.mxu0 %v4777
  %6660 = vmatprep.subr.bf16.mxu0 %v4782
  %6661 = vmatpush1.bf16.msra.mxu0 %v4781
  %6662 = vmatprep.subr.bf16.mxu0 %v4786
  %6663 = vmatpush1.bf16.msra.mxu0 %v4785
  %6664 = vmatprep.subr.bf16.mxu0 %v4790
  %6665 = vmatpush1.bf16.msra.mxu0 %v4789
  %6666 = vmatprep.subr.bf16.mxu0 %v4794
  %6667 = vmatpush1.bf16.msra.mxu0 %v4793
  %6668 = vmatprep.subr.bf16.mxu0 %v4798
  %6669 = vmatpush1.bf16.msra.mxu0 %v4797
  %6670 = vmatprep.subr.bf16.mxu0 %v4802
  %6671 = vmatpush1.bf16.msra.mxu0 %v4801
  %6672 = vmatprep.subr.bf16.mxu0 %v4806
  %6673 = vmatpush1.bf16.msra.mxu0 %v4805
  %6674 = vmatprep.subr.bf16.mxu0 %v4810
  %6675 = vmatpush1.bf16.msra.mxu0 %v4809
  %6676 = vmatprep.subr.bf16.mxu0 %v4814
  %6677 = vmatpush1.bf16.msra.mxu0 %v4813
  %6678 = vmatprep.subr.bf16.mxu0 %v4818
  %6679 = vmatpush1.bf16.msra.mxu0 %v4817
  %6680 = vmatprep.subr.bf16.mxu0 %v4822
  %6681 = vmatpush1.bf16.msra.mxu0 %v4821
  %6682 = vmatprep.subr.bf16.mxu0 %v4826
  %6683 = vmatpush1.bf16.msra.mxu0 %v4825
  %6684 = vmatprep.mubr.bf16.mxu0 %v1650
  %6685 = vmatmul.mubr.bf16.gmra.mrb[0].mxu0 %v1649
  %v6686 = vpop.f32.mrb[0].mxu0
  %v6687 = vadd.f32 %v6574, %v6686
  %v6688 = vpop.f32.mrb[0].mxu0
  %v6689 = vadd.f32 %v6576, %v6688
  %v6690 = vpop.f32.mrb[0].mxu0
  %v6691 = vadd.f32 %v6578, %v6690
  %v6692 = vpop.f32.mrb[0].mxu0
  %v6693 = vadd.f32 %v6580, %v6692
  %6694 = vmatprep.mubr.bf16.mxu0 %v1675
  %6695 = vmatmul.mubr.bf16.gmra.mrb[0].mxu0 %v1674
  %v6696 = vpop.f32.mrb[0].mxu0
  %v6697 = vadd.f32 %v6584, %v6696
  %v6698 = vpop.f32.mrb[0].mxu0
  %v6699 = vadd.f32 %v6586, %v6698
  %v6700 = vpop.f32.mrb[0].mxu0
  %v6701 = vadd.f32 %v6588, %v6700
  %v6702 = vpop.f32.mrb[0].mxu0
  %v6703 = vadd.f32 %v6590, %v6702
  %6704 = vmatprep.mubr.bf16.mxu0 %v1700
  %6705 = vmatmul.mubr.bf16.gmra.mrb[0].mxu0 %v1699
  %v6706 = vpop.f32.mrb[0].mxu0
  %v6707 = vadd.f32 %v6594, %v6706
  %v6708 = vpop.f32.mrb[0].mxu0
  %v6709 = vadd.f32 %v6596, %v6708
  %v6710 = vpop.f32.mrb[0].mxu0
  %v6711 = vadd.f32 %v6598, %v6710
  %v6712 = vpop.f32.mrb[0].mxu0
  %v6713 = vadd.f32 %v6600, %v6712
  %6714 = vmatprep.mubr.bf16.mxu0 %v1725
  %6715 = vmatmul.mubr.bf16.gmra.mrb[0].mxu0 %v1724
  %v6716 = vpop.f32.mrb[0].mxu0
  %v6717 = vadd.f32 %v6604, %v6716
  %v6718 = vpop.f32.mrb[0].mxu0
  %v6719 = vadd.f32 %v6606, %v6718
  %v6720 = vpop.f32.mrb[0].mxu0
  %v6721 = vadd.f32 %v6608, %v6720
  %v6722 = vpop.f32.mrb[0].mxu0
  %v6723 = vadd.f32 %v6610, %v6722
  %6724 = vmatprep.mubr.bf16.mxu0 %v1750
  %6725 = vmatmul.mubr.bf16.gmra.mrb[0].mxu0 %v1749
  %v6726 = vpop.f32.mrb[0].mxu0
  %v6727 = vadd.f32 %v6614, %v6726
  %v6728 = vpop.f32.mrb[0].mxu0
  %v6729 = vadd.f32 %v6616, %v6728
  %v6730 = vpop.f32.mrb[0].mxu0
  %v6731 = vadd.f32 %v6618, %v6730
  %v6732 = vpop.f32.mrb[0].mxu0
  %v6733 = vadd.f32 %v6620, %v6732
  %6734 = vmatprep.mubr.bf16.mxu0 %v1775
  %6735 = vmatmul.mubr.bf16.gmra.mrb[0].mxu0 %v1774
  %v6736 = vpop.f32.mrb[0].mxu0
  %v6737 = vadd.f32 %v6624, %v6736
  %v6738 = vpop.f32.mrb[0].mxu0
  %v6739 = vadd.f32 %v6626, %v6738
  %v6740 = vpop.f32.mrb[0].mxu0
  %v6741 = vadd.f32 %v6628, %v6740
  %v6742 = vpop.f32.mrb[0].mxu0
  %v6743 = vadd.f32 %v6630, %v6742
  %6744 = vmatprep.mubr.bf16.mxu0 %v1800
  %6745 = vmatmul.mubr.bf16.gmra.mrb[0].mxu0 %v1799
  %v6746 = vpop.f32.mrb[0].mxu0
  %v6747 = vadd.f32 %v6634, %v6746
  %v6748 = vpop.f32.mrb[0].mxu0
  %v6749 = vadd.f32 %v6636, %v6748
  %v6750 = vpop.f32.mrb[0].mxu0
  %v6751 = vadd.f32 %v6638, %v6750
  %v6752 = vpop.f32.mrb[0].mxu0
  %v6753 = vadd.f32 %v6640, %v6752
  %6754 = vmatprep.mubr.bf16.mxu0 %v1825
  %6755 = vmatmul.mubr.bf16.gmra.mrb[0].mxu0 %v1824
  %v6756 = vpop.f32.mrb[0].mxu0
  %v6757 = vadd.f32 %v6644, %v6756
  %v6758 = vpop.f32.mrb[0].mxu0
  %v6759 = vadd.f32 %v6646, %v6758
  %v6760 = vpop.f32.mrb[0].mxu0
  %v6761 = vadd.f32 %v6648, %v6760
  %v6762 = vpop.f32.mrb[0].mxu0
  %v6763 = vadd.f32 %v6650, %v6762
  %6764 = vdwg.mxu0
  %6765 = vmatprep.subr.bf16.mxu0 %v4830
  %6766 = vmatpush1.bf16.msra.mxu0 %v4829
  %6767 = vmatprep.subr.bf16.mxu0 %v4834
  %6768 = vmatpush1.bf16.msra.mxu0 %v4833
  %6769 = vmatprep.subr.bf16.mxu0 %v4838
  %6770 = vmatpush1.bf16.msra.mxu0 %v4837
  %6771 = vmatprep.subr.bf16.mxu0 %v4842
  %6772 = vmatpush1.bf16.msra.mxu0 %v4841
  %6773 = vmatprep.subr.bf16.mxu0 %v4846
  %6774 = vmatpush1.bf16.msra.mxu0 %v4845
  %6775 = vmatprep.subr.bf16.mxu0 %v4850
  %6776 = vmatpush1.bf16.msra.mxu0 %v4849
  %6777 = vmatprep.subr.bf16.mxu0 %v4854
  %6778 = vmatpush1.bf16.msra.mxu0 %v4853
  %6779 = vmatprep.subr.bf16.mxu0 %v4858
  %6780 = vmatpush1.bf16.msra.mxu0 %v4857
  %6781 = vmatprep.subr.bf16.mxu0 %v4862
  %6782 = vmatpush1.bf16.msra.mxu0 %v4861
  %6783 = vmatprep.subr.bf16.mxu0 %v4866
  %6784 = vmatpush1.bf16.msra.mxu0 %v4865
  %6785 = vmatprep.subr.bf16.mxu0 %v4870
  %6786 = vmatpush1.bf16.msra.mxu0 %v4869
  %6787 = vmatprep.subr.bf16.mxu0 %v4874
  %6788 = vmatpush1.bf16.msra.mxu0 %v4873
  %6789 = vmatprep.subr.bf16.mxu0 %v4878
  %6790 = vmatpush1.bf16.msra.mxu0 %v4877
  %6791 = vmatprep.subr.bf16.mxu0 %v4882
  %6792 = vmatpush1.bf16.msra.mxu0 %v4881
  %6793 = vmatprep.subr.bf16.mxu0 %v4886
  %6794 = vmatpush1.bf16.msra.mxu0 %v4885
  %6795 = vmatprep.subr.bf16.mxu0 %v4890
  %6796 = vmatpush1.bf16.msra.mxu0 %v4889
  %6797 = vmatprep.mubr.bf16.mxu0 %v1652
  %6798 = vmatmul.mubr.bf16.gmra.mrb[0].mxu0 %v1651
  %v6799 = vpop.f32.mrb[0].mxu0
  %v6800 = vadd.f32 %v6687, %v6799
  %v6801 = vpop.f32.mrb[0].mxu0
  %v6802 = vadd.f32 %v6689, %v6801
  %v6803 = vpop.f32.mrb[0].mxu0
  %v6804 = vadd.f32 %v6691, %v6803
  %v6805 = vpop.f32.mrb[0].mxu0
  %v6806 = vadd.f32 %v6693, %v6805
  %6807 = vmatprep.mubr.bf16.mxu0 %v1677
  %6808 = vmatmul.mubr.bf16.gmra.mrb[0].mxu0 %v1676
  %v6809 = vpop.f32.mrb[0].mxu0
  %v6810 = vadd.f32 %v6697, %v6809
  %v6811 = vpop.f32.mrb[0].mxu0
  %v6812 = vadd.f32 %v6699, %v6811
  %v6813 = vpop.f32.mrb[0].mxu0
  %v6814 = vadd.f32 %v6701, %v6813
  %v6815 = vpop.f32.mrb[0].mxu0
  %v6816 = vadd.f32 %v6703, %v6815
  %6817 = vmatprep.mubr.bf16.mxu0 %v1702
  %6818 = vmatmul.mubr.bf16.gmra.mrb[0].mxu0 %v1701
  %v6819 = vpop.f32.mrb[0].mxu0
  %v6820 = vadd.f32 %v6707, %v6819
  %v6821 = vpop.f32.mrb[0].mxu0
  %v6822 = vadd.f32 %v6709, %v6821
  %v6823 = vpop.f32.mrb[0].mxu0
  %v6824 = vadd.f32 %v6711, %v6823
  %v6825 = vpop.f32.mrb[0].mxu0
  %v6826 = vadd.f32 %v6713, %v6825
  %6827 = vmatprep.mubr.bf16.mxu0 %v1727
  %6828 = vmatmul.mubr.bf16.gmra.mrb[0].mxu0 %v1726
  %v6829 = vpop.f32.mrb[0].mxu0
  %v6830 = vadd.f32 %v6717, %v6829
  %v6831 = vpop.f32.mrb[0].mxu0
  %v6832 = vadd.f32 %v6719, %v6831
  %v6833 = vpop.f32.mrb[0].mxu0
  %v6834 = vadd.f32 %v6721, %v6833
  %v6835 = vpop.f32.mrb[0].mxu0
  %v6836 = vadd.f32 %v6723, %v6835
  %6837 = vmatprep.mubr.bf16.mxu0 %v1752
  %6838 = vmatmul.mubr.bf16.gmra.mrb[0].mxu0 %v1751
  %v6839 = vpop.f32.mrb[0].mxu0
  %v6840 = vadd.f32 %v6727, %v6839
  %v6841 = vpop.f32.mrb[0].mxu0
  %v6842 = vadd.f32 %v6729, %v6841
  %v6843 = vpop.f32.mrb[0].mxu0
  %v6844 = vadd.f32 %v6731, %v6843
  %v6845 = vpop.f32.mrb[0].mxu0
  %v6846 = vadd.f32 %v6733, %v6845
  %6847 = vmatprep.mubr.bf16.mxu0 %v1777
  %6848 = vmatmul.mubr.bf16.gmra.mrb[0].mxu0 %v1776
  %v6849 = vpop.f32.mrb[0].mxu0
  %v6850 = vadd.f32 %v6737, %v6849
  %v6851 = vpop.f32.mrb[0].mxu0
  %v6852 = vadd.f32 %v6739, %v6851
  %v6853 = vpop.f32.mrb[0].mxu0
  %v6854 = vadd.f32 %v6741, %v6853
  %v6855 = vpop.f32.mrb[0].mxu0
  %v6856 = vadd.f32 %v6743, %v6855
  %6857 = vmatprep.mubr.bf16.mxu0 %v1802
  %6858 = vmatmul.mubr.bf16.gmra.mrb[0].mxu0 %v1801
  %v6859 = vpop.f32.mrb[0].mxu0
  %v6860 = vadd.f32 %v6747, %v6859
  %v6861 = vpop.f32.mrb[0].mxu0
  %v6862 = vadd.f32 %v6749, %v6861
  %v6863 = vpop.f32.mrb[0].mxu0
  %v6864 = vadd.f32 %v6751, %v6863
  %v6865 = vpop.f32.mrb[0].mxu0
  %v6866 = vadd.f32 %v6753, %v6865
  %6867 = vmatprep.mubr.bf16.mxu0 %v1827
  %6868 = vmatmul.mubr.bf16.gmra.mrb[0].mxu0 %v1826
  %v6869 = vpop.f32.mrb[0].mxu0
  %v6870 = vadd.f32 %v6757, %v6869
  %v6871 = vpop.f32.mrb[0].mxu0
  %v6872 = vadd.f32 %v6759, %v6871
  %v6873 = vpop.f32.mrb[0].mxu0
  %v6874 = vadd.f32 %v6761, %v6873
  %v6875 = vpop.f32.mrb[0].mxu0
  %v6876 = vadd.f32 %v6763, %v6875
  %6877 = vdwg.mxu0
  %6878 = vmatprep.subr.bf16.mxu0 %v4894
  %6879 = vmatpush1.bf16.msra.mxu0 %v4893
  %6880 = vmatprep.subr.bf16.mxu0 %v4898
  %6881 = vmatpush1.bf16.msra.mxu0 %v4897
  %6882 = vmatprep.subr.bf16.mxu0 %v4902
  %6883 = vmatpush1.bf16.msra.mxu0 %v4901
  %6884 = vmatprep.subr.bf16.mxu0 %v4906
  %6885 = vmatpush1.bf16.msra.mxu0 %v4905
  %6886 = vmatprep.subr.bf16.mxu0 %v4910
  %6887 = vmatpush1.bf16.msra.mxu0 %v4909
  %6888 = vmatprep.subr.bf16.mxu0 %v4914
  %6889 = vmatpush1.bf16.msra.mxu0 %v4913
  %6890 = vmatprep.subr.bf16.mxu0 %v4918
  %6891 = vmatpush1.bf16.msra.mxu0 %v4917
  %6892 = vmatprep.subr.bf16.mxu0 %v4922
  %6893 = vmatpush1.bf16.msra.mxu0 %v4921
  %6894 = vmatprep.subr.bf16.mxu0 %v4926
  %6895 = vmatpush1.bf16.msra.mxu0 %v4925
  %6896 = vmatprep.subr.bf16.mxu0 %v4930
  %6897 = vmatpush1.bf16.msra.mxu0 %v4929
  %6898 = vmatprep.subr.bf16.mxu0 %v4934
  %6899 = vmatpush1.bf16.msra.mxu0 %v4933
  %6900 = vmatprep.subr.bf16.mxu0 %v4938
  %6901 = vmatpush1.bf16.msra.mxu0 %v4937
  %6902 = vmatprep.subr.bf16.mxu0 %v4942
  %6903 = vmatpush1.bf16.msra.mxu0 %v4941
  %6904 = vmatprep.subr.bf16.mxu0 %v4946
  %6905 = vmatpush1.bf16.msra.mxu0 %v4945
  %6906 = vmatprep.subr.bf16.mxu0 %v4950
  %6907 = vmatpush1.bf16.msra.mxu0 %v4949
  %6908 = vmatprep.subr.bf16.mxu0 %v4954
  %6909 = vmatpush1.bf16.msra.mxu0 %v4953
  %6910 = vmatprep.mubr.bf16.mxu0 %v1654
  %6911 = vmatmul.mubr.bf16.gmra.mrb[0].mxu0 %v1653
  %v6912 = vpop.f32.mrb[0].mxu0
  %v6913 = vadd.f32 %v6800, %v6912
  %v6914 = vpop.f32.mrb[0].mxu0
  %v6915 = vadd.f32 %v6802, %v6914
  %v6916 = vpop.f32.mrb[0].mxu0
  %v6917 = vadd.f32 %v6804, %v6916
  %v6918 = vpop.f32.mrb[0].mxu0
  %v6919 = vadd.f32 %v6806, %v6918
  %6920 = vmatprep.mubr.bf16.mxu0 %v1679
  %6921 = vmatmul.mubr.bf16.gmra.mrb[0].mxu0 %v1678
  %v6922 = vpop.f32.mrb[0].mxu0
  %v6923 = vadd.f32 %v6810, %v6922
  %v6924 = vpop.f32.mrb[0].mxu0
  %v6925 = vadd.f32 %v6812, %v6924
  %v6926 = vpop.f32.mrb[0].mxu0
  %v6927 = vadd.f32 %v6814, %v6926
  %v6928 = vpop.f32.mrb[0].mxu0
  %v6929 = vadd.f32 %v6816, %v6928
  %6930 = vmatprep.mubr.bf16.mxu0 %v1704
  %6931 = vmatmul.mubr.bf16.gmra.mrb[0].mxu0 %v1703
  %v6932 = vpop.f32.mrb[0].mxu0
  %v6933 = vadd.f32 %v6820, %v6932
  %v6934 = vpop.f32.mrb[0].mxu0
  %v6935 = vadd.f32 %v6822, %v6934
  %v6936 = vpop.f32.mrb[0].mxu0
  %v6937 = vadd.f32 %v6824, %v6936
  %v6938 = vpop.f32.mrb[0].mxu0
  %v6939 = vadd.f32 %v6826, %v6938
  %6940 = vmatprep.mubr.bf16.mxu0 %v1729
  %6941 = vmatmul.mubr.bf16.gmra.mrb[0].mxu0 %v1728
  %v6942 = vpop.f32.mrb[0].mxu0
  %v6943 = vadd.f32 %v6830, %v6942
  %v6944 = vpop.f32.mrb[0].mxu0
  %v6945 = vadd.f32 %v6832, %v6944
  %v6946 = vpop.f32.mrb[0].mxu0
  %v6947 = vadd.f32 %v6834, %v6946
  %v6948 = vpop.f32.mrb[0].mxu0
  %v6949 = vadd.f32 %v6836, %v6948
  %6950 = vmatprep.mubr.bf16.mxu0 %v1754
  %6951 = vmatmul.mubr.bf16.gmra.mrb[0].mxu0 %v1753
  %v6952 = vpop.f32.mrb[0].mxu0
  %v6953 = vadd.f32 %v6840, %v6952
  %v6954 = vpop.f32.mrb[0].mxu0
  %v6955 = vadd.f32 %v6842, %v6954
  %v6956 = vpop.f32.mrb[0].mxu0
  %v6957 = vadd.f32 %v6844, %v6956
  %v6958 = vpop.f32.mrb[0].mxu0
  %v6959 = vadd.f32 %v6846, %v6958
  %6960 = vmatprep.mubr.bf16.mxu0 %v1779
  %6961 = vmatmul.mubr.bf16.gmra.mrb[0].mxu0 %v1778
  %v6962 = vpop.f32.mrb[0].mxu0
  %v6963 = vadd.f32 %v6850, %v6962
  %v6964 = vpop.f32.mrb[0].mxu0
  %v6965 = vadd.f32 %v6852, %v6964
  %v6966 = vpop.f32.mrb[0].mxu0
  %v6967 = vadd.f32 %v6854, %v6966
  %v6968 = vpop.f32.mrb[0].mxu0
  %v6969 = vadd.f32 %v6856, %v6968
  %6970 = vmatprep.mubr.bf16.mxu0 %v1804
  %6971 = vmatmul.mubr.bf16.gmra.mrb[0].mxu0 %v1803
  %v6972 = vpop.f32.mrb[0].mxu0
  %v6973 = vadd.f32 %v6860, %v6972
  %v6974 = vpop.f32.mrb[0].mxu0
  %v6975 = vadd.f32 %v6862, %v6974
  %v6976 = vpop.f32.mrb[0].mxu0
  %v6977 = vadd.f32 %v6864, %v6976
  %v6978 = vpop.f32.mrb[0].mxu0
  %v6979 = vadd.f32 %v6866, %v6978
  %6980 = vmatprep.mubr.bf16.mxu0 %v1829
  %6981 = vmatmul.mubr.bf16.gmra.mrb[0].mxu0 %v1828
  %v6982 = vpop.f32.mrb[0].mxu0
  %v6983 = vadd.f32 %v6870, %v6982
  %v6984 = vpop.f32.mrb[0].mxu0
  %v6985 = vadd.f32 %v6872, %v6984
  %v6986 = vpop.f32.mrb[0].mxu0
  %v6987 = vadd.f32 %v6874, %v6986
  %v6988 = vpop.f32.mrb[0].mxu0
  %v6989 = vadd.f32 %v6876, %v6988
  %6990 = vdwg.mxu0
  %6991 = vmatprep.subr.bf16.mxu0 %v4958
  %6992 = vmatpush1.bf16.msra.mxu0 %v4957
  %6993 = vmatprep.subr.bf16.mxu0 %v4962
  %6994 = vmatpush1.bf16.msra.mxu0 %v4961
  %6995 = vmatprep.subr.bf16.mxu0 %v4966
  %6996 = vmatpush1.bf16.msra.mxu0 %v4965
  %6997 = vmatprep.subr.bf16.mxu0 %v4970
  %6998 = vmatpush1.bf16.msra.mxu0 %v4969
  %6999 = vmatprep.subr.bf16.mxu0 %v4974
  %7000 = vmatpush1.bf16.msra.mxu0 %v4973
  %7001 = vmatprep.subr.bf16.mxu0 %v4978
  %7002 = vmatpush1.bf16.msra.mxu0 %v4977
  %7003 = vmatprep.subr.bf16.mxu0 %v4982
  %7004 = vmatpush1.bf16.msra.mxu0 %v4981
  %7005 = vmatprep.subr.bf16.mxu0 %v4986
  %7006 = vmatpush1.bf16.msra.mxu0 %v4985
  %7007 = vmatprep.subr.bf16.mxu0 %v4990
  %7008 = vmatpush1.bf16.msra.mxu0 %v4989
  %7009 = vmatprep.subr.bf16.mxu0 %v4994
  %7010 = vmatpush1.bf16.msra.mxu0 %v4993
  %7011 = vmatprep.subr.bf16.mxu0 %v4998
  %7012 = vmatpush1.bf16.msra.mxu0 %v4997
  %7013 = vmatprep.subr.bf16.mxu0 %v5002
  %7014 = vmatpush1.bf16.msra.mxu0 %v5001
  %7015 = vmatprep.subr.bf16.mxu0 %v5006
  %7016 = vmatpush1.bf16.msra.mxu0 %v5005
  %7017 = vmatprep.subr.bf16.mxu0 %v5010
  %7018 = vmatpush1.bf16.msra.mxu0 %v5009
  %7019 = vmatprep.subr.bf16.mxu0 %v5014
  %7020 = vmatpush1.bf16.msra.mxu0 %v5013
  %7021 = vmatprep.subr.bf16.mxu0 %v5018
  %7022 = vmatpush1.bf16.msra.mxu0 %v5017
  %7023 = vmatprep.mubr.bf16.mxu0 %v1656
  %7024 = vmatmul.mubr.bf16.gmra.mrb[0].mxu0 %v1655
  %v7025 = vpop.f32.mrb[0].mxu0
  %v7026 = vadd.f32 %v6913, %v7025
  %v7027 = vpop.f32.mrb[0].mxu0
  %v7028 = vadd.f32 %v6915, %v7027
  %v7029 = vpop.f32.mrb[0].mxu0
  %v7030 = vadd.f32 %v6917, %v7029
  %v7031 = vpop.f32.mrb[0].mxu0
  %v7032 = vadd.f32 %v6919, %v7031
  %7033 = vmatprep.mubr.bf16.mxu0 %v1681
  %7034 = vmatmul.mubr.bf16.gmra.mrb[0].mxu0 %v1680
  %v7035 = vpop.f32.mrb[0].mxu0
  %v7036 = vadd.f32 %v6923, %v7035
  %v7037 = vpop.f32.mrb[0].mxu0
  %v7038 = vadd.f32 %v6925, %v7037
  %v7039 = vpop.f32.mrb[0].mxu0
  %v7040 = vadd.f32 %v6927, %v7039
  %v7041 = vpop.f32.mrb[0].mxu0
  %v7042 = vadd.f32 %v6929, %v7041
  %7043 = vmatprep.mubr.bf16.mxu0 %v1706
  %7044 = vmatmul.mubr.bf16.gmra.mrb[0].mxu0 %v1705
  %v7045 = vpop.f32.mrb[0].mxu0
  %v7046 = vadd.f32 %v6933, %v7045
  %v7047 = vpop.f32.mrb[0].mxu0
  %v7048 = vadd.f32 %v6935, %v7047
  %v7049 = vpop.f32.mrb[0].mxu0
  %v7050 = vadd.f32 %v6937, %v7049
  %v7051 = vpop.f32.mrb[0].mxu0
  %v7052 = vadd.f32 %v6939, %v7051
  %7053 = vmatprep.mubr.bf16.mxu0 %v1731
  %7054 = vmatmul.mubr.bf16.gmra.mrb[0].mxu0 %v1730
  %v7055 = vpop.f32.mrb[0].mxu0
  %v7056 = vadd.f32 %v6943, %v7055
  %v7057 = vpop.f32.mrb[0].mxu0
  %v7058 = vadd.f32 %v6945, %v7057
  %v7059 = vpop.f32.mrb[0].mxu0
  %v7060 = vadd.f32 %v6947, %v7059
  %v7061 = vpop.f32.mrb[0].mxu0
  %v7062 = vadd.f32 %v6949, %v7061
  %7063 = vmatprep.mubr.bf16.mxu0 %v1756
  %7064 = vmatmul.mubr.bf16.gmra.mrb[0].mxu0 %v1755
  %v7065 = vpop.f32.mrb[0].mxu0
  %v7066 = vadd.f32 %v6953, %v7065
  %v7067 = vpop.f32.mrb[0].mxu0
  %v7068 = vadd.f32 %v6955, %v7067
  %v7069 = vpop.f32.mrb[0].mxu0
  %v7070 = vadd.f32 %v6957, %v7069
  %v7071 = vpop.f32.mrb[0].mxu0
  %v7072 = vadd.f32 %v6959, %v7071
  %7073 = vmatprep.mubr.bf16.mxu0 %v1781
  %7074 = vmatmul.mubr.bf16.gmra.mrb[0].mxu0 %v1780
  %v7075 = vpop.f32.mrb[0].mxu0
  %v7076 = vadd.f32 %v6963, %v7075
  %v7077 = vpop.f32.mrb[0].mxu0
  %v7078 = vadd.f32 %v6965, %v7077
  %v7079 = vpop.f32.mrb[0].mxu0
  %v7080 = vadd.f32 %v6967, %v7079
  %v7081 = vpop.f32.mrb[0].mxu0
  %v7082 = vadd.f32 %v6969, %v7081
  %7083 = vmatprep.mubr.bf16.mxu0 %v1806
  %7084 = vmatmul.mubr.bf16.gmra.mrb[0].mxu0 %v1805
  %v7085 = vpop.f32.mrb[0].mxu0
  %v7086 = vadd.f32 %v6973, %v7085
  %v7087 = vpop.f32.mrb[0].mxu0
  %v7088 = vadd.f32 %v6975, %v7087
  %v7089 = vpop.f32.mrb[0].mxu0
  %v7090 = vadd.f32 %v6977, %v7089
  %v7091 = vpop.f32.mrb[0].mxu0
  %v7092 = vadd.f32 %v6979, %v7091
  %7093 = vmatprep.mubr.bf16.mxu0 %v1831
  %7094 = vmatmul.mubr.bf16.gmra.mrb[0].mxu0 %v1830
  %v7095 = vpop.f32.mrb[0].mxu0
  %v7096 = vadd.f32 %v6983, %v7095
  %v7097 = vpop.f32.mrb[0].mxu0
  %v7098 = vadd.f32 %v6985, %v7097
  %v7099 = vpop.f32.mrb[0].mxu0
  %v7100 = vadd.f32 %v6987, %v7099
  %v7101 = vpop.f32.mrb[0].mxu0
  %v7102 = vadd.f32 %v6989, %v7101
  %7103 = vdwg.mxu0
  %7104 = vmatprep.subr.bf16.mxu0 %v5022
  %7105 = vmatpush1.bf16.msra.mxu0 %v5021
  %7106 = vmatprep.subr.bf16.mxu0 %v5026
  %7107 = vmatpush1.bf16.msra.mxu0 %v5025
  %7108 = vmatprep.subr.bf16.mxu0 %v5030
  %7109 = vmatpush1.bf16.msra.mxu0 %v5029
  %7110 = vmatprep.subr.bf16.mxu0 %v5034
  %7111 = vmatpush1.bf16.msra.mxu0 %v5033
  %7112 = vmatprep.subr.bf16.mxu0 %v5038
  %7113 = vmatpush1.bf16.msra.mxu0 %v5037
  %7114 = vmatprep.subr.bf16.mxu0 %v5042
  %7115 = vmatpush1.bf16.msra.mxu0 %v5041
  %7116 = vmatprep.subr.bf16.mxu0 %v5046
  %7117 = vmatpush1.bf16.msra.mxu0 %v5045
  %7118 = vmatprep.subr.bf16.mxu0 %v5050
  %7119 = vmatpush1.bf16.msra.mxu0 %v5049
  %7120 = vmatprep.subr.bf16.mxu0 %v5054
  %7121 = vmatpush1.bf16.msra.mxu0 %v5053
  %7122 = vmatprep.subr.bf16.mxu0 %v5058
  %7123 = vmatpush1.bf16.msra.mxu0 %v5057
  %7124 = vmatprep.subr.bf16.mxu0 %v5062
  %7125 = vmatpush1.bf16.msra.mxu0 %v5061
  %7126 = vmatprep.subr.bf16.mxu0 %v5066
  %7127 = vmatpush1.bf16.msra.mxu0 %v5065
  %7128 = vmatprep.subr.bf16.mxu0 %v5070
  %7129 = vmatpush1.bf16.msra.mxu0 %v5069
  %7130 = vmatprep.subr.bf16.mxu0 %v5074
  %7131 = vmatpush1.bf16.msra.mxu0 %v5073
  %7132 = vmatprep.subr.bf16.mxu0 %v5078
  %7133 = vmatpush1.bf16.msra.mxu0 %v5077
  %7134 = vmatprep.subr.bf16.mxu0 %v5082
  %7135 = vmatpush1.bf16.msra.mxu0 %v5081
  %7136 = vmatprep.mubr.bf16.mxu0 %v1658
  %7137 = vmatmul.mubr.bf16.gmra.mrb[0].mxu0 %v1657
  %v7138 = vpop.f32.mrb[0].mxu0
  %v7139 = vadd.f32 %v7026, %v7138
  %v7140 = vpop.f32.mrb[0].mxu0
  %v7141 = vadd.f32 %v7028, %v7140
  %v7142 = vpop.f32.mrb[0].mxu0
  %v7143 = vadd.f32 %v7030, %v7142
  %v7144 = vpop.f32.mrb[0].mxu0
  %v7145 = vadd.f32 %v7032, %v7144
  %7146 = vmatprep.mubr.bf16.mxu0 %v1683
  %7147 = vmatmul.mubr.bf16.gmra.mrb[0].mxu0 %v1682
  %v7148 = vpop.f32.mrb[0].mxu0
  %v7149 = vadd.f32 %v7036, %v7148
  %v7150 = vpop.f32.mrb[0].mxu0
  %v7151 = vadd.f32 %v7038, %v7150
  %v7152 = vpop.f32.mrb[0].mxu0
  %v7153 = vadd.f32 %v7040, %v7152
  %v7154 = vpop.f32.mrb[0].mxu0
  %v7155 = vadd.f32 %v7042, %v7154
  %7156 = vmatprep.mubr.bf16.mxu0 %v1708
  %7157 = vmatmul.mubr.bf16.gmra.mrb[0].mxu0 %v1707
  %v7158 = vpop.f32.mrb[0].mxu0
  %v7159 = vadd.f32 %v7046, %v7158
  %v7160 = vpop.f32.mrb[0].mxu0
  %v7161 = vadd.f32 %v7048, %v7160
  %v7162 = vpop.f32.mrb[0].mxu0
  %v7163 = vadd.f32 %v7050, %v7162
  %v7164 = vpop.f32.mrb[0].mxu0
  %v7165 = vadd.f32 %v7052, %v7164
  %7166 = vmatprep.mubr.bf16.mxu0 %v1733
  %7167 = vmatmul.mubr.bf16.gmra.mrb[0].mxu0 %v1732
  %v7168 = vpop.f32.mrb[0].mxu0
  %v7169 = vadd.f32 %v7056, %v7168
  %v7170 = vpop.f32.mrb[0].mxu0
  %v7171 = vadd.f32 %v7058, %v7170
  %v7172 = vpop.f32.mrb[0].mxu0
  %v7173 = vadd.f32 %v7060, %v7172
  %v7174 = vpop.f32.mrb[0].mxu0
  %v7175 = vadd.f32 %v7062, %v7174
  %7176 = vmatprep.mubr.bf16.mxu0 %v1758
  %7177 = vmatmul.mubr.bf16.gmra.mrb[0].mxu0 %v1757
  %v7178 = vpop.f32.mrb[0].mxu0
  %v7179 = vadd.f32 %v7066, %v7178
  %v7180 = vpop.f32.mrb[0].mxu0
  %v7181 = vadd.f32 %v7068, %v7180
  %v7182 = vpop.f32.mrb[0].mxu0
  %v7183 = vadd.f32 %v7070, %v7182
  %v7184 = vpop.f32.mrb[0].mxu0
  %v7185 = vadd.f32 %v7072, %v7184
  %7186 = vmatprep.mubr.bf16.mxu0 %v1783
  %7187 = vmatmul.mubr.bf16.gmra.mrb[0].mxu0 %v1782
  %v7188 = vpop.f32.mrb[0].mxu0
  %v7189 = vadd.f32 %v7076, %v7188
  %v7190 = vpop.f32.mrb[0].mxu0
  %v7191 = vadd.f32 %v7078, %v7190
  %v7192 = vpop.f32.mrb[0].mxu0
  %v7193 = vadd.f32 %v7080, %v7192
  %v7194 = vpop.f32.mrb[0].mxu0
  %v7195 = vadd.f32 %v7082, %v7194
  %7196 = vmatprep.mubr.bf16.mxu0 %v1808
  %7197 = vmatmul.mubr.bf16.gmra.mrb[0].mxu0 %v1807
  %v7198 = vpop.f32.mrb[0].mxu0
  %v7199 = vadd.f32 %v7086, %v7198
  %v7200 = vpop.f32.mrb[0].mxu0
  %v7201 = vadd.f32 %v7088, %v7200
  %v7202 = vpop.f32.mrb[0].mxu0
  %v7203 = vadd.f32 %v7090, %v7202
  %v7204 = vpop.f32.mrb[0].mxu0
  %v7205 = vadd.f32 %v7092, %v7204
  %7206 = vmatprep.mubr.bf16.mxu0 %v1833
  %7207 = vmatmul.mubr.bf16.gmra.mrb[0].mxu0 %v1832
  %v7208 = vpop.f32.mrb[0].mxu0
  %v7209 = vadd.f32 %v7096, %v7208
  %v7210 = vpop.f32.mrb[0].mxu0
  %v7211 = vadd.f32 %v7098, %v7210
  %v7212 = vpop.f32.mrb[0].mxu0
  %v7213 = vadd.f32 %v7100, %v7212
  %v7214 = vpop.f32.mrb[0].mxu0
  %v7215 = vadd.f32 %v7102, %v7214
  %7216 = vdwg.mxu0
  %7217 = vmatprep.subr.bf16.mxu0 %v5086
  %7218 = vmatpush1.bf16.msra.mxu0 %v5085
  %7219 = vmatprep.subr.bf16.mxu0 %v5090
  %7220 = vmatpush1.bf16.msra.mxu0 %v5089
  %7221 = vmatprep.subr.bf16.mxu0 %v5094
  %7222 = vmatpush1.bf16.msra.mxu0 %v5093
  %7223 = vmatprep.subr.bf16.mxu0 %v5098
  %7224 = vmatpush1.bf16.msra.mxu0 %v5097
  %7225 = vmatprep.subr.bf16.mxu0 %v5102
  %7226 = vmatpush1.bf16.msra.mxu0 %v5101
  %7227 = vmatprep.subr.bf16.mxu0 %v5106
  %7228 = vmatpush1.bf16.msra.mxu0 %v5105
  %7229 = vmatprep.subr.bf16.mxu0 %v5110
  %7230 = vmatpush1.bf16.msra.mxu0 %v5109
  %7231 = vmatprep.subr.bf16.mxu0 %v5114
  %7232 = vmatpush1.bf16.msra.mxu0 %v5113
  %7233 = vmatprep.subr.bf16.mxu0 %v5118
  %7234 = vmatpush1.bf16.msra.mxu0 %v5117
  %7235 = vmatprep.subr.bf16.mxu0 %v5122
  %7236 = vmatpush1.bf16.msra.mxu0 %v5121
  %7237 = vmatprep.subr.bf16.mxu0 %v5126
  %7238 = vmatpush1.bf16.msra.mxu0 %v5125
  %7239 = vmatprep.subr.bf16.mxu0 %v5130
  %7240 = vmatpush1.bf16.msra.mxu0 %v5129
  %7241 = vmatprep.subr.bf16.mxu0 %v5134
  %7242 = vmatpush1.bf16.msra.mxu0 %v5133
  %7243 = vmatprep.subr.bf16.mxu0 %v5138
  %7244 = vmatpush1.bf16.msra.mxu0 %v5137
  %7245 = vmatprep.subr.bf16.mxu0 %v5142
  %7246 = vmatpush1.bf16.msra.mxu0 %v5141
  %7247 = vmatprep.subr.bf16.mxu0 %v5146
  %7248 = vmatpush1.bf16.msra.mxu0 %v5145
  %7249 = vmatprep.mubr.bf16.mxu0 %v1660
  %7250 = vmatmul.mubr.bf16.gmra.mrb[0].mxu0 %v1659
  %v7251 = vpop.f32.mrb[0].mxu0
  %v7252 = vadd.f32 %v7139, %v7251
  %v7253 = vpop.f32.mrb[0].mxu0
  %v7254 = vadd.f32 %v7141, %v7253
  %v7255 = vpop.f32.mrb[0].mxu0
  %v7256 = vadd.f32 %v7143, %v7255
  %v7257 = vpop.f32.mrb[0].mxu0
  %v7258 = vadd.f32 %v7145, %v7257
  %7259 = vmatprep.mubr.bf16.mxu0 %v1685
  %7260 = vmatmul.mubr.bf16.gmra.mrb[0].mxu0 %v1684
  %v7261 = vpop.f32.mrb[0].mxu0
  %v7262 = vadd.f32 %v7149, %v7261
  %v7263 = vpop.f32.mrb[0].mxu0
  %v7264 = vadd.f32 %v7151, %v7263
  %v7265 = vpop.f32.mrb[0].mxu0
  %v7266 = vadd.f32 %v7153, %v7265
  %v7267 = vpop.f32.mrb[0].mxu0
  %v7268 = vadd.f32 %v7155, %v7267
  %7269 = vmatprep.mubr.bf16.mxu0 %v1710
  %7270 = vmatmul.mubr.bf16.gmra.mrb[0].mxu0 %v1709
  %v7271 = vpop.f32.mrb[0].mxu0
  %v7272 = vadd.f32 %v7159, %v7271
  %v7273 = vpop.f32.mrb[0].mxu0
  %v7274 = vadd.f32 %v7161, %v7273
  %v7275 = vpop.f32.mrb[0].mxu0
  %v7276 = vadd.f32 %v7163, %v7275
  %v7277 = vpop.f32.mrb[0].mxu0
  %v7278 = vadd.f32 %v7165, %v7277
  %7279 = vmatprep.mubr.bf16.mxu0 %v1735
  %7280 = vmatmul.mubr.bf16.gmra.mrb[0].mxu0 %v1734
  %v7281 = vpop.f32.mrb[0].mxu0
  %v7282 = vadd.f32 %v7169, %v7281
  %v7283 = vpop.f32.mrb[0].mxu0
  %v7284 = vadd.f32 %v7171, %v7283
  %v7285 = vpop.f32.mrb[0].mxu0
  %v7286 = vadd.f32 %v7173, %v7285
  %v7287 = vpop.f32.mrb[0].mxu0
  %v7288 = vadd.f32 %v7175, %v7287
  %7289 = vmatprep.mubr.bf16.mxu0 %v1760
  %7290 = vmatmul.mubr.bf16.gmra.mrb[0].mxu0 %v1759
  %v7291 = vpop.f32.mrb[0].mxu0
  %v7292 = vadd.f32 %v7179, %v7291
  %v7293 = vpop.f32.mrb[0].mxu0
  %v7294 = vadd.f32 %v7181, %v7293
  %v7295 = vpop.f32.mrb[0].mxu0
  %v7296 = vadd.f32 %v7183, %v7295
  %v7297 = vpop.f32.mrb[0].mxu0
  %v7298 = vadd.f32 %v7185, %v7297
  %7299 = vmatprep.mubr.bf16.mxu0 %v1785
  %7300 = vmatmul.mubr.bf16.gmra.mrb[0].mxu0 %v1784
  %v7301 = vpop.f32.mrb[0].mxu0
  %v7302 = vadd.f32 %v7189, %v7301
  %v7303 = vpop.f32.mrb[0].mxu0
  %v7304 = vadd.f32 %v7191, %v7303
  %v7305 = vpop.f32.mrb[0].mxu0
  %v7306 = vadd.f32 %v7193, %v7305
  %v7307 = vpop.f32.mrb[0].mxu0
  %v7308 = vadd.f32 %v7195, %v7307
  %7309 = vmatprep.mubr.bf16.mxu0 %v1810
  %7310 = vmatmul.mubr.bf16.gmra.mrb[0].mxu0 %v1809
  %v7311 = vpop.f32.mrb[0].mxu0
  %v7312 = vadd.f32 %v7199, %v7311
  %v7313 = vpop.f32.mrb[0].mxu0
  %v7314 = vadd.f32 %v7201, %v7313
  %v7315 = vpop.f32.mrb[0].mxu0
  %v7316 = vadd.f32 %v7203, %v7315
  %v7317 = vpop.f32.mrb[0].mxu0
  %v7318 = vadd.f32 %v7205, %v7317
  %7319 = vmatprep.mubr.bf16.mxu0 %v1835
  %7320 = vmatmul.mubr.bf16.gmra.mrb[0].mxu0 %v1834
  %v7321 = vpop.f32.mrb[0].mxu0
  %v7322 = vadd.f32 %v7209, %v7321
  %v7323 = vpop.f32.mrb[0].mxu0
  %v7324 = vadd.f32 %v7211, %v7323
  %v7325 = vpop.f32.mrb[0].mxu0
  %v7326 = vadd.f32 %v7213, %v7325
  %v7327 = vpop.f32.mrb[0].mxu0
  %v7328 = vadd.f32 %v7215, %v7327
  %7329 = vdwg.mxu0
  %7330 = vmatprep.subr.bf16.mxu0 %v5150
  %7331 = vmatpush1.bf16.msra.mxu0 %v5149
  %7332 = vmatprep.subr.bf16.mxu0 %v5154
  %7333 = vmatpush1.bf16.msra.mxu0 %v5153
  %7334 = vmatprep.subr.bf16.mxu0 %v5158
  %7335 = vmatpush1.bf16.msra.mxu0 %v5157
  %7336 = vmatprep.subr.bf16.mxu0 %v5162
  %7337 = vmatpush1.bf16.msra.mxu0 %v5161
  %7338 = vmatprep.subr.bf16.mxu0 0
  %7339 = vmatpush1.bf16.msra.mxu0 0
  %7340 = vmatprep.subr.bf16.mxu0 0
  %7341 = vmatpush1.bf16.msra.mxu0 0
  %7342 = vmatprep.subr.bf16.mxu0 0
  %7343 = vmatpush1.bf16.msra.mxu0 0
  %7344 = vmatprep.subr.bf16.mxu0 0
  %7345 = vmatpush1.bf16.msra.mxu0 0
  %7346 = vmatprep.subr.bf16.mxu0 0
  %7347 = vmatpush1.bf16.msra.mxu0 0
  %7348 = vmatprep.subr.bf16.mxu0 0
  %7349 = vmatpush1.bf16.msra.mxu0 0
  %7350 = vmatprep.subr.bf16.mxu0 0
  %7351 = vmatpush1.bf16.msra.mxu0 0
  %7352 = vmatprep.subr.bf16.mxu0 0
  %7353 = vmatpush1.bf16.msra.mxu0 0
  %7354 = vmatprep.subr.bf16.mxu0 0
  %7355 = vmatpush1.bf16.msra.mxu0 0
  %7356 = vmatprep.subr.bf16.mxu0 0
  %7357 = vmatpush1.bf16.msra.mxu0 0
  %7358 = vmatprep.subr.bf16.mxu0 0
  %7359 = vmatpush1.bf16.msra.mxu0 0
  %7360 = vmatprep.subr.bf16.mxu0 0
  %7361 = vmatpush1.bf16.msra.mxu0 0
  %7362 = vmatprep.mubr.bf16.mxu0 0
  %7363 = vmatmul.mubr.bf16.gmra.mrb[0].mxu0 %v5951
  %v7364 = vpop.f32.mrb[0].mxu0
  %v7365 = vadd.f32 %v7252, %v7364
  %v7366 = vpop.f32.mrb[0].mxu0
  %v7367 = vadd.f32 %v7254, %v7366
  %v7368 = vpop.f32.mrb[0].mxu0
  %v7369 = vadd.f32 %v7256, %v7368
  %v7370 = vpop.f32.mrb[0].mxu0
  %v7371 = vadd.f32 %v7258, %v7370
  %7372 = vmatprep.mubr.bf16.mxu0 0
  %7373 = vmatmul.mubr.bf16.gmra.mrb[0].mxu0 %v5954
  %v7374 = vpop.f32.mrb[0].mxu0
  %v7375 = vadd.f32 %v7262, %v7374
  %v7376 = vpop.f32.mrb[0].mxu0
  %v7377 = vadd.f32 %v7264, %v7376
  %v7378 = vpop.f32.mrb[0].mxu0
  %v7379 = vadd.f32 %v7266, %v7378
  %v7380 = vpop.f32.mrb[0].mxu0
  %v7381 = vadd.f32 %v7268, %v7380
  %7382 = vmatprep.mubr.bf16.mxu0 0
  %7383 = vmatmul.mubr.bf16.gmra.mrb[0].mxu0 %v5957
  %v7384 = vpop.f32.mrb[0].mxu0
  %v7385 = vadd.f32 %v7272, %v7384
  %v7386 = vpop.f32.mrb[0].mxu0
  %v7387 = vadd.f32 %v7274, %v7386
  %v7388 = vpop.f32.mrb[0].mxu0
  %v7389 = vadd.f32 %v7276, %v7388
  %v7390 = vpop.f32.mrb[0].mxu0
  %v7391 = vadd.f32 %v7278, %v7390
  %7392 = vmatprep.mubr.bf16.mxu0 0
  %7393 = vmatmul.mubr.bf16.gmra.mrb[0].mxu0 %v5960
  %v7394 = vpop.f32.mrb[0].mxu0
  %v7395 = vadd.f32 %v7282, %v7394
  %v7396 = vpop.f32.mrb[0].mxu0
  %v7397 = vadd.f32 %v7284, %v7396
  %v7398 = vpop.f32.mrb[0].mxu0
  %v7399 = vadd.f32 %v7286, %v7398
  %v7400 = vpop.f32.mrb[0].mxu0
  %v7401 = vadd.f32 %v7288, %v7400
  %7402 = vmatprep.mubr.bf16.mxu0 0
  %7403 = vmatmul.mubr.bf16.gmra.mrb[0].mxu0 %v5963
  %v7404 = vpop.f32.mrb[0].mxu0
  %v7405 = vadd.f32 %v7292, %v7404
  %v7406 = vpop.f32.mrb[0].mxu0
  %v7407 = vadd.f32 %v7294, %v7406
  %v7408 = vpop.f32.mrb[0].mxu0
  %v7409 = vadd.f32 %v7296, %v7408
  %v7410 = vpop.f32.mrb[0].mxu0
  %v7411 = vadd.f32 %v7298, %v7410
  %7412 = vmatprep.mubr.bf16.mxu0 0
  %7413 = vmatmul.mubr.bf16.gmra.mrb[0].mxu0 %v5966
  %v7414 = vpop.f32.mrb[0].mxu0
  %v7415 = vadd.f32 %v7302, %v7414
  %v7416 = vpop.f32.mrb[0].mxu0
  %v7417 = vadd.f32 %v7304, %v7416
  %v7418 = vpop.f32.mrb[0].mxu0
  %v7419 = vadd.f32 %v7306, %v7418
  %v7420 = vpop.f32.mrb[0].mxu0
  %v7421 = vadd.f32 %v7308, %v7420
  %7422 = vmatprep.mubr.bf16.mxu0 0
  %7423 = vmatmul.mubr.bf16.gmra.mrb[0].mxu0 %v5969
  %v7424 = vpop.f32.mrb[0].mxu0
  %v7425 = vadd.f32 %v7312, %v7424
  %v7426 = vpop.f32.mrb[0].mxu0
  %v7427 = vadd.f32 %v7314, %v7426
  %v7428 = vpop.f32.mrb[0].mxu0
  %v7429 = vadd.f32 %v7316, %v7428
  %v7430 = vpop.f32.mrb[0].mxu0
  %v7431 = vadd.f32 %v7318, %v7430
  %7432 = vmatprep.mubr.bf16.mxu0 0
  %7433 = vmatmul.mubr.bf16.gmra.mrb[0].mxu0 %v5972
  %v7434 = vpop.f32.mrb[0].mxu0
  %v7435 = vadd.f32 %v7322, %v7434
  %v7436 = vpop.f32.mrb[0].mxu0
  %v7437 = vadd.f32 %v7324, %v7436
  %v7438 = vpop.f32.mrb[0].mxu0
  %v7439 = vadd.f32 %v7326, %v7438
  %v7440 = vpop.f32.mrb[0].mxu0
  %v7441 = vadd.f32 %v7328, %v7440
  %7442 = vdwg.mxu0
  %7443 = vmatprep.subr.bf16.mxu0 %v4384
  %7444 = vmatpush1.bf16.msra.mxu0 %v4383
  %7445 = vmatprep.subr.bf16.mxu0 %v4388
  %7446 = vmatpush1.bf16.msra.mxu0 %v4387
  %7447 = vmatprep.subr.bf16.mxu0 %v4392
  %7448 = vmatpush1.bf16.msra.mxu0 %v4391
  %7449 = vmatprep.subr.bf16.mxu0 %v4396
  %7450 = vmatpush1.bf16.msra.mxu0 %v4395
  %7451 = vmatprep.subr.bf16.mxu0 %v4400
  %7452 = vmatpush1.bf16.msra.mxu0 %v4399
  %7453 = vmatprep.subr.bf16.mxu0 %v4404
  %7454 = vmatpush1.bf16.msra.mxu0 %v4403
  %7455 = vmatprep.subr.bf16.mxu0 %v4408
  %7456 = vmatpush1.bf16.msra.mxu0 %v4407
  %7457 = vmatprep.subr.bf16.mxu0 %v4412
  %7458 = vmatpush1.bf16.msra.mxu0 %v4411
  %7459 = vmatprep.subr.bf16.mxu0 %v4416
  %7460 = vmatpush1.bf16.msra.mxu0 %v4415
  %7461 = vmatprep.subr.bf16.mxu0 %v4420
  %7462 = vmatpush1.bf16.msra.mxu0 %v4419
  %7463 = vmatprep.subr.bf16.mxu0 %v4424
  %7464 = vmatpush1.bf16.msra.mxu0 %v4423
  %7465 = vmatprep.subr.bf16.mxu0 %v4428
  %7466 = vmatpush1.bf16.msra.mxu0 %v4427
  %7467 = vmatprep.subr.bf16.mxu0 %v4432
  %7468 = vmatpush1.bf16.msra.mxu0 %v4431
  %7469 = vmatprep.subr.bf16.mxu0 %v4436
  %7470 = vmatpush1.bf16.msra.mxu0 %v4435
  %7471 = vmatprep.subr.bf16.mxu0 %v4440
  %7472 = vmatpush1.bf16.msra.mxu0 %v4439
  %7473 = vmatprep.subr.bf16.mxu0 %v4444
  %7474 = vmatpush1.bf16.msra.mxu0 %v4443
  %7475 = vmatprep.mubr.bf16.mxu0 %v1638
  %7476 = vmatmul.mubr.bf16.gmra.mrb[0].mxu0 %v1637
  %v7477 = vpop.f32.mrb[0].mxu0
  %v7478 = vadd.f32 %v1020, %v7477
  %v7479 = vpop.f32.mrb[0].mxu0
  %v7480 = vadd.f32 %v1024, %v7479
  %v7481 = vpop.f32.mrb[0].mxu0
  %v7482 = vadd.f32 %v1020, %v7481
  %v7483 = vpop.f32.mrb[0].mxu0
  %v7484 = vadd.f32 %v1024, %v7483
  %7485 = vmatprep.mubr.bf16.mxu0 %v1663
  %7486 = vmatmul.mubr.bf16.gmra.mrb[0].mxu0 %v1662
  %v7487 = vpop.f32.mrb[0].mxu0
  %v7488 = vadd.f32 %v1020, %v7487
  %v7489 = vpop.f32.mrb[0].mxu0
  %v7490 = vadd.f32 %v1024, %v7489
  %v7491 = vpop.f32.mrb[0].mxu0
  %v7492 = vadd.f32 %v1020, %v7491
  %v7493 = vpop.f32.mrb[0].mxu0
  %v7494 = vadd.f32 %v1024, %v7493
  %7495 = vmatprep.mubr.bf16.mxu0 %v1688
  %7496 = vmatmul.mubr.bf16.gmra.mrb[0].mxu0 %v1687
  %v7497 = vpop.f32.mrb[0].mxu0
  %v7498 = vadd.f32 %v1020, %v7497
  %v7499 = vpop.f32.mrb[0].mxu0
  %v7500 = vadd.f32 %v1024, %v7499
  %v7501 = vpop.f32.mrb[0].mxu0
  %v7502 = vadd.f32 %v1020, %v7501
  %v7503 = vpop.f32.mrb[0].mxu0
  %v7504 = vadd.f32 %v1024, %v7503
  %7505 = vmatprep.mubr.bf16.mxu0 %v1713
  %7506 = vmatmul.mubr.bf16.gmra.mrb[0].mxu0 %v1712
  %v7507 = vpop.f32.mrb[0].mxu0
  %v7508 = vadd.f32 %v1020, %v7507
  %v7509 = vpop.f32.mrb[0].mxu0
  %v7510 = vadd.f32 %v1024, %v7509
  %v7511 = vpop.f32.mrb[0].mxu0
  %v7512 = vadd.f32 %v1020, %v7511
  %v7513 = vpop.f32.mrb[0].mxu0
  %v7514 = vadd.f32 %v1024, %v7513
  %7515 = vmatprep.mubr.bf16.mxu0 %v1738
  %7516 = vmatmul.mubr.bf16.gmra.mrb[0].mxu0 %v1737
  %v7517 = vpop.f32.mrb[0].mxu0
  %v7518 = vadd.f32 %v1020, %v7517
  %v7519 = vpop.f32.mrb[0].mxu0
  %v7520 = vadd.f32 %v1024, %v7519
  %v7521 = vpop.f32.mrb[0].mxu0
  %v7522 = vadd.f32 %v1020, %v7521
  %v7523 = vpop.f32.mrb[0].mxu0
  %v7524 = vadd.f32 %v1024, %v7523
  %7525 = vmatprep.mubr.bf16.mxu0 %v1763
  %7526 = vmatmul.mubr.bf16.gmra.mrb[0].mxu0 %v1762
  %v7527 = vpop.f32.mrb[0].mxu0
  %v7528 = vadd.f32 %v1020, %v7527
  %v7529 = vpop.f32.mrb[0].mxu0
  %v7530 = vadd.f32 %v1024, %v7529
  %v7531 = vpop.f32.mrb[0].mxu0
  %v7532 = vadd.f32 %v1020, %v7531
  %v7533 = vpop.f32.mrb[0].mxu0
  %v7534 = vadd.f32 %v1024, %v7533
  %7535 = vmatprep.mubr.bf16.mxu0 %v1788
  %7536 = vmatmul.mubr.bf16.gmra.mrb[0].mxu0 %v1787
  %v7537 = vpop.f32.mrb[0].mxu0
  %v7538 = vadd.f32 %v1020, %v7537
  %v7539 = vpop.f32.mrb[0].mxu0
  %v7540 = vadd.f32 %v1024, %v7539
  %v7541 = vpop.f32.mrb[0].mxu0
  %v7542 = vadd.f32 %v1020, %v7541
  %v7543 = vpop.f32.mrb[0].mxu0
  %v7544 = vadd.f32 %v1024, %v7543
  %7545 = vmatprep.mubr.bf16.mxu0 %v1813
  %7546 = vmatmul.mubr.bf16.gmra.mrb[0].mxu0 %v1812
  %v7547 = vpop.f32.mrb[0].mxu0
  %v7548 = vadd.f32 %v1020, %v7547
  %v7549 = vpop.f32.mrb[0].mxu0
  %v7550 = vadd.f32 %v1024, %v7549
  %v7551 = vpop.f32.mrb[0].mxu0
  %v7552 = vadd.f32 %v1020, %v7551
  %v7553 = vpop.f32.mrb[0].mxu0
  %v7554 = vadd.f32 %v1024, %v7553
  %7555 = vdwg.mxu0
  %7556 = vmatprep.subr.bf16.mxu0 %v4448
  %7557 = vmatpush1.bf16.msra.mxu0 %v4447
  %7558 = vmatprep.subr.bf16.mxu0 %v4452
  %7559 = vmatpush1.bf16.msra.mxu0 %v4451
  %7560 = vmatprep.subr.bf16.mxu0 %v4456
  %7561 = vmatpush1.bf16.msra.mxu0 %v4455
  %7562 = vmatprep.subr.bf16.mxu0 %v4460
  %7563 = vmatpush1.bf16.msra.mxu0 %v4459
  %7564 = vmatprep.subr.bf16.mxu0 %v4464
  %7565 = vmatpush1.bf16.msra.mxu0 %v4463
  %7566 = vmatprep.subr.bf16.mxu0 %v4468
  %7567 = vmatpush1.bf16.msra.mxu0 %v4467
  %7568 = vmatprep.subr.bf16.mxu0 %v4472
  %7569 = vmatpush1.bf16.msra.mxu0 %v4471
  %7570 = vmatprep.subr.bf16.mxu0 %v4476
  %7571 = vmatpush1.bf16.msra.mxu0 %v4475
  %7572 = vmatprep.subr.bf16.mxu0 %v4480
  %7573 = vmatpush1.bf16.msra.mxu0 %v4479
  %7574 = vmatprep.subr.bf16.mxu0 %v4484
  %7575 = vmatpush1.bf16.msra.mxu0 %v4483
  %7576 = vmatprep.subr.bf16.mxu0 %v4488
  %7577 = vmatpush1.bf16.msra.mxu0 %v4487
  %7578 = vmatprep.subr.bf16.mxu0 %v4492
  %7579 = vmatpush1.bf16.msra.mxu0 %v4491
  %7580 = vmatprep.subr.bf16.mxu0 %v4496
  %7581 = vmatpush1.bf16.msra.mxu0 %v4495
  %7582 = vmatprep.subr.bf16.mxu0 %v4500
  %7583 = vmatpush1.bf16.msra.mxu0 %v4499
  %7584 = vmatprep.subr.bf16.mxu0 %v4504
  %7585 = vmatpush1.bf16.msra.mxu0 %v4503
  %7586 = vmatprep.subr.bf16.mxu0 %v4508
  %7587 = vmatpush1.bf16.msra.mxu0 %v4507
  %7588 = vmatprep.mubr.bf16.mxu0 %v1640
  %7589 = vmatmul.mubr.bf16.gmra.mrb[0].mxu0 %v1639
  %v7590 = vpop.f32.mrb[0].mxu0
  %v7591 = vadd.f32 %v7478, %v7590
  %v7592 = vpop.f32.mrb[0].mxu0
  %v7593 = vadd.f32 %v7480, %v7592
  %v7594 = vpop.f32.mrb[0].mxu0
  %v7595 = vadd.f32 %v7482, %v7594
  %v7596 = vpop.f32.mrb[0].mxu0
  %v7597 = vadd.f32 %v7484, %v7596
  %7598 = vmatprep.mubr.bf16.mxu0 %v1665
  %7599 = vmatmul.mubr.bf16.gmra.mrb[0].mxu0 %v1664
  %v7600 = vpop.f32.mrb[0].mxu0
  %v7601 = vadd.f32 %v7488, %v7600
  %v7602 = vpop.f32.mrb[0].mxu0
  %v7603 = vadd.f32 %v7490, %v7602
  %v7604 = vpop.f32.mrb[0].mxu0
  %v7605 = vadd.f32 %v7492, %v7604
  %v7606 = vpop.f32.mrb[0].mxu0
  %v7607 = vadd.f32 %v7494, %v7606
  %7608 = vmatprep.mubr.bf16.mxu0 %v1690
  %7609 = vmatmul.mubr.bf16.gmra.mrb[0].mxu0 %v1689
  %v7610 = vpop.f32.mrb[0].mxu0
  %v7611 = vadd.f32 %v7498, %v7610
  %v7612 = vpop.f32.mrb[0].mxu0
  %v7613 = vadd.f32 %v7500, %v7612
  %v7614 = vpop.f32.mrb[0].mxu0
  %v7615 = vadd.f32 %v7502, %v7614
  %v7616 = vpop.f32.mrb[0].mxu0
  %v7617 = vadd.f32 %v7504, %v7616
  %7618 = vmatprep.mubr.bf16.mxu0 %v1715
  %7619 = vmatmul.mubr.bf16.gmra.mrb[0].mxu0 %v1714
  %v7620 = vpop.f32.mrb[0].mxu0
  %v7621 = vadd.f32 %v7508, %v7620
  %v7622 = vpop.f32.mrb[0].mxu0
  %v7623 = vadd.f32 %v7510, %v7622
  %v7624 = vpop.f32.mrb[0].mxu0
  %v7625 = vadd.f32 %v7512, %v7624
  %v7626 = vpop.f32.mrb[0].mxu0
  %v7627 = vadd.f32 %v7514, %v7626
  %7628 = vmatprep.mubr.bf16.mxu0 %v1740
  %7629 = vmatmul.mubr.bf16.gmra.mrb[0].mxu0 %v1739
  %v7630 = vpop.f32.mrb[0].mxu0
  %v7631 = vadd.f32 %v7518, %v7630
  %v7632 = vpop.f32.mrb[0].mxu0
  %v7633 = vadd.f32 %v7520, %v7632
  %v7634 = vpop.f32.mrb[0].mxu0
  %v7635 = vadd.f32 %v7522, %v7634
  %v7636 = vpop.f32.mrb[0].mxu0
  %v7637 = vadd.f32 %v7524, %v7636
  %7638 = vmatprep.mubr.bf16.mxu0 %v1765
  %7639 = vmatmul.mubr.bf16.gmra.mrb[0].mxu0 %v1764
  %v7640 = vpop.f32.mrb[0].mxu0
  %v7641 = vadd.f32 %v7528, %v7640
  %v7642 = vpop.f32.mrb[0].mxu0
  %v7643 = vadd.f32 %v7530, %v7642
  %v7644 = vpop.f32.mrb[0].mxu0
  %v7645 = vadd.f32 %v7532, %v7644
  %v7646 = vpop.f32.mrb[0].mxu0
  %v7647 = vadd.f32 %v7534, %v7646
  %7648 = vmatprep.mubr.bf16.mxu0 %v1790
  %7649 = vmatmul.mubr.bf16.gmra.mrb[0].mxu0 %v1789
  %v7650 = vpop.f32.mrb[0].mxu0
  %v7651 = vadd.f32 %v7538, %v7650
  %v7652 = vpop.f32.mrb[0].mxu0
  %v7653 = vadd.f32 %v7540, %v7652
  %v7654 = vpop.f32.mrb[0].mxu0
  %v7655 = vadd.f32 %v7542, %v7654
  %v7656 = vpop.f32.mrb[0].mxu0
  %v7657 = vadd.f32 %v7544, %v7656
  %7658 = vmatprep.mubr.bf16.mxu0 %v1815
  %7659 = vmatmul.mubr.bf16.gmra.mrb[0].mxu0 %v1814
  %v7660 = vpop.f32.mrb[0].mxu0
  %v7661 = vadd.f32 %v7548, %v7660
  %v7662 = vpop.f32.mrb[0].mxu0
  %v7663 = vadd.f32 %v7550, %v7662
  %v7664 = vpop.f32.mrb[0].mxu0
  %v7665 = vadd.f32 %v7552, %v7664
  %v7666 = vpop.f32.mrb[0].mxu0
  %v7667 = vadd.f32 %v7554, %v7666
  %7668 = vdwg.mxu0
  %7669 = vmatprep.subr.bf16.mxu0 %v4512
  %7670 = vmatpush1.bf16.msra.mxu0 %v4511
  %7671 = vmatprep.subr.bf16.mxu0 %v4516
  %7672 = vmatpush1.bf16.msra.mxu0 %v4515
  %7673 = vmatprep.subr.bf16.mxu0 %v4520
  %7674 = vmatpush1.bf16.msra.mxu0 %v4519
  %7675 = vmatprep.subr.bf16.mxu0 %v4524
  %7676 = vmatpush1.bf16.msra.mxu0 %v4523
  %7677 = vmatprep.subr.bf16.mxu0 %v4528
  %7678 = vmatpush1.bf16.msra.mxu0 %v4527
  %7679 = vmatprep.subr.bf16.mxu0 %v4532
  %7680 = vmatpush1.bf16.msra.mxu0 %v4531
  %7681 = vmatprep.subr.bf16.mxu0 %v4536
  %7682 = vmatpush1.bf16.msra.mxu0 %v4535
  %7683 = vmatprep.subr.bf16.mxu0 %v4540
  %7684 = vmatpush1.bf16.msra.mxu0 %v4539
  %7685 = vmatprep.subr.bf16.mxu0 %v4544
  %7686 = vmatpush1.bf16.msra.mxu0 %v4543
  %7687 = vmatprep.subr.bf16.mxu0 %v4548
  %7688 = vmatpush1.bf16.msra.mxu0 %v4547
  %7689 = vmatprep.subr.bf16.mxu0 %v4552
  %7690 = vmatpush1.bf16.msra.mxu0 %v4551
  %7691 = vmatprep.subr.bf16.mxu0 %v4556
  %7692 = vmatpush1.bf16.msra.mxu0 %v4555
  %7693 = vmatprep.subr.bf16.mxu0 %v4560
  %7694 = vmatpush1.bf16.msra.mxu0 %v4559
  %7695 = vmatprep.subr.bf16.mxu0 %v4564
  %7696 = vmatpush1.bf16.msra.mxu0 %v4563
  %7697 = vmatprep.subr.bf16.mxu0 %v4568
  %7698 = vmatpush1.bf16.msra.mxu0 %v4567
  %7699 = vmatprep.subr.bf16.mxu0 %v4572
  %7700 = vmatpush1.bf16.msra.mxu0 %v4571
  %7701 = vmatprep.mubr.bf16.mxu0 %v1642
  %7702 = vmatmul.mubr.bf16.gmra.mrb[0].mxu0 %v1641
  %v7703 = vpop.f32.mrb[0].mxu0
  %v7704 = vadd.f32 %v7591, %v7703
  %v7705 = vpop.f32.mrb[0].mxu0
  %v7706 = vadd.f32 %v7593, %v7705
  %v7707 = vpop.f32.mrb[0].mxu0
  %v7708 = vadd.f32 %v7595, %v7707
  %v7709 = vpop.f32.mrb[0].mxu0
  %v7710 = vadd.f32 %v7597, %v7709
  %7711 = vmatprep.mubr.bf16.mxu0 %v1667
  %7712 = vmatmul.mubr.bf16.gmra.mrb[0].mxu0 %v1666
  %v7713 = vpop.f32.mrb[0].mxu0
  %v7714 = vadd.f32 %v7601, %v7713
  %v7715 = vpop.f32.mrb[0].mxu0
  %v7716 = vadd.f32 %v7603, %v7715
  %v7717 = vpop.f32.mrb[0].mxu0
  %v7718 = vadd.f32 %v7605, %v7717
  %v7719 = vpop.f32.mrb[0].mxu0
  %v7720 = vadd.f32 %v7607, %v7719
  %7721 = vmatprep.mubr.bf16.mxu0 %v1692
  %7722 = vmatmul.mubr.bf16.gmra.mrb[0].mxu0 %v1691
  %v7723 = vpop.f32.mrb[0].mxu0
  %v7724 = vadd.f32 %v7611, %v7723
  %v7725 = vpop.f32.mrb[0].mxu0
  %v7726 = vadd.f32 %v7613, %v7725
  %v7727 = vpop.f32.mrb[0].mxu0
  %v7728 = vadd.f32 %v7615, %v7727
  %v7729 = vpop.f32.mrb[0].mxu0
  %v7730 = vadd.f32 %v7617, %v7729
  %7731 = vmatprep.mubr.bf16.mxu0 %v1717
  %7732 = vmatmul.mubr.bf16.gmra.mrb[0].mxu0 %v1716
  %v7733 = vpop.f32.mrb[0].mxu0
  %v7734 = vadd.f32 %v7621, %v7733
  %v7735 = vpop.f32.mrb[0].mxu0
  %v7736 = vadd.f32 %v7623, %v7735
  %v7737 = vpop.f32.mrb[0].mxu0
  %v7738 = vadd.f32 %v7625, %v7737
  %v7739 = vpop.f32.mrb[0].mxu0
  %v7740 = vadd.f32 %v7627, %v7739
  %7741 = vmatprep.mubr.bf16.mxu0 %v1742
  %7742 = vmatmul.mubr.bf16.gmra.mrb[0].mxu0 %v1741
  %v7743 = vpop.f32.mrb[0].mxu0
  %v7744 = vadd.f32 %v7631, %v7743
  %v7745 = vpop.f32.mrb[0].mxu0
  %v7746 = vadd.f32 %v7633, %v7745
  %v7747 = vpop.f32.mrb[0].mxu0
  %v7748 = vadd.f32 %v7635, %v7747
  %v7749 = vpop.f32.mrb[0].mxu0
  %v7750 = vadd.f32 %v7637, %v7749
  %7751 = vmatprep.mubr.bf16.mxu0 %v1767
  %7752 = vmatmul.mubr.bf16.gmra.mrb[0].mxu0 %v1766
  %v7753 = vpop.f32.mrb[0].mxu0
  %v7754 = vadd.f32 %v7641, %v7753
  %v7755 = vpop.f32.mrb[0].mxu0
  %v7756 = vadd.f32 %v7643, %v7755
  %v7757 = vpop.f32.mrb[0].mxu0
  %v7758 = vadd.f32 %v7645, %v7757
  %v7759 = vpop.f32.mrb[0].mxu0
  %v7760 = vadd.f32 %v7647, %v7759
  %7761 = vmatprep.mubr.bf16.mxu0 %v1792
  %7762 = vmatmul.mubr.bf16.gmra.mrb[0].mxu0 %v1791
  %v7763 = vpop.f32.mrb[0].mxu0
  %v7764 = vadd.f32 %v7651, %v7763
  %v7765 = vpop.f32.mrb[0].mxu0
  %v7766 = vadd.f32 %v7653, %v7765
  %v7767 = vpop.f32.mrb[0].mxu0
  %v7768 = vadd.f32 %v7655, %v7767
  %v7769 = vpop.f32.mrb[0].mxu0
  %v7770 = vadd.f32 %v7657, %v7769
  %7771 = vmatprep.mubr.bf16.mxu0 %v1817
  %7772 = vmatmul.mubr.bf16.gmra.mrb[0].mxu0 %v1816
  %v7773 = vpop.f32.mrb[0].mxu0
  %v7774 = vadd.f32 %v7661, %v7773
  %v7775 = vpop.f32.mrb[0].mxu0
  %v7776 = vadd.f32 %v7663, %v7775
  %v7777 = vpop.f32.mrb[0].mxu0
  %v7778 = vadd.f32 %v7665, %v7777
  %v7779 = vpop.f32.mrb[0].mxu0
  %v7780 = vadd.f32 %v7667, %v7779
  %7781 = vdwg.mxu0
  %7782 = vmatprep.subr.bf16.mxu0 %v4576
  %7783 = vmatpush1.bf16.msra.mxu0 %v4575
  %7784 = vmatprep.subr.bf16.mxu0 %v4580
  %7785 = vmatpush1.bf16.msra.mxu0 %v4579
  %7786 = vmatprep.subr.bf16.mxu0 %v4584
  %7787 = vmatpush1.bf16.msra.mxu0 %v4583
  %7788 = vmatprep.subr.bf16.mxu0 %v4588
  %7789 = vmatpush1.bf16.msra.mxu0 %v4587
  %7790 = vmatprep.subr.bf16.mxu0 %v4592
  %7791 = vmatpush1.bf16.msra.mxu0 %v4591
  %7792 = vmatprep.subr.bf16.mxu0 %v4596
  %7793 = vmatpush1.bf16.msra.mxu0 %v4595
  %7794 = vmatprep.subr.bf16.mxu0 %v4600
  %7795 = vmatpush1.bf16.msra.mxu0 %v4599
  %7796 = vmatprep.subr.bf16.mxu0 %v4604
  %7797 = vmatpush1.bf16.msra.mxu0 %v4603
  %7798 = vmatprep.subr.bf16.mxu0 %v4608
  %7799 = vmatpush1.bf16.msra.mxu0 %v4607
  %7800 = vmatprep.subr.bf16.mxu0 %v4612
  %7801 = vmatpush1.bf16.msra.mxu0 %v4611
  %7802 = vmatprep.subr.bf16.mxu0 %v4616
  %7803 = vmatpush1.bf16.msra.mxu0 %v4615
  %7804 = vmatprep.subr.bf16.mxu0 %v4620
  %7805 = vmatpush1.bf16.msra.mxu0 %v4619
  %7806 = vmatprep.subr.bf16.mxu0 %v4624
  %7807 = vmatpush1.bf16.msra.mxu0 %v4623
  %7808 = vmatprep.subr.bf16.mxu0 %v4628
  %7809 = vmatpush1.bf16.msra.mxu0 %v4627
  %7810 = vmatprep.subr.bf16.mxu0 %v4632
  %7811 = vmatpush1.bf16.msra.mxu0 %v4631
  %7812 = vmatprep.subr.bf16.mxu0 %v4636
  %7813 = vmatpush1.bf16.msra.mxu0 %v4635
  %7814 = vmatprep.mubr.bf16.mxu0 %v1644
  %7815 = vmatmul.mubr.bf16.gmra.mrb[0].mxu0 %v1643
  %v7816 = vpop.f32.mrb[0].mxu0
  %v7817 = vadd.f32 %v7704, %v7816
  %v7818 = vpop.f32.mrb[0].mxu0
  %v7819 = vadd.f32 %v7706, %v7818
  %v7820 = vpop.f32.mrb[0].mxu0
  %v7821 = vadd.f32 %v7708, %v7820
  %v7822 = vpop.f32.mrb[0].mxu0
  %v7823 = vadd.f32 %v7710, %v7822
  %7824 = vmatprep.mubr.bf16.mxu0 %v1669
  %7825 = vmatmul.mubr.bf16.gmra.mrb[0].mxu0 %v1668
  %v7826 = vpop.f32.mrb[0].mxu0
  %v7827 = vadd.f32 %v7714, %v7826
  %v7828 = vpop.f32.mrb[0].mxu0
  %v7829 = vadd.f32 %v7716, %v7828
  %v7830 = vpop.f32.mrb[0].mxu0
  %v7831 = vadd.f32 %v7718, %v7830
  %v7832 = vpop.f32.mrb[0].mxu0
  %v7833 = vadd.f32 %v7720, %v7832
  %7834 = vmatprep.mubr.bf16.mxu0 %v1694
  %7835 = vmatmul.mubr.bf16.gmra.mrb[0].mxu0 %v1693
  %v7836 = vpop.f32.mrb[0].mxu0
  %v7837 = vadd.f32 %v7724, %v7836
  %v7838 = vpop.f32.mrb[0].mxu0
  %v7839 = vadd.f32 %v7726, %v7838
  %v7840 = vpop.f32.mrb[0].mxu0
  %v7841 = vadd.f32 %v7728, %v7840
  %v7842 = vpop.f32.mrb[0].mxu0
  %v7843 = vadd.f32 %v7730, %v7842
  %7844 = vmatprep.mubr.bf16.mxu0 %v1719
  %7845 = vmatmul.mubr.bf16.gmra.mrb[0].mxu0 %v1718
  %v7846 = vpop.f32.mrb[0].mxu0
  %v7847 = vadd.f32 %v7734, %v7846
  %v7848 = vpop.f32.mrb[0].mxu0
  %v7849 = vadd.f32 %v7736, %v7848
  %v7850 = vpop.f32.mrb[0].mxu0
  %v7851 = vadd.f32 %v7738, %v7850
  %v7852 = vpop.f32.mrb[0].mxu0
  %v7853 = vadd.f32 %v7740, %v7852
  %7854 = vmatprep.mubr.bf16.mxu0 %v1744
  %7855 = vmatmul.mubr.bf16.gmra.mrb[0].mxu0 %v1743
  %v7856 = vpop.f32.mrb[0].mxu0
  %v7857 = vadd.f32 %v7744, %v7856
  %v7858 = vpop.f32.mrb[0].mxu0
  %v7859 = vadd.f32 %v7746, %v7858
  %v7860 = vpop.f32.mrb[0].mxu0
  %v7861 = vadd.f32 %v7748, %v7860
  %v7862 = vpop.f32.mrb[0].mxu0
  %v7863 = vadd.f32 %v7750, %v7862
  %7864 = vmatprep.mubr.bf16.mxu0 %v1769
  %7865 = vmatmul.mubr.bf16.gmra.mrb[0].mxu0 %v1768
  %v7866 = vpop.f32.mrb[0].mxu0
  %v7867 = vadd.f32 %v7754, %v7866
  %v7868 = vpop.f32.mrb[0].mxu0
  %v7869 = vadd.f32 %v7756, %v7868
  %v7870 = vpop.f32.mrb[0].mxu0
  %v7871 = vadd.f32 %v7758, %v7870
  %v7872 = vpop.f32.mrb[0].mxu0
  %v7873 = vadd.f32 %v7760, %v7872
  %7874 = vmatprep.mubr.bf16.mxu0 %v1794
  %7875 = vmatmul.mubr.bf16.gmra.mrb[0].mxu0 %v1793
  %v7876 = vpop.f32.mrb[0].mxu0
  %v7877 = vadd.f32 %v7764, %v7876
  %v7878 = vpop.f32.mrb[0].mxu0
  %v7879 = vadd.f32 %v7766, %v7878
  %v7880 = vpop.f32.mrb[0].mxu0
  %v7881 = vadd.f32 %v7768, %v7880
  %v7882 = vpop.f32.mrb[0].mxu0
  %v7883 = vadd.f32 %v7770, %v7882
  %7884 = vmatprep.mubr.bf16.mxu0 %v1819
  %7885 = vmatmul.mubr.bf16.gmra.mrb[0].mxu0 %v1818
  %v7886 = vpop.f32.mrb[0].mxu0
  %v7887 = vadd.f32 %v7774, %v7886
  %v7888 = vpop.f32.mrb[0].mxu0
  %v7889 = vadd.f32 %v7776, %v7888
  %v7890 = vpop.f32.mrb[0].mxu0
  %v7891 = vadd.f32 %v7778, %v7890
  %v7892 = vpop.f32.mrb[0].mxu0
  %v7893 = vadd.f32 %v7780, %v7892
  %7894 = vdwg.mxu0
  %7895 = vmatprep.subr.bf16.mxu0 %v4640
  %7896 = vmatpush1.bf16.msra.mxu0 %v4639
  %7897 = vmatprep.subr.bf16.mxu0 %v4644
  %7898 = vmatpush1.bf16.msra.mxu0 %v4643
  %7899 = vmatprep.subr.bf16.mxu0 %v4648
  %7900 = vmatpush1.bf16.msra.mxu0 %v4647
  %7901 = vmatprep.subr.bf16.mxu0 %v4652
  %7902 = vmatpush1.bf16.msra.mxu0 %v4651
  %7903 = vmatprep.subr.bf16.mxu0 %v4656
  %7904 = vmatpush1.bf16.msra.mxu0 %v4655
  %7905 = vmatprep.subr.bf16.mxu0 %v4660
  %7906 = vmatpush1.bf16.msra.mxu0 %v4659
  %7907 = vmatprep.subr.bf16.mxu0 %v4664
  %7908 = vmatpush1.bf16.msra.mxu0 %v4663
  %7909 = vmatprep.subr.bf16.mxu0 %v4668
  %7910 = vmatpush1.bf16.msra.mxu0 %v4667
  %7911 = vmatprep.subr.bf16.mxu0 %v4672
  %7912 = vmatpush1.bf16.msra.mxu0 %v4671
  %7913 = vmatprep.subr.bf16.mxu0 %v4676
  %7914 = vmatpush1.bf16.msra.mxu0 %v4675
  %7915 = vmatprep.subr.bf16.mxu0 %v4680
  %7916 = vmatpush1.bf16.msra.mxu0 %v4679
  %7917 = vmatprep.subr.bf16.mxu0 %v4684
  %7918 = vmatpush1.bf16.msra.mxu0 %v4683
  %7919 = vmatprep.subr.bf16.mxu0 %v4688
  %7920 = vmatpush1.bf16.msra.mxu0 %v4687
  %7921 = vmatprep.subr.bf16.mxu0 %v4692
  %7922 = vmatpush1.bf16.msra.mxu0 %v4691
  %7923 = vmatprep.subr.bf16.mxu0 %v4696
  %7924 = vmatpush1.bf16.msra.mxu0 %v4695
  %7925 = vmatprep.subr.bf16.mxu0 %v4700
  %7926 = vmatpush1.bf16.msra.mxu0 %v4699
  %7927 = vmatprep.mubr.bf16.mxu0 %v1646
  %7928 = vmatmul.mubr.bf16.gmra.mrb[0].mxu0 %v1645
  %v7929 = vpop.f32.mrb[0].mxu0
  %v7930 = vadd.f32 %v7817, %v7929
  %v7931 = vpop.f32.mrb[0].mxu0
  %v7932 = vadd.f32 %v7819, %v7931
  %v7933 = vpop.f32.mrb[0].mxu0
  %v7934 = vadd.f32 %v7821, %v7933
  %v7935 = vpop.f32.mrb[0].mxu0
  %v7936 = vadd.f32 %v7823, %v7935
  %7937 = vmatprep.mubr.bf16.mxu0 %v1671
  %7938 = vmatmul.mubr.bf16.gmra.mrb[0].mxu0 %v1670
  %v7939 = vpop.f32.mrb[0].mxu0
  %v7940 = vadd.f32 %v7827, %v7939
  %v7941 = vpop.f32.mrb[0].mxu0
  %v7942 = vadd.f32 %v7829, %v7941
  %v7943 = vpop.f32.mrb[0].mxu0
  %v7944 = vadd.f32 %v7831, %v7943
  %v7945 = vpop.f32.mrb[0].mxu0
  %v7946 = vadd.f32 %v7833, %v7945
  %7947 = vmatprep.mubr.bf16.mxu0 %v1696
  %7948 = vmatmul.mubr.bf16.gmra.mrb[0].mxu0 %v1695
  %v7949 = vpop.f32.mrb[0].mxu0
  %v7950 = vadd.f32 %v7837, %v7949
  %v7951 = vpop.f32.mrb[0].mxu0
  %v7952 = vadd.f32 %v7839, %v7951
  %v7953 = vpop.f32.mrb[0].mxu0
  %v7954 = vadd.f32 %v7841, %v7953
  %v7955 = vpop.f32.mrb[0].mxu0
  %v7956 = vadd.f32 %v7843, %v7955
  %7957 = vmatprep.mubr.bf16.mxu0 %v1721
  %7958 = vmatmul.mubr.bf16.gmra.mrb[0].mxu0 %v1720
  %v7959 = vpop.f32.mrb[0].mxu0
  %v7960 = vadd.f32 %v7847, %v7959
  %v7961 = vpop.f32.mrb[0].mxu0
  %v7962 = vadd.f32 %v7849, %v7961
  %v7963 = vpop.f32.mrb[0].mxu0
  %v7964 = vadd.f32 %v7851, %v7963
  %v7965 = vpop.f32.mrb[0].mxu0
  %v7966 = vadd.f32 %v7853, %v7965
  %7967 = vmatprep.mubr.bf16.mxu0 %v1746
  %7968 = vmatmul.mubr.bf16.gmra.mrb[0].mxu0 %v1745
  %v7969 = vpop.f32.mrb[0].mxu0
  %v7970 = vadd.f32 %v7857, %v7969
  %v7971 = vpop.f32.mrb[0].mxu0
  %v7972 = vadd.f32 %v7859, %v7971
  %v7973 = vpop.f32.mrb[0].mxu0
  %v7974 = vadd.f32 %v7861, %v7973
  %v7975 = vpop.f32.mrb[0].mxu0
  %v7976 = vadd.f32 %v7863, %v7975
  %7977 = vmatprep.mubr.bf16.mxu0 %v1771
  %7978 = vmatmul.mubr.bf16.gmra.mrb[0].mxu0 %v1770
  %v7979 = vpop.f32.mrb[0].mxu0
  %v7980 = vadd.f32 %v7867, %v7979
  %v7981 = vpop.f32.mrb[0].mxu0
  %v7982 = vadd.f32 %v7869, %v7981
  %v7983 = vpop.f32.mrb[0].mxu0
  %v7984 = vadd.f32 %v7871, %v7983
  %v7985 = vpop.f32.mrb[0].mxu0
  %v7986 = vadd.f32 %v7873, %v7985
  %7987 = vmatprep.mubr.bf16.mxu0 %v1796
  %7988 = vmatmul.mubr.bf16.gmra.mrb[0].mxu0 %v1795
  %v7989 = vpop.f32.mrb[0].mxu0
  %v7990 = vadd.f32 %v7877, %v7989
  %v7991 = vpop.f32.mrb[0].mxu0
  %v7992 = vadd.f32 %v7879, %v7991
  %v7993 = vpop.f32.mrb[0].mxu0
  %v7994 = vadd.f32 %v7881, %v7993
  %v7995 = vpop.f32.mrb[0].mxu0
  %v7996 = vadd.f32 %v7883, %v7995
  %7997 = vmatprep.mubr.bf16.mxu0 %v1821
  %7998 = vmatmul.mubr.bf16.gmra.mrb[0].mxu0 %v1820
  %v7999 = vpop.f32.mrb[0].mxu0
  %v8000 = vadd.f32 %v7887, %v7999
  %v8001 = vpop.f32.mrb[0].mxu0
  %v8002 = vadd.f32 %v7889, %v8001
  %v8003 = vpop.f32.mrb[0].mxu0
  %v8004 = vadd.f32 %v7891, %v8003
  %v8005 = vpop.f32.mrb[0].mxu0
  %v8006 = vadd.f32 %v7893, %v8005
  %8007 = vdwg.mxu0
  %8008 = vmatprep.subr.bf16.mxu0 %v4704
  %8009 = vmatpush1.bf16.msra.mxu0 %v4703
  %8010 = vmatprep.subr.bf16.mxu0 %v4708
  %8011 = vmatpush1.bf16.msra.mxu0 %v4707
  %8012 = vmatprep.subr.bf16.mxu0 %v4712
  %8013 = vmatpush1.bf16.msra.mxu0 %v4711
  %8014 = vmatprep.subr.bf16.mxu0 %v4716
  %8015 = vmatpush1.bf16.msra.mxu0 %v4715
  %8016 = vmatprep.subr.bf16.mxu0 %v4720
  %8017 = vmatpush1.bf16.msra.mxu0 %v4719
  %8018 = vmatprep.subr.bf16.mxu0 %v4724
  %8019 = vmatpush1.bf16.msra.mxu0 %v4723
  %8020 = vmatprep.subr.bf16.mxu0 %v4728
  %8021 = vmatpush1.bf16.msra.mxu0 %v4727
  %8022 = vmatprep.subr.bf16.mxu0 %v4732
  %8023 = vmatpush1.bf16.msra.mxu0 %v4731
  %8024 = vmatprep.subr.bf16.mxu0 %v4736
  %8025 = vmatpush1.bf16.msra.mxu0 %v4735
  %8026 = vmatprep.subr.bf16.mxu0 %v4740
  %8027 = vmatpush1.bf16.msra.mxu0 %v4739
  %8028 = vmatprep.subr.bf16.mxu0 %v4744
  %8029 = vmatpush1.bf16.msra.mxu0 %v4743
  %8030 = vmatprep.subr.bf16.mxu0 %v4748
  %8031 = vmatpush1.bf16.msra.mxu0 %v4747
  %8032 = vmatprep.subr.bf16.mxu0 %v4752
  %8033 = vmatpush1.bf16.msra.mxu0 %v4751
  %8034 = vmatprep.subr.bf16.mxu0 %v4756
  %8035 = vmatpush1.bf16.msra.mxu0 %v4755
  %8036 = vmatprep.subr.bf16.mxu0 %v4760
  %8037 = vmatpush1.bf16.msra.mxu0 %v4759
  %8038 = vmatprep.subr.bf16.mxu0 %v4764
  %8039 = vmatpush1.bf16.msra.mxu0 %v4763
  %8040 = vmatprep.mubr.bf16.mxu0 %v1648
  %8041 = vmatmul.mubr.bf16.gmra.mrb[0].mxu0 %v1647
  %v8042 = vpop.f32.mrb[0].mxu0
  %v8043 = vadd.f32 %v7930, %v8042
  %v8044 = vpop.f32.mrb[0].mxu0
  %v8045 = vadd.f32 %v7932, %v8044
  %v8046 = vpop.f32.mrb[0].mxu0
  %v8047 = vadd.f32 %v7934, %v8046
  %v8048 = vpop.f32.mrb[0].mxu0
  %v8049 = vadd.f32 %v7936, %v8048
  %8050 = vmatprep.mubr.bf16.mxu0 %v1673
  %8051 = vmatmul.mubr.bf16.gmra.mrb[0].mxu0 %v1672
  %v8052 = vpop.f32.mrb[0].mxu0
  %v8053 = vadd.f32 %v7940, %v8052
  %v8054 = vpop.f32.mrb[0].mxu0
  %v8055 = vadd.f32 %v7942, %v8054
  %v8056 = vpop.f32.mrb[0].mxu0
  %v8057 = vadd.f32 %v7944, %v8056
  %v8058 = vpop.f32.mrb[0].mxu0
  %v8059 = vadd.f32 %v7946, %v8058
  %8060 = vmatprep.mubr.bf16.mxu0 %v1698
  %8061 = vmatmul.mubr.bf16.gmra.mrb[0].mxu0 %v1697
  %v8062 = vpop.f32.mrb[0].mxu0
  %v8063 = vadd.f32 %v7950, %v8062
  %v8064 = vpop.f32.mrb[0].mxu0
  %v8065 = vadd.f32 %v7952, %v8064
  %v8066 = vpop.f32.mrb[0].mxu0
  %v8067 = vadd.f32 %v7954, %v8066
  %v8068 = vpop.f32.mrb[0].mxu0
  %v8069 = vadd.f32 %v7956, %v8068
  %8070 = vmatprep.mubr.bf16.mxu0 %v1723
  %8071 = vmatmul.mubr.bf16.gmra.mrb[0].mxu0 %v1722
  %v8072 = vpop.f32.mrb[0].mxu0
  %v8073 = vadd.f32 %v7960, %v8072
  %v8074 = vpop.f32.mrb[0].mxu0
  %v8075 = vadd.f32 %v7962, %v8074
  %v8076 = vpop.f32.mrb[0].mxu0
  %v8077 = vadd.f32 %v7964, %v8076
  %v8078 = vpop.f32.mrb[0].mxu0
  %v8079 = vadd.f32 %v7966, %v8078
  %8080 = vmatprep.mubr.bf16.mxu0 %v1748
  %8081 = vmatmul.mubr.bf16.gmra.mrb[0].mxu0 %v1747
  %v8082 = vpop.f32.mrb[0].mxu0
  %v8083 = vadd.f32 %v7970, %v8082
  %v8084 = vpop.f32.mrb[0].mxu0
  %v8085 = vadd.f32 %v7972, %v8084
  %v8086 = vpop.f32.mrb[0].mxu0
  %v8087 = vadd.f32 %v7974, %v8086
  %v8088 = vpop.f32.mrb[0].mxu0
  %v8089 = vadd.f32 %v7976, %v8088
  %8090 = vmatprep.mubr.bf16.mxu0 %v1773
  %8091 = vmatmul.mubr.bf16.gmra.mrb[0].mxu0 %v1772
  %v8092 = vpop.f32.mrb[0].mxu0
  %v8093 = vadd.f32 %v7980, %v8092
  %v8094 = vpop.f32.mrb[0].mxu0
  %v8095 = vadd.f32 %v7982, %v8094
  %v8096 = vpop.f32.mrb[0].mxu0
  %v8097 = vadd.f32 %v7984, %v8096
  %v8098 = vpop.f32.mrb[0].mxu0
  %v8099 = vadd.f32 %v7986, %v8098
  %8100 = vmatprep.mubr.bf16.mxu0 %v1798
  %8101 = vmatmul.mubr.bf16.gmra.mrb[0].mxu0 %v1797
  %v8102 = vpop.f32.mrb[0].mxu0
  %v8103 = vadd.f32 %v7990, %v8102
  %v8104 = vpop.f32.mrb[0].mxu0
  %v8105 = vadd.f32 %v7992, %v8104
  %v8106 = vpop.f32.mrb[0].mxu0
  %v8107 = vadd.f32 %v7994, %v8106
  %v8108 = vpop.f32.mrb[0].mxu0
  %v8109 = vadd.f32 %v7996, %v8108
  %8110 = vmatprep.mubr.bf16.mxu0 %v1823
  %8111 = vmatmul.mubr.bf16.gmra.mrb[0].mxu0 %v1822
  %v8112 = vpop.f32.mrb[0].mxu0
  %v8113 = vadd.f32 %v8000, %v8112
  %v8114 = vpop.f32.mrb[0].mxu0
  %v8115 = vadd.f32 %v8002, %v8114
  %v8116 = vpop.f32.mrb[0].mxu0
  %v8117 = vadd.f32 %v8004, %v8116
  %v8118 = vpop.f32.mrb[0].mxu0
  %v8119 = vadd.f32 %v8006, %v8118
  %8120 = vdwg.mxu0
  %8121 = vmatprep.subr.bf16.mxu0 %v4768
  %8122 = vmatpush1.bf16.msra.mxu0 %v4767
  %8123 = vmatprep.subr.bf16.mxu0 %v4772
  %8124 = vmatpush1.bf16.msra.mxu0 %v4771
  %8125 = vmatprep.subr.bf16.mxu0 %v4776
  %8126 = vmatpush1.bf16.msra.mxu0 %v4775
  %8127 = vmatprep.subr.bf16.mxu0 %v4780
  %8128 = vmatpush1.bf16.msra.mxu0 %v4779
  %8129 = vmatprep.subr.bf16.mxu0 %v4784
  %8130 = vmatpush1.bf16.msra.mxu0 %v4783
  %8131 = vmatprep.subr.bf16.mxu0 %v4788
  %8132 = vmatpush1.bf16.msra.mxu0 %v4787
  %8133 = vmatprep.subr.bf16.mxu0 %v4792
  %8134 = vmatpush1.bf16.msra.mxu0 %v4791
  %8135 = vmatprep.subr.bf16.mxu0 %v4796
  %8136 = vmatpush1.bf16.msra.mxu0 %v4795
  %8137 = vmatprep.subr.bf16.mxu0 %v4800
  %8138 = vmatpush1.bf16.msra.mxu0 %v4799
  %8139 = vmatprep.subr.bf16.mxu0 %v4804
  %8140 = vmatpush1.bf16.msra.mxu0 %v4803
  %8141 = vmatprep.subr.bf16.mxu0 %v4808
  %8142 = vmatpush1.bf16.msra.mxu0 %v4807
  %8143 = vmatprep.subr.bf16.mxu0 %v4812
  %8144 = vmatpush1.bf16.msra.mxu0 %v4811
  %8145 = vmatprep.subr.bf16.mxu0 %v4816
  %8146 = vmatpush1.bf16.msra.mxu0 %v4815
  %8147 = vmatprep.subr.bf16.mxu0 %v4820
  %8148 = vmatpush1.bf16.msra.mxu0 %v4819
  %8149 = vmatprep.subr.bf16.mxu0 %v4824
  %8150 = vmatpush1.bf16.msra.mxu0 %v4823
  %8151 = vmatprep.subr.bf16.mxu0 %v4828
  %8152 = vmatpush1.bf16.msra.mxu0 %v4827
  %8153 = vmatprep.mubr.bf16.mxu0 %v1650
  %8154 = vmatmul.mubr.bf16.gmra.mrb[0].mxu0 %v1649
  %v8155 = vpop.f32.mrb[0].mxu0
  %v8156 = vadd.f32 %v8043, %v8155
  %v8157 = vpop.f32.mrb[0].mxu0
  %v8158 = vadd.f32 %v8045, %v8157
  %v8159 = vpop.f32.mrb[0].mxu0
  %v8160 = vadd.f32 %v8047, %v8159
  %v8161 = vpop.f32.mrb[0].mxu0
  %v8162 = vadd.f32 %v8049, %v8161
  %8163 = vmatprep.mubr.bf16.mxu0 %v1675
  %8164 = vmatmul.mubr.bf16.gmra.mrb[0].mxu0 %v1674
  %v8165 = vpop.f32.mrb[0].mxu0
  %v8166 = vadd.f32 %v8053, %v8165
  %v8167 = vpop.f32.mrb[0].mxu0
  %v8168 = vadd.f32 %v8055, %v8167
  %v8169 = vpop.f32.mrb[0].mxu0
  %v8170 = vadd.f32 %v8057, %v8169
  %v8171 = vpop.f32.mrb[0].mxu0
  %v8172 = vadd.f32 %v8059, %v8171
  %8173 = vmatprep.mubr.bf16.mxu0 %v1700
  %8174 = vmatmul.mubr.bf16.gmra.mrb[0].mxu0 %v1699
  %v8175 = vpop.f32.mrb[0].mxu0
  %v8176 = vadd.f32 %v8063, %v8175
  %v8177 = vpop.f32.mrb[0].mxu0
  %v8178 = vadd.f32 %v8065, %v8177
  %v8179 = vpop.f32.mrb[0].mxu0
  %v8180 = vadd.f32 %v8067, %v8179
  %v8181 = vpop.f32.mrb[0].mxu0
  %v8182 = vadd.f32 %v8069, %v8181
  %8183 = vmatprep.mubr.bf16.mxu0 %v1725
  %8184 = vmatmul.mubr.bf16.gmra.mrb[0].mxu0 %v1724
  %v8185 = vpop.f32.mrb[0].mxu0
  %v8186 = vadd.f32 %v8073, %v8185
  %v8187 = vpop.f32.mrb[0].mxu0
  %v8188 = vadd.f32 %v8075, %v8187
  %v8189 = vpop.f32.mrb[0].mxu0
  %v8190 = vadd.f32 %v8077, %v8189
  %v8191 = vpop.f32.mrb[0].mxu0
  %v8192 = vadd.f32 %v8079, %v8191
  %8193 = vmatprep.mubr.bf16.mxu0 %v1750
  %8194 = vmatmul.mubr.bf16.gmra.mrb[0].mxu0 %v1749
  %v8195 = vpop.f32.mrb[0].mxu0
  %v8196 = vadd.f32 %v8083, %v8195
  %v8197 = vpop.f32.mrb[0].mxu0
  %v8198 = vadd.f32 %v8085, %v8197
  %v8199 = vpop.f32.mrb[0].mxu0
  %v8200 = vadd.f32 %v8087, %v8199
  %v8201 = vpop.f32.mrb[0].mxu0
  %v8202 = vadd.f32 %v8089, %v8201
  %8203 = vmatprep.mubr.bf16.mxu0 %v1775
  %8204 = vmatmul.mubr.bf16.gmra.mrb[0].mxu0 %v1774
  %v8205 = vpop.f32.mrb[0].mxu0
  %v8206 = vadd.f32 %v8093, %v8205
  %v8207 = vpop.f32.mrb[0].mxu0
  %v8208 = vadd.f32 %v8095, %v8207
  %v8209 = vpop.f32.mrb[0].mxu0
  %v8210 = vadd.f32 %v8097, %v8209
  %v8211 = vpop.f32.mrb[0].mxu0
  %v8212 = vadd.f32 %v8099, %v8211
  %8213 = vmatprep.mubr.bf16.mxu0 %v1800
  %8214 = vmatmul.mubr.bf16.gmra.mrb[0].mxu0 %v1799
  %v8215 = vpop.f32.mrb[0].mxu0
  %v8216 = vadd.f32 %v8103, %v8215
  %v8217 = vpop.f32.mrb[0].mxu0
  %v8218 = vadd.f32 %v8105, %v8217
  %v8219 = vpop.f32.mrb[0].mxu0
  %v8220 = vadd.f32 %v8107, %v8219
  %v8221 = vpop.f32.mrb[0].mxu0
  %v8222 = vadd.f32 %v8109, %v8221
  %8223 = vmatprep.mubr.bf16.mxu0 %v1825
  %8224 = vmatmul.mubr.bf16.gmra.mrb[0].mxu0 %v1824
  %v8225 = vpop.f32.mrb[0].mxu0
  %v8226 = vadd.f32 %v8113, %v8225
  %v8227 = vpop.f32.mrb[0].mxu0
  %v8228 = vadd.f32 %v8115, %v8227
  %v8229 = vpop.f32.mrb[0].mxu0
  %v8230 = vadd.f32 %v8117, %v8229
  %v8231 = vpop.f32.mrb[0].mxu0
  %v8232 = vadd.f32 %v8119, %v8231
  %8233 = vdwg.mxu0
  %8234 = vmatprep.subr.bf16.mxu0 %v4832
  %8235 = vmatpush1.bf16.msra.mxu0 %v4831
  %8236 = vmatprep.subr.bf16.mxu0 %v4836
  %8237 = vmatpush1.bf16.msra.mxu0 %v4835
  %8238 = vmatprep.subr.bf16.mxu0 %v4840
  %8239 = vmatpush1.bf16.msra.mxu0 %v4839
  %8240 = vmatprep.subr.bf16.mxu0 %v4844
  %8241 = vmatpush1.bf16.msra.mxu0 %v4843
  %8242 = vmatprep.subr.bf16.mxu0 %v4848
  %8243 = vmatpush1.bf16.msra.mxu0 %v4847
  %8244 = vmatprep.subr.bf16.mxu0 %v4852
  %8245 = vmatpush1.bf16.msra.mxu0 %v4851
  %8246 = vmatprep.subr.bf16.mxu0 %v4856
  %8247 = vmatpush1.bf16.msra.mxu0 %v4855
  %8248 = vmatprep.subr.bf16.mxu0 %v4860
  %8249 = vmatpush1.bf16.msra.mxu0 %v4859
  %8250 = vmatprep.subr.bf16.mxu0 %v4864
  %8251 = vmatpush1.bf16.msra.mxu0 %v4863
  %8252 = vmatprep.subr.bf16.mxu0 %v4868
  %8253 = vmatpush1.bf16.msra.mxu0 %v4867
  %8254 = vmatprep.subr.bf16.mxu0 %v4872
  %8255 = vmatpush1.bf16.msra.mxu0 %v4871
  %8256 = vmatprep.subr.bf16.mxu0 %v4876
  %8257 = vmatpush1.bf16.msra.mxu0 %v4875
  %8258 = vmatprep.subr.bf16.mxu0 %v4880
  %8259 = vmatpush1.bf16.msra.mxu0 %v4879
  %8260 = vmatprep.subr.bf16.mxu0 %v4884
  %8261 = vmatpush1.bf16.msra.mxu0 %v4883
  %8262 = vmatprep.subr.bf16.mxu0 %v4888
  %8263 = vmatpush1.bf16.msra.mxu0 %v4887
  %8264 = vmatprep.subr.bf16.mxu0 %v4892
  %8265 = vmatpush1.bf16.msra.mxu0 %v4891
  %8266 = vmatprep.mubr.bf16.mxu0 %v1652
  %8267 = vmatmul.mubr.bf16.gmra.mrb[0].mxu0 %v1651
  %v8268 = vpop.f32.mrb[0].mxu0
  %v8269 = vadd.f32 %v8156, %v8268
  %v8270 = vpop.f32.mrb[0].mxu0
  %v8271 = vadd.f32 %v8158, %v8270
  %v8272 = vpop.f32.mrb[0].mxu0
  %v8273 = vadd.f32 %v8160, %v8272
  %v8274 = vpop.f32.mrb[0].mxu0
  %v8275 = vadd.f32 %v8162, %v8274
  %8276 = vmatprep.mubr.bf16.mxu0 %v1677
  %8277 = vmatmul.mubr.bf16.gmra.mrb[0].mxu0 %v1676
  %v8278 = vpop.f32.mrb[0].mxu0
  %v8279 = vadd.f32 %v8166, %v8278
  %v8280 = vpop.f32.mrb[0].mxu0
  %v8281 = vadd.f32 %v8168, %v8280
  %v8282 = vpop.f32.mrb[0].mxu0
  %v8283 = vadd.f32 %v8170, %v8282
  %v8284 = vpop.f32.mrb[0].mxu0
  %v8285 = vadd.f32 %v8172, %v8284
  %8286 = vmatprep.mubr.bf16.mxu0 %v1702
  %8287 = vmatmul.mubr.bf16.gmra.mrb[0].mxu0 %v1701
  %v8288 = vpop.f32.mrb[0].mxu0
  %v8289 = vadd.f32 %v8176, %v8288
  %v8290 = vpop.f32.mrb[0].mxu0
  %v8291 = vadd.f32 %v8178, %v8290
  %v8292 = vpop.f32.mrb[0].mxu0
  %v8293 = vadd.f32 %v8180, %v8292
  %v8294 = vpop.f32.mrb[0].mxu0
  %v8295 = vadd.f32 %v8182, %v8294
  %8296 = vmatprep.mubr.bf16.mxu0 %v1727
  %8297 = vmatmul.mubr.bf16.gmra.mrb[0].mxu0 %v1726
  %v8298 = vpop.f32.mrb[0].mxu0
  %v8299 = vadd.f32 %v8186, %v8298
  %v8300 = vpop.f32.mrb[0].mxu0
  %v8301 = vadd.f32 %v8188, %v8300
  %v8302 = vpop.f32.mrb[0].mxu0
  %v8303 = vadd.f32 %v8190, %v8302
  %v8304 = vpop.f32.mrb[0].mxu0
  %v8305 = vadd.f32 %v8192, %v8304
  %8306 = vmatprep.mubr.bf16.mxu0 %v1752
  %8307 = vmatmul.mubr.bf16.gmra.mrb[0].mxu0 %v1751
  %v8308 = vpop.f32.mrb[0].mxu0
  %v8309 = vadd.f32 %v8196, %v8308
  %v8310 = vpop.f32.mrb[0].mxu0
  %v8311 = vadd.f32 %v8198, %v8310
  %v8312 = vpop.f32.mrb[0].mxu0
  %v8313 = vadd.f32 %v8200, %v8312
  %v8314 = vpop.f32.mrb[0].mxu0
  %v8315 = vadd.f32 %v8202, %v8314
  %8316 = vmatprep.mubr.bf16.mxu0 %v1777
  %8317 = vmatmul.mubr.bf16.gmra.mrb[0].mxu0 %v1776
  %v8318 = vpop.f32.mrb[0].mxu0
  %v8319 = vadd.f32 %v8206, %v8318
  %v8320 = vpop.f32.mrb[0].mxu0
  %v8321 = vadd.f32 %v8208, %v8320
  %v8322 = vpop.f32.mrb[0].mxu0
  %v8323 = vadd.f32 %v8210, %v8322
  %v8324 = vpop.f32.mrb[0].mxu0
  %v8325 = vadd.f32 %v8212, %v8324
  %8326 = vmatprep.mubr.bf16.mxu0 %v1802
  %8327 = vmatmul.mubr.bf16.gmra.mrb[0].mxu0 %v1801
  %v8328 = vpop.f32.mrb[0].mxu0
  %v8329 = vadd.f32 %v8216, %v8328
  %v8330 = vpop.f32.mrb[0].mxu0
  %v8331 = vadd.f32 %v8218, %v8330
  %v8332 = vpop.f32.mrb[0].mxu0
  %v8333 = vadd.f32 %v8220, %v8332
  %v8334 = vpop.f32.mrb[0].mxu0
  %v8335 = vadd.f32 %v8222, %v8334
  %8336 = vmatprep.mubr.bf16.mxu0 %v1827
  %8337 = vmatmul.mubr.bf16.gmra.mrb[0].mxu0 %v1826
  %v8338 = vpop.f32.mrb[0].mxu0
  %v8339 = vadd.f32 %v8226, %v8338
  %v8340 = vpop.f32.mrb[0].mxu0
  %v8341 = vadd.f32 %v8228, %v8340
  %v8342 = vpop.f32.mrb[0].mxu0
  %v8343 = vadd.f32 %v8230, %v8342
  %v8344 = vpop.f32.mrb[0].mxu0
  %v8345 = vadd.f32 %v8232, %v8344
  %8346 = vdwg.mxu0
  %8347 = vmatprep.subr.bf16.mxu0 %v4896
  %8348 = vmatpush1.bf16.msra.mxu0 %v4895
  %8349 = vmatprep.subr.bf16.mxu0 %v4900
  %8350 = vmatpush1.bf16.msra.mxu0 %v4899
  %8351 = vmatprep.subr.bf16.mxu0 %v4904
  %8352 = vmatpush1.bf16.msra.mxu0 %v4903
  %8353 = vmatprep.subr.bf16.mxu0 %v4908
  %8354 = vmatpush1.bf16.msra.mxu0 %v4907
  %8355 = vmatprep.subr.bf16.mxu0 %v4912
  %8356 = vmatpush1.bf16.msra.mxu0 %v4911
  %8357 = vmatprep.subr.bf16.mxu0 %v4916
  %8358 = vmatpush1.bf16.msra.mxu0 %v4915
  %8359 = vmatprep.subr.bf16.mxu0 %v4920
  %8360 = vmatpush1.bf16.msra.mxu0 %v4919
  %8361 = vmatprep.subr.bf16.mxu0 %v4924
  %8362 = vmatpush1.bf16.msra.mxu0 %v4923
  %8363 = vmatprep.subr.bf16.mxu0 %v4928
  %8364 = vmatpush1.bf16.msra.mxu0 %v4927
  %8365 = vmatprep.subr.bf16.mxu0 %v4932
  %8366 = vmatpush1.bf16.msra.mxu0 %v4931
  %8367 = vmatprep.subr.bf16.mxu0 %v4936
  %8368 = vmatpush1.bf16.msra.mxu0 %v4935
  %8369 = vmatprep.subr.bf16.mxu0 %v4940
  %8370 = vmatpush1.bf16.msra.mxu0 %v4939
  %8371 = vmatprep.subr.bf16.mxu0 %v4944
  %8372 = vmatpush1.bf16.msra.mxu0 %v4943
  %8373 = vmatprep.subr.bf16.mxu0 %v4948
  %8374 = vmatpush1.bf16.msra.mxu0 %v4947
  %8375 = vmatprep.subr.bf16.mxu0 %v4952
  %8376 = vmatpush1.bf16.msra.mxu0 %v4951
  %8377 = vmatprep.subr.bf16.mxu0 %v4956
  %8378 = vmatpush1.bf16.msra.mxu0 %v4955
  %8379 = vmatprep.mubr.bf16.mxu0 %v1654
  %8380 = vmatmul.mubr.bf16.gmra.mrb[0].mxu0 %v1653
  %v8381 = vpop.f32.mrb[0].mxu0
  %v8382 = vadd.f32 %v8269, %v8381
  %v8383 = vpop.f32.mrb[0].mxu0
  %v8384 = vadd.f32 %v8271, %v8383
  %v8385 = vpop.f32.mrb[0].mxu0
  %v8386 = vadd.f32 %v8273, %v8385
  %v8387 = vpop.f32.mrb[0].mxu0
  %v8388 = vadd.f32 %v8275, %v8387
  %8389 = vmatprep.mubr.bf16.mxu0 %v1679
  %8390 = vmatmul.mubr.bf16.gmra.mrb[0].mxu0 %v1678
  %v8391 = vpop.f32.mrb[0].mxu0
  %v8392 = vadd.f32 %v8279, %v8391
  %v8393 = vpop.f32.mrb[0].mxu0
  %v8394 = vadd.f32 %v8281, %v8393
  %v8395 = vpop.f32.mrb[0].mxu0
  %v8396 = vadd.f32 %v8283, %v8395
  %v8397 = vpop.f32.mrb[0].mxu0
  %v8398 = vadd.f32 %v8285, %v8397
  %8399 = vmatprep.mubr.bf16.mxu0 %v1704
  %8400 = vmatmul.mubr.bf16.gmra.mrb[0].mxu0 %v1703
  %v8401 = vpop.f32.mrb[0].mxu0
  %v8402 = vadd.f32 %v8289, %v8401
  %v8403 = vpop.f32.mrb[0].mxu0
  %v8404 = vadd.f32 %v8291, %v8403
  %v8405 = vpop.f32.mrb[0].mxu0
  %v8406 = vadd.f32 %v8293, %v8405
  %v8407 = vpop.f32.mrb[0].mxu0
  %v8408 = vadd.f32 %v8295, %v8407
  %8409 = vmatprep.mubr.bf16.mxu0 %v1729
  %8410 = vmatmul.mubr.bf16.gmra.mrb[0].mxu0 %v1728
  %v8411 = vpop.f32.mrb[0].mxu0
  %v8412 = vadd.f32 %v8299, %v8411
  %v8413 = vpop.f32.mrb[0].mxu0
  %v8414 = vadd.f32 %v8301, %v8413
  %v8415 = vpop.f32.mrb[0].mxu0
  %v8416 = vadd.f32 %v8303, %v8415
  %v8417 = vpop.f32.mrb[0].mxu0
  %v8418 = vadd.f32 %v8305, %v8417
  %8419 = vmatprep.mubr.bf16.mxu0 %v1754
  %8420 = vmatmul.mubr.bf16.gmra.mrb[0].mxu0 %v1753
  %v8421 = vpop.f32.mrb[0].mxu0
  %v8422 = vadd.f32 %v8309, %v8421
  %v8423 = vpop.f32.mrb[0].mxu0
  %v8424 = vadd.f32 %v8311, %v8423
  %v8425 = vpop.f32.mrb[0].mxu0
  %v8426 = vadd.f32 %v8313, %v8425
  %v8427 = vpop.f32.mrb[0].mxu0
  %v8428 = vadd.f32 %v8315, %v8427
  %8429 = vmatprep.mubr.bf16.mxu0 %v1779
  %8430 = vmatmul.mubr.bf16.gmra.mrb[0].mxu0 %v1778
  %v8431 = vpop.f32.mrb[0].mxu0
  %v8432 = vadd.f32 %v8319, %v8431
  %v8433 = vpop.f32.mrb[0].mxu0
  %v8434 = vadd.f32 %v8321, %v8433
  %v8435 = vpop.f32.mrb[0].mxu0
  %v8436 = vadd.f32 %v8323, %v8435
  %v8437 = vpop.f32.mrb[0].mxu0
  %v8438 = vadd.f32 %v8325, %v8437
  %8439 = vmatprep.mubr.bf16.mxu0 %v1804
  %8440 = vmatmul.mubr.bf16.gmra.mrb[0].mxu0 %v1803
  %v8441 = vpop.f32.mrb[0].mxu0
  %v8442 = vadd.f32 %v8329, %v8441
  %v8443 = vpop.f32.mrb[0].mxu0
  %v8444 = vadd.f32 %v8331, %v8443
  %v8445 = vpop.f32.mrb[0].mxu0
  %v8446 = vadd.f32 %v8333, %v8445
  %v8447 = vpop.f32.mrb[0].mxu0
  %v8448 = vadd.f32 %v8335, %v8447
  %8449 = vmatprep.mubr.bf16.mxu0 %v1829
  %8450 = vmatmul.mubr.bf16.gmra.mrb[0].mxu0 %v1828
  %v8451 = vpop.f32.mrb[0].mxu0
  %v8452 = vadd.f32 %v8339, %v8451
  %v8453 = vpop.f32.mrb[0].mxu0
  %v8454 = vadd.f32 %v8341, %v8453
  %v8455 = vpop.f32.mrb[0].mxu0
  %v8456 = vadd.f32 %v8343, %v8455
  %v8457 = vpop.f32.mrb[0].mxu0
  %v8458 = vadd.f32 %v8345, %v8457
  %8459 = vdwg.mxu0
  %8460 = vmatprep.subr.bf16.mxu0 %v4960
  %8461 = vmatpush1.bf16.msra.mxu0 %v4959
  %8462 = vmatprep.subr.bf16.mxu0 %v4964
  %8463 = vmatpush1.bf16.msra.mxu0 %v4963
  %8464 = vmatprep.subr.bf16.mxu0 %v4968
  %8465 = vmatpush1.bf16.msra.mxu0 %v4967
  %8466 = vmatprep.subr.bf16.mxu0 %v4972
  %8467 = vmatpush1.bf16.msra.mxu0 %v4971
  %8468 = vmatprep.subr.bf16.mxu0 %v4976
  %8469 = vmatpush1.bf16.msra.mxu0 %v4975
  %8470 = vmatprep.subr.bf16.mxu0 %v4980
  %8471 = vmatpush1.bf16.msra.mxu0 %v4979
  %8472 = vmatprep.subr.bf16.mxu0 %v4984
  %8473 = vmatpush1.bf16.msra.mxu0 %v4983
  %8474 = vmatprep.subr.bf16.mxu0 %v4988
  %8475 = vmatpush1.bf16.msra.mxu0 %v4987
  %8476 = vmatprep.subr.bf16.mxu0 %v4992
  %8477 = vmatpush1.bf16.msra.mxu0 %v4991
  %8478 = vmatprep.subr.bf16.mxu0 %v4996
  %8479 = vmatpush1.bf16.msra.mxu0 %v4995
  %8480 = vmatprep.subr.bf16.mxu0 %v5000
  %8481 = vmatpush1.bf16.msra.mxu0 %v4999
  %8482 = vmatprep.subr.bf16.mxu0 %v5004
  %8483 = vmatpush1.bf16.msra.mxu0 %v5003
  %8484 = vmatprep.subr.bf16.mxu0 %v5008
  %8485 = vmatpush1.bf16.msra.mxu0 %v5007
  %8486 = vmatprep.subr.bf16.mxu0 %v5012
  %8487 = vmatpush1.bf16.msra.mxu0 %v5011
  %8488 = vmatprep.subr.bf16.mxu0 %v5016
  %8489 = vmatpush1.bf16.msra.mxu0 %v5015
  %8490 = vmatprep.subr.bf16.mxu0 %v5020
  %8491 = vmatpush1.bf16.msra.mxu0 %v5019
  %8492 = vmatprep.mubr.bf16.mxu0 %v1656
  %8493 = vmatmul.mubr.bf16.gmra.mrb[0].mxu0 %v1655
  %v8494 = vpop.f32.mrb[0].mxu0
  %v8495 = vadd.f32 %v8382, %v8494
  %v8496 = vpop.f32.mrb[0].mxu0
  %v8497 = vadd.f32 %v8384, %v8496
  %v8498 = vpop.f32.mrb[0].mxu0
  %v8499 = vadd.f32 %v8386, %v8498
  %v8500 = vpop.f32.mrb[0].mxu0
  %v8501 = vadd.f32 %v8388, %v8500
  %8502 = vmatprep.mubr.bf16.mxu0 %v1681
  %8503 = vmatmul.mubr.bf16.gmra.mrb[0].mxu0 %v1680
  %v8504 = vpop.f32.mrb[0].mxu0
  %v8505 = vadd.f32 %v8392, %v8504
  %v8506 = vpop.f32.mrb[0].mxu0
  %v8507 = vadd.f32 %v8394, %v8506
  %v8508 = vpop.f32.mrb[0].mxu0
  %v8509 = vadd.f32 %v8396, %v8508
  %v8510 = vpop.f32.mrb[0].mxu0
  %v8511 = vadd.f32 %v8398, %v8510
  %8512 = vmatprep.mubr.bf16.mxu0 %v1706
  %8513 = vmatmul.mubr.bf16.gmra.mrb[0].mxu0 %v1705
  %v8514 = vpop.f32.mrb[0].mxu0
  %v8515 = vadd.f32 %v8402, %v8514
  %v8516 = vpop.f32.mrb[0].mxu0
  %v8517 = vadd.f32 %v8404, %v8516
  %v8518 = vpop.f32.mrb[0].mxu0
  %v8519 = vadd.f32 %v8406, %v8518
  %v8520 = vpop.f32.mrb[0].mxu0
  %v8521 = vadd.f32 %v8408, %v8520
  %8522 = vmatprep.mubr.bf16.mxu0 %v1731
  %8523 = vmatmul.mubr.bf16.gmra.mrb[0].mxu0 %v1730
  %v8524 = vpop.f32.mrb[0].mxu0
  %v8525 = vadd.f32 %v8412, %v8524
  %v8526 = vpop.f32.mrb[0].mxu0
  %v8527 = vadd.f32 %v8414, %v8526
  %v8528 = vpop.f32.mrb[0].mxu0
  %v8529 = vadd.f32 %v8416, %v8528
  %v8530 = vpop.f32.mrb[0].mxu0
  %v8531 = vadd.f32 %v8418, %v8530
  %8532 = vmatprep.mubr.bf16.mxu0 %v1756
  %8533 = vmatmul.mubr.bf16.gmra.mrb[0].mxu0 %v1755
  %v8534 = vpop.f32.mrb[0].mxu0
  %v8535 = vadd.f32 %v8422, %v8534
  %v8536 = vpop.f32.mrb[0].mxu0
  %v8537 = vadd.f32 %v8424, %v8536
  %v8538 = vpop.f32.mrb[0].mxu0
  %v8539 = vadd.f32 %v8426, %v8538
  %v8540 = vpop.f32.mrb[0].mxu0
  %v8541 = vadd.f32 %v8428, %v8540
  %8542 = vmatprep.mubr.bf16.mxu0 %v1781
  %8543 = vmatmul.mubr.bf16.gmra.mrb[0].mxu0 %v1780
  %v8544 = vpop.f32.mrb[0].mxu0
  %v8545 = vadd.f32 %v8432, %v8544
  %v8546 = vpop.f32.mrb[0].mxu0
  %v8547 = vadd.f32 %v8434, %v8546
  %v8548 = vpop.f32.mrb[0].mxu0
  %v8549 = vadd.f32 %v8436, %v8548
  %v8550 = vpop.f32.mrb[0].mxu0
  %v8551 = vadd.f32 %v8438, %v8550
  %8552 = vmatprep.mubr.bf16.mxu0 %v1806
  %8553 = vmatmul.mubr.bf16.gmra.mrb[0].mxu0 %v1805
  %v8554 = vpop.f32.mrb[0].mxu0
  %v8555 = vadd.f32 %v8442, %v8554
  %v8556 = vpop.f32.mrb[0].mxu0
  %v8557 = vadd.f32 %v8444, %v8556
  %v8558 = vpop.f32.mrb[0].mxu0
  %v8559 = vadd.f32 %v8446, %v8558
  %v8560 = vpop.f32.mrb[0].mxu0
  %v8561 = vadd.f32 %v8448, %v8560
  %8562 = vmatprep.mubr.bf16.mxu0 %v1831
  %8563 = vmatmul.mubr.bf16.gmra.mrb[0].mxu0 %v1830
  %v8564 = vpop.f32.mrb[0].mxu0
  %v8565 = vadd.f32 %v8452, %v8564
  %v8566 = vpop.f32.mrb[0].mxu0
  %v8567 = vadd.f32 %v8454, %v8566
  %v8568 = vpop.f32.mrb[0].mxu0
  %v8569 = vadd.f32 %v8456, %v8568
  %v8570 = vpop.f32.mrb[0].mxu0
  %v8571 = vadd.f32 %v8458, %v8570
  %8572 = vdwg.mxu0
  %8573 = vmatprep.subr.bf16.mxu0 %v5024
  %8574 = vmatpush1.bf16.msra.mxu0 %v5023
  %8575 = vmatprep.subr.bf16.mxu0 %v5028
  %8576 = vmatpush1.bf16.msra.mxu0 %v5027
  %8577 = vmatprep.subr.bf16.mxu0 %v5032
  %8578 = vmatpush1.bf16.msra.mxu0 %v5031
  %8579 = vmatprep.subr.bf16.mxu0 %v5036
  %8580 = vmatpush1.bf16.msra.mxu0 %v5035
  %8581 = vmatprep.subr.bf16.mxu0 %v5040
  %8582 = vmatpush1.bf16.msra.mxu0 %v5039
  %8583 = vmatprep.subr.bf16.mxu0 %v5044
  %8584 = vmatpush1.bf16.msra.mxu0 %v5043
  %8585 = vmatprep.subr.bf16.mxu0 %v5048
  %8586 = vmatpush1.bf16.msra.mxu0 %v5047
  %8587 = vmatprep.subr.bf16.mxu0 %v5052
  %8588 = vmatpush1.bf16.msra.mxu0 %v5051
  %8589 = vmatprep.subr.bf16.mxu0 %v5056
  %8590 = vmatpush1.bf16.msra.mxu0 %v5055
  %8591 = vmatprep.subr.bf16.mxu0 %v5060
  %8592 = vmatpush1.bf16.msra.mxu0 %v5059
  %8593 = vmatprep.subr.bf16.mxu0 %v5064
  %8594 = vmatpush1.bf16.msra.mxu0 %v5063
  %8595 = vmatprep.subr.bf16.mxu0 %v5068
  %8596 = vmatpush1.bf16.msra.mxu0 %v5067
  %8597 = vmatprep.subr.bf16.mxu0 %v5072
  %8598 = vmatpush1.bf16.msra.mxu0 %v5071
  %8599 = vmatprep.subr.bf16.mxu0 %v5076
  %8600 = vmatpush1.bf16.msra.mxu0 %v5075
  %8601 = vmatprep.subr.bf16.mxu0 %v5080
  %8602 = vmatpush1.bf16.msra.mxu0 %v5079
  %8603 = vmatprep.subr.bf16.mxu0 %v5084
  %8604 = vmatpush1.bf16.msra.mxu0 %v5083
  %8605 = vmatprep.mubr.bf16.mxu0 %v1658
  %8606 = vmatmul.mubr.bf16.gmra.mrb[0].mxu0 %v1657
  %v8607 = vpop.f32.mrb[0].mxu0
  %v8608 = vadd.f32 %v8495, %v8607
  %v8609 = vpop.f32.mrb[0].mxu0
  %v8610 = vadd.f32 %v8497, %v8609
  %v8611 = vpop.f32.mrb[0].mxu0
  %v8612 = vadd.f32 %v8499, %v8611
  %v8613 = vpop.f32.mrb[0].mxu0
  %v8614 = vadd.f32 %v8501, %v8613
  %8615 = vmatprep.mubr.bf16.mxu0 %v1683
  %8616 = vmatmul.mubr.bf16.gmra.mrb[0].mxu0 %v1682
  %v8617 = vpop.f32.mrb[0].mxu0
  %v8618 = vadd.f32 %v8505, %v8617
  %v8619 = vpop.f32.mrb[0].mxu0
  %v8620 = vadd.f32 %v8507, %v8619
  %v8621 = vpop.f32.mrb[0].mxu0
  %v8622 = vadd.f32 %v8509, %v8621
  %v8623 = vpop.f32.mrb[0].mxu0
  %v8624 = vadd.f32 %v8511, %v8623
  %8625 = vmatprep.mubr.bf16.mxu0 %v1708
  %8626 = vmatmul.mubr.bf16.gmra.mrb[0].mxu0 %v1707
  %v8627 = vpop.f32.mrb[0].mxu0
  %v8628 = vadd.f32 %v8515, %v8627
  %v8629 = vpop.f32.mrb[0].mxu0
  %v8630 = vadd.f32 %v8517, %v8629
  %v8631 = vpop.f32.mrb[0].mxu0
  %v8632 = vadd.f32 %v8519, %v8631
  %v8633 = vpop.f32.mrb[0].mxu0
  %v8634 = vadd.f32 %v8521, %v8633
  %8635 = vmatprep.mubr.bf16.mxu0 %v1733
  %8636 = vmatmul.mubr.bf16.gmra.mrb[0].mxu0 %v1732
  %v8637 = vpop.f32.mrb[0].mxu0
  %v8638 = vadd.f32 %v8525, %v8637
  %v8639 = vpop.f32.mrb[0].mxu0
  %v8640 = vadd.f32 %v8527, %v8639
  %v8641 = vpop.f32.mrb[0].mxu0
  %v8642 = vadd.f32 %v8529, %v8641
  %v8643 = vpop.f32.mrb[0].mxu0
  %v8644 = vadd.f32 %v8531, %v8643
  %8645 = vmatprep.mubr.bf16.mxu0 %v1758
  %8646 = vmatmul.mubr.bf16.gmra.mrb[0].mxu0 %v1757
  %v8647 = vpop.f32.mrb[0].mxu0
  %v8648 = vadd.f32 %v8535, %v8647
  %v8649 = vpop.f32.mrb[0].mxu0
  %v8650 = vadd.f32 %v8537, %v8649
  %v8651 = vpop.f32.mrb[0].mxu0
  %v8652 = vadd.f32 %v8539, %v8651
  %v8653 = vpop.f32.mrb[0].mxu0
  %v8654 = vadd.f32 %v8541, %v8653
  %8655 = vmatprep.mubr.bf16.mxu0 %v1783
  %8656 = vmatmul.mubr.bf16.gmra.mrb[0].mxu0 %v1782
  %v8657 = vpop.f32.mrb[0].mxu0
  %v8658 = vadd.f32 %v8545, %v8657
  %v8659 = vpop.f32.mrb[0].mxu0
  %v8660 = vadd.f32 %v8547, %v8659
  %v8661 = vpop.f32.mrb[0].mxu0
  %v8662 = vadd.f32 %v8549, %v8661
  %v8663 = vpop.f32.mrb[0].mxu0
  %v8664 = vadd.f32 %v8551, %v8663
  %8665 = vmatprep.mubr.bf16.mxu0 %v1808
  %8666 = vmatmul.mubr.bf16.gmra.mrb[0].mxu0 %v1807
  %v8667 = vpop.f32.mrb[0].mxu0
  %v8668 = vadd.f32 %v8555, %v8667
  %v8669 = vpop.f32.mrb[0].mxu0
  %v8670 = vadd.f32 %v8557, %v8669
  %v8671 = vpop.f32.mrb[0].mxu0
  %v8672 = vadd.f32 %v8559, %v8671
  %v8673 = vpop.f32.mrb[0].mxu0
  %v8674 = vadd.f32 %v8561, %v8673
  %8675 = vmatprep.mubr.bf16.mxu0 %v1833
  %8676 = vmatmul.mubr.bf16.gmra.mrb[0].mxu0 %v1832
  %v8677 = vpop.f32.mrb[0].mxu0
  %v8678 = vadd.f32 %v8565, %v8677
  %v8679 = vpop.f32.mrb[0].mxu0
  %v8680 = vadd.f32 %v8567, %v8679
  %v8681 = vpop.f32.mrb[0].mxu0
  %v8682 = vadd.f32 %v8569, %v8681
  %v8683 = vpop.f32.mrb[0].mxu0
  %v8684 = vadd.f32 %v8571, %v8683
  %8685 = vdwg.mxu0
  %8686 = vmatprep.subr.bf16.mxu0 %v5088
  %8687 = vmatpush1.bf16.msra.mxu0 %v5087
  %8688 = vmatprep.subr.bf16.mxu0 %v5092
  %8689 = vmatpush1.bf16.msra.mxu0 %v5091
  %8690 = vmatprep.subr.bf16.mxu0 %v5096
  %8691 = vmatpush1.bf16.msra.mxu0 %v5095
  %8692 = vmatprep.subr.bf16.mxu0 %v5100
  %8693 = vmatpush1.bf16.msra.mxu0 %v5099
  %8694 = vmatprep.subr.bf16.mxu0 %v5104
  %8695 = vmatpush1.bf16.msra.mxu0 %v5103
  %8696 = vmatprep.subr.bf16.mxu0 %v5108
  %8697 = vmatpush1.bf16.msra.mxu0 %v5107
  %8698 = vmatprep.subr.bf16.mxu0 %v5112
  %8699 = vmatpush1.bf16.msra.mxu0 %v5111
  %8700 = vmatprep.subr.bf16.mxu0 %v5116
  %8701 = vmatpush1.bf16.msra.mxu0 %v5115
  %8702 = vmatprep.subr.bf16.mxu0 %v5120
  %8703 = vmatpush1.bf16.msra.mxu0 %v5119
  %8704 = vmatprep.subr.bf16.mxu0 %v5124
  %8705 = vmatpush1.bf16.msra.mxu0 %v5123
  %8706 = vmatprep.subr.bf16.mxu0 %v5128
  %8707 = vmatpush1.bf16.msra.mxu0 %v5127
  %8708 = vmatprep.subr.bf16.mxu0 %v5132
  %8709 = vmatpush1.bf16.msra.mxu0 %v5131
  %8710 = vmatprep.subr.bf16.mxu0 %v5136
  %8711 = vmatpush1.bf16.msra.mxu0 %v5135
  %8712 = vmatprep.subr.bf16.mxu0 %v5140
  %8713 = vmatpush1.bf16.msra.mxu0 %v5139
  %8714 = vmatprep.subr.bf16.mxu0 %v5144
  %8715 = vmatpush1.bf16.msra.mxu0 %v5143
  %8716 = vmatprep.subr.bf16.mxu0 %v5148
  %8717 = vmatpush1.bf16.msra.mxu0 %v5147
  %8718 = vmatprep.mubr.bf16.mxu0 %v1660
  %8719 = vmatmul.mubr.bf16.gmra.mrb[0].mxu0 %v1659
  %v8720 = vpop.f32.mrb[0].mxu0
  %v8721 = vadd.f32 %v8608, %v8720
  %v8722 = vpop.f32.mrb[0].mxu0
  %v8723 = vadd.f32 %v8610, %v8722
  %v8724 = vpop.f32.mrb[0].mxu0
  %v8725 = vadd.f32 %v8612, %v8724
  %v8726 = vpop.f32.mrb[0].mxu0
  %v8727 = vadd.f32 %v8614, %v8726
  %8728 = vmatprep.mubr.bf16.mxu0 %v1685
  %8729 = vmatmul.mubr.bf16.gmra.mrb[0].mxu0 %v1684
  %v8730 = vpop.f32.mrb[0].mxu0
  %v8731 = vadd.f32 %v8618, %v8730
  %v8732 = vpop.f32.mrb[0].mxu0
  %v8733 = vadd.f32 %v8620, %v8732
  %v8734 = vpop.f32.mrb[0].mxu0
  %v8735 = vadd.f32 %v8622, %v8734
  %v8736 = vpop.f32.mrb[0].mxu0
  %v8737 = vadd.f32 %v8624, %v8736
  %8738 = vmatprep.mubr.bf16.mxu0 %v1710
  %8739 = vmatmul.mubr.bf16.gmra.mrb[0].mxu0 %v1709
  %v8740 = vpop.f32.mrb[0].mxu0
  %v8741 = vadd.f32 %v8628, %v8740
  %v8742 = vpop.f32.mrb[0].mxu0
  %v8743 = vadd.f32 %v8630, %v8742
  %v8744 = vpop.f32.mrb[0].mxu0
  %v8745 = vadd.f32 %v8632, %v8744
  %v8746 = vpop.f32.mrb[0].mxu0
  %v8747 = vadd.f32 %v8634, %v8746
  %8748 = vmatprep.mubr.bf16.mxu0 %v1735
  %8749 = vmatmul.mubr.bf16.gmra.mrb[0].mxu0 %v1734
  %v8750 = vpop.f32.mrb[0].mxu0
  %v8751 = vadd.f32 %v8638, %v8750
  %v8752 = vpop.f32.mrb[0].mxu0
  %v8753 = vadd.f32 %v8640, %v8752
  %v8754 = vpop.f32.mrb[0].mxu0
  %v8755 = vadd.f32 %v8642, %v8754
  %v8756 = vpop.f32.mrb[0].mxu0
  %v8757 = vadd.f32 %v8644, %v8756
  %8758 = vmatprep.mubr.bf16.mxu0 %v1760
  %8759 = vmatmul.mubr.bf16.gmra.mrb[0].mxu0 %v1759
  %v8760 = vpop.f32.mrb[0].mxu0
  %v8761 = vadd.f32 %v8648, %v8760
  %v8762 = vpop.f32.mrb[0].mxu0
  %v8763 = vadd.f32 %v8650, %v8762
  %v8764 = vpop.f32.mrb[0].mxu0
  %v8765 = vadd.f32 %v8652, %v8764
  %v8766 = vpop.f32.mrb[0].mxu0
  %v8767 = vadd.f32 %v8654, %v8766
  %8768 = vmatprep.mubr.bf16.mxu0 %v1785
  %8769 = vmatmul.mubr.bf16.gmra.mrb[0].mxu0 %v1784
  %v8770 = vpop.f32.mrb[0].mxu0
  %v8771 = vadd.f32 %v8658, %v8770
  %v8772 = vpop.f32.mrb[0].mxu0
  %v8773 = vadd.f32 %v8660, %v8772
  %v8774 = vpop.f32.mrb[0].mxu0
  %v8775 = vadd.f32 %v8662, %v8774
  %v8776 = vpop.f32.mrb[0].mxu0
  %v8777 = vadd.f32 %v8664, %v8776
  %8778 = vmatprep.mubr.bf16.mxu0 %v1810
  %8779 = vmatmul.mubr.bf16.gmra.mrb[0].mxu0 %v1809
  %v8780 = vpop.f32.mrb[0].mxu0
  %v8781 = vadd.f32 %v8668, %v8780
  %v8782 = vpop.f32.mrb[0].mxu0
  %v8783 = vadd.f32 %v8670, %v8782
  %v8784 = vpop.f32.mrb[0].mxu0
  %v8785 = vadd.f32 %v8672, %v8784
  %v8786 = vpop.f32.mrb[0].mxu0
  %v8787 = vadd.f32 %v8674, %v8786
  %8788 = vmatprep.mubr.bf16.mxu0 %v1835
  %8789 = vmatmul.mubr.bf16.gmra.mrb[0].mxu0 %v1834
  %v8790 = vpop.f32.mrb[0].mxu0
  %v8791 = vadd.f32 %v8678, %v8790
  %v8792 = vpop.f32.mrb[0].mxu0
  %v8793 = vadd.f32 %v8680, %v8792
  %v8794 = vpop.f32.mrb[0].mxu0
  %v8795 = vadd.f32 %v8682, %v8794
  %v8796 = vpop.f32.mrb[0].mxu0
  %v8797 = vadd.f32 %v8684, %v8796
  %8798 = vdwg.mxu0
  %8799 = vmatprep.subr.bf16.mxu0 %v5152
  %8800 = vmatpush1.bf16.msra.mxu0 %v5151
  %8801 = vmatprep.subr.bf16.mxu0 %v5156
  %8802 = vmatpush1.bf16.msra.mxu0 %v5155
  %8803 = vmatprep.subr.bf16.mxu0 %v5160
  %8804 = vmatpush1.bf16.msra.mxu0 %v5159
  %8805 = vmatprep.subr.bf16.mxu0 %v5164
  %8806 = vmatpush1.bf16.msra.mxu0 %v5163
  %8807 = vmatprep.subr.bf16.mxu0 0
  %8808 = vmatpush1.bf16.msra.mxu0 0
  %8809 = vmatprep.subr.bf16.mxu0 0
  %8810 = vmatpush1.bf16.msra.mxu0 0
  %8811 = vmatprep.subr.bf16.mxu0 0
  %8812 = vmatpush1.bf16.msra.mxu0 0
  %8813 = vmatprep.subr.bf16.mxu0 0
  %8814 = vmatpush1.bf16.msra.mxu0 0
  %8815 = vmatprep.subr.bf16.mxu0 0
  %8816 = vmatpush1.bf16.msra.mxu0 0
  %8817 = vmatprep.subr.bf16.mxu0 0
  %8818 = vmatpush1.bf16.msra.mxu0 0
  %8819 = vmatprep.subr.bf16.mxu0 0
  %8820 = vmatpush1.bf16.msra.mxu0 0
  %8821 = vmatprep.subr.bf16.mxu0 0
  %8822 = vmatpush1.bf16.msra.mxu0 0
  %8823 = vmatprep.subr.bf16.mxu0 0
  %8824 = vmatpush1.bf16.msra.mxu0 0
  %8825 = vmatprep.subr.bf16.mxu0 0
  %8826 = vmatpush1.bf16.msra.mxu0 0
  %8827 = vmatprep.subr.bf16.mxu0 0
  %8828 = vmatpush1.bf16.msra.mxu0 0
  %8829 = vmatprep.subr.bf16.mxu0 0
  %8830 = vmatpush1.bf16.msra.mxu0 0
  %8831 = vmatprep.mubr.bf16.mxu0 0
  %8832 = vmatmul.mubr.bf16.gmra.mrb[0].mxu0 %v5951
  %v8833 = vpop.f32.mrb[0].mxu0
  %v8834 = vadd.f32 %v8721, %v8833
  %v8835 = vpop.f32.mrb[0].mxu0
  %v8836 = vadd.f32 %v8723, %v8835
  %v8837 = vpop.f32.mrb[0].mxu0
  %v8838 = vadd.f32 %v8725, %v8837
  %v8839 = vpop.f32.mrb[0].mxu0
  %v8840 = vadd.f32 %v8727, %v8839
  %8841 = vmatprep.mubr.bf16.mxu0 0
  %8842 = vmatmul.mubr.bf16.gmra.mrb[0].mxu0 %v5954
  %v8843 = vpop.f32.mrb[0].mxu0
  %v8844 = vadd.f32 %v8731, %v8843
  %v8845 = vpop.f32.mrb[0].mxu0
  %v8846 = vadd.f32 %v8733, %v8845
  %v8847 = vpop.f32.mrb[0].mxu0
  %v8848 = vadd.f32 %v8735, %v8847
  %v8849 = vpop.f32.mrb[0].mxu0
  %v8850 = vadd.f32 %v8737, %v8849
  %8851 = vmatprep.mubr.bf16.mxu0 0
  %8852 = vmatmul.mubr.bf16.gmra.mrb[0].mxu0 %v5957
  %v8853 = vpop.f32.mrb[0].mxu0
  %v8854 = vadd.f32 %v8741, %v8853
  %v8855 = vpop.f32.mrb[0].mxu0
  %v8856 = vadd.f32 %v8743, %v8855
  %v8857 = vpop.f32.mrb[0].mxu0
  %v8858 = vadd.f32 %v8745, %v8857
  %v8859 = vpop.f32.mrb[0].mxu0
  %v8860 = vadd.f32 %v8747, %v8859
  %8861 = vmatprep.mubr.bf16.mxu0 0
  %8862 = vmatmul.mubr.bf16.gmra.mrb[0].mxu0 %v5960
  %v8863 = vpop.f32.mrb[0].mxu0
  %v8864 = vadd.f32 %v8751, %v8863
  %v8865 = vpop.f32.mrb[0].mxu0
  %v8866 = vadd.f32 %v8753, %v8865
  %v8867 = vpop.f32.mrb[0].mxu0
  %v8868 = vadd.f32 %v8755, %v8867
  %v8869 = vpop.f32.mrb[0].mxu0
  %v8870 = vadd.f32 %v8757, %v8869
  %8871 = vmatprep.mubr.bf16.mxu0 0
  %8872 = vmatmul.mubr.bf16.gmra.mrb[0].mxu0 %v5963
  %v8873 = vpop.f32.mrb[0].mxu0
  %v8874 = vadd.f32 %v8761, %v8873
  %v8875 = vpop.f32.mrb[0].mxu0
  %v8876 = vadd.f32 %v8763, %v8875
  %v8877 = vpop.f32.mrb[0].mxu0
  %v8878 = vadd.f32 %v8765, %v8877
  %v8879 = vpop.f32.mrb[0].mxu0
  %v8880 = vadd.f32 %v8767, %v8879
  %8881 = vmatprep.mubr.bf16.mxu0 0
  %8882 = vmatmul.mubr.bf16.gmra.mrb[0].mxu0 %v5966
  %v8883 = vpop.f32.mrb[0].mxu0
  %v8884 = vadd.f32 %v8771, %v8883
  %v8885 = vpop.f32.mrb[0].mxu0
  %v8886 = vadd.f32 %v8773, %v8885
  %v8887 = vpop.f32.mrb[0].mxu0
  %v8888 = vadd.f32 %v8775, %v8887
  %v8889 = vpop.f32.mrb[0].mxu0
  %v8890 = vadd.f32 %v8777, %v8889
  %8891 = vmatprep.mubr.bf16.mxu0 0
  %8892 = vmatmul.mubr.bf16.gmra.mrb[0].mxu0 %v5969
  %v8893 = vpop.f32.mrb[0].mxu0
  %v8894 = vadd.f32 %v8781, %v8893
  %v8895 = vpop.f32.mrb[0].mxu0
  %v8896 = vadd.f32 %v8783, %v8895
  %v8897 = vpop.f32.mrb[0].mxu0
  %v8898 = vadd.f32 %v8785, %v8897
  %v8899 = vpop.f32.mrb[0].mxu0
  %v8900 = vadd.f32 %v8787, %v8899
  %8901 = vmatprep.mubr.bf16.mxu0 0
  %8902 = vmatmul.mubr.bf16.gmra.mrb[0].mxu0 %v5972
  %v8903 = vpop.f32.mrb[0].mxu0
  %v8904 = vadd.f32 %v8791, %v8903
  %v8905 = vpop.f32.mrb[0].mxu0
  %v8906 = vadd.f32 %v8793, %v8905
  %v8907 = vpop.f32.mrb[0].mxu0
  %v8908 = vadd.f32 %v8795, %v8907
  %v8909 = vpop.f32.mrb[0].mxu0
  %v8910 = vadd.f32 %v8797, %v8909
  %8911 = vdwg.mxu0
  %v8912 = vmax.f32 %v7365, 0.0
  %v8913 = vmax.f32 %v7367, 0.0
  %v8914 = vmax.f32 %v8834, 0.0
  %v8915 = vmax.f32 %v8836, 0.0
  %v8916 = vmax.f32 %v7369, 0.0
  %v8917 = vmax.f32 %v7371, 0.0
  %v8918 = vmax.f32 %v8838, 0.0
  %v8919 = vmax.f32 %v8840, 0.0
  %v8920 = vmax.f32 %v7375, 0.0
  %v8921 = vmax.f32 %v7377, 0.0
  %v8922 = vmax.f32 %v8844, 0.0
  %v8923 = vmax.f32 %v8846, 0.0
  %v8924 = vmax.f32 %v7379, 0.0
  %v8925 = vmax.f32 %v7381, 0.0
  %v8926 = vmax.f32 %v8848, 0.0
  %v8927 = vmax.f32 %v8850, 0.0
  %v8928 = vmax.f32 %v7385, 0.0
  %v8929 = vmax.f32 %v7387, 0.0
  %v8930 = vmax.f32 %v8854, 0.0
  %v8931 = vmax.f32 %v8856, 0.0
  %v8932 = vmax.f32 %v7389, 0.0
  %v8933 = vmax.f32 %v7391, 0.0
  %v8934 = vmax.f32 %v8858, 0.0
  %v8935 = vmax.f32 %v8860, 0.0
  %v8936 = vmax.f32 %v7395, 0.0
  %v8937 = vmax.f32 %v7397, 0.0
  %v8938 = vmax.f32 %v8864, 0.0
  %v8939 = vmax.f32 %v8866, 0.0
  %v8940 = vmax.f32 %v7399, 0.0
  %v8941 = vmax.f32 %v7401, 0.0
  %v8942 = vmax.f32 %v8868, 0.0
  %v8943 = vmax.f32 %v8870, 0.0
  %v8944 = vmax.f32 %v7405, 0.0
  %v8945 = vmax.f32 %v7407, 0.0
  %v8946 = vmax.f32 %v8874, 0.0
  %v8947 = vmax.f32 %v8876, 0.0
  %v8948 = vmax.f32 %v7409, 0.0
  %v8949 = vmax.f32 %v7411, 0.0
  %v8950 = vmax.f32 %v8878, 0.0
  %v8951 = vmax.f32 %v8880, 0.0
  %v8952 = vmax.f32 %v7415, 0.0
  %v8953 = vmax.f32 %v7417, 0.0
  %v8954 = vmax.f32 %v8884, 0.0
  %v8955 = vmax.f32 %v8886, 0.0
  %v8956 = vmax.f32 %v7419, 0.0
  %v8957 = vmax.f32 %v7421, 0.0
  %v8958 = vmax.f32 %v8888, 0.0
  %v8959 = vmax.f32 %v8890, 0.0
  %v8960 = vmax.f32 %v7425, 0.0
  %v8961 = vmax.f32 %v7427, 0.0
  %v8962 = vmax.f32 %v8894, 0.0
  %v8963 = vmax.f32 %v8896, 0.0
  %v8964 = vmax.f32 %v7429, 0.0
  %v8965 = vmax.f32 %v7431, 0.0
  %v8966 = vmax.f32 %v8898, 0.0
  %v8967 = vmax.f32 %v8900, 0.0
  %v8968 = vmax.f32 %v7435, 0.0
  %v8969 = vmax.f32 %v7437, 0.0
  %v8970 = vmax.f32 %v8904, 0.0
  %v8971 = vmax.f32 %v8906, 0.0
  %v8972 = vmax.f32 %v7439, 0.0
  %v8973 = vmax.f32 %v7441, 0.0
  %v8974 = vmax.f32 %v8908, 0.0
  %v8975 = vmax.f32 %v8910, 0.0
  %8976 = vst [vmem:[%s3] sm:$0xff] %v8912
  %8977 = vst [vmem:[%s3 + $0x8] sm:$0xff] %v8913
  %8978 = vst [vmem:[%s3 + $0x10] sm:$0xff] %v8914
  %8979 = vst [vmem:[%s3 + $0x18] sm:$0xff] %v8915
  %8980 = vst [vmem:[%s3 + $0x20] sm:$0xff] %v8916
  %8981 = vst [vmem:[%s3 + $0x28] sm:$0xff] %v8917
  %8982 = vst [vmem:[%s3 + $0x30] sm:$0xff] %v8918
  %8983 = vst [vmem:[%s3 + $0x38] sm:$0xff] %v8919
  %8984 = vst [vmem:[%s3 + $0x40] sm:$0xff] %v8920
  %8985 = vst [vmem:[%s3 + $0x48] sm:$0xff] %v8921
  %8986 = vst [vmem:[%s3 + $0x50] sm:$0xff] %v8922
  %8987 = vst [vmem:[%s3 + $0x58] sm:$0xff] %v8923
  %8988 = vst [vmem:[%s3 + $0x60] sm:$0xff] %v8924
  %8989 = vst [vmem:[%s3 + $0x68] sm:$0xff] %v8925
  %8990 = vst [vmem:[%s3 + $0x70] sm:$0xff] %v8926
  %8991 = vst [vmem:[%s3 + $0x78] sm:$0xff] %v8927
  %8992 = vst [vmem:[%s3 + $0x80] sm:$0xff] %v8928
  %8993 = vst [vmem:[%s3 + $0x88] sm:$0xff] %v8929
  %8994 = vst [vmem:[%s3 + $0x90] sm:$0xff] %v8930
  %8995 = vst [vmem:[%s3 + $0x98] sm:$0xff] %v8931
  %8996 = vst [vmem:[%s3 + $0xa0] sm:$0xff] %v8932
  %8997 = vst [vmem:[%s3 + $0xa8] sm:$0xff] %v8933
  %8998 = vst [vmem:[%s3 + $0xb0] sm:$0xff] %v8934
  %8999 = vst [vmem:[%s3 + $0xb8] sm:$0xff] %v8935
  %9000 = vst [vmem:[%s3 + $0xc0] sm:$0xff] %v8936
  %9001 = vst [vmem:[%s3 + $0xc8] sm:$0xff] %v8937
  %9002 = vst [vmem:[%s3 + $0xd0] sm:$0xff] %v8938
  %9003 = vst [vmem:[%s3 + $0xd8] sm:$0xff] %v8939
  %9004 = vst [vmem:[%s3 + $0xe0] sm:$0xff] %v8940
  %9005 = vst [vmem:[%s3 + $0xe8] sm:$0xff] %v8941
  %9006 = vst [vmem:[%s3 + $0xf0] sm:$0xff] %v8942
  %9007 = vst [vmem:[%s3 + $0xf8] sm:$0xff] %v8943
  %9008 = vst [vmem:[%s3 + $0x100] sm:$0xff] %v8944
  %9009 = vst [vmem:[%s3 + $0x108] sm:$0xff] %v8945
  %9010 = vst [vmem:[%s3 + $0x110] sm:$0xff] %v8946
  %9011 = vst [vmem:[%s3 + $0x118] sm:$0xff] %v8947
  %9012 = vst [vmem:[%s3 + $0x120] sm:$0xff] %v8948
  %9013 = vst [vmem:[%s3 + $0x128] sm:$0xff] %v8949
  %9014 = vst [vmem:[%s3 + $0x130] sm:$0xff] %v8950
  %9015 = vst [vmem:[%s3 + $0x138] sm:$0xff] %v8951
  %9016 = vst [vmem:[%s3 + $0x140] sm:$0xff] %v8952
  %9017 = vst [vmem:[%s3 + $0x148] sm:$0xff] %v8953
  %9018 = vst [vmem:[%s3 + $0x150] sm:$0xff] %v8954
  %9019 = vst [vmem:[%s3 + $0x158] sm:$0xff] %v8955
  %9020 = vst [vmem:[%s3 + $0x160] sm:$0xff] %v8956
  %9021 = vst [vmem:[%s3 + $0x168] sm:$0xff] %v8957
  %9022 = vst [vmem:[%s3 + $0x170] sm:$0xff] %v8958
  %9023 = vst [vmem:[%s3 + $0x178] sm:$0xff] %v8959
  %9024 = vst [vmem:[%s3 + $0x180] sm:$0xff] %v8960
  %9025 = vst [vmem:[%s3 + $0x188] sm:$0xff] %v8961
  %9026 = vst [vmem:[%s3 + $0x190] sm:$0xff] %v8962
  %9027 = vst [vmem:[%s3 + $0x198] sm:$0xff] %v8963
  %9028 = vst [vmem:[%s3 + $0x1a0] sm:$0xff] %v8964
  %9029 = vst [vmem:[%s3 + $0x1a8] sm:$0xff] %v8965
  %9030 = vst [vmem:[%s3 + $0x1b0] sm:$0xff] %v8966
  %9031 = vst [vmem:[%s3 + $0x1b8] sm:$0xff] %v8967
  %9032 = vst [vmem:[%s3 + $0x1c0] sm:$0xff] %v8968
  %9033 = vst [vmem:[%s3 + $0x1c8] sm:$0xff] %v8969
  %9034 = vst [vmem:[%s3 + $0x1d0] sm:$0xff] %v8970
  %9035 = vst [vmem:[%s3 + $0x1d8] sm:$0xff] %v8971
  %9036 = vst [vmem:[%s3 + $0x1e0] sm:$0xff] %v8972
  %9037 = vst [vmem:[%s3 + $0x1e8] sm:$0xff] %v8973
  %9038 = vst [vmem:[%s3 + $0x1f0] sm:$0xff] %v8974
  %9039 = vst [vmem:[%s3 + $0x1f8] sm:$0xff] %v8975
  // Predicated region
  $region14: #{convnet_forward.7} parent=0 // pred_check
    _
  $region15: #{convnet_forward.7} parent=0 // pred_check_branch
    %9041 = sbr.rel (0) target = $region17
  $region16: #{convnet_forward.7} parent=0 // pred_region
    _
  $region17: #{convnet_forward.7} parent=0 // pred_fallthru
    _
  // Predicated region
  $region18: #{convnet_forward.7} parent=0 // pred_check
    _
  $region19: #{convnet_forward.7} parent=0 // pred_check_branch
    %9043 = sbr.rel (0) target = $region21
  $region20: #{convnet_forward.7} parent=0 // pred_region
    _
  $region21: #{convnet_forward.7} parent=0 // pred_fallthru
    _

</llo_original>
